<compile_context>
chip_gen: v7x
topology: tpu7x:2x2x1
jax: 0.10.0
libtpu: 0.0.40
codegen_flags: <defaults>
</compile_context>

<pallas_src>
import functools

import jax
import jax.numpy as jnp
from jax import lax
from jax.experimental import pallas as pl
from jax.experimental.pallas import tpu as pltpu

EPS = 1e-5
MXU_DTYPE = jnp.bfloat16      # matmul operand dtype (accumulation stays f32)


def _vmem_limit_bytes():
    """Scoped-VMEM budget: ~48 MiB on v7x (64 MiB phys), up to 96 MiB on v5e/v6e."""
    try:
        cap = int(pltpu.get_tpu_info().vmem_capacity_bytes)
        return max(32 << 20, min((cap * 3) // 4, 96 << 20))
    except Exception:
        return 48 << 20


_VMEM_LIMIT = _vmem_limit_bytes()


# ----------------------------- Pallas kernels ------------------------------ #

def _conv_bn_stats_kernel(a_ref, w_ref, vmask_ref, o_ref, sum_ref, ssq_ref,
                          acc_ref, *, offsets, tm):
    """Implicit-GEMM conv + fused per-(M tile) partial BN statistics.

    grid = (Cout tiles [parallel], M tiles [parallel], Cin tiles [arbitrary]).
      a_ref   : (tm + halo, tkc) f32  flat padded NHWC rows (+ halo rows)
      w_ref   : (k*k, tkc, tn)   bf16 weights per kernel position
      vmask   : (tm, 1)          f32  1.0 only at real conv-output rows
      o_ref   : (tm, tn)         f32  conv output tile
      sum/ssq : (1, 1, tn)       f32  per-M-tile partial channel stats
      acc_ref : (tm, tn)         f32  VMEM accumulator across Cin tiles
    """
    c = pl.program_id(2)
    n_c = pl.num_programs(2)

    for idx, off in enumerate(offsets):
        # Shifted window for kernel position (ki, kj): rows [off, off + tm).
        a_kk = a_ref[pl.ds(off, tm), :].astype(MXU_DTYPE)
        contrib = jnp.dot(a_kk, w_ref[idx], preferred_element_type=jnp.float32)
        if idx == 0:
            @pl.when(c == 0)
            def _(contrib=contrib):
                acc_ref[...] = contrib          # overwrite: no zero-fill pass

            @pl.when(c != 0)
            def _(contrib=contrib):
                acc_ref[...] += contrib
        else:
            acc_ref[...] += contrib

    @pl.when(c == n_c - 1)
    def _():
        y = acc_ref[...]
        o_ref[...] = y
        # Mask pseudo-rows that are not real outputs (pad / stride / tail rows)
        # so they do not bias the batch statistics.
        ym = y * vmask_ref[...]
        sum_ref[0] = jnp.sum(ym, axis=0, keepdims=True)
        ssq_ref[0] = jnp.sum(ym * y, axis=0, keepdims=True)


def _bn_apply_transpose_kernel(y_ref, scale_ref, shift_ref, o_ref):
    """BN apply fused with the channels-last -> channel-major transpose."""
    yn = y_ref[...] * scale_ref[...] + shift_ref[...]     # (Simg, tn)
    o_ref[0] = yn.T                                       # (tn, Simg) lane-dense


def _bn_apply_kernel(y_ref, scale_ref, shift_ref, o_ref):
    """Fallback tiled BN apply (very large spatial extents only)."""
    o_ref[...] = y_ref[...] * scale_ref[...] + shift_ref[...]


# ------------------------------ JAX wrapper -------------------------------- #

def _pick_tile(total, candidates):
    for c in candidates:
        if total % c == 0:
            return c
    return total


def _round_up(x, m):
    return ((x + m - 1) // m) * m


@functools.partial(jax.jit, static_argnames=("k_size", "stride", "padding"))
def conv2d_batchnorm(x, weight, bias, gamma, beta, *, k_size, stride, padding):
    """Forward of conv2DBatchNorm.  x: (N, Cin, H, W) f32 -> (N, Cout, Ho, Wo).

    `bias` is accepted for API parity but unused: a conv bias feeding a
    training-mode BatchNorm cancels exactly in (y - mean(y)).
    """
    del bias
    n, cin, h, w = x.shape
    cout = weight.shape[0]
    k, s, p = k_size, stride, padding

    hp, wp = h + 2 * p, w + 2 * p
    ho = (hp - k) // s + 1
    wo = (wp - k) // s + 1

    cinp = max(8, _round_up(cin, 8))
    coutp = _round_up(cout, 128)
    simg = _round_up(hp * wp, 128)           # per-image flat pseudo-row count
    m_rows = n * simg                        # pseudo-output rows (incl. garbage)
    count = float(n * ho * wo)               # real output rows (BN divisor)

    # ---- flat padded NHWC layout: row r = img*simg + i*wp + j --------------
    xn = jnp.transpose(x, (0, 2, 3, 1)).astype(jnp.float32)
    xn = jnp.pad(xn, ((0, 0), (p, p), (p, p), (0, cinp - cin)))
    xflat = xn.reshape(n, hp * wp, cinp)
    xflat = jnp.pad(xflat, ((0, 0), (0, simg - hp * wp), (0, 0)))
    xflat = xflat.reshape(m_rows, cinp)

    # ---- tiling -------------------------------------------------------------
    halo = (k - 1) * wp + (k - 1)            # max window shift (stride-1 grid)
    halo_p = _round_up(halo, 16) if halo else 0
    tm = min(1024, m_rows)                   # m_rows is a multiple of 128
    if tm < halo_p:                          # extremely wide images
        tm = min(_round_up(halo_p, 128), m_rows)
    n_mt = pl.cdiv(m_rows, tm)
    mp = n_mt * tm
    tn = _pick_tile(coutp, (512, 256, 128))  # few Cout tiles => A streamed few times
    tkc = _pick_tile(cinp, (512, 256, 128))
    n_c = cinp // tkc

    # ---- overlapping ("halo") M tiles: implicit GEMM, no HBM im2col ---------
    xext = jnp.pad(xflat, ((0, mp + tm - m_rows), (0, 0)))
    a_main = xext[:mp].reshape(n_mt, tm, cinp)
    if halo_p:
        a_halo = xext[tm:tm + mp].reshape(n_mt, tm, cinp)[:, :halo_p, :]
        a_ov = jnp.concatenate([a_main, a_halo], axis=1)
    else:
        a_ov = a_main

    # weights: (Cout, Cin, k, k) -> (k*k, cinp, coutp), bf16 for the MXU
    w3 = jnp.transpose(weight, (2, 3, 1, 0)).reshape(k * k, cin, cout)
    w3 = jnp.pad(w3, ((0, 0), (0, cinp - cin), (0, coutp - cout))).astype(MXU_DTYPE)

    # validity mask over pseudo rows (1.0 only at real conv output positions)
    idx = jnp.arange(simg, dtype=jnp.int32)
    ii, jj = idx // wp, idx % wp
    valid = ((idx < hp * wp)
             & (ii % s == 0) & (ii <= (ho - 1) * s)
             & (jj % s == 0) & (jj <= (wo - 1) * s))
    vmask = jnp.tile(valid.astype(jnp.float32), (n,))
    vmask = jnp.pad(vmask, (0, mp - m_rows)).reshape(mp, 1)

    offsets = tuple(ki * wp + kj for ki in range(k) for kj in range(k))

    # ---- pass 1: implicit-GEMM conv + fused partial BN statistics -----------
    conv_out, psum, pssq = pl.pallas_call(
        functools.partial(_conv_bn_stats_kernel, offsets=offsets, tm=tm),
        out_shape=(
            jax.ShapeDtypeStruct((mp, coutp), jnp.float32),
            jax.ShapeDtypeStruct((n_mt, 1, coutp), jnp.float32),
            jax.ShapeDtypeStruct((n_mt, 1, coutp), jnp.float32),
        ),
        grid_spec=pltpu.PrefetchScalarGridSpec(
            num_scalar_prefetch=0,
            grid=(coutp // tn, n_mt, n_c),
            in_specs=[
                # TODO(synk): add pipeline_mode=pl.Buffered(3) here if the A
                # DMA ever shows up as exposed latency on a profile.
                pl.BlockSpec((None, tm + halo_p, tkc), lambda j, i, c: (i, 0, c)),
                pl.BlockSpec((k * k, tkc, tn), lambda j, i, c: (0, c, j)),
                pl.BlockSpec((tm, 1), lambda j, i, c: (i, 0)),
            ],
            out_specs=[
                pl.BlockSpec((tm, tn), lambda j, i, c: (i, j)),
                pl.BlockSpec((1, 1, tn), lambda j, i, c: (i, 0, j)),
                pl.BlockSpec((1, 1, tn), lambda j, i, c: (i, 0, j)),
            ],
            scratch_shapes=[pltpu.VMEM((tm, tn), jnp.float32)],
        ),
        compiler_params=pltpu.CompilerParams(
            dimension_semantics=("parallel", "parallel", "arbitrary"),
            vmem_limit_bytes=_VMEM_LIMIT,
        ),
    )(a_ov, w3, vmask)

    # ---- BN scale/shift from the partial stats (tiny, plain JAX) ------------
    # TODO(synk): E[x^2]-E[x]^2 cancels badly when |mean| >> std; the per-tile
    # partials reduced here in f32 mitigate it, shifted sums would fix it.
    sum_c = jnp.sum(psum, axis=0)            # (1, coutp)
    ssq_c = jnp.sum(pssq, axis=0)
    mean = sum_c / count
    var = jnp.maximum(ssq_c / count - mean * mean, 0.0)     # biased variance
    inv_std = lax.rsqrt(var + EPS)
    g2 = jnp.pad(gamma.astype(jnp.float32), (0, coutp - cout)).reshape(1, coutp)
    b2 = jnp.pad(beta.astype(jnp.float32), (0, coutp - cout)).reshape(1, coutp)
    scale = g2 * inv_std
    shift = b2 - mean * scale

    # ---- pass 2: y*scale + shift, fused transpose to channel-major ----------
    tn2 = None
    for cand in (512, 256, 128):
        if coutp % cand == 0 and simg * cand * 4 * 4 <= _VMEM_LIMIT // 2:
            tn2 = cand
            break

    if tn2 is not None:
        bn3 = pl.pallas_call(
            _bn_apply_transpose_kernel,
            out_shape=jax.ShapeDtypeStruct((n, coutp, simg), jnp.float32),
            grid_spec=pltpu.PrefetchScalarGridSpec(
                num_scalar_prefetch=0,
                grid=(n, coutp // tn2),
                in_specs=[
                    pl.BlockSpec((simg, tn2), lambda b, j: (b, j)),
                    pl.BlockSpec((1, tn2), lambda b, j: (0, j)),
                    pl.BlockSpec((1, tn2), lambda b, j: (0, j)),
                ],
                out_specs=pl.BlockSpec((1, tn2, simg), lambda b, j: (b, j, 0)),
            ),
            compiler_params=pltpu.CompilerParams(
                dimension_semantics=("parallel", "parallel"),
                vmem_limit_bytes=_VMEM_LIMIT,
            ),
        )(conv_out, scale, shift)
        full = bn3[:, :cout, :hp * wp].reshape(n, cout, hp, wp)
    else:
        # Fallback for very large spatial extents: plain tiled normalize,
        # channel transpose left to XLA.
        tm2 = _pick_tile(mp, (1024, 512, 256, 128))
        tn2f = _pick_tile(coutp, (512, 256, 128))
        bn_flat = pl.pallas_call(
            _bn_apply_kernel,
            out_shape=jax.ShapeDtypeStruct((mp, coutp), jnp.float32),
            grid_spec=pltpu.PrefetchScalarGridSpec(
                num_scalar_prefetch=0,
                grid=(mp // tm2, coutp // tn2f),
                in_specs=[
                    pl.BlockSpec((tm2, tn2f), lambda i, j: (i, j)),
                    pl.BlockSpec((1, tn2f), lambda i, j: (0, j)),
                    pl.BlockSpec((1, tn2f), lambda i, j: (0, j)),
                ],
                out_specs=pl.BlockSpec((tm2, tn2f), lambda i, j: (i, j)),
            ),
            compiler_params=pltpu.CompilerParams(
                dimension_semantics=("parallel", "parallel"),
                vmem_limit_bytes=_VMEM_LIMIT,
            ),
        )(conv_out, scale, shift)
        full = bn_flat[:m_rows, :cout].reshape(n, simg, cout)[:, :hp * wp, :]
        full = full.reshape(n, hp, wp, cout).transpose(0, 3, 1, 2)

    # ---- final spatial crop / stride subsample (small XLA copy) -------------
    out = full[:, :, :(ho - 1) * s + 1:s, :(wo - 1) * s + 1:s]
    return out


# ------------------------------- reference --------------------------------- #

def _reference(x, weight, bias, gamma, beta, stride, padding):
    conv = lax.conv_general_dilated(
        x, weight, window_strides=(stride, stride),
        padding=[(padding, padding), (padding, padding)],
        dimension_numbers=("NCHW", "OIHW", "NCHW"),
        precision=lax.Precision.HIGHEST)
    conv = conv + bias[None, :, None, None]
    mean = conv.mean(axis=(0, 2, 3), keepdims=True)
    var = ((conv - mean) ** 2).mean(axis=(0, 2, 3), keepdims=True)
    return (conv - mean) * lax.rsqrt(var + EPS) * gamma[None, :, None, None] \
        + beta[None, :, None, None]


# --------------------------------- main ------------------------------------ #

if __name__ == "__main__":
    # conv2DBatchNorm(in_channels=4, n_filters=8, k_size=3, stride=1, padding=1)
    N, CIN, H, W = 2, 4, 16, 16
    COUT, K, STRIDE, PAD = 8, 3, 1, 1

    key = jax.random.PRNGKey(0)
    kx, kw, kb = jax.random.split(key, 3)

    x = jax.random.normal(kx, (N, CIN, H, W), jnp.float32)
    fan_in = CIN * K * K
    bound = 1.0 / (fan_in ** 0.5)
    weight = jax.random.uniform(kw, (COUT, CIN, K, K), jnp.float32, -bound, bound)
    bias = jax.random.uniform(kb, (COUT,), jnp.float32, -bound, bound)
    gamma = jnp.ones((COUT,), jnp.float32)
    beta = jnp.zeros((COUT,), jnp.float32)

    out = conv2d_batchnorm(x, weight, bias, gamma, beta,
                           k_size=K, stride=STRIDE, padding=PAD)
    out = jax.block_until_ready(out)

    ref = _reference(x, weight, bias, gamma, beta, STRIDE, PAD)
    assert out.shape == ref.shape == (N, COUT, H, W), (out.shape, ref.shape)

    # Loose check vs. the pure-f32 reference (kernel uses bf16 MXU operands).
    err = float(jnp.max(jnp.abs(out - ref)))
    assert jnp.allclose(out, ref, atol=5e-2, rtol=5e-2), err

    # Tight check vs. a reference that sees the same bf16 operand rounding.
    xq = x.astype(jnp.bfloat16).astype(jnp.float32)
    wq = weight.astype(jnp.bfloat16).astype(jnp.float32)
    ref_q = _reference(xq, wq, bias, gamma, beta, STRIDE, PAD)
    err_q = float(jnp.max(jnp.abs(out - ref_q)))
    assert jnp.allclose(out, ref_q, atol=1e-3, rtol=1e-3), err_q

    print("KERNEL_OK")
</pallas_src>

<mosaic_0001>
module attributes {stable_mosaic.version = 11 : i64} {
  func.func @_conv_bn_stats_kernel(%arg0: i32, %arg1: i32, %arg2: i32, %arg3: memref<1x816x8xf32, #tpu.memory_space<vmem>>, %arg4: memref<9x8x128xbf16, #tpu.memory_space<vmem>>, %arg5: memref<768x1xf32, #tpu.memory_space<vmem>>, %arg6: memref<768x128xf32, #tpu.memory_space<vmem>>, %arg7: memref<1x1x128xf32, #tpu.memory_space<vmem>>, %arg8: memref<1x1x128xf32, #tpu.memory_space<vmem>>, %arg9: memref<768x128xf32, #tpu.memory_space<vmem>>) attributes {dimension_semantics = [#tpu.dimension_semantics<parallel>, #tpu.dimension_semantics<parallel>, #tpu.dimension_semantics<arbitrary>], iteration_bounds = array<i64: 1, 1, 1>, scalar_prefetch = 0 : i64, scratch_operands = 1 : i64, tpu.core_type = #tpu.core_type<tc>, window_params = [{transform_indices = @transform_0, window_bounds = array<i64: 1, 816, 8>}, {transform_indices = @transform_1, window_bounds = array<i64: 9, 8, 128>}, {transform_indices = @transform_2, window_bounds = array<i64: 768, 1>}, {transform_indices = @transform_3, window_bounds = array<i64: 768, 128>}, {transform_indices = @transform_4, window_bounds = array<i64: 1, 1, 128>}, {transform_indices = @transform_5, window_bounds = array<i64: 1, 1, 128>}]} {
    %c0 = arith.constant 0 : index
    %c0_0 = arith.constant 0 : index
    %c0_1 = arith.constant 0 : index
    %0 = vector.load %arg3[%c0, %c0_0, %c0_1] : memref<1x816x8xf32, #tpu.memory_space<vmem>>, vector<1x768x8xf32>
    %1 = vector.shape_cast %0 : vector<1x768x8xf32> to vector<768x8xf32>
    %2 = arith.truncf %1 : vector<768x8xf32> to vector<768x8xbf16>
    %c0_2 = arith.constant 0 : index
    %c0_3 = arith.constant 0 : index
    %c0_4 = arith.constant 0 : index
    %3 = vector.load %arg4[%c0_2, %c0_3, %c0_4] : memref<9x8x128xbf16, #tpu.memory_space<vmem>>, vector<1x8x128xbf16>
    %4 = vector.shape_cast %3 : vector<1x8x128xbf16> to vector<8x128xbf16>
    %cst = arith.constant dense<0.000000e+00> : vector<768x128xf32>
    %5 = tpu.matmul %2, %4, %cst {dimension_numbers = #tpu.dot_dimension_numbers<[1], [0], [0], [1], [0, 0, 1, 1], [], []>} : vector<768x8xbf16>, vector<8x128xbf16>, vector<768x128xf32> -> vector<768x128xf32>
    %c0_i32 = arith.constant 0 : i32
    %6 = arith.cmpi eq, %arg2, %c0_i32 : i32
    %7 = arith.extui %6 : i1 to i32
    %c0_i32_5 = arith.constant 0 : i32
    %8 = arith.cmpi ne, %7, %c0_i32_5 : i32
    scf.if %8 {
      %c0_84 = arith.constant 0 : index
      %c0_85 = arith.constant 0 : index
      %87 = vector.load %arg9[%c0_84, %c0_85] : memref<768x128xf32, #tpu.memory_space<vmem>>, vector<768x128xf32>
      tpu.vector_store %arg9[%c0_84, %c0_85], %5 {strides = array<i32>} : memref<768x128xf32, #tpu.memory_space<vmem>>, vector<768x128xf32>,
    } else {
    }
    %c0_i32_6 = arith.constant 0 : i32
    %9 = arith.cmpi ne, %arg2, %c0_i32_6 : i32
    %10 = arith.extui %9 : i1 to i32
    %c0_i32_7 = arith.constant 0 : i32
    %11 = arith.cmpi ne, %10, %c0_i32_7 : i32
    scf.if %11 {
      %c0_84 = arith.constant 0 : index
      %c0_85 = arith.constant 0 : index
      %87 = vector.load %arg9[%c0_84, %c0_85] : memref<768x128xf32, #tpu.memory_space<vmem>>, vector<768x128xf32>
      %88 = arith.addf %87, %5 : vector<768x128xf32>
      %c0_86 = arith.constant 0 : index
      %c0_87 = arith.constant 0 : index
      %89 = vector.load %arg9[%c0_86, %c0_87] : memref<768x128xf32, #tpu.memory_space<vmem>>, vector<768x128xf32>
      tpu.vector_store %arg9[%c0_86, %c0_87], %88 {strides = array<i32>} : memref<768x128xf32, #tpu.memory_space<vmem>>, vector<768x128xf32>,
    } else {
    }
    %c0_8 = arith.constant 0 : index
    %c1 = arith.constant 1 : index
    %c0_9 = arith.constant 0 : index
    %12 = vector.load %arg3[%c0_8, %c1, %c0_9] : memref<1x816x8xf32, #tpu.memory_space<vmem>>, vector<1x768x8xf32>
    %13 = vector.shape_cast %12 : vector<1x768x8xf32> to vector<768x8xf32>
    %14 = arith.truncf %13 : vector<768x8xf32> to vector<768x8xbf16>
    %c1_10 = arith.constant 1 : index
    %c0_11 = arith.constant 0 : index
    %c0_12 = arith.constant 0 : index
    %15 = vector.load %arg4[%c1_10, %c0_11, %c0_12] : memref<9x8x128xbf16, #tpu.memory_space<vmem>>, vector<1x8x128xbf16>
    %16 = vector.shape_cast %15 : vector<1x8x128xbf16> to vector<8x128xbf16>
    %cst_13 = arith.constant dense<0.000000e+00> : vector<768x128xf32>
    %17 = tpu.matmul %14, %16, %cst_13 {dimension_numbers = #tpu.dot_dimension_numbers<[1], [0], [0], [1], [0, 0, 1, 1], [], []>} : vector<768x8xbf16>, vector<8x128xbf16>, vector<768x128xf32> -> vector<768x128xf32>
    %c0_14 = arith.constant 0 : index
    %c0_15 = arith.constant 0 : index
    %18 = vector.load %arg9[%c0_14, %c0_15] : memref<768x128xf32, #tpu.memory_space<vmem>>, vector<768x128xf32>
    %19 = arith.addf %18, %17 : vector<768x128xf32>
    %c0_16 = arith.constant 0 : index
    %c0_17 = arith.constant 0 : index
    %20 = vector.load %arg9[%c0_16, %c0_17] : memref<768x128xf32, #tpu.memory_space<vmem>>, vector<768x128xf32>
    tpu.vector_store %arg9[%c0_16, %c0_17], %19 {strides = array<i32>} : memref<768x128xf32, #tpu.memory_space<vmem>>, vector<768x128xf32>,
    %c0_18 = arith.constant 0 : index
    %c2 = arith.constant 2 : index
    %c0_19 = arith.constant 0 : index
    %21 = vector.load %arg3[%c0_18, %c2, %c0_19] : memref<1x816x8xf32, #tpu.memory_space<vmem>>, vector<1x768x8xf32>
    %22 = vector.shape_cast %21 : vector<1x768x8xf32> to vector<768x8xf32>
    %23 = arith.truncf %22 : vector<768x8xf32> to vector<768x8xbf16>
    %c2_20 = arith.constant 2 : index
    %c0_21 = arith.constant 0 : index
    %c0_22 = arith.constant 0 : index
    %24 = vector.load %arg4[%c2_20, %c0_21, %c0_22] : memref<9x8x128xbf16, #tpu.memory_space<vmem>>, vector<1x8x128xbf16>
    %25 = vector.shape_cast %24 : vector<1x8x128xbf16> to vector<8x128xbf16>
    %cst_23 = arith.constant dense<0.000000e+00> : vector<768x128xf32>
    %26 = tpu.matmul %23, %25, %cst_23 {dimension_numbers = #tpu.dot_dimension_numbers<[1], [0], [0], [1], [0, 0, 1, 1], [], []>} : vector<768x8xbf16>, vector<8x128xbf16>, vector<768x128xf32> -> vector<768x128xf32>
    %c0_24 = arith.constant 0 : index
    %c0_25 = arith.constant 0 : index
    %27 = vector.load %arg9[%c0_24, %c0_25] : memref<768x128xf32, #tpu.memory_space<vmem>>, vector<768x128xf32>
    %28 = arith.addf %27, %26 : vector<768x128xf32>
    %c0_26 = arith.constant 0 : index
    %c0_27 = arith.constant 0 : index
    %29 = vector.load %arg9[%c0_26, %c0_27] : memref<768x128xf32, #tpu.memory_space<vmem>>, vector<768x128xf32>
    tpu.vector_store %arg9[%c0_26, %c0_27], %28 {strides = array<i32>} : memref<768x128xf32, #tpu.memory_space<vmem>>, vector<768x128xf32>,
    %c0_28 = arith.constant 0 : index
    %c18 = arith.constant 18 : index
    %c0_29 = arith.constant 0 : index
    %30 = vector.load %arg3[%c0_28, %c18, %c0_29] : memref<1x816x8xf32, #tpu.memory_space<vmem>>, vector<1x768x8xf32>
    %31 = vector.shape_cast %30 : vector<1x768x8xf32> to vector<768x8xf32>
    %32 = arith.truncf %31 : vector<768x8xf32> to vector<768x8xbf16>
    %c3 = arith.constant 3 : index
    %c0_30 = arith.constant 0 : index
    %c0_31 = arith.constant 0 : index
    %33 = vector.load %arg4[%c3, %c0_30, %c0_31] : memref<9x8x128xbf16, #tpu.memory_space<vmem>>, vector<1x8x128xbf16>
    %34 = vector.shape_cast %33 : vector<1x8x128xbf16> to vector<8x128xbf16>
    %cst_32 = arith.constant dense<0.000000e+00> : vector<768x128xf32>
    %35 = tpu.matmul %32, %34, %cst_32 {dimension_numbers = #tpu.dot_dimension_numbers<[1], [0], [0], [1], [0, 0, 1, 1], [], []>} : vector<768x8xbf16>, vector<8x128xbf16>, vector<768x128xf32> -> vector<768x128xf32>
    %c0_33 = arith.constant 0 : index
    %c0_34 = arith.constant 0 : index
    %36 = vector.load %arg9[%c0_33, %c0_34] : memref<768x128xf32, #tpu.memory_space<vmem>>, vector<768x128xf32>
    %37 = arith.addf %36, %35 : vector<768x128xf32>
    %c0_35 = arith.constant 0 : index
    %c0_36 = arith.constant 0 : index
    %38 = vector.load %arg9[%c0_35, %c0_36] : memref<768x128xf32, #tpu.memory_space<vmem>>, vector<768x128xf32>
    tpu.vector_store %arg9[%c0_35, %c0_36], %37 {strides = array<i32>} : memref<768x128xf32, #tpu.memory_space<vmem>>, vector<768x128xf32>,
    %c0_37 = arith.constant 0 : index
    %c19 = arith.constant 19 : index
    %c0_38 = arith.constant 0 : index
    %39 = vector.load %arg3[%c0_37, %c19, %c0_38] : memref<1x816x8xf32, #tpu.memory_space<vmem>>, vector<1x768x8xf32>
    %40 = vector.shape_cast %39 : vector<1x768x8xf32> to vector<768x8xf32>
    %41 = arith.truncf %40 : vector<768x8xf32> to vector<768x8xbf16>
    %c4 = arith.constant 4 : index
    %c0_39 = arith.constant 0 : index
    %c0_40 = arith.constant 0 : index
    %42 = vector.load %arg4[%c4, %c0_39, %c0_40] : memref<9x8x128xbf16, #tpu.memory_space<vmem>>, vector<1x8x128xbf16>
    %43 = vector.shape_cast %42 : vector<1x8x128xbf16> to vector<8x128xbf16>
    %cst_41 = arith.constant dense<0.000000e+00> : vector<768x128xf32>
    %44 = tpu.matmul %41, %43, %cst_41 {dimension_numbers = #tpu.dot_dimension_numbers<[1], [0], [0], [1], [0, 0, 1, 1], [], []>} : vector<768x8xbf16>, vector<8x128xbf16>, vector<768x128xf32> -> vector<768x128xf32>
    %c0_42 = arith.constant 0 : index
    %c0_43 = arith.constant 0 : index
    %45 = vector.load %arg9[%c0_42, %c0_43] : memref<768x128xf32, #tpu.memory_space<vmem>>, vector<768x128xf32>
    %46 = arith.addf %45, %44 : vector<768x128xf32>
    %c0_44 = arith.constant 0 : index
    %c0_45 = arith.constant 0 : index
    %47 = vector.load %arg9[%c0_44, %c0_45] : memref<768x128xf32, #tpu.memory_space<vmem>>, vector<768x128xf32>
    tpu.vector_store %arg9[%c0_44, %c0_45], %46 {strides = array<i32>} : memref<768x128xf32, #tpu.memory_space<vmem>>, vector<768x128xf32>,
    %c0_46 = arith.constant 0 : index
    %c20 = arith.constant 20 : index
    %c0_47 = arith.constant 0 : index
    %48 = vector.load %arg3[%c0_46, %c20, %c0_47] : memref<1x816x8xf32, #tpu.memory_space<vmem>>, vector<1x768x8xf32>
    %49 = vector.shape_cast %48 : vector<1x768x8xf32> to vector<768x8xf32>
    %50 = arith.truncf %49 : vector<768x8xf32> to vector<768x8xbf16>
    %c5 = arith.constant 5 : index
    %c0_48 = arith.constant 0 : index
    %c0_49 = arith.constant 0 : index
    %51 = vector.load %arg4[%c5, %c0_48, %c0_49] : memref<9x8x128xbf16, #tpu.memory_space<vmem>>, vector<1x8x128xbf16>
    %52 = vector.shape_cast %51 : vector<1x8x128xbf16> to vector<8x128xbf16>
    %cst_50 = arith.constant dense<0.000000e+00> : vector<768x128xf32>
    %53 = tpu.matmul %50, %52, %cst_50 {dimension_numbers = #tpu.dot_dimension_numbers<[1], [0], [0], [1], [0, 0, 1, 1], [], []>} : vector<768x8xbf16>, vector<8x128xbf16>, vector<768x128xf32> -> vector<768x128xf32>
    %c0_51 = arith.constant 0 : index
    %c0_52 = arith.constant 0 : index
    %54 = vector.load %arg9[%c0_51, %c0_52] : memref<768x128xf32, #tpu.memory_space<vmem>>, vector<768x128xf32>
    %55 = arith.addf %54, %53 : vector<768x128xf32>
    %c0_53 = arith.constant 0 : index
    %c0_54 = arith.constant 0 : index
    %56 = vector.load %arg9[%c0_53, %c0_54] : memref<768x128xf32, #tpu.memory_space<vmem>>, vector<768x128xf32>
    tpu.vector_store %arg9[%c0_53, %c0_54], %55 {strides = array<i32>} : memref<768x128xf32, #tpu.memory_space<vmem>>, vector<768x128xf32>,
    %c0_55 = arith.constant 0 : index
    %c36 = arith.constant 36 : index
    %c0_56 = arith.constant 0 : index
    %57 = vector.load %arg3[%c0_55, %c36, %c0_56] : memref<1x816x8xf32, #tpu.memory_space<vmem>>, vector<1x768x8xf32>
    %58 = vector.shape_cast %57 : vector<1x768x8xf32> to vector<768x8xf32>
    %59 = arith.truncf %58 : vector<768x8xf32> to vector<768x8xbf16>
    %c6 = arith.constant 6 : index
    %c0_57 = arith.constant 0 : index
    %c0_58 = arith.constant 0 : index
    %60 = vector.load %arg4[%c6, %c0_57, %c0_58] : memref<9x8x128xbf16, #tpu.memory_space<vmem>>, vector<1x8x128xbf16>
    %61 = vector.shape_cast %60 : vector<1x8x128xbf16> to vector<8x128xbf16>
    %cst_59 = arith.constant dense<0.000000e+00> : vector<768x128xf32>
    %62 = tpu.matmul %59, %61, %cst_59 {dimension_numbers = #tpu.dot_dimension_numbers<[1], [0], [0], [1], [0, 0, 1, 1], [], []>} : vector<768x8xbf16>, vector<8x128xbf16>, vector<768x128xf32> -> vector<768x128xf32>
    %c0_60 = arith.constant 0 : index
    %c0_61 = arith.constant 0 : index
    %63 = vector.load %arg9[%c0_60, %c0_61] : memref<768x128xf32, #tpu.memory_space<vmem>>, vector<768x128xf32>
    %64 = arith.addf %63, %62 : vector<768x128xf32>
    %c0_62 = arith.constant 0 : index
    %c0_63 = arith.constant 0 : index
    %65 = vector.load %arg9[%c0_62, %c0_63] : memref<768x128xf32, #tpu.memory_space<vmem>>, vector<768x128xf32>
    tpu.vector_store %arg9[%c0_62, %c0_63], %64 {strides = array<i32>} : memref<768x128xf32, #tpu.memory_space<vmem>>, vector<768x128xf32>,
    %c0_64 = arith.constant 0 : index
    %c37 = arith.constant 37 : index
    %c0_65 = arith.constant 0 : index
    %66 = vector.load %arg3[%c0_64, %c37, %c0_65] : memref<1x816x8xf32, #tpu.memory_space<vmem>>, vector<1x768x8xf32>
    %67 = vector.shape_cast %66 : vector<1x768x8xf32> to vector<768x8xf32>
    %68 = arith.truncf %67 : vector<768x8xf32> to vector<768x8xbf16>
    %c7 = arith.constant 7 : index
    %c0_66 = arith.constant 0 : index
    %c0_67 = arith.constant 0 : index
    %69 = vector.load %arg4[%c7, %c0_66, %c0_67] : memref<9x8x128xbf16, #tpu.memory_space<vmem>>, vector<1x8x128xbf16>
    %70 = vector.shape_cast %69 : vector<1x8x128xbf16> to vector<8x128xbf16>
    %cst_68 = arith.constant dense<0.000000e+00> : vector<768x128xf32>
    %71 = tpu.matmul %68, %70, %cst_68 {dimension_numbers = #tpu.dot_dimension_numbers<[1], [0], [0], [1], [0, 0, 1, 1], [], []>} : vector<768x8xbf16>, vector<8x128xbf16>, vector<768x128xf32> -> vector<768x128xf32>
    %c0_69 = arith.constant 0 : index
    %c0_70 = arith.constant 0 : index
    %72 = vector.load %arg9[%c0_69, %c0_70] : memref<768x128xf32, #tpu.memory_space<vmem>>, vector<768x128xf32>
    %73 = arith.addf %72, %71 : vector<768x128xf32>
    %c0_71 = arith.constant 0 : index
    %c0_72 = arith.constant 0 : index
    %74 = vector.load %arg9[%c0_71, %c0_72] : memref<768x128xf32, #tpu.memory_space<vmem>>, vector<768x128xf32>
    tpu.vector_store %arg9[%c0_71, %c0_72], %73 {strides = array<i32>} : memref<768x128xf32, #tpu.memory_space<vmem>>, vector<768x128xf32>,
    %c0_73 = arith.constant 0 : index
    %c38 = arith.constant 38 : index
    %c0_74 = arith.constant 0 : index
    %75 = vector.load %arg3[%c0_73, %c38, %c0_74] : memref<1x816x8xf32, #tpu.memory_space<vmem>>, vector<1x768x8xf32>
    %76 = vector.shape_cast %75 : vector<1x768x8xf32> to vector<768x8xf32>
    %77 = arith.truncf %76 : vector<768x8xf32> to vector<768x8xbf16>
    %c8 = arith.constant 8 : index
    %c0_75 = arith.constant 0 : index
    %c0_76 = arith.constant 0 : index
    %78 = vector.load %arg4[%c8, %c0_75, %c0_76] : memref<9x8x128xbf16, #tpu.memory_space<vmem>>, vector<1x8x128xbf16>
    %79 = vector.shape_cast %78 : vector<1x8x128xbf16> to vector<8x128xbf16>
    %cst_77 = arith.constant dense<0.000000e+00> : vector<768x128xf32>
    %80 = tpu.matmul %77, %79, %cst_77 {dimension_numbers = #tpu.dot_dimension_numbers<[1], [0], [0], [1], [0, 0, 1, 1], [], []>} : vector<768x8xbf16>, vector<8x128xbf16>, vector<768x128xf32> -> vector<768x128xf32>
    %c0_78 = arith.constant 0 : index
    %c0_79 = arith.constant 0 : index
    %81 = vector.load %arg9[%c0_78, %c0_79] : memref<768x128xf32, #tpu.memory_space<vmem>>, vector<768x128xf32>
    %82 = arith.addf %81, %80 : vector<768x128xf32>
    %c0_80 = arith.constant 0 : index
    %c0_81 = arith.constant 0 : index
    %83 = vector.load %arg9[%c0_80, %c0_81] : memref<768x128xf32, #tpu.memory_space<vmem>>, vector<768x128xf32>
    tpu.vector_store %arg9[%c0_80, %c0_81], %82 {strides = array<i32>} : memref<768x128xf32, #tpu.memory_space<vmem>>, vector<768x128xf32>,
    %c0_i32_82 = arith.constant 0 : i32
    %84 = arith.cmpi eq, %arg2, %c0_i32_82 : i32
    %85 = arith.extui %84 : i1 to i32
    %c0_i32_83 = arith.constant 0 : i32
    %86 = arith.cmpi ne, %85, %c0_i32_83 : i32
    scf.if %86 {
      %c0_84 = arith.constant 0 : index
      %c0_85 = arith.constant 0 : index
      %87 = vector.load %arg9[%c0_84, %c0_85] : memref<768x128xf32, #tpu.memory_space<vmem>>, vector<768x128xf32>
      %c0_86 = arith.constant 0 : index
      %c0_87 = arith.constant 0 : index
      %88 = vector.load %arg6[%c0_86, %c0_87] : memref<768x128xf32, #tpu.memory_space<vmem>>, vector<768x128xf32>
      tpu.vector_store %arg6[%c0_86, %c0_87], %87 {strides = array<i32>} : memref<768x128xf32, #tpu.memory_space<vmem>>, vector<768x128xf32>,
      %c0_88 = arith.constant 0 : index
      %c0_89 = arith.constant 0 : index
      %89 = vector.load %arg5[%c0_88, %c0_89] : memref<768x1xf32, #tpu.memory_space<vmem>>, vector<768x1xf32>
      %90 = vector.broadcast %89 : vector<768x1xf32> to vector<768x128xf32>
      %91 = arith.mulf %87, %90 : vector<768x128xf32>
      %cst_90 = arith.constant dense<0.000000e+00> : vector<128xf32>
      %92 = vector.multi_reduction <add>, %91, %cst_90 [0] : vector<768x128xf32> to vector<128xf32>
      %93 = vector.shape_cast %92 : vector<128xf32> to vector<1x128xf32>
      %c0_91 = arith.constant 0 : index
      %c0_92 = arith.constant 0 : index
      %c0_93 = arith.constant 0 : index
      %94 = vector.load %arg7[%c0_91, %c0_92, %c0_93] : memref<1x1x128xf32, #tpu.memory_space<vmem>>, vector<1x1x128xf32>
      %95 = vector.shape_cast %94 : vector<1x1x128xf32> to vector<1x128xf32>
      %96 = vector.shape_cast %93 : vector<1x128xf32> to vector<1x1x128xf32>
      tpu.vector_store %arg7[%c0_91, %c0_92, %c0_93], %96 {strides = array<i32>} : memref<1x1x128xf32, #tpu.memory_space<vmem>>, vector<1x1x128xf32>,
      %97 = arith.mulf %91, %87 : vector<768x128xf32>
      %cst_94 = arith.constant dense<0.000000e+00> : vector<128xf32>
      %98 = vector.multi_reduction <add>, %97, %cst_94 [0] : vector<768x128xf32> to vector<128xf32>
      %99 = vector.shape_cast %98 : vector<128xf32> to vector<1x128xf32>
      %c0_95 = arith.constant 0 : index
      %c0_96 = arith.constant 0 : index
      %c0_97 = arith.constant 0 : index
      %100 = vector.load %arg8[%c0_95, %c0_96, %c0_97] : memref<1x1x128xf32, #tpu.memory_space<vmem>>, vector<1x1x128xf32>
      %101 = vector.shape_cast %100 : vector<1x1x128xf32> to vector<1x128xf32>
      %102 = vector.shape_cast %99 : vector<1x128xf32> to vector<1x1x128xf32>
      tpu.vector_store %arg8[%c0_95, %c0_96, %c0_97], %102 {strides = array<i32>} : memref<1x1x128xf32, #tpu.memory_space<vmem>>, vector<1x1x128xf32>,
    } else {
    }
    return
  }
  func.func @transform_0(%arg0: i32, %arg1: i32, %arg2: i32) -> (i32, i32, i32) {
    %c0_i32 = arith.constant 0 : i32
    %c0_i32_0 = arith.constant 0 : i32
    return %arg1, %c0_i32, %arg2 : i32, i32, i32
  }
  func.func @transform_1(%arg0: i32, %arg1: i32, %arg2: i32) -> (i32, i32, i32) {
    %c0_i32 = arith.constant 0 : i32
    %c0_i32_0 = arith.constant 0 : i32
    return %c0_i32, %arg2, %arg0 : i32, i32, i32
  }
  func.func @transform_2(%arg0: i32, %arg1: i32, %arg2: i32) -> (i32, i32) {
    %c0_i32 = arith.constant 0 : i32
    %c0_i32_0 = arith.constant 0 : i32
    return %arg1, %c0_i32 : i32, i32
  }
  func.func @transform_3(%arg0: i32, %arg1: i32, %arg2: i32) -> (i32, i32) {
    %c0_i32 = arith.constant 0 : i32
    return %arg1, %arg0 : i32, i32
  }
  func.func @transform_4(%arg0: i32, %arg1: i32, %arg2: i32) -> (i32, i32, i32) {
    %c0_i32 = arith.constant 0 : i32
    %c0_i32_0 = arith.constant 0 : i32
    return %arg1, %c0_i32, %arg0 : i32, i32, i32
  }
  func.func @transform_5(%arg0: i32, %arg1: i32, %arg2: i32) -> (i32, i32, i32) {
    %c0_i32 = arith.constant 0 : i32
    %c0_i32_0 = arith.constant 0 : i32
    return %arg1, %c0_i32, %arg0 : i32, i32, i32
  }
}

module attributes {stable_mosaic.version = 11 : i64} {
  func.func @_bn_apply_transpose_kernel(%arg0: i32, %arg1: i32, %arg2: memref<384x128xf32, #tpu.memory_space<vmem>>, %arg3: memref<1x128xf32, #tpu.memory_space<vmem>>, %arg4: memref<1x128xf32, #tpu.memory_space<vmem>>, %arg5: memref<1x128x384xf32, #tpu.memory_space<vmem>>) attributes {dimension_semantics = [#tpu.dimension_semantics<parallel>, #tpu.dimension_semantics<parallel>], iteration_bounds = array<i64: 2, 1>, scalar_prefetch = 0 : i64, scratch_operands = 0 : i64, tpu.core_type = #tpu.core_type<tc>, window_params = [{transform_indices = @transform_0, window_bounds = array<i64: 384, 128>}, {transform_indices = @transform_1, window_bounds = array<i64: 1, 128>}, {transform_indices = @transform_2, window_bounds = array<i64: 1, 128>}, {transform_indices = @transform_3, window_bounds = array<i64: 1, 128, 384>}]} {
    %c0 = arith.constant 0 : index
    %c0_0 = arith.constant 0 : index
    %0 = vector.load %arg2[%c0, %c0_0] : memref<384x128xf32, #tpu.memory_space<vmem>>, vector<384x128xf32>
    %c0_1 = arith.constant 0 : index
    %c0_2 = arith.constant 0 : index
    %1 = vector.load %arg3[%c0_1, %c0_2] : memref<1x128xf32, #tpu.memory_space<vmem>>, vector<1x128xf32>
    %2 = vector.broadcast %1 : vector<1x128xf32> to vector<384x128xf32>
    %3 = arith.mulf %0, %2 : vector<384x128xf32>
    %c0_3 = arith.constant 0 : index
    %c0_4 = arith.constant 0 : index
    %4 = vector.load %arg4[%c0_3, %c0_4] : memref<1x128xf32, #tpu.memory_space<vmem>>, vector<1x128xf32>
    %5 = vector.broadcast %4 : vector<1x128xf32> to vector<384x128xf32>
    %6 = arith.addf %3, %5 : vector<384x128xf32>
    %7 = tpu.transpose %6, [1, 0] : vector<384x128xf32> -> vector<128x384xf32>
    %c0_5 = arith.constant 0 : index
    %c0_6 = arith.constant 0 : index
    %c0_7 = arith.constant 0 : index
    %8 = vector.load %arg5[%c0_5, %c0_6, %c0_7] : memref<1x128x384xf32, #tpu.memory_space<vmem>>, vector<1x128x384xf32>
    %9 = vector.shape_cast %8 : vector<1x128x384xf32> to vector<128x384xf32>
    %10 = vector.shape_cast %7 : vector<128x384xf32> to vector<1x128x384xf32>
    tpu.vector_store %arg5[%c0_5, %c0_6, %c0_7], %10 {strides = array<i32>} : memref<1x128x384xf32, #tpu.memory_space<vmem>>, vector<1x128x384xf32>,
    return
  }
  func.func @transform_0(%arg0: i32, %arg1: i32) -> (i32, i32) {
    %c0_i32 = arith.constant 0 : i32
    return %arg0, %arg1 : i32, i32
  }
  func.func @transform_1(%arg0: i32, %arg1: i32) -> (i32, i32) {
    %c0_i32 = arith.constant 0 : i32
    %c0_i32_0 = arith.constant 0 : i32
    return %c0_i32, %arg1 : i32, i32
  }
  func.func @transform_2(%arg0: i32, %arg1: i32) -> (i32, i32) {
    %c0_i32 = arith.constant 0 : i32
    %c0_i32_0 = arith.constant 0 : i32
    return %c0_i32, %arg1 : i32, i32
  }
  func.func @transform_3(%arg0: i32, %arg1: i32) -> (i32, i32, i32) {
    %c0_i32 = arith.constant 0 : i32
    %c0_i32_0 = arith.constant 0 : i32
    return %arg0, %arg1, %c0_i32 : i32, i32, i32
  }
}

</mosaic_0001>

<llo_original>
// kernel: conv2d_batchnorm.3
$region0: #{conv2d_batchnorm.3}
  #allocation0 [shape = 'u32[]', space=smem, size = 0x4, offset = 0x4, fixed_abs, tag = 'smem constant byte address 0x4 - core index']
  #allocation1 [shape = 'u32[144,128]{1,0:T(1,128)}', space=vmem, size = 0x12000, scoped, tag = 'internal scratch']
  %s0 = inlined_call_operand.vmem [shape: f32[768,128], index: 0, kind: input, shape index: {}]
  %s1 = inlined_call_operand.vmem [shape: f32[1,128], index: 1, kind: input, shape index: {}]
  %s2 = inlined_call_operand.vmem [shape: f32[1,128], index: 2, kind: input, shape index: {}]
  %s3 = inlined_call_operand.vmem [shape: f32[2,128,384], index: 3, kind: output, shape index: {}]
  %s4 = sld [smem:[#allocation0]]
  $region45: #{conv2d_batchnorm.3} parent=0
    _
  %s6 = ssub.s32 1, %s4
  %s7 = scalar_select 0, %s6, %s4
  loop: start=0, step=1, limit=4
  $region2: #{conv2d_batchnorm.3} parent=0 // loop_pre_header
    _
  $region3: #{conv2d_batchnorm.3} parent=0 // loop_header
    %s9 = sphi 0, %s13
    %p10 = scmp.ge.s32.totalorder %s9, 4
    %s16 = sphi 0, %s28
    %s17 = sphi 0, %s24
    %s18 = sphi 0, %s16
    %s19 = sphi 0, %s17
    %s20 = sphi 0, %s18
    %s21 = sphi 0, %s19
    %s33 = sphi 0, %s35
    %s36 = sphi 0, %s33
    %s37 = sphi 0, %s36
    %s53 = sphi 0, %s37
    %s59 = sphi 0, %s61
    %s62 = sphi 0, %s59
    %s63 = sphi 0, %s62
    %s79 = sphi 0, %s63
    %s85 = sphi 0, %s87
    %s88 = sphi 0, %s85
    %s89 = sphi 0, %s88
    %s105 = sphi 0, %s89
    %s113 = sphi 0, %s115
    %s116 = sphi 0, %s113
    %s117 = sphi 0, %s116
    %s133 = sphi 0, %s117
  $region4: #{conv2d_batchnorm.3} parent=0 // loop_header_branch
    %12 = sbr.rel (%p10) target = $region8
  $region5: #{conv2d_batchnorm.3} parent=0 // loop_body
    %s14 = ssub.s32 %s9, 1
    %s15 = ssub.s32 %s9, 2
    %s22 = sadd.s32 1, %s17
    %p23 = scmp.ge.s32.totalorder %s22, 1
    %s24 = scalar_select %p23, 0, %s22
    %s25 = sadd.s32 1, %s16
    %s26 = scalar_select %p23, %s25, %s16
    %p27 = scmp.ge.s32.totalorder %s26, 2
    %s28 = scalar_select %p27, 0, %s26
    %s29 = ssub.s32 %s16, %s28
    %s30 = ssub.s32 %s17, %s24
    %s31 = sor.u32 %s29, %s30
    %p32 = scmp.eq.s32.totalorder %s31, 0
    %s34 = sadd.s32 %s33, 1
    %s35 = scalar_select %p32, %s33, %s34
    %p38 = pneg %p32
    %p39 = scmp.eq.s32.totalorder %s9, 1
    %p40 = por %p38, %p39
    %p41 = scmp.ne.s32.totalorder %s33, %s36
    %p42 = scmp.eq.s32.totalorder %s9, 0
    %p43 = por %p41, %p42
    %p44 = scmp.ne.s32.totalorder %s33, %s36
    %p45 = scmp.eq.s32.totalorder %s14, 1
    %p46 = por %p44, %p45
    %p47 = scmp.ne.s32.totalorder %s36, %s37
    %p48 = scmp.eq.s32.totalorder %s14, 0
    %p49 = por %p47, %p48
    %p50 = scmp.ne.s32.totalorder %s36, %s37
    %p51 = scmp.eq.s32.totalorder %s15, 1
    %p52 = por %p50, %p51
    %p54 = scmp.ne.s32.totalorder %s37, %s53
    %p55 = scmp.eq.s32.totalorder %s15, 0
    %p56 = por %p54, %p55
    %s57 = ssub.s32 %s17, %s24
    %p58 = scmp.eq.s32.totalorder %s57, 0
    %s60 = sadd.s32 %s59, 1
    %s61 = scalar_select %p58, %s59, %s60
    %p64 = pneg %p58
    %p65 = scmp.eq.s32.totalorder %s9, 1
    %p66 = por %p64, %p65
    %p67 = scmp.ne.s32.totalorder %s59, %s62
    %p68 = scmp.eq.s32.totalorder %s9, 0
    %p69 = por %p67, %p68
    %p70 = scmp.ne.s32.totalorder %s59, %s62
    %p71 = scmp.eq.s32.totalorder %s14, 1
    %p72 = por %p70, %p71
    %p73 = scmp.ne.s32.totalorder %s62, %s63
    %p74 = scmp.eq.s32.totalorder %s14, 0
    %p75 = por %p73, %p74
    %p76 = scmp.ne.s32.totalorder %s62, %s63
    %p77 = scmp.eq.s32.totalorder %s15, 1
    %p78 = por %p76, %p77
    %p80 = scmp.ne.s32.totalorder %s63, %s79
    %p81 = scmp.eq.s32.totalorder %s15, 0
    %p82 = por %p80, %p81
    %s83 = ssub.s32 %s17, %s24
    %p84 = scmp.eq.s32.totalorder %s83, 0
    %s86 = sadd.s32 %s85, 1
    %s87 = scalar_select %p84, %s85, %s86
    %p90 = pneg %p84
    %p91 = scmp.eq.s32.totalorder %s9, 1
    %p92 = por %p90, %p91
    %p93 = scmp.ne.s32.totalorder %s85, %s88
    %p94 = scmp.eq.s32.totalorder %s9, 0
    %p95 = por %p93, %p94
    %p96 = scmp.ne.s32.totalorder %s85, %s88
    %p97 = scmp.eq.s32.totalorder %s14, 1
    %p98 = por %p96, %p97
    %p99 = scmp.ne.s32.totalorder %s88, %s89
    %p100 = scmp.eq.s32.totalorder %s14, 0
    %p101 = por %p99, %p100
    %p102 = scmp.ne.s32.totalorder %s88, %s89
    %p103 = scmp.eq.s32.totalorder %s15, 1
    %p104 = por %p102, %p103
    %p106 = scmp.ne.s32.totalorder %s89, %s105
    %p107 = scmp.eq.s32.totalorder %s15, 0
    %p108 = por %p106, %p107
    %s109 = ssub.s32 %s16, %s28
    %s110 = ssub.s32 %s17, %s24
    %s111 = sor.u32 %s109, %s110
    %p112 = scmp.eq.s32.totalorder %s111, 0
    %s114 = sadd.s32 %s113, 1
    %s115 = scalar_select %p112, %s113, %s114
    %p118 = pneg %p112
    %p119 = scmp.eq.s32.totalorder %s9, 1
    %p120 = por %p118, %p119
    %p121 = scmp.ne.s32.totalorder %s113, %s116
    %p122 = scmp.eq.s32.totalorder %s9, 0
    %p123 = por %p121, %p122
    %p124 = scmp.ne.s32.totalorder %s113, %s116
    %p125 = scmp.eq.s32.totalorder %s14, 1
    %p126 = por %p124, %p125
    %p127 = scmp.ne.s32.totalorder %s116, %s117
    %p128 = scmp.eq.s32.totalorder %s14, 0
    %p129 = por %p127, %p128
    %p130 = scmp.ne.s32.totalorder %s116, %s117
    %p131 = scmp.eq.s32.totalorder %s15, 1
    %p132 = por %p130, %p131
    %p134 = scmp.ne.s32.totalorder %s117, %s133
    %p135 = scmp.eq.s32.totalorder %s15, 0
    %p136 = por %p134, %p135
    %p137 = scmp.le.s32.totalorder 1, %s9
    %p138 = scmp.lt.s32.totalorder %s9, 3
    %p139 = pnand %p137, %p138
    %p140 = pneg %p139
    // Predicated region
    $region9: #{conv2d_batchnorm.3} parent=5 // pred_check
      _
    $region10: #{conv2d_batchnorm.3} parent=5 // pred_check_branch
      %142 = sbr.rel (%p139) target = $region12
    $region11: #{conv2d_batchnorm.3} parent=5 // pred_region
      %s143 = ssub.s32 %s9, 1
      // Predicated region
      $region13: #{conv2d_batchnorm.3} parent=11 // pred_check
        %p144 = pneg %p75
      $region14: #{conv2d_batchnorm.3} parent=11 // pred_check_branch
        %146 = sbr.rel (%p144) target = $region16
      $region15: #{conv2d_batchnorm.3} parent=11 // pred_region
        %p147 = scmp.lt.s32.totalorder %s19, 0
        %s148 = scalar_select %p147, %s19, 0
        %s149 = scalar_lea.vmem %s1, %s148
      $region16: #{conv2d_batchnorm.3} parent=11 // pred_fallthru
        _
      // Predicated region
      $region17: #{conv2d_batchnorm.3} parent=11 // pred_check
        %p150 = pneg %p101
      $region18: #{conv2d_batchnorm.3} parent=11 // pred_check_branch
        %152 = sbr.rel (%p150) target = $region20
      $region19: #{conv2d_batchnorm.3} parent=11 // pred_region
        %p153 = scmp.lt.s32.totalorder %s19, 0
        %s154 = scalar_select %p153, %s19, 0
        %s155 = scalar_lea.vmem %s2, %s154
      $region20: #{conv2d_batchnorm.3} parent=11 // pred_fallthru
        _
    $region12: #{conv2d_batchnorm.3} parent=5 // pred_fallthru
      _
    %p156 = scmp.lt.s32.totalorder %s9, 2
    // Predicated region
    $region21: #{conv2d_batchnorm.3} parent=5 // pred_check
      %p157 = pneg %p156
    $region22: #{conv2d_batchnorm.3} parent=5 // pred_check_branch
      %159 = sbr.rel (%p157) target = $region24
    $region23: #{conv2d_batchnorm.3} parent=5 // pred_region
      // Predicated region
      $region25: #{conv2d_batchnorm.3} parent=23 // pred_check
        %p160 = pneg %p43
      $region26: #{conv2d_batchnorm.3} parent=23 // pred_check_branch
        %162 = sbr.rel (%p160) target = $region28
      $region27: #{conv2d_batchnorm.3} parent=23 // pred_region
        %s163 = smul.u32 48, %s16
        %p164 = scmp.lt.s32.totalorder %s163, 95
        %s165 = scalar_select %p164, %s163, 95
        %p166 = scmp.lt.s32.totalorder %s17, 0
        %s167 = scalar_select %p166, %s17, 0
        %s168 = sadd.s32 %s167, %s165
        %s169 = smul.addr %s168, 8
        %s170 = scalar_lea.vmem %s0, %s169
        %s171 = smul.u32 48, %s16
      $region28: #{conv2d_batchnorm.3} parent=23 // pred_fallthru
        _
    $region24: #{conv2d_batchnorm.3} parent=5 // pred_fallthru
      _
    %p172 = scmp.le.s32.totalorder 1, %s9
    %p173 = scmp.lt.s32.totalorder %s9, 3
    %p174 = pnand %p172, %p173
    %p175 = pneg %p174
    // Predicated region
    $region29: #{conv2d_batchnorm.3} parent=5 // pred_check
      _
    $region30: #{conv2d_batchnorm.3} parent=5 // pred_check_branch
      %177 = sbr.rel (%p174) target = $region32
    $region31: #{conv2d_batchnorm.3} parent=5 // pred_region
      %s178 = ssub.s32 %s9, 1
      %s179 = smul.u32 48, %s18
      %p180 = scmp.lt.s32.totalorder %s179, 95
      %s181 = scalar_select %p180, %s179, 95
      %p182 = scmp.lt.s32.totalorder %s19, 0
      %s183 = scalar_select %p182, %s19, 0
      %s184 = sadd.s32 %s183, %s181
      %s185 = smul.addr %s184, 8
      %s186 = scalar_lea.vmem %s0, %s185
      %p187 = pneg %p49
      %p188 = pneg %p46
      %p189 = scmp.lt.s32.totalorder %s19, 0
      %s190 = scalar_select %p189, %s19, 0
      %s191 = scalar_lea.vmem %s1, %s190
      %p192 = pneg %p75
      %p193 = pneg %p72
      %p194 = scmp.lt.s32.totalorder %s19, 0
      %s195 = scalar_select %p194, %s19, 0
      %s196 = scalar_lea.vmem %s2, %s195
      %p197 = pneg %p101
      %p198 = pneg %p98
      %p199 = pneg %p129
      %p200 = pneg %p126
      %s201 = smul.u32 16, %s19
      %p202 = scmp.lt.s32.totalorder %s18, 1
      %s203 = scalar_select %p202, %s18, 1
      %p204 = scmp.lt.s32.totalorder %s201, 15
      %s205 = scalar_select %p204, %s201, 15
      %s206 = smul.addr %s205, 3
      %s207 = smul.addr %s203, 48
      %s208 = sadd.s32 %s206, %s207
      %s209 = smul.addr %s208, 8
      %s210 = scalar_lea.vmem %s3, %s209
      %s211 = smul.u32 48, %s18
      %p212 = scmp.lt.s32.totalorder %s211, 95
      %s213 = scalar_select %p212, %s211, 95
      %p214 = scmp.lt.s32.totalorder %s19, 0
      %s215 = scalar_select %p214, %s19, 0
      %s216 = sadd.s32 %s215, %s213
      %s217 = smul.addr %s216, 8
      %s218 = scalar_lea.vmem %s0, %s217
      %s219 = smul.u32 48, %s18
      %p220 = scmp.lt.s32.totalorder %s19, 0
      %s221 = scalar_select %p220, %s19, 0
      %s222 = scalar_lea.vmem %s1, %s221
      %p223 = scmp.lt.s32.totalorder %s19, 0
      %s224 = scalar_select %p223, %s19, 0
      %s225 = scalar_lea.vmem %s2, %s224
      %s226 = smul.u32 16, %s19
      %p227 = scmp.lt.s32.totalorder %s18, 1
      %s228 = scalar_select %p227, %s18, 1
      %p229 = scmp.lt.s32.totalorder %s226, 15
      %s230 = scalar_select %p229, %s226, 15
      %s231 = smul.addr %s230, 3
      %s232 = smul.addr %s228, 48
      %s233 = sadd.s32 %s231, %s232
      %s234 = smul.addr %s233, 8
      %s235 = scalar_lea.vmem %s3, %s234
      %s236 = smul.u32 16, %s19
      %v237 = vld [vmem:[%s218] sm:$0xff]
      %v238 = vld [vmem:[%s218 + $0x8] sm:$0xff]
      %v239 = vld [vmem:[%s218 + $0x10] sm:$0xff]
      %v240 = vld [vmem:[%s218 + $0x18] sm:$0xff]
      %v241 = vld [vmem:[%s218 + $0x20] sm:$0xff]
      %v242 = vld [vmem:[%s218 + $0x28] sm:$0xff]
      %v243 = vld [vmem:[%s218 + $0x30] sm:$0xff]
      %v244 = vld [vmem:[%s218 + $0x38] sm:$0xff]
      %v245 = vld [vmem:[%s218 + $0x40] sm:$0xff]
      %v246 = vld [vmem:[%s218 + $0x48] sm:$0xff]
      %v247 = vld [vmem:[%s218 + $0x50] sm:$0xff]
      %v248 = vld [vmem:[%s218 + $0x58] sm:$0xff]
      %v249 = vld [vmem:[%s218 + $0x60] sm:$0xff]
      %v250 = vld [vmem:[%s218 + $0x68] sm:$0xff]
      %v251 = vld [vmem:[%s218 + $0x70] sm:$0xff]
      %v252 = vld [vmem:[%s218 + $0x78] sm:$0xff]
      %v253 = vld [vmem:[%s218 + $0x80] sm:$0xff]
      %v254 = vld [vmem:[%s218 + $0x88] sm:$0xff]
      %v255 = vld [vmem:[%s218 + $0x90] sm:$0xff]
      %v256 = vld [vmem:[%s218 + $0x98] sm:$0xff]
      %v257 = vld [vmem:[%s218 + $0xa0] sm:$0xff]
      %v258 = vld [vmem:[%s218 + $0xa8] sm:$0xff]
      %v259 = vld [vmem:[%s218 + $0xb0] sm:$0xff]
      %v260 = vld [vmem:[%s218 + $0xb8] sm:$0xff]
      %v261 = vld [vmem:[%s218 + $0xc0] sm:$0xff]
      %v262 = vld [vmem:[%s218 + $0xc8] sm:$0xff]
      %v263 = vld [vmem:[%s218 + $0xd0] sm:$0xff]
      %v264 = vld [vmem:[%s218 + $0xd8] sm:$0xff]
      %v265 = vld [vmem:[%s218 + $0xe0] sm:$0xff]
      %v266 = vld [vmem:[%s218 + $0xe8] sm:$0xff]
      %v267 = vld [vmem:[%s218 + $0xf0] sm:$0xff]
      %v268 = vld [vmem:[%s218 + $0xf8] sm:$0xff]
      %v269 = vld [vmem:[%s218 + $0x100] sm:$0xff]
      %v270 = vld [vmem:[%s218 + $0x108] sm:$0xff]
      %v271 = vld [vmem:[%s218 + $0x110] sm:$0xff]
      %v272 = vld [vmem:[%s218 + $0x118] sm:$0xff]
      %v273 = vld [vmem:[%s218 + $0x120] sm:$0xff]
      %v274 = vld [vmem:[%s218 + $0x128] sm:$0xff]
      %v275 = vld [vmem:[%s218 + $0x130] sm:$0xff]
      %v276 = vld [vmem:[%s218 + $0x138] sm:$0xff]
      %v277 = vld [vmem:[%s218 + $0x140] sm:$0xff]
      %v278 = vld [vmem:[%s218 + $0x148] sm:$0xff]
      %v279 = vld [vmem:[%s218 + $0x150] sm:$0xff]
      %v280 = vld [vmem:[%s218 + $0x158] sm:$0xff]
      %v281 = vld [vmem:[%s218 + $0x160] sm:$0xff]
      %v282 = vld [vmem:[%s218 + $0x168] sm:$0xff]
      %v283 = vld [vmem:[%s218 + $0x170] sm:$0xff]
      %v284 = vld [vmem:[%s218 + $0x178] sm:$0xff]
      %v285 = vld [vmem:[%s222] sm:$0x1]
      %v287 = vlaneseq
      %v288 = vshrl.u32 %v287, 7
      %v289 = vsub.s32 0, %v288
      %v290 = vrot.slane %v285, %v289
      %v292 = vmul.f32 %v237, %v290
      %v293 = vmul.f32 %v238, %v290
      %v294 = vmul.f32 %v239, %v290
      %v295 = vmul.f32 %v240, %v290
      %v296 = vmul.f32 %v241, %v290
      %v297 = vmul.f32 %v242, %v290
      %v298 = vmul.f32 %v243, %v290
      %v299 = vmul.f32 %v244, %v290
      %v300 = vmul.f32 %v245, %v290
      %v301 = vmul.f32 %v246, %v290
      %v302 = vmul.f32 %v247, %v290
      %v303 = vmul.f32 %v248, %v290
      %v304 = vmul.f32 %v249, %v290
      %v305 = vmul.f32 %v250, %v290
      %v306 = vmul.f32 %v251, %v290
      %v307 = vmul.f32 %v252, %v290
      %v308 = vmul.f32 %v253, %v290
      %v309 = vmul.f32 %v254, %v290
      %v310 = vmul.f32 %v255, %v290
      %v311 = vmul.f32 %v256, %v290
      %v312 = vmul.f32 %v257, %v290
      %v313 = vmul.f32 %v258, %v290
      %v314 = vmul.f32 %v259, %v290
      %v315 = vmul.f32 %v260, %v290
      %v316 = vmul.f32 %v261, %v290
      %v317 = vmul.f32 %v262, %v290
      %v318 = vmul.f32 %v263, %v290
      %v319 = vmul.f32 %v264, %v290
      %v320 = vmul.f32 %v265, %v290
      %v321 = vmul.f32 %v266, %v290
      %v322 = vmul.f32 %v267, %v290
      %v323 = vmul.f32 %v268, %v290
      %v324 = vmul.f32 %v269, %v290
      %v325 = vmul.f32 %v270, %v290
      %v326 = vmul.f32 %v271, %v290
      %v327 = vmul.f32 %v272, %v290
      %v328 = vmul.f32 %v273, %v290
      %v329 = vmul.f32 %v274, %v290
      %v330 = vmul.f32 %v275, %v290
      %v331 = vmul.f32 %v276, %v290
      %v332 = vmul.f32 %v277, %v290
      %v333 = vmul.f32 %v278, %v290
      %v334 = vmul.f32 %v279, %v290
      %v335 = vmul.f32 %v280, %v290
      %v336 = vmul.f32 %v281, %v290
      %v337 = vmul.f32 %v282, %v290
      %v338 = vmul.f32 %v283, %v290
      %v339 = vmul.f32 %v284, %v290
      %v340 = vld [vmem:[%s225] sm:$0x1]
      %v342 = vlaneseq
      %v343 = vshrl.u32 %v342, 7
      %v344 = vsub.s32 0, %v343
      %v345 = vrot.slane %v340, %v344
      %v347 = vadd.f32 %v292, %v345
      %v348 = vadd.f32 %v293, %v345
      %v349 = vadd.f32 %v294, %v345
      %v350 = vadd.f32 %v295, %v345
      %v351 = vadd.f32 %v296, %v345
      %v352 = vadd.f32 %v297, %v345
      %v353 = vadd.f32 %v298, %v345
      %v354 = vadd.f32 %v299, %v345
      %v355 = vadd.f32 %v300, %v345
      %v356 = vadd.f32 %v301, %v345
      %v357 = vadd.f32 %v302, %v345
      %v358 = vadd.f32 %v303, %v345
      %v359 = vadd.f32 %v304, %v345
      %v360 = vadd.f32 %v305, %v345
      %v361 = vadd.f32 %v306, %v345
      %v362 = vadd.f32 %v307, %v345
      %v363 = vadd.f32 %v308, %v345
      %v364 = vadd.f32 %v309, %v345
      %v365 = vadd.f32 %v310, %v345
      %v366 = vadd.f32 %v311, %v345
      %v367 = vadd.f32 %v312, %v345
      %v368 = vadd.f32 %v313, %v345
      %v369 = vadd.f32 %v314, %v345
      %v370 = vadd.f32 %v315, %v345
      %v371 = vadd.f32 %v316, %v345
      %v372 = vadd.f32 %v317, %v345
      %v373 = vadd.f32 %v318, %v345
      %v374 = vadd.f32 %v319, %v345
      %v375 = vadd.f32 %v320, %v345
      %v376 = vadd.f32 %v321, %v345
      %v377 = vadd.f32 %v322, %v345
      %v378 = vadd.f32 %v323, %v345
      %v379 = vadd.f32 %v324, %v345
      %v380 = vadd.f32 %v325, %v345
      %v381 = vadd.f32 %v326, %v345
      %v382 = vadd.f32 %v327, %v345
      %v383 = vadd.f32 %v328, %v345
      %v384 = vadd.f32 %v329, %v345
      %v385 = vadd.f32 %v330, %v345
      %v386 = vadd.f32 %v331, %v345
      %v387 = vadd.f32 %v332, %v345
      %v388 = vadd.f32 %v333, %v345
      %v389 = vadd.f32 %v334, %v345
      %v390 = vadd.f32 %v335, %v345
      %v391 = vadd.f32 %v336, %v345
      %v392 = vadd.f32 %v337, %v345
      %v393 = vadd.f32 %v338, %v345
      %v394 = vadd.f32 %v339, %v345
      %395 = vxpose.xlu0.b32.start [1/16] %v347, 128
      %396 = vxpose.xlu0.b32.cont [2/16] %v348, 128
      %397 = vxpose.xlu0.b32.cont [3/16] %v349, 128
      %398 = vxpose.xlu0.b32.cont [4/16] %v350, 128
      %399 = vxpose.xlu0.b32.cont [5/16] %v351, 128
      %400 = vxpose.xlu0.b32.cont [6/16] %v352, 128
      %401 = vxpose.xlu0.b32.cont [7/16] %v353, 128
      %402 = vxpose.xlu0.b32.cont [8/16] %v354, 128
      %403 = vxpose.xlu0.b32.cont [9/16] %v355, 128
      %404 = vxpose.xlu0.b32.cont [10/16] %v356, 128
      %405 = vxpose.xlu0.b32.cont [11/16] %v357, 128
      %406 = vxpose.xlu0.b32.cont [12/16] %v358, 128
      %407 = vxpose.xlu0.b32.cont [13/16] %v359, 128
      %408 = vxpose.xlu0.b32.cont [14/16] %v360, 128
      %409 = vxpose.xlu0.b32.cont [15/16] %v361, 128
      %410 = vxpose.xlu0.b32.end [16/16] %v362, 128
      %v411 = vpop.trf.xlu0
      %v412 = vpop.trf.xlu0
      %v413 = vpop.trf.xlu0
      %v414 = vpop.trf.xlu0
      %v415 = vpop.trf.xlu0
      %v416 = vpop.trf.xlu0
      %v417 = vpop.trf.xlu0
      %v418 = vpop.trf.xlu0
      %v419 = vpop.trf.xlu0
      %v420 = vpop.trf.xlu0
      %v421 = vpop.trf.xlu0
      %v422 = vpop.trf.xlu0
      %v423 = vpop.trf.xlu0
      %v424 = vpop.trf.xlu0
      %v425 = vpop.trf.xlu0
      %v426 = vpop.trf.xlu0
      %427 = vxpose.xlu0.b32.start [1/16] %v363, 128
      %428 = vxpose.xlu0.b32.cont [2/16] %v364, 128
      %429 = vxpose.xlu0.b32.cont [3/16] %v365, 128
      %430 = vxpose.xlu0.b32.cont [4/16] %v366, 128
      %431 = vxpose.xlu0.b32.cont [5/16] %v367, 128
      %432 = vxpose.xlu0.b32.cont [6/16] %v368, 128
      %433 = vxpose.xlu0.b32.cont [7/16] %v369, 128
      %434 = vxpose.xlu0.b32.cont [8/16] %v370, 128
      %435 = vxpose.xlu0.b32.cont [9/16] %v371, 128
      %436 = vxpose.xlu0.b32.cont [10/16] %v372, 128
      %437 = vxpose.xlu0.b32.cont [11/16] %v373, 128
      %438 = vxpose.xlu0.b32.cont [12/16] %v374, 128
      %439 = vxpose.xlu0.b32.cont [13/16] %v375, 128
      %440 = vxpose.xlu0.b32.cont [14/16] %v376, 128
      %441 = vxpose.xlu0.b32.cont [15/16] %v377, 128
      %442 = vxpose.xlu0.b32.end [16/16] %v378, 128
      %v443 = vpop.trf.xlu0
      %v444 = vpop.trf.xlu0
      %v445 = vpop.trf.xlu0
      %v446 = vpop.trf.xlu0
      %v447 = vpop.trf.xlu0
      %v448 = vpop.trf.xlu0
      %v449 = vpop.trf.xlu0
      %v450 = vpop.trf.xlu0
      %v451 = vpop.trf.xlu0
      %v452 = vpop.trf.xlu0
      %v453 = vpop.trf.xlu0
      %v454 = vpop.trf.xlu0
      %v455 = vpop.trf.xlu0
      %v456 = vpop.trf.xlu0
      %v457 = vpop.trf.xlu0
      %v458 = vpop.trf.xlu0
      %459 = vxpose.xlu0.b32.start [1/16] %v379, 128
      %460 = vxpose.xlu0.b32.cont [2/16] %v380, 128
      %461 = vxpose.xlu0.b32.cont [3/16] %v381, 128
      %462 = vxpose.xlu0.b32.cont [4/16] %v382, 128
      %463 = vxpose.xlu0.b32.cont [5/16] %v383, 128
      %464 = vxpose.xlu0.b32.cont [6/16] %v384, 128
      %465 = vxpose.xlu0.b32.cont [7/16] %v385, 128
      %466 = vxpose.xlu0.b32.cont [8/16] %v386, 128
      %467 = vxpose.xlu0.b32.cont [9/16] %v387, 128
      %468 = vxpose.xlu0.b32.cont [10/16] %v388, 128
      %469 = vxpose.xlu0.b32.cont [11/16] %v389, 128
      %470 = vxpose.xlu0.b32.cont [12/16] %v390, 128
      %471 = vxpose.xlu0.b32.cont [13/16] %v391, 128
      %472 = vxpose.xlu0.b32.cont [14/16] %v392, 128
      %473 = vxpose.xlu0.b32.cont [15/16] %v393, 128
      %474 = vxpose.xlu0.b32.end [16/16] %v394, 128
      %v475 = vpop.trf.xlu0
      %v476 = vpop.trf.xlu0
      %v477 = vpop.trf.xlu0
      %v478 = vpop.trf.xlu0
      %v479 = vpop.trf.xlu0
      %v480 = vpop.trf.xlu0
      %v481 = vpop.trf.xlu0
      %v482 = vpop.trf.xlu0
      %v483 = vpop.trf.xlu0
      %v484 = vpop.trf.xlu0
      %v485 = vpop.trf.xlu0
      %v486 = vpop.trf.xlu0
      %v487 = vpop.trf.xlu0
      %v488 = vpop.trf.xlu0
      %v489 = vpop.trf.xlu0
      %v490 = vpop.trf.xlu0
      %491 = vst [vmem:[%s235] sm:$0xff] %v411
      %492 = vst [vmem:[%s235 + $0x8] sm:$0xff] %v443
      %493 = vst [vmem:[%s235 + $0x10] sm:$0xff] %v475
      %494 = vst [vmem:[%s235 + $0x18] sm:$0xff] %v412
      %495 = vst [vmem:[%s235 + $0x20] sm:$0xff] %v444
      %496 = vst [vmem:[%s235 + $0x28] sm:$0xff] %v476
      %497 = vst [vmem:[%s235 + $0x30] sm:$0xff] %v413
      %498 = vst [vmem:[%s235 + $0x38] sm:$0xff] %v445
      %499 = vst [vmem:[%s235 + $0x40] sm:$0xff] %v477
      %500 = vst [vmem:[%s235 + $0x48] sm:$0xff] %v414
      %501 = vst [vmem:[%s235 + $0x50] sm:$0xff] %v446
      %502 = vst [vmem:[%s235 + $0x58] sm:$0xff] %v478
      %503 = vst [vmem:[%s235 + $0x60] sm:$0xff] %v415
      %504 = vst [vmem:[%s235 + $0x68] sm:$0xff] %v447
      %505 = vst [vmem:[%s235 + $0x70] sm:$0xff] %v479
      %506 = vst [vmem:[%s235 + $0x78] sm:$0xff] %v416
      %507 = vst [vmem:[%s235 + $0x80] sm:$0xff] %v448
      %508 = vst [vmem:[%s235 + $0x88] sm:$0xff] %v480
      %509 = vst [vmem:[%s235 + $0x90] sm:$0xff] %v417
      %510 = vst [vmem:[%s235 + $0x98] sm:$0xff] %v449
      %511 = vst [vmem:[%s235 + $0xa0] sm:$0xff] %v481
      %512 = vst [vmem:[%s235 + $0xa8] sm:$0xff] %v418
      %513 = vst [vmem:[%s235 + $0xb0] sm:$0xff] %v450
      %514 = vst [vmem:[%s235 + $0xb8] sm:$0xff] %v482
      %515 = vst [vmem:[%s235 + $0xc0] sm:$0xff] %v419
      %516 = vst [vmem:[%s235 + $0xc8] sm:$0xff] %v451
      %517 = vst [vmem:[%s235 + $0xd0] sm:$0xff] %v483
      %518 = vst [vmem:[%s235 + $0xd8] sm:$0xff] %v420
      %519 = vst [vmem:[%s235 + $0xe0] sm:$0xff] %v452
      %520 = vst [vmem:[%s235 + $0xe8] sm:$0xff] %v484
      %521 = vst [vmem:[%s235 + $0xf0] sm:$0xff] %v421
      %522 = vst [vmem:[%s235 + $0xf8] sm:$0xff] %v453
      %523 = vst [vmem:[%s235 + $0x100] sm:$0xff] %v485
      %524 = vst [vmem:[%s235 + $0x108] sm:$0xff] %v422
      %525 = vst [vmem:[%s235 + $0x110] sm:$0xff] %v454
      %526 = vst [vmem:[%s235 + $0x118] sm:$0xff] %v486
      %527 = vst [vmem:[%s235 + $0x120] sm:$0xff] %v423
      %528 = vst [vmem:[%s235 + $0x128] sm:$0xff] %v455
      %529 = vst [vmem:[%s235 + $0x130] sm:$0xff] %v487
      %530 = vst [vmem:[%s235 + $0x138] sm:$0xff] %v424
      %531 = vst [vmem:[%s235 + $0x140] sm:$0xff] %v456
      %532 = vst [vmem:[%s235 + $0x148] sm:$0xff] %v488
      %533 = vst [vmem:[%s235 + $0x150] sm:$0xff] %v425
      %534 = vst [vmem:[%s235 + $0x158] sm:$0xff] %v457
      %535 = vst [vmem:[%s235 + $0x160] sm:$0xff] %v489
      %536 = vst [vmem:[%s235 + $0x168] sm:$0xff] %v426
      %537 = vst [vmem:[%s235 + $0x170] sm:$0xff] %v458
      %538 = vst [vmem:[%s235 + $0x178] sm:$0xff] %v490
      %s539 = smul.u32 16, %s19
      %p540 = scmp.lt.s32.totalorder %s18, 1
      %s541 = scalar_select %p540, %s18, 1
      %p542 = scmp.lt.s32.totalorder %s539, 15
      %s543 = scalar_select %p542, %s539, 15
      %s544 = smul.addr %s543, 3
      %s545 = smul.addr %s541, 48
      %s546 = sadd.s32 %s544, %s545
      %s547 = smul.addr %s546, 8
      %s548 = scalar_lea.vmem %s3, %s547
      // Predicated region
      $region33: #{conv2d_batchnorm.3} parent=31 // pred_check
        %p549 = pneg %p126
      $region34: #{conv2d_batchnorm.3} parent=31 // pred_check_branch
        %551 = sbr.rel (%p549) target = $region36
      $region35: #{conv2d_batchnorm.3} parent=31 // pred_region
        %s552 = smul.u32 16, %s19
      $region36: #{conv2d_batchnorm.3} parent=31 // pred_fallthru
        _
    $region32: #{conv2d_batchnorm.3} parent=5 // pred_fallthru
      _
    %p553 = scmp.le.s32.totalorder 2, %s9
    // Predicated region
    $region37: #{conv2d_batchnorm.3} parent=5 // pred_check
      %p554 = pneg %p553
    $region38: #{conv2d_batchnorm.3} parent=5 // pred_check_branch
      %556 = sbr.rel (%p554) target = $region40
    $region39: #{conv2d_batchnorm.3} parent=5 // pred_region
      %s557 = ssub.s32 %s9, 2
      // Predicated region
      $region41: #{conv2d_batchnorm.3} parent=39 // pred_check
        %p558 = pneg %p132
      $region42: #{conv2d_batchnorm.3} parent=39 // pred_check_branch
        %560 = sbr.rel (%p558) target = $region44
      $region43: #{conv2d_batchnorm.3} parent=39 // pred_region
        %s561 = smul.u32 16, %s21
        %p562 = scmp.lt.s32.totalorder %s20, 1
        %s563 = scalar_select %p562, %s20, 1
        %p564 = scmp.lt.s32.totalorder %s561, 15
        %s565 = scalar_select %p564, %s561, 15
        %s566 = smul.addr %s565, 3
        %s567 = smul.addr %s563, 48
        %s568 = sadd.s32 %s566, %s567
        %s569 = smul.addr %s568, 8
        %s570 = scalar_lea.vmem %s3, %s569
      $region44: #{conv2d_batchnorm.3} parent=39 // pred_fallthru
        _
    $region40: #{conv2d_batchnorm.3} parent=5 // pred_fallthru
      _
  $region6: #{conv2d_batchnorm.3} parent=0 // loop_footer
    %s13 = sadd.s32 1, %s9
  $region7: #{conv2d_batchnorm.3} parent=0 // loop_footer_branch
    %8 = sbr.rel target = $region3
  $region8: #{conv2d_batchnorm.3} parent=0 // loop_exit
    _

// kernel: conv2d_batchnorm.2
$region0: #{conv2d_batchnorm.2}
  #allocation0 [shape = 'u32[]', space=smem, size = 0x4, offset = 0x4, fixed_abs, tag = 'smem constant byte address 0x4 - core index']
  #allocation1 [shape = 'u32[144,128]{1,0:T(1,128)}', space=vmem, size = 0x12000, scoped, tag = 'internal scratch']
  #allocation2 [shape = 'f32[768,128]{1,0:T(8,128)}', space=vmem, size = 0x60000, scoped, tag = 'scratch operand']
  %s0 = inlined_call_operand.vmem [shape: f32[1,816,8], index: 0, kind: input, shape index: {}]
  %s1 = inlined_call_operand.vmem [shape: bf16[9,8,128], index: 1, kind: input, shape index: {}]
  %s2 = inlined_call_operand.vmem [shape: f32[768,1], index: 2, kind: input, shape index: {}]
  %s3 = inlined_call_operand.vmem [shape: f32[768,128], index: 3, kind: output, shape index: {0}]
  %s4 = inlined_call_operand.vmem [shape: f32[1,1,128], index: 4, kind: output, shape index: {1}]
  %s5 = inlined_call_operand.vmem [shape: f32[1,1,128], index: 5, kind: output, shape index: {2}]
  %6 = xla_tuple %s3, %s4, %s5
  %s7 = sld [smem:[#allocation0]]
  $region50: #{conv2d_batchnorm.2} parent=0
    _
  %s9 = ssub.s32 1, %s7
  %s10 = scalar_select 0, %s9, %s7
  // Predicated region
  $region2: #{conv2d_batchnorm.2} parent=0 // pred_check
    _
  $region3: #{conv2d_batchnorm.2} parent=0 // pred_check_branch
    %12 = sbr.rel (0) target = $region5
  $region4: #{conv2d_batchnorm.2} parent=0 // pred_region
    _
  $region5: #{conv2d_batchnorm.2} parent=0 // pred_fallthru
    _
  // Predicated region
  $region6: #{conv2d_batchnorm.2} parent=0 // pred_check
    _
  $region7: #{conv2d_batchnorm.2} parent=0 // pred_check_branch
    %14 = sbr.rel (0) target = $region9
  $region8: #{conv2d_batchnorm.2} parent=0 // pred_region
    _
  $region9: #{conv2d_batchnorm.2} parent=0 // pred_fallthru
    _
  // Predicated region
  $region10: #{conv2d_batchnorm.2} parent=0 // pred_check
    _
  $region11: #{conv2d_batchnorm.2} parent=0 // pred_check_branch
    %16 = sbr.rel (0) target = $region13
  $region12: #{conv2d_batchnorm.2} parent=0 // pred_region
    _
  $region13: #{conv2d_batchnorm.2} parent=0 // pred_fallthru
    _
  %v18 = vld [vmem:[%s0] sm:$0xff]
  %v19 = vld [vmem:[%s0 + $0x8] sm:$0xff]
  %v20 = vld [vmem:[%s0 + $0x10] sm:$0xff]
  %v21 = vld [vmem:[%s0 + $0x18] sm:$0xff]
  %v22 = vld [vmem:[%s0 + $0x20] sm:$0xff]
  %v23 = vld [vmem:[%s0 + $0x28] sm:$0xff]
  %v24 = vld [vmem:[%s0 + $0x30] sm:$0xff]
  %v25 = vld [vmem:[%s0 + $0x38] sm:$0xff]
  %v26 = vld [vmem:[%s0 + $0x40] sm:$0xff]
  %v27 = vld [vmem:[%s0 + $0x48] sm:$0xff]
  %v28 = vld [vmem:[%s0 + $0x50] sm:$0xff]
  %v29 = vld [vmem:[%s0 + $0x58] sm:$0xff]
  %v30 = vld [vmem:[%s0 + $0x60] sm:$0xff]
  %v31 = vld [vmem:[%s0 + $0x68] sm:$0xff]
  %v32 = vld [vmem:[%s0 + $0x70] sm:$0xff]
  %v33 = vld [vmem:[%s0 + $0x78] sm:$0xff]
  %v34 = vld [vmem:[%s0 + $0x80] sm:$0xff]
  %v35 = vld [vmem:[%s0 + $0x88] sm:$0xff]
  %v36 = vld [vmem:[%s0 + $0x90] sm:$0xff]
  %v37 = vld [vmem:[%s0 + $0x98] sm:$0xff]
  %v38 = vld [vmem:[%s0 + $0xa0] sm:$0xff]
  %v39 = vld [vmem:[%s0 + $0xa8] sm:$0xff]
  %v40 = vld [vmem:[%s0 + $0xb0] sm:$0xff]
  %v41 = vld [vmem:[%s0 + $0xb8] sm:$0xff]
  %v42 = vld [vmem:[%s0 + $0xc0] sm:$0xff]
  %v43 = vld [vmem:[%s0 + $0xc8] sm:$0xff]
  %v44 = vld [vmem:[%s0 + $0xd0] sm:$0xff]
  %v45 = vld [vmem:[%s0 + $0xd8] sm:$0xff]
  %v46 = vld [vmem:[%s0 + $0xe0] sm:$0xff]
  %v47 = vld [vmem:[%s0 + $0xe8] sm:$0xff]
  %v48 = vld [vmem:[%s0 + $0xf0] sm:$0xff]
  %v49 = vld [vmem:[%s0 + $0xf8] sm:$0xff]
  %v50 = vld [vmem:[%s0 + $0x100] sm:$0xff]
  %v51 = vld [vmem:[%s0 + $0x108] sm:$0xff]
  %v52 = vld [vmem:[%s0 + $0x110] sm:$0xff]
  %v53 = vld [vmem:[%s0 + $0x118] sm:$0xff]
  %v54 = vld [vmem:[%s0 + $0x120] sm:$0xff]
  %v55 = vld [vmem:[%s0 + $0x128] sm:$0xff]
  %v56 = vld [vmem:[%s0 + $0x130] sm:$0xff]
  %v57 = vld [vmem:[%s0 + $0x138] sm:$0xff]
  %v58 = vld [vmem:[%s0 + $0x140] sm:$0xff]
  %v59 = vld [vmem:[%s0 + $0x148] sm:$0xff]
  %v60 = vld [vmem:[%s0 + $0x150] sm:$0xff]
  %v61 = vld [vmem:[%s0 + $0x158] sm:$0xff]
  %v62 = vld [vmem:[%s0 + $0x160] sm:$0xff]
  %v63 = vld [vmem:[%s0 + $0x168] sm:$0xff]
  %v64 = vld [vmem:[%s0 + $0x170] sm:$0xff]
  %v65 = vld [vmem:[%s0 + $0x178] sm:$0xff]
  %v66 = vld [vmem:[%s0 + $0x180] sm:$0xff]
  %v67 = vld [vmem:[%s0 + $0x188] sm:$0xff]
  %v68 = vld [vmem:[%s0 + $0x190] sm:$0xff]
  %v69 = vld [vmem:[%s0 + $0x198] sm:$0xff]
  %v70 = vld [vmem:[%s0 + $0x1a0] sm:$0xff]
  %v71 = vld [vmem:[%s0 + $0x1a8] sm:$0xff]
  %v72 = vld [vmem:[%s0 + $0x1b0] sm:$0xff]
  %v73 = vld [vmem:[%s0 + $0x1b8] sm:$0xff]
  %v74 = vld [vmem:[%s0 + $0x1c0] sm:$0xff]
  %v75 = vld [vmem:[%s0 + $0x1c8] sm:$0xff]
  %v76 = vld [vmem:[%s0 + $0x1d0] sm:$0xff]
  %v77 = vld [vmem:[%s0 + $0x1d8] sm:$0xff]
  %v78 = vld [vmem:[%s0 + $0x1e0] sm:$0xff]
  %v79 = vld [vmem:[%s0 + $0x1e8] sm:$0xff]
  %v80 = vld [vmem:[%s0 + $0x1f0] sm:$0xff]
  %v81 = vld [vmem:[%s0 + $0x1f8] sm:$0xff]
  %v82 = vld [vmem:[%s0 + $0x200] sm:$0xff]
  %v83 = vld [vmem:[%s0 + $0x208] sm:$0xff]
  %v84 = vld [vmem:[%s0 + $0x210] sm:$0xff]
  %v85 = vld [vmem:[%s0 + $0x218] sm:$0xff]
  %v86 = vld [vmem:[%s0 + $0x220] sm:$0xff]
  %v87 = vld [vmem:[%s0 + $0x228] sm:$0xff]
  %v88 = vld [vmem:[%s0 + $0x230] sm:$0xff]
  %v89 = vld [vmem:[%s0 + $0x238] sm:$0xff]
  %v90 = vld [vmem:[%s0 + $0x240] sm:$0xff]
  %v91 = vld [vmem:[%s0 + $0x248] sm:$0xff]
  %v92 = vld [vmem:[%s0 + $0x250] sm:$0xff]
  %v93 = vld [vmem:[%s0 + $0x258] sm:$0xff]
  %v94 = vld [vmem:[%s0 + $0x260] sm:$0xff]
  %v95 = vld [vmem:[%s0 + $0x268] sm:$0xff]
  %v96 = vld [vmem:[%s0 + $0x270] sm:$0xff]
  %v97 = vld [vmem:[%s0 + $0x278] sm:$0xff]
  %v98 = vld [vmem:[%s0 + $0x280] sm:$0xff]
  %v99 = vld [vmem:[%s0 + $0x288] sm:$0xff]
  %v100 = vld [vmem:[%s0 + $0x290] sm:$0xff]
  %v101 = vld [vmem:[%s0 + $0x298] sm:$0xff]
  %v102 = vld [vmem:[%s0 + $0x2a0] sm:$0xff]
  %v103 = vld [vmem:[%s0 + $0x2a8] sm:$0xff]
  %v104 = vld [vmem:[%s0 + $0x2b0] sm:$0xff]
  %v105 = vld [vmem:[%s0 + $0x2b8] sm:$0xff]
  %v106 = vld [vmem:[%s0 + $0x2c0] sm:$0xff]
  %v107 = vld [vmem:[%s0 + $0x2c8] sm:$0xff]
  %v108 = vld [vmem:[%s0 + $0x2d0] sm:$0xff]
  %v109 = vld [vmem:[%s0 + $0x2d8] sm:$0xff]
  %v110 = vld [vmem:[%s0 + $0x2e0] sm:$0xff]
  %v111 = vld [vmem:[%s0 + $0x2e8] sm:$0xff]
  %v112 = vld [vmem:[%s0 + $0x2f0] sm:$0xff]
  %v113 = vld [vmem:[%s0 + $0x2f8] sm:$0xff]
  %v114 = vpack.c.bf16 %v19, %v18
  %v115 = vpack.c.bf16 %v21, %v20
  %v116 = vpack.c.bf16 %v23, %v22
  %v117 = vpack.c.bf16 %v25, %v24
  %v118 = vpack.c.bf16 %v27, %v26
  %v119 = vpack.c.bf16 %v29, %v28
  %v120 = vpack.c.bf16 %v31, %v30
  %v121 = vpack.c.bf16 %v33, %v32
  %v122 = vpack.c.bf16 %v35, %v34
  %v123 = vpack.c.bf16 %v37, %v36
  %v124 = vpack.c.bf16 %v39, %v38
  %v125 = vpack.c.bf16 %v41, %v40
  %v126 = vpack.c.bf16 %v43, %v42
  %v127 = vpack.c.bf16 %v45, %v44
  %v128 = vpack.c.bf16 %v47, %v46
  %v129 = vpack.c.bf16 %v49, %v48
  %v130 = vpack.c.bf16 %v51, %v50
  %v131 = vpack.c.bf16 %v53, %v52
  %v132 = vpack.c.bf16 %v55, %v54
  %v133 = vpack.c.bf16 %v57, %v56
  %v134 = vpack.c.bf16 %v59, %v58
  %v135 = vpack.c.bf16 %v61, %v60
  %v136 = vpack.c.bf16 %v63, %v62
  %v137 = vpack.c.bf16 %v65, %v64
  %v138 = vpack.c.bf16 %v67, %v66
  %v139 = vpack.c.bf16 %v69, %v68
  %v140 = vpack.c.bf16 %v71, %v70
  %v141 = vpack.c.bf16 %v73, %v72
  %v142 = vpack.c.bf16 %v75, %v74
  %v143 = vpack.c.bf16 %v77, %v76
  %v144 = vpack.c.bf16 %v79, %v78
  %v145 = vpack.c.bf16 %v81, %v80
  %v146 = vpack.c.bf16 %v83, %v82
  %v147 = vpack.c.bf16 %v85, %v84
  %v148 = vpack.c.bf16 %v87, %v86
  %v149 = vpack.c.bf16 %v89, %v88
  %v150 = vpack.c.bf16 %v91, %v90
  %v151 = vpack.c.bf16 %v93, %v92
  %v152 = vpack.c.bf16 %v95, %v94
  %v153 = vpack.c.bf16 %v97, %v96
  %v154 = vpack.c.bf16 %v99, %v98
  %v155 = vpack.c.bf16 %v101, %v100
  %v156 = vpack.c.bf16 %v103, %v102
  %v157 = vpack.c.bf16 %v105, %v104
  %v158 = vpack.c.bf16 %v107, %v106
  %v159 = vpack.c.bf16 %v109, %v108
  %v160 = vpack.c.bf16 %v111, %v110
  %v161 = vpack.c.bf16 %v113, %v112
  %v162 = vld [vmem:[%s1] sm:$0xf]
  %vm163 = vcmask 64512
  %v165 = vsel %vm163, %v114, 0
  %v168 = vsel %vm163, %v115, 0
  %v171 = vsel %vm163, %v116, 0
  %v174 = vsel %vm163, %v117, 0
  %v177 = vsel %vm163, %v118, 0
  %v180 = vsel %vm163, %v119, 0
  %v183 = vsel %vm163, %v120, 0
  %v186 = vsel %vm163, %v121, 0
  %v189 = vsel %vm163, %v122, 0
  %v192 = vsel %vm163, %v123, 0
  %v195 = vsel %vm163, %v124, 0
  %v198 = vsel %vm163, %v125, 0
  %v201 = vsel %vm163, %v126, 0
  %v204 = vsel %vm163, %v127, 0
  %v207 = vsel %vm163, %v128, 0
  %v210 = vsel %vm163, %v129, 0
  %v213 = vsel %vm163, %v130, 0
  %v216 = vsel %vm163, %v131, 0
  %v219 = vsel %vm163, %v132, 0
  %v222 = vsel %vm163, %v133, 0
  %v225 = vsel %vm163, %v134, 0
  %v228 = vsel %vm163, %v135, 0
  %v231 = vsel %vm163, %v136, 0
  %v234 = vsel %vm163, %v137, 0
  %v237 = vsel %vm163, %v138, 0
  %v240 = vsel %vm163, %v139, 0
  %v243 = vsel %vm163, %v140, 0
  %v246 = vsel %vm163, %v141, 0
  %v249 = vsel %vm163, %v142, 0
  %v252 = vsel %vm163, %v143, 0
  %v255 = vsel %vm163, %v144, 0
  %v258 = vsel %vm163, %v145, 0
  %v261 = vsel %vm163, %v146, 0
  %v264 = vsel %vm163, %v147, 0
  %v267 = vsel %vm163, %v148, 0
  %v270 = vsel %vm163, %v149, 0
  %v273 = vsel %vm163, %v150, 0
  %v276 = vsel %vm163, %v151, 0
  %v279 = vsel %vm163, %v152, 0
  %v282 = vsel %vm163, %v153, 0
  %v285 = vsel %vm163, %v154, 0
  %v288 = vsel %vm163, %v155, 0
  %v291 = vsel %vm163, %v156, 0
  %v294 = vsel %vm163, %v157, 0
  %v297 = vsel %vm163, %v158, 0
  %v300 = vsel %vm163, %v159, 0
  %v303 = vsel %vm163, %v160, 0
  %v306 = vsel %vm163, %v161, 0
  %vm308 = vcmask 1043456
  %v310 = vsel %vm308, %v162, 0
  %312 = vmatprep.subr.bf16.mxu0 0
  %313 = vmatpush1.bf16.msra.mxu0 %v310
  %314 = vmatprep.subr.bf16.mxu0 0
  %315 = vmatpush1.bf16.msra.mxu0 0
  %316 = vmatprep.subr.bf16.mxu0 0
  %317 = vmatpush1.bf16.msra.mxu0 0
  %318 = vmatprep.subr.bf16.mxu0 0
  %319 = vmatpush1.bf16.msra.mxu0 0
  %320 = vmatprep.subr.bf16.mxu0 0
  %321 = vmatpush1.bf16.msra.mxu0 0
  %322 = vmatprep.subr.bf16.mxu0 0
  %323 = vmatpush1.bf16.msra.mxu0 0
  %324 = vmatprep.subr.bf16.mxu0 0
  %325 = vmatpush1.bf16.msra.mxu0 0
  %326 = vmatprep.subr.bf16.mxu0 0
  %327 = vmatpush1.bf16.msra.mxu0 0
  %328 = vmatprep.subr.bf16.mxu0 0
  %329 = vmatpush1.bf16.msra.mxu0 0
  %330 = vmatprep.subr.bf16.mxu0 0
  %331 = vmatpush1.bf16.msra.mxu0 0
  %332 = vmatprep.subr.bf16.mxu0 0
  %333 = vmatpush1.bf16.msra.mxu0 0
  %334 = vmatprep.subr.bf16.mxu0 0
  %335 = vmatpush1.bf16.msra.mxu0 0
  %336 = vmatprep.subr.bf16.mxu0 0
  %337 = vmatpush1.bf16.msra.mxu0 0
  %338 = vmatprep.subr.bf16.mxu0 0
  %339 = vmatpush1.bf16.msra.mxu0 0
  %340 = vmatprep.subr.bf16.mxu0 0
  %341 = vmatpush1.bf16.msra.mxu0 0
  %342 = vmatprep.subr.bf16.mxu0 0
  %343 = vmatpush1.bf16.msra.mxu0 0
  %344 = vmatprep.mubr.bf16.mxu0 0
  %345 = vmatmul.mubr.bf16.gmra.mrb[0].mxu0 %v165
  %v346 = vpop.f32.mrb[0].mxu0
  %v347 = vadd.f32 0.0, %v346
  %v348 = vpop.f32.mrb[0].mxu0
  %v349 = vpop.f32.mrb[0].mxu0
  %v350 = vadd.f32 0.0, %v349
  %v351 = vpop.f32.mrb[0].mxu0
  %352 = vmatprep.mubr.bf16.mxu0 0
  %353 = vmatmul.mubr.bf16.gmra.mrb[0].mxu0 %v168
  %v354 = vpop.f32.mrb[0].mxu0
  %v355 = vadd.f32 0.0, %v354
  %v356 = vpop.f32.mrb[0].mxu0
  %v357 = vpop.f32.mrb[0].mxu0
  %v358 = vadd.f32 0.0, %v357
  %v359 = vpop.f32.mrb[0].mxu0
  %360 = vmatprep.mubr.bf16.mxu0 0
  %361 = vmatmul.mubr.bf16.gmra.mrb[0].mxu0 %v171
  %v362 = vpop.f32.mrb[0].mxu0
  %v363 = vadd.f32 0.0, %v362
  %v364 = vpop.f32.mrb[0].mxu0
  %v365 = vpop.f32.mrb[0].mxu0
  %v366 = vadd.f32 0.0, %v365
  %v367 = vpop.f32.mrb[0].mxu0
  %368 = vmatprep.mubr.bf16.mxu0 0
  %369 = vmatmul.mubr.bf16.gmra.mrb[0].mxu0 %v174
  %v370 = vpop.f32.mrb[0].mxu0
  %v371 = vadd.f32 0.0, %v370
  %v372 = vpop.f32.mrb[0].mxu0
  %v373 = vpop.f32.mrb[0].mxu0
  %v374 = vadd.f32 0.0, %v373
  %v375 = vpop.f32.mrb[0].mxu0
  %376 = vmatprep.mubr.bf16.mxu0 0
  %377 = vmatmul.mubr.bf16.gmra.mrb[0].mxu0 %v177
  %v378 = vpop.f32.mrb[0].mxu0
  %v379 = vadd.f32 0.0, %v378
  %v380 = vpop.f32.mrb[0].mxu0
  %v381 = vpop.f32.mrb[0].mxu0
  %v382 = vadd.f32 0.0, %v381
  %v383 = vpop.f32.mrb[0].mxu0
  %384 = vmatprep.mubr.bf16.mxu0 0
  %385 = vmatmul.mubr.bf16.gmra.mrb[0].mxu0 %v180
  %v386 = vpop.f32.mrb[0].mxu0
  %v387 = vadd.f32 0.0, %v386
  %v388 = vpop.f32.mrb[0].mxu0
  %v389 = vpop.f32.mrb[0].mxu0
  %v390 = vadd.f32 0.0, %v389
  %v391 = vpop.f32.mrb[0].mxu0
  %392 = vmatprep.mubr.bf16.mxu0 0
  %393 = vmatmul.mubr.bf16.gmra.mrb[0].mxu0 %v183
  %v394 = vpop.f32.mrb[0].mxu0
  %v395 = vadd.f32 0.0, %v394
  %v396 = vpop.f32.mrb[0].mxu0
  %v397 = vpop.f32.mrb[0].mxu0
  %v398 = vadd.f32 0.0, %v397
  %v399 = vpop.f32.mrb[0].mxu0
  %400 = vmatprep.mubr.bf16.mxu0 0
  %401 = vmatmul.mubr.bf16.gmra.mrb[0].mxu0 %v186
  %v402 = vpop.f32.mrb[0].mxu0
  %v403 = vadd.f32 0.0, %v402
  %v404 = vpop.f32.mrb[0].mxu0
  %v405 = vpop.f32.mrb[0].mxu0
  %v406 = vadd.f32 0.0, %v405
  %v407 = vpop.f32.mrb[0].mxu0
  %408 = vmatprep.mubr.bf16.mxu0 0
  %409 = vmatmul.mubr.bf16.gmra.mrb[0].mxu0 %v189
  %v410 = vpop.f32.mrb[0].mxu0
  %v411 = vadd.f32 0.0, %v410
  %v412 = vpop.f32.mrb[0].mxu0
  %v413 = vpop.f32.mrb[0].mxu0
  %v414 = vadd.f32 0.0, %v413
  %v415 = vpop.f32.mrb[0].mxu0
  %416 = vmatprep.mubr.bf16.mxu0 0
  %417 = vmatmul.mubr.bf16.gmra.mrb[0].mxu0 %v192
  %v418 = vpop.f32.mrb[0].mxu0
  %v419 = vadd.f32 0.0, %v418
  %v420 = vpop.f32.mrb[0].mxu0
  %v421 = vpop.f32.mrb[0].mxu0
  %v422 = vadd.f32 0.0, %v421
  %v423 = vpop.f32.mrb[0].mxu0
  %424 = vmatprep.mubr.bf16.mxu0 0
  %425 = vmatmul.mubr.bf16.gmra.mrb[0].mxu0 %v195
  %v426 = vpop.f32.mrb[0].mxu0
  %v427 = vadd.f32 0.0, %v426
  %v428 = vpop.f32.mrb[0].mxu0
  %v429 = vpop.f32.mrb[0].mxu0
  %v430 = vadd.f32 0.0, %v429
  %v431 = vpop.f32.mrb[0].mxu0
  %432 = vmatprep.mubr.bf16.mxu0 0
  %433 = vmatmul.mubr.bf16.gmra.mrb[0].mxu0 %v198
  %v434 = vpop.f32.mrb[0].mxu0
  %v435 = vadd.f32 0.0, %v434
  %v436 = vpop.f32.mrb[0].mxu0
  %v437 = vpop.f32.mrb[0].mxu0
  %v438 = vadd.f32 0.0, %v437
  %v439 = vpop.f32.mrb[0].mxu0
  %440 = vmatprep.mubr.bf16.mxu0 0
  %441 = vmatmul.mubr.bf16.gmra.mrb[0].mxu0 %v201
  %v442 = vpop.f32.mrb[0].mxu0
  %v443 = vadd.f32 0.0, %v442
  %v444 = vpop.f32.mrb[0].mxu0
  %v445 = vpop.f32.mrb[0].mxu0
  %v446 = vadd.f32 0.0, %v445
  %v447 = vpop.f32.mrb[0].mxu0
  %448 = vmatprep.mubr.bf16.mxu0 0
  %449 = vmatmul.mubr.bf16.gmra.mrb[0].mxu0 %v204
  %v450 = vpop.f32.mrb[0].mxu0
  %v451 = vadd.f32 0.0, %v450
  %v452 = vpop.f32.mrb[0].mxu0
  %v453 = vpop.f32.mrb[0].mxu0
  %v454 = vadd.f32 0.0, %v453
  %v455 = vpop.f32.mrb[0].mxu0
  %456 = vmatprep.mubr.bf16.mxu0 0
  %457 = vmatmul.mubr.bf16.gmra.mrb[0].mxu0 %v207
  %v458 = vpop.f32.mrb[0].mxu0
  %v459 = vadd.f32 0.0, %v458
  %v460 = vpop.f32.mrb[0].mxu0
  %v461 = vpop.f32.mrb[0].mxu0
  %v462 = vadd.f32 0.0, %v461
  %v463 = vpop.f32.mrb[0].mxu0
  %464 = vmatprep.mubr.bf16.mxu0 0
  %465 = vmatmul.mubr.bf16.gmra.mrb[0].mxu0 %v210
  %v466 = vpop.f32.mrb[0].mxu0
  %v467 = vadd.f32 0.0, %v466
  %v468 = vpop.f32.mrb[0].mxu0
  %v469 = vpop.f32.mrb[0].mxu0
  %v470 = vadd.f32 0.0, %v469
  %v471 = vpop.f32.mrb[0].mxu0
  %472 = vmatprep.mubr.bf16.mxu0 0
  %473 = vmatmul.mubr.bf16.gmra.mrb[0].mxu0 %v213
  %v474 = vpop.f32.mrb[0].mxu0
  %v475 = vadd.f32 0.0, %v474
  %v476 = vpop.f32.mrb[0].mxu0
  %v477 = vpop.f32.mrb[0].mxu0
  %v478 = vadd.f32 0.0, %v477
  %v479 = vpop.f32.mrb[0].mxu0
  %480 = vmatprep.mubr.bf16.mxu0 0
  %481 = vmatmul.mubr.bf16.gmra.mrb[0].mxu0 %v216
  %v482 = vpop.f32.mrb[0].mxu0
  %v483 = vadd.f32 0.0, %v482
  %v484 = vpop.f32.mrb[0].mxu0
  %v485 = vpop.f32.mrb[0].mxu0
  %v486 = vadd.f32 0.0, %v485
  %v487 = vpop.f32.mrb[0].mxu0
  %488 = vmatprep.mubr.bf16.mxu0 0
  %489 = vmatmul.mubr.bf16.gmra.mrb[0].mxu0 %v219
  %v490 = vpop.f32.mrb[0].mxu0
  %v491 = vadd.f32 0.0, %v490
  %v492 = vpop.f32.mrb[0].mxu0
  %v493 = vpop.f32.mrb[0].mxu0
  %v494 = vadd.f32 0.0, %v493
  %v495 = vpop.f32.mrb[0].mxu0
  %496 = vmatprep.mubr.bf16.mxu0 0
  %497 = vmatmul.mubr.bf16.gmra.mrb[0].mxu0 %v222
  %v498 = vpop.f32.mrb[0].mxu0
  %v499 = vadd.f32 0.0, %v498
  %v500 = vpop.f32.mrb[0].mxu0
  %v501 = vpop.f32.mrb[0].mxu0
  %v502 = vadd.f32 0.0, %v501
  %v503 = vpop.f32.mrb[0].mxu0
  %504 = vmatprep.mubr.bf16.mxu0 0
  %505 = vmatmul.mubr.bf16.gmra.mrb[0].mxu0 %v225
  %v506 = vpop.f32.mrb[0].mxu0
  %v507 = vadd.f32 0.0, %v506
  %v508 = vpop.f32.mrb[0].mxu0
  %v509 = vpop.f32.mrb[0].mxu0
  %v510 = vadd.f32 0.0, %v509
  %v511 = vpop.f32.mrb[0].mxu0
  %512 = vmatprep.mubr.bf16.mxu0 0
  %513 = vmatmul.mubr.bf16.gmra.mrb[0].mxu0 %v228
  %v514 = vpop.f32.mrb[0].mxu0
  %v515 = vadd.f32 0.0, %v514
  %v516 = vpop.f32.mrb[0].mxu0
  %v517 = vpop.f32.mrb[0].mxu0
  %v518 = vadd.f32 0.0, %v517
  %v519 = vpop.f32.mrb[0].mxu0
  %520 = vmatprep.mubr.bf16.mxu0 0
  %521 = vmatmul.mubr.bf16.gmra.mrb[0].mxu0 %v231
  %v522 = vpop.f32.mrb[0].mxu0
  %v523 = vadd.f32 0.0, %v522
  %v524 = vpop.f32.mrb[0].mxu0
  %v525 = vpop.f32.mrb[0].mxu0
  %v526 = vadd.f32 0.0, %v525
  %v527 = vpop.f32.mrb[0].mxu0
  %528 = vmatprep.mubr.bf16.mxu0 0
  %529 = vmatmul.mubr.bf16.gmra.mrb[0].mxu0 %v234
  %v530 = vpop.f32.mrb[0].mxu0
  %v531 = vadd.f32 0.0, %v530
  %v532 = vpop.f32.mrb[0].mxu0
  %v533 = vpop.f32.mrb[0].mxu0
  %v534 = vadd.f32 0.0, %v533
  %v535 = vpop.f32.mrb[0].mxu0
  %536 = vmatprep.mubr.bf16.mxu0 0
  %537 = vmatmul.mubr.bf16.gmra.mrb[0].mxu0 %v237
  %v538 = vpop.f32.mrb[0].mxu0
  %v539 = vadd.f32 0.0, %v538
  %v540 = vpop.f32.mrb[0].mxu0
  %v541 = vpop.f32.mrb[0].mxu0
  %v542 = vadd.f32 0.0, %v541
  %v543 = vpop.f32.mrb[0].mxu0
  %544 = vmatprep.mubr.bf16.mxu0 0
  %545 = vmatmul.mubr.bf16.gmra.mrb[0].mxu0 %v240
  %v546 = vpop.f32.mrb[0].mxu0
  %v547 = vadd.f32 0.0, %v546
  %v548 = vpop.f32.mrb[0].mxu0
  %v549 = vpop.f32.mrb[0].mxu0
  %v550 = vadd.f32 0.0, %v549
  %v551 = vpop.f32.mrb[0].mxu0
  %552 = vmatprep.mubr.bf16.mxu0 0
  %553 = vmatmul.mubr.bf16.gmra.mrb[0].mxu0 %v243
  %v554 = vpop.f32.mrb[0].mxu0
  %v555 = vadd.f32 0.0, %v554
  %v556 = vpop.f32.mrb[0].mxu0
  %v557 = vpop.f32.mrb[0].mxu0
  %v558 = vadd.f32 0.0, %v557
  %v559 = vpop.f32.mrb[0].mxu0
  %560 = vmatprep.mubr.bf16.mxu0 0
  %561 = vmatmul.mubr.bf16.gmra.mrb[0].mxu0 %v246
  %v562 = vpop.f32.mrb[0].mxu0
  %v563 = vadd.f32 0.0, %v562
  %v564 = vpop.f32.mrb[0].mxu0
  %v565 = vpop.f32.mrb[0].mxu0
  %v566 = vadd.f32 0.0, %v565
  %v567 = vpop.f32.mrb[0].mxu0
  %568 = vmatprep.mubr.bf16.mxu0 0
  %569 = vmatmul.mubr.bf16.gmra.mrb[0].mxu0 %v249
  %v570 = vpop.f32.mrb[0].mxu0
  %v571 = vadd.f32 0.0, %v570
  %v572 = vpop.f32.mrb[0].mxu0
  %v573 = vpop.f32.mrb[0].mxu0
  %v574 = vadd.f32 0.0, %v573
  %v575 = vpop.f32.mrb[0].mxu0
  %576 = vmatprep.mubr.bf16.mxu0 0
  %577 = vmatmul.mubr.bf16.gmra.mrb[0].mxu0 %v252
  %v578 = vpop.f32.mrb[0].mxu0
  %v579 = vadd.f32 0.0, %v578
  %v580 = vpop.f32.mrb[0].mxu0
  %v581 = vpop.f32.mrb[0].mxu0
  %v582 = vadd.f32 0.0, %v581
  %v583 = vpop.f32.mrb[0].mxu0
  %584 = vmatprep.mubr.bf16.mxu0 0
  %585 = vmatmul.mubr.bf16.gmra.mrb[0].mxu0 %v255
  %v586 = vpop.f32.mrb[0].mxu0
  %v587 = vadd.f32 0.0, %v586
  %v588 = vpop.f32.mrb[0].mxu0
  %v589 = vpop.f32.mrb[0].mxu0
  %v590 = vadd.f32 0.0, %v589
  %v591 = vpop.f32.mrb[0].mxu0
  %592 = vmatprep.mubr.bf16.mxu0 0
  %593 = vmatmul.mubr.bf16.gmra.mrb[0].mxu0 %v258
  %v594 = vpop.f32.mrb[0].mxu0
  %v595 = vadd.f32 0.0, %v594
  %v596 = vpop.f32.mrb[0].mxu0
  %v597 = vpop.f32.mrb[0].mxu0
  %v598 = vadd.f32 0.0, %v597
  %v599 = vpop.f32.mrb[0].mxu0
  %600 = vmatprep.mubr.bf16.mxu0 0
  %601 = vmatmul.mubr.bf16.gmra.mrb[0].mxu0 %v261
  %v602 = vpop.f32.mrb[0].mxu0
  %v603 = vadd.f32 0.0, %v602
  %v604 = vpop.f32.mrb[0].mxu0
  %v605 = vpop.f32.mrb[0].mxu0
  %v606 = vadd.f32 0.0, %v605
  %v607 = vpop.f32.mrb[0].mxu0
  %608 = vmatprep.mubr.bf16.mxu0 0
  %609 = vmatmul.mubr.bf16.gmra.mrb[0].mxu0 %v264
  %v610 = vpop.f32.mrb[0].mxu0
  %v611 = vadd.f32 0.0, %v610
  %v612 = vpop.f32.mrb[0].mxu0
  %v613 = vpop.f32.mrb[0].mxu0
  %v614 = vadd.f32 0.0, %v613
  %v615 = vpop.f32.mrb[0].mxu0
  %616 = vmatprep.mubr.bf16.mxu0 0
  %617 = vmatmul.mubr.bf16.gmra.mrb[0].mxu0 %v267
  %v618 = vpop.f32.mrb[0].mxu0
  %v619 = vadd.f32 0.0, %v618
  %v620 = vpop.f32.mrb[0].mxu0
  %v621 = vpop.f32.mrb[0].mxu0
  %v622 = vadd.f32 0.0, %v621
  %v623 = vpop.f32.mrb[0].mxu0
  %624 = vmatprep.mubr.bf16.mxu0 0
  %625 = vmatmul.mubr.bf16.gmra.mrb[0].mxu0 %v270
  %v626 = vpop.f32.mrb[0].mxu0
  %v627 = vadd.f32 0.0, %v626
  %v628 = vpop.f32.mrb[0].mxu0
  %v629 = vpop.f32.mrb[0].mxu0
  %v630 = vadd.f32 0.0, %v629
  %v631 = vpop.f32.mrb[0].mxu0
  %632 = vmatprep.mubr.bf16.mxu0 0
  %633 = vmatmul.mubr.bf16.gmra.mrb[0].mxu0 %v273
  %v634 = vpop.f32.mrb[0].mxu0
  %v635 = vadd.f32 0.0, %v634
  %v636 = vpop.f32.mrb[0].mxu0
  %v637 = vpop.f32.mrb[0].mxu0
  %v638 = vadd.f32 0.0, %v637
  %v639 = vpop.f32.mrb[0].mxu0
  %640 = vmatprep.mubr.bf16.mxu0 0
  %641 = vmatmul.mubr.bf16.gmra.mrb[0].mxu0 %v276
  %v642 = vpop.f32.mrb[0].mxu0
  %v643 = vadd.f32 0.0, %v642
  %v644 = vpop.f32.mrb[0].mxu0
  %v645 = vpop.f32.mrb[0].mxu0
  %v646 = vadd.f32 0.0, %v645
  %v647 = vpop.f32.mrb[0].mxu0
  %648 = vmatprep.mubr.bf16.mxu0 0
  %649 = vmatmul.mubr.bf16.gmra.mrb[0].mxu0 %v279
  %v650 = vpop.f32.mrb[0].mxu0
  %v651 = vadd.f32 0.0, %v650
  %v652 = vpop.f32.mrb[0].mxu0
  %v653 = vpop.f32.mrb[0].mxu0
  %v654 = vadd.f32 0.0, %v653
  %v655 = vpop.f32.mrb[0].mxu0
  %656 = vmatprep.mubr.bf16.mxu0 0
  %657 = vmatmul.mubr.bf16.gmra.mrb[0].mxu0 %v282
  %v658 = vpop.f32.mrb[0].mxu0
  %v659 = vadd.f32 0.0, %v658
  %v660 = vpop.f32.mrb[0].mxu0
  %v661 = vpop.f32.mrb[0].mxu0
  %v662 = vadd.f32 0.0, %v661
  %v663 = vpop.f32.mrb[0].mxu0
  %664 = vmatprep.mubr.bf16.mxu0 0
  %665 = vmatmul.mubr.bf16.gmra.mrb[0].mxu0 %v285
  %v666 = vpop.f32.mrb[0].mxu0
  %v667 = vadd.f32 0.0, %v666
  %v668 = vpop.f32.mrb[0].mxu0
  %v669 = vpop.f32.mrb[0].mxu0
  %v670 = vadd.f32 0.0, %v669
  %v671 = vpop.f32.mrb[0].mxu0
  %672 = vmatprep.mubr.bf16.mxu0 0
  %673 = vmatmul.mubr.bf16.gmra.mrb[0].mxu0 %v288
  %v674 = vpop.f32.mrb[0].mxu0
  %v675 = vadd.f32 0.0, %v674
  %v676 = vpop.f32.mrb[0].mxu0
  %v677 = vpop.f32.mrb[0].mxu0
  %v678 = vadd.f32 0.0, %v677
  %v679 = vpop.f32.mrb[0].mxu0
  %680 = vmatprep.mubr.bf16.mxu0 0
  %681 = vmatmul.mubr.bf16.gmra.mrb[0].mxu0 %v291
  %v682 = vpop.f32.mrb[0].mxu0
  %v683 = vadd.f32 0.0, %v682
  %v684 = vpop.f32.mrb[0].mxu0
  %v685 = vpop.f32.mrb[0].mxu0
  %v686 = vadd.f32 0.0, %v685
  %v687 = vpop.f32.mrb[0].mxu0
  %688 = vmatprep.mubr.bf16.mxu0 0
  %689 = vmatmul.mubr.bf16.gmra.mrb[0].mxu0 %v294
  %v690 = vpop.f32.mrb[0].mxu0
  %v691 = vadd.f32 0.0, %v690
  %v692 = vpop.f32.mrb[0].mxu0
  %v693 = vpop.f32.mrb[0].mxu0
  %v694 = vadd.f32 0.0, %v693
  %v695 = vpop.f32.mrb[0].mxu0
  %696 = vmatprep.mubr.bf16.mxu0 0
  %697 = vmatmul.mubr.bf16.gmra.mrb[0].mxu0 %v297
  %v698 = vpop.f32.mrb[0].mxu0
  %v699 = vadd.f32 0.0, %v698
  %v700 = vpop.f32.mrb[0].mxu0
  %v701 = vpop.f32.mrb[0].mxu0
  %v702 = vadd.f32 0.0, %v701
  %v703 = vpop.f32.mrb[0].mxu0
  %704 = vmatprep.mubr.bf16.mxu0 0
  %705 = vmatmul.mubr.bf16.gmra.mrb[0].mxu0 %v300
  %v706 = vpop.f32.mrb[0].mxu0
  %v707 = vadd.f32 0.0, %v706
  %v708 = vpop.f32.mrb[0].mxu0
  %v709 = vpop.f32.mrb[0].mxu0
  %v710 = vadd.f32 0.0, %v709
  %v711 = vpop.f32.mrb[0].mxu0
  %712 = vmatprep.mubr.bf16.mxu0 0
  %713 = vmatmul.mubr.bf16.gmra.mrb[0].mxu0 %v303
  %v714 = vpop.f32.mrb[0].mxu0
  %v715 = vadd.f32 0.0, %v714
  %v716 = vpop.f32.mrb[0].mxu0
  %v717 = vpop.f32.mrb[0].mxu0
  %v718 = vadd.f32 0.0, %v717
  %v719 = vpop.f32.mrb[0].mxu0
  %720 = vmatprep.mubr.bf16.mxu0 0
  %721 = vmatmul.mubr.bf16.gmra.mrb[0].mxu0 %v306
  %v722 = vpop.f32.mrb[0].mxu0
  %v723 = vadd.f32 0.0, %v722
  %v724 = vpop.f32.mrb[0].mxu0
  %v725 = vpop.f32.mrb[0].mxu0
  %v726 = vadd.f32 0.0, %v725
  %v727 = vpop.f32.mrb[0].mxu0
  %728 = vdwg.mxu0
  %p729 = scmp.eq.s32.totalorder 0, 0
  // Predicated region
  $region14: #{conv2d_batchnorm.2} parent=0 // pred_check
    %p730 = pneg %p729
  $region15: #{conv2d_batchnorm.2} parent=0 // pred_check_branch
    %732 = sbr.rel (%p730) target = $region17
  $region16: #{conv2d_batchnorm.2} parent=0 // pred_region
    %733 = vst [vmem:[#allocation2] sm:$0xff] %v347
    %734 = vst [vmem:[#allocation2 + $0x8] sm:$0xff] %v350
    %735 = vst [vmem:[#allocation2 + $0x10] sm:$0xff] %v355
    %736 = vst [vmem:[#allocation2 + $0x18] sm:$0xff] %v358
    %737 = vst [vmem:[#allocation2 + $0x20] sm:$0xff] %v363
    %738 = vst [vmem:[#allocation2 + $0x28] sm:$0xff] %v366
    %739 = vst [vmem:[#allocation2 + $0x30] sm:$0xff] %v371
    %740 = vst [vmem:[#allocation2 + $0x38] sm:$0xff] %v374
    %741 = vst [vmem:[#allocation2 + $0x40] sm:$0xff] %v379
    %742 = vst [vmem:[#allocation2 + $0x48] sm:$0xff] %v382
    %743 = vst [vmem:[#allocation2 + $0x50] sm:$0xff] %v387
    %744 = vst [vmem:[#allocation2 + $0x58] sm:$0xff] %v390
    %745 = vst [vmem:[#allocation2 + $0x60] sm:$0xff] %v395
    %746 = vst [vmem:[#allocation2 + $0x68] sm:$0xff] %v398
    %747 = vst [vmem:[#allocation2 + $0x70] sm:$0xff] %v403
    %748 = vst [vmem:[#allocation2 + $0x78] sm:$0xff] %v406
    %749 = vst [vmem:[#allocation2 + $0x80] sm:$0xff] %v411
    %750 = vst [vmem:[#allocation2 + $0x88] sm:$0xff] %v414
    %751 = vst [vmem:[#allocation2 + $0x90] sm:$0xff] %v419
    %752 = vst [vmem:[#allocation2 + $0x98] sm:$0xff] %v422
    %753 = vst [vmem:[#allocation2 + $0xa0] sm:$0xff] %v427
    %754 = vst [vmem:[#allocation2 + $0xa8] sm:$0xff] %v430
    %755 = vst [vmem:[#allocation2 + $0xb0] sm:$0xff] %v435
    %756 = vst [vmem:[#allocation2 + $0xb8] sm:$0xff] %v438
    %757 = vst [vmem:[#allocation2 + $0xc0] sm:$0xff] %v443
    %758 = vst [vmem:[#allocation2 + $0xc8] sm:$0xff] %v446
    %759 = vst [vmem:[#allocation2 + $0xd0] sm:$0xff] %v451
    %760 = vst [vmem:[#allocation2 + $0xd8] sm:$0xff] %v454
    %761 = vst [vmem:[#allocation2 + $0xe0] sm:$0xff] %v459
    %762 = vst [vmem:[#allocation2 + $0xe8] sm:$0xff] %v462
    %763 = vst [vmem:[#allocation2 + $0xf0] sm:$0xff] %v467
    %764 = vst [vmem:[#allocation2 + $0xf8] sm:$0xff] %v470
    %765 = vst [vmem:[#allocation2 + $0x100] sm:$0xff] %v475
    %766 = vst [vmem:[#allocation2 + $0x108] sm:$0xff] %v478
    %767 = vst [vmem:[#allocation2 + $0x110] sm:$0xff] %v483
    %768 = vst [vmem:[#allocation2 + $0x118] sm:$0xff] %v486
    %769 = vst [vmem:[#allocation2 + $0x120] sm:$0xff] %v491
    %770 = vst [vmem:[#allocation2 + $0x128] sm:$0xff] %v494
    %771 = vst [vmem:[#allocation2 + $0x130] sm:$0xff] %v499
    %772 = vst [vmem:[#allocation2 + $0x138] sm:$0xff] %v502
    %773 = vst [vmem:[#allocation2 + $0x140] sm:$0xff] %v507
    %774 = vst [vmem:[#allocation2 + $0x148] sm:$0xff] %v510
    %775 = vst [vmem:[#allocation2 + $0x150] sm:$0xff] %v515
    %776 = vst [vmem:[#allocation2 + $0x158] sm:$0xff] %v518
    %777 = vst [vmem:[#allocation2 + $0x160] sm:$0xff] %v523
    %778 = vst [vmem:[#allocation2 + $0x168] sm:$0xff] %v526
    %779 = vst [vmem:[#allocation2 + $0x170] sm:$0xff] %v531
    %780 = vst [vmem:[#allocation2 + $0x178] sm:$0xff] %v534
    %781 = vst [vmem:[#allocation2 + $0x180] sm:$0xff] %v539
    %782 = vst [vmem:[#allocation2 + $0x188] sm:$0xff] %v542
    %783 = vst [vmem:[#allocation2 + $0x190] sm:$0xff] %v547
    %784 = vst [vmem:[#allocation2 + $0x198] sm:$0xff] %v550
    %785 = vst [vmem:[#allocation2 + $0x1a0] sm:$0xff] %v555
    %786 = vst [vmem:[#allocation2 + $0x1a8] sm:$0xff] %v558
    %787 = vst [vmem:[#allocation2 + $0x1b0] sm:$0xff] %v563
    %788 = vst [vmem:[#allocation2 + $0x1b8] sm:$0xff] %v566
    %789 = vst [vmem:[#allocation2 + $0x1c0] sm:$0xff] %v571
    %790 = vst [vmem:[#allocation2 + $0x1c8] sm:$0xff] %v574
    %791 = vst [vmem:[#allocation2 + $0x1d0] sm:$0xff] %v579
    %792 = vst [vmem:[#allocation2 + $0x1d8] sm:$0xff] %v582
    %793 = vst [vmem:[#allocation2 + $0x1e0] sm:$0xff] %v587
    %794 = vst [vmem:[#allocation2 + $0x1e8] sm:$0xff] %v590
    %795 = vst [vmem:[#allocation2 + $0x1f0] sm:$0xff] %v595
    %796 = vst [vmem:[#allocation2 + $0x1f8] sm:$0xff] %v598
    %797 = vst [vmem:[#allocation2 + $0x200] sm:$0xff] %v603
    %798 = vst [vmem:[#allocation2 + $0x208] sm:$0xff] %v606
    %799 = vst [vmem:[#allocation2 + $0x210] sm:$0xff] %v611
    %800 = vst [vmem:[#allocation2 + $0x218] sm:$0xff] %v614
    %801 = vst [vmem:[#allocation2 + $0x220] sm:$0xff] %v619
    %802 = vst [vmem:[#allocation2 + $0x228] sm:$0xff] %v622
    %803 = vst [vmem:[#allocation2 + $0x230] sm:$0xff] %v627
    %804 = vst [vmem:[#allocation2 + $0x238] sm:$0xff] %v630
    %805 = vst [vmem:[#allocation2 + $0x240] sm:$0xff] %v635
    %806 = vst [vmem:[#allocation2 + $0x248] sm:$0xff] %v638
    %807 = vst [vmem:[#allocation2 + $0x250] sm:$0xff] %v643
    %808 = vst [vmem:[#allocation2 + $0x258] sm:$0xff] %v646
    %809 = vst [vmem:[#allocation2 + $0x260] sm:$0xff] %v651
    %810 = vst [vmem:[#allocation2 + $0x268] sm:$0xff] %v654
    %811 = vst [vmem:[#allocation2 + $0x270] sm:$0xff] %v659
    %812 = vst [vmem:[#allocation2 + $0x278] sm:$0xff] %v662
    %813 = vst [vmem:[#allocation2 + $0x280] sm:$0xff] %v667
    %814 = vst [vmem:[#allocation2 + $0x288] sm:$0xff] %v670
    %815 = vst [vmem:[#allocation2 + $0x290] sm:$0xff] %v675
    %816 = vst [vmem:[#allocation2 + $0x298] sm:$0xff] %v678
    %817 = vst [vmem:[#allocation2 + $0x2a0] sm:$0xff] %v683
    %818 = vst [vmem:[#allocation2 + $0x2a8] sm:$0xff] %v686
    %819 = vst [vmem:[#allocation2 + $0x2b0] sm:$0xff] %v691
    %820 = vst [vmem:[#allocation2 + $0x2b8] sm:$0xff] %v694
    %821 = vst [vmem:[#allocation2 + $0x2c0] sm:$0xff] %v699
    %822 = vst [vmem:[#allocation2 + $0x2c8] sm:$0xff] %v702
    %823 = vst [vmem:[#allocation2 + $0x2d0] sm:$0xff] %v707
    %824 = vst [vmem:[#allocation2 + $0x2d8] sm:$0xff] %v710
    %825 = vst [vmem:[#allocation2 + $0x2e0] sm:$0xff] %v715
    %826 = vst [vmem:[#allocation2 + $0x2e8] sm:$0xff] %v718
    %827 = vst [vmem:[#allocation2 + $0x2f0] sm:$0xff] %v723
    %828 = vst [vmem:[#allocation2 + $0x2f8] sm:$0xff] %v726
  $region17: #{conv2d_batchnorm.2} parent=0 // pred_fallthru
    _
  %p829 = scmp.ne.s32.totalorder 0, 0
  // Predicated region
  $region18: #{conv2d_batchnorm.2} parent=0 // pred_check
    %p830 = pneg %p829
  $region19: #{conv2d_batchnorm.2} parent=0 // pred_check_branch
    %832 = sbr.rel (%p830) target = $region21
  $region20: #{conv2d_batchnorm.2} parent=0 // pred_region
    %v833 = vld [vmem:[#allocation2] sm:$0xff]
    %v834 = vld [vmem:[#allocation2 + $0x8] sm:$0xff]
    %v835 = vld [vmem:[#allocation2 + $0x10] sm:$0xff]
    %v836 = vld [vmem:[#allocation2 + $0x18] sm:$0xff]
    %v837 = vld [vmem:[#allocation2 + $0x20] sm:$0xff]
    %v838 = vld [vmem:[#allocation2 + $0x28] sm:$0xff]
    %v839 = vld [vmem:[#allocation2 + $0x30] sm:$0xff]
    %v840 = vld [vmem:[#allocation2 + $0x38] sm:$0xff]
    %v841 = vld [vmem:[#allocation2 + $0x40] sm:$0xff]
    %v842 = vld [vmem:[#allocation2 + $0x48] sm:$0xff]
    %v843 = vld [vmem:[#allocation2 + $0x50] sm:$0xff]
    %v844 = vld [vmem:[#allocation2 + $0x58] sm:$0xff]
    %v845 = vld [vmem:[#allocation2 + $0x60] sm:$0xff]
    %v846 = vld [vmem:[#allocation2 + $0x68] sm:$0xff]
    %v847 = vld [vmem:[#allocation2 + $0x70] sm:$0xff]
    %v848 = vld [vmem:[#allocation2 + $0x78] sm:$0xff]
    %v849 = vld [vmem:[#allocation2 + $0x80] sm:$0xff]
    %v850 = vld [vmem:[#allocation2 + $0x88] sm:$0xff]
    %v851 = vld [vmem:[#allocation2 + $0x90] sm:$0xff]
    %v852 = vld [vmem:[#allocation2 + $0x98] sm:$0xff]
    %v853 = vld [vmem:[#allocation2 + $0xa0] sm:$0xff]
    %v854 = vld [vmem:[#allocation2 + $0xa8] sm:$0xff]
    %v855 = vld [vmem:[#allocation2 + $0xb0] sm:$0xff]
    %v856 = vld [vmem:[#allocation2 + $0xb8] sm:$0xff]
    %v857 = vld [vmem:[#allocation2 + $0xc0] sm:$0xff]
    %v858 = vld [vmem:[#allocation2 + $0xc8] sm:$0xff]
    %v859 = vld [vmem:[#allocation2 + $0xd0] sm:$0xff]
    %v860 = vld [vmem:[#allocation2 + $0xd8] sm:$0xff]
    %v861 = vld [vmem:[#allocation2 + $0xe0] sm:$0xff]
    %v862 = vld [vmem:[#allocation2 + $0xe8] sm:$0xff]
    %v863 = vld [vmem:[#allocation2 + $0xf0] sm:$0xff]
    %v864 = vld [vmem:[#allocation2 + $0xf8] sm:$0xff]
    %v865 = vld [vmem:[#allocation2 + $0x100] sm:$0xff]
    %v866 = vld [vmem:[#allocation2 + $0x108] sm:$0xff]
    %v867 = vld [vmem:[#allocation2 + $0x110] sm:$0xff]
    %v868 = vld [vmem:[#allocation2 + $0x118] sm:$0xff]
    %v869 = vld [vmem:[#allocation2 + $0x120] sm:$0xff]
    %v870 = vld [vmem:[#allocation2 + $0x128] sm:$0xff]
    %v871 = vld [vmem:[#allocation2 + $0x130] sm:$0xff]
    %v872 = vld [vmem:[#allocation2 + $0x138] sm:$0xff]
    %v873 = vld [vmem:[#allocation2 + $0x140] sm:$0xff]
    %v874 = vld [vmem:[#allocation2 + $0x148] sm:$0xff]
    %v875 = vld [vmem:[#allocation2 + $0x150] sm:$0xff]
    %v876 = vld [vmem:[#allocation2 + $0x158] sm:$0xff]
    %v877 = vld [vmem:[#allocation2 + $0x160] sm:$0xff]
    %v878 = vld [vmem:[#allocation2 + $0x168] sm:$0xff]
    %v879 = vld [vmem:[#allocation2 + $0x170] sm:$0xff]
    %v880 = vld [vmem:[#allocation2 + $0x178] sm:$0xff]
    %v881 = vld [vmem:[#allocation2 + $0x180] sm:$0xff]
    %v882 = vld [vmem:[#allocation2 + $0x188] sm:$0xff]
    %v883 = vld [vmem:[#allocation2 + $0x190] sm:$0xff]
    %v884 = vld [vmem:[#allocation2 + $0x198] sm:$0xff]
    %v885 = vld [vmem:[#allocation2 + $0x1a0] sm:$0xff]
    %v886 = vld [vmem:[#allocation2 + $0x1a8] sm:$0xff]
    %v887 = vld [vmem:[#allocation2 + $0x1b0] sm:$0xff]
    %v888 = vld [vmem:[#allocation2 + $0x1b8] sm:$0xff]
    %v889 = vld [vmem:[#allocation2 + $0x1c0] sm:$0xff]
    %v890 = vld [vmem:[#allocation2 + $0x1c8] sm:$0xff]
    %v891 = vld [vmem:[#allocation2 + $0x1d0] sm:$0xff]
    %v892 = vld [vmem:[#allocation2 + $0x1d8] sm:$0xff]
    %v893 = vld [vmem:[#allocation2 + $0x1e0] sm:$0xff]
    %v894 = vld [vmem:[#allocation2 + $0x1e8] sm:$0xff]
    %v895 = vld [vmem:[#allocation2 + $0x1f0] sm:$0xff]
    %v896 = vld [vmem:[#allocation2 + $0x1f8] sm:$0xff]
    %v897 = vld [vmem:[#allocation2 + $0x200] sm:$0xff]
    %v898 = vld [vmem:[#allocation2 + $0x208] sm:$0xff]
    %v899 = vld [vmem:[#allocation2 + $0x210] sm:$0xff]
    %v900 = vld [vmem:[#allocation2 + $0x218] sm:$0xff]
    %v901 = vld [vmem:[#allocation2 + $0x220] sm:$0xff]
    %v902 = vld [vmem:[#allocation2 + $0x228] sm:$0xff]
    %v903 = vld [vmem:[#allocation2 + $0x230] sm:$0xff]
    %v904 = vld [vmem:[#allocation2 + $0x238] sm:$0xff]
    %v905 = vld [vmem:[#allocation2 + $0x240] sm:$0xff]
    %v906 = vld [vmem:[#allocation2 + $0x248] sm:$0xff]
    %v907 = vld [vmem:[#allocation2 + $0x250] sm:$0xff]
    %v908 = vld [vmem:[#allocation2 + $0x258] sm:$0xff]
    %v909 = vld [vmem:[#allocation2 + $0x260] sm:$0xff]
    %v910 = vld [vmem:[#allocation2 + $0x268] sm:$0xff]
    %v911 = vld [vmem:[#allocation2 + $0x270] sm:$0xff]
    %v912 = vld [vmem:[#allocation2 + $0x278] sm:$0xff]
    %v913 = vld [vmem:[#allocation2 + $0x280] sm:$0xff]
    %v914 = vld [vmem:[#allocation2 + $0x288] sm:$0xff]
    %v915 = vld [vmem:[#allocation2 + $0x290] sm:$0xff]
    %v916 = vld [vmem:[#allocation2 + $0x298] sm:$0xff]
    %v917 = vld [vmem:[#allocation2 + $0x2a0] sm:$0xff]
    %v918 = vld [vmem:[#allocation2 + $0x2a8] sm:$0xff]
    %v919 = vld [vmem:[#allocation2 + $0x2b0] sm:$0xff]
    %v920 = vld [vmem:[#allocation2 + $0x2b8] sm:$0xff]
    %v921 = vld [vmem:[#allocation2 + $0x2c0] sm:$0xff]
    %v922 = vld [vmem:[#allocation2 + $0x2c8] sm:$0xff]
    %v923 = vld [vmem:[#allocation2 + $0x2d0] sm:$0xff]
    %v924 = vld [vmem:[#allocation2 + $0x2d8] sm:$0xff]
    %v925 = vld [vmem:[#allocation2 + $0x2e0] sm:$0xff]
    %v926 = vld [vmem:[#allocation2 + $0x2e8] sm:$0xff]
    %v927 = vld [vmem:[#allocation2 + $0x2f0] sm:$0xff]
    %v928 = vld [vmem:[#allocation2 + $0x2f8] sm:$0xff]
    %v929 = vadd.f32 %v833, %v347
    %v930 = vadd.f32 %v834, %v350
    %v931 = vadd.f32 %v835, %v355
    %v932 = vadd.f32 %v836, %v358
    %v933 = vadd.f32 %v837, %v363
    %v934 = vadd.f32 %v838, %v366
    %v935 = vadd.f32 %v839, %v371
    %v936 = vadd.f32 %v840, %v374
    %v937 = vadd.f32 %v841, %v379
    %v938 = vadd.f32 %v842, %v382
    %v939 = vadd.f32 %v843, %v387
    %v940 = vadd.f32 %v844, %v390
    %v941 = vadd.f32 %v845, %v395
    %v942 = vadd.f32 %v846, %v398
    %v943 = vadd.f32 %v847, %v403
    %v944 = vadd.f32 %v848, %v406
    %v945 = vadd.f32 %v849, %v411
    %v946 = vadd.f32 %v850, %v414
    %v947 = vadd.f32 %v851, %v419
    %v948 = vadd.f32 %v852, %v422
    %v949 = vadd.f32 %v853, %v427
    %v950 = vadd.f32 %v854, %v430
    %v951 = vadd.f32 %v855, %v435
    %v952 = vadd.f32 %v856, %v438
    %v953 = vadd.f32 %v857, %v443
    %v954 = vadd.f32 %v858, %v446
    %v955 = vadd.f32 %v859, %v451
    %v956 = vadd.f32 %v860, %v454
    %v957 = vadd.f32 %v861, %v459
    %v958 = vadd.f32 %v862, %v462
    %v959 = vadd.f32 %v863, %v467
    %v960 = vadd.f32 %v864, %v470
    %v961 = vadd.f32 %v865, %v475
    %v962 = vadd.f32 %v866, %v478
    %v963 = vadd.f32 %v867, %v483
    %v964 = vadd.f32 %v868, %v486
    %v965 = vadd.f32 %v869, %v491
    %v966 = vadd.f32 %v870, %v494
    %v967 = vadd.f32 %v871, %v499
    %v968 = vadd.f32 %v872, %v502
    %v969 = vadd.f32 %v873, %v507
    %v970 = vadd.f32 %v874, %v510
    %v971 = vadd.f32 %v875, %v515
    %v972 = vadd.f32 %v876, %v518
    %v973 = vadd.f32 %v877, %v523
    %v974 = vadd.f32 %v878, %v526
    %v975 = vadd.f32 %v879, %v531
    %v976 = vadd.f32 %v880, %v534
    %v977 = vadd.f32 %v881, %v539
    %v978 = vadd.f32 %v882, %v542
    %v979 = vadd.f32 %v883, %v547
    %v980 = vadd.f32 %v884, %v550
    %v981 = vadd.f32 %v885, %v555
    %v982 = vadd.f32 %v886, %v558
    %v983 = vadd.f32 %v887, %v563
    %v984 = vadd.f32 %v888, %v566
    %v985 = vadd.f32 %v889, %v571
    %v986 = vadd.f32 %v890, %v574
    %v987 = vadd.f32 %v891, %v579
    %v988 = vadd.f32 %v892, %v582
    %v989 = vadd.f32 %v893, %v587
    %v990 = vadd.f32 %v894, %v590
    %v991 = vadd.f32 %v895, %v595
    %v992 = vadd.f32 %v896, %v598
    %v993 = vadd.f32 %v897, %v603
    %v994 = vadd.f32 %v898, %v606
    %v995 = vadd.f32 %v899, %v611
    %v996 = vadd.f32 %v900, %v614
    %v997 = vadd.f32 %v901, %v619
    %v998 = vadd.f32 %v902, %v622
    %v999 = vadd.f32 %v903, %v627
    %v1000 = vadd.f32 %v904, %v630
    %v1001 = vadd.f32 %v905, %v635
    %v1002 = vadd.f32 %v906, %v638
    %v1003 = vadd.f32 %v907, %v643
    %v1004 = vadd.f32 %v908, %v646
    %v1005 = vadd.f32 %v909, %v651
    %v1006 = vadd.f32 %v910, %v654
    %v1007 = vadd.f32 %v911, %v659
    %v1008 = vadd.f32 %v912, %v662
    %v1009 = vadd.f32 %v913, %v667
    %v1010 = vadd.f32 %v914, %v670
    %v1011 = vadd.f32 %v915, %v675
    %v1012 = vadd.f32 %v916, %v678
    %v1013 = vadd.f32 %v917, %v683
    %v1014 = vadd.f32 %v918, %v686
    %v1015 = vadd.f32 %v919, %v691
    %v1016 = vadd.f32 %v920, %v694
    %v1017 = vadd.f32 %v921, %v699
    %v1018 = vadd.f32 %v922, %v702
    %v1019 = vadd.f32 %v923, %v707
    %v1020 = vadd.f32 %v924, %v710
    %v1021 = vadd.f32 %v925, %v715
    %v1022 = vadd.f32 %v926, %v718
    %v1023 = vadd.f32 %v927, %v723
    %v1024 = vadd.f32 %v928, %v726
    %1025 = vst [vmem:[#allocation2] sm:$0xff] %v929
    %1026 = vst [vmem:[#allocation2 + $0x8] sm:$0xff] %v930
    %1027 = vst [vmem:[#allocation2 + $0x10] sm:$0xff] %v931
    %1028 = vst [vmem:[#allocation2 + $0x18] sm:$0xff] %v932
    %1029 = vst [vmem:[#allocation2 + $0x20] sm:$0xff] %v933
    %1030 = vst [vmem:[#allocation2 + $0x28] sm:$0xff] %v934
    %1031 = vst [vmem:[#allocation2 + $0x30] sm:$0xff] %v935
    %1032 = vst [vmem:[#allocation2 + $0x38] sm:$0xff] %v936
    %1033 = vst [vmem:[#allocation2 + $0x40] sm:$0xff] %v937
    %1034 = vst [vmem:[#allocation2 + $0x48] sm:$0xff] %v938
    %1035 = vst [vmem:[#allocation2 + $0x50] sm:$0xff] %v939
    %1036 = vst [vmem:[#allocation2 + $0x58] sm:$0xff] %v940
    %1037 = vst [vmem:[#allocation2 + $0x60] sm:$0xff] %v941
    %1038 = vst [vmem:[#allocation2 + $0x68] sm:$0xff] %v942
    %1039 = vst [vmem:[#allocation2 + $0x70] sm:$0xff] %v943
    %1040 = vst [vmem:[#allocation2 + $0x78] sm:$0xff] %v944
    %1041 = vst [vmem:[#allocation2 + $0x80] sm:$0xff] %v945
    %1042 = vst [vmem:[#allocation2 + $0x88] sm:$0xff] %v946
    %1043 = vst [vmem:[#allocation2 + $0x90] sm:$0xff] %v947
    %1044 = vst [vmem:[#allocation2 + $0x98] sm:$0xff] %v948
    %1045 = vst [vmem:[#allocation2 + $0xa0] sm:$0xff] %v949
    %1046 = vst [vmem:[#allocation2 + $0xa8] sm:$0xff] %v950
    %1047 = vst [vmem:[#allocation2 + $0xb0] sm:$0xff] %v951
    %1048 = vst [vmem:[#allocation2 + $0xb8] sm:$0xff] %v952
    %1049 = vst [vmem:[#allocation2 + $0xc0] sm:$0xff] %v953
    %1050 = vst [vmem:[#allocation2 + $0xc8] sm:$0xff] %v954
    %1051 = vst [vmem:[#allocation2 + $0xd0] sm:$0xff] %v955
    %1052 = vst [vmem:[#allocation2 + $0xd8] sm:$0xff] %v956
    %1053 = vst [vmem:[#allocation2 + $0xe0] sm:$0xff] %v957
    %1054 = vst [vmem:[#allocation2 + $0xe8] sm:$0xff] %v958
    %1055 = vst [vmem:[#allocation2 + $0xf0] sm:$0xff] %v959
    %1056 = vst [vmem:[#allocation2 + $0xf8] sm:$0xff] %v960
    %1057 = vst [vmem:[#allocation2 + $0x100] sm:$0xff] %v961
    %1058 = vst [vmem:[#allocation2 + $0x108] sm:$0xff] %v962
    %1059 = vst [vmem:[#allocation2 + $0x110] sm:$0xff] %v963
    %1060 = vst [vmem:[#allocation2 + $0x118] sm:$0xff] %v964
    %1061 = vst [vmem:[#allocation2 + $0x120] sm:$0xff] %v965
    %1062 = vst [vmem:[#allocation2 + $0x128] sm:$0xff] %v966
    %1063 = vst [vmem:[#allocation2 + $0x130] sm:$0xff] %v967
    %1064 = vst [vmem:[#allocation2 + $0x138] sm:$0xff] %v968
    %1065 = vst [vmem:[#allocation2 + $0x140] sm:$0xff] %v969
    %1066 = vst [vmem:[#allocation2 + $0x148] sm:$0xff] %v970
    %1067 = vst [vmem:[#allocation2 + $0x150] sm:$0xff] %v971
    %1068 = vst [vmem:[#allocation2 + $0x158] sm:$0xff] %v972
    %1069 = vst [vmem:[#allocation2 + $0x160] sm:$0xff] %v973
    %1070 = vst [vmem:[#allocation2 + $0x168] sm:$0xff] %v974
    %1071 = vst [vmem:[#allocation2 + $0x170] sm:$0xff] %v975
    %1072 = vst [vmem:[#allocation2 + $0x178] sm:$0xff] %v976
    %1073 = vst [vmem:[#allocation2 + $0x180] sm:$0xff] %v977
    %1074 = vst [vmem:[#allocation2 + $0x188] sm:$0xff] %v978
    %1075 = vst [vmem:[#allocation2 + $0x190] sm:$0xff] %v979
    %1076 = vst [vmem:[#allocation2 + $0x198] sm:$0xff] %v980
    %1077 = vst [vmem:[#allocation2 + $0x1a0] sm:$0xff] %v981
    %1078 = vst [vmem:[#allocation2 + $0x1a8] sm:$0xff] %v982
    %1079 = vst [vmem:[#allocation2 + $0x1b0] sm:$0xff] %v983
    %1080 = vst [vmem:[#allocation2 + $0x1b8] sm:$0xff] %v984
    %1081 = vst [vmem:[#allocation2 + $0x1c0] sm:$0xff] %v985
    %1082 = vst [vmem:[#allocation2 + $0x1c8] sm:$0xff] %v986
    %1083 = vst [vmem:[#allocation2 + $0x1d0] sm:$0xff] %v987
    %1084 = vst [vmem:[#allocation2 + $0x1d8] sm:$0xff] %v988
    %1085 = vst [vmem:[#allocation2 + $0x1e0] sm:$0xff] %v989
    %1086 = vst [vmem:[#allocation2 + $0x1e8] sm:$0xff] %v990
    %1087 = vst [vmem:[#allocation2 + $0x1f0] sm:$0xff] %v991
    %1088 = vst [vmem:[#allocation2 + $0x1f8] sm:$0xff] %v992
    %1089 = vst [vmem:[#allocation2 + $0x200] sm:$0xff] %v993
    %1090 = vst [vmem:[#allocation2 + $0x208] sm:$0xff] %v994
    %1091 = vst [vmem:[#allocation2 + $0x210] sm:$0xff] %v995
    %1092 = vst [vmem:[#allocation2 + $0x218] sm:$0xff] %v996
    %1093 = vst [vmem:[#allocation2 + $0x220] sm:$0xff] %v997
    %1094 = vst [vmem:[#allocation2 + $0x228] sm:$0xff] %v998
    %1095 = vst [vmem:[#allocation2 + $0x230] sm:$0xff] %v999
    %1096 = vst [vmem:[#allocation2 + $0x238] sm:$0xff] %v1000
    %1097 = vst [vmem:[#allocation2 + $0x240] sm:$0xff] %v1001
    %1098 = vst [vmem:[#allocation2 + $0x248] sm:$0xff] %v1002
    %1099 = vst [vmem:[#allocation2 + $0x250] sm:$0xff] %v1003
    %1100 = vst [vmem:[#allocation2 + $0x258] sm:$0xff] %v1004
    %1101 = vst [vmem:[#allocation2 + $0x260] sm:$0xff] %v1005
    %1102 = vst [vmem:[#allocation2 + $0x268] sm:$0xff] %v1006
    %1103 = vst [vmem:[#allocation2 + $0x270] sm:$0xff] %v1007
    %1104 = vst [vmem:[#allocation2 + $0x278] sm:$0xff] %v1008
    %1105 = vst [vmem:[#allocation2 + $0x280] sm:$0xff] %v1009
    %1106 = vst [vmem:[#allocation2 + $0x288] sm:$0xff] %v1010
    %1107 = vst [vmem:[#allocation2 + $0x290] sm:$0xff] %v1011
    %1108 = vst [vmem:[#allocation2 + $0x298] sm:$0xff] %v1012
    %1109 = vst [vmem:[#allocation2 + $0x2a0] sm:$0xff] %v1013
    %1110 = vst [vmem:[#allocation2 + $0x2a8] sm:$0xff] %v1014
    %1111 = vst [vmem:[#allocation2 + $0x2b0] sm:$0xff] %v1015
    %1112 = vst [vmem:[#allocation2 + $0x2b8] sm:$0xff] %v1016
    %1113 = vst [vmem:[#allocation2 + $0x2c0] sm:$0xff] %v1017
    %1114 = vst [vmem:[#allocation2 + $0x2c8] sm:$0xff] %v1018
    %1115 = vst [vmem:[#allocation2 + $0x2d0] sm:$0xff] %v1019
    %1116 = vst [vmem:[#allocation2 + $0x2d8] sm:$0xff] %v1020
    %1117 = vst [vmem:[#allocation2 + $0x2e0] sm:$0xff] %v1021
    %1118 = vst [vmem:[#allocation2 + $0x2e8] sm:$0xff] %v1022
    %1119 = vst [vmem:[#allocation2 + $0x2f0] sm:$0xff] %v1023
    %1120 = vst [vmem:[#allocation2 + $0x2f8] sm:$0xff] %v1024
  $region21: #{conv2d_batchnorm.2} parent=0 // pred_fallthru
    _
  %v1121 = vld [vmem:[%s0 + $0x1] sm:$0xff]
  %v1122 = vld [vmem:[%s0 + $0x9] sm:$0xff]
  %v1123 = vld [vmem:[%s0 + $0x11] sm:$0xff]
  %v1124 = vld [vmem:[%s0 + $0x19] sm:$0xff]
  %v1125 = vld [vmem:[%s0 + $0x21] sm:$0xff]
  %v1126 = vld [vmem:[%s0 + $0x29] sm:$0xff]
  %v1127 = vld [vmem:[%s0 + $0x31] sm:$0xff]
  %v1128 = vld [vmem:[%s0 + $0x39] sm:$0xff]
  %v1129 = vld [vmem:[%s0 + $0x41] sm:$0xff]
  %v1130 = vld [vmem:[%s0 + $0x49] sm:$0xff]
  %v1131 = vld [vmem:[%s0 + $0x51] sm:$0xff]
  %v1132 = vld [vmem:[%s0 + $0x59] sm:$0xff]
  %v1133 = vld [vmem:[%s0 + $0x61] sm:$0xff]
  %v1134 = vld [vmem:[%s0 + $0x69] sm:$0xff]
  %v1135 = vld [vmem:[%s0 + $0x71] sm:$0xff]
  %v1136 = vld [vmem:[%s0 + $0x79] sm:$0xff]
  %v1137 = vld [vmem:[%s0 + $0x81] sm:$0xff]
  %v1138 = vld [vmem:[%s0 + $0x89] sm:$0xff]
  %v1139 = vld [vmem:[%s0 + $0x91] sm:$0xff]
  %v1140 = vld [vmem:[%s0 + $0x99] sm:$0xff]
  %v1141 = vld [vmem:[%s0 + $0xa1] sm:$0xff]
  %v1142 = vld [vmem:[%s0 + $0xa9] sm:$0xff]
  %v1143 = vld [vmem:[%s0 + $0xb1] sm:$0xff]
  %v1144 = vld [vmem:[%s0 + $0xb9] sm:$0xff]
  %v1145 = vld [vmem:[%s0 + $0xc1] sm:$0xff]
  %v1146 = vld [vmem:[%s0 + $0xc9] sm:$0xff]
  %v1147 = vld [vmem:[%s0 + $0xd1] sm:$0xff]
  %v1148 = vld [vmem:[%s0 + $0xd9] sm:$0xff]
  %v1149 = vld [vmem:[%s0 + $0xe1] sm:$0xff]
  %v1150 = vld [vmem:[%s0 + $0xe9] sm:$0xff]
  %v1151 = vld [vmem:[%s0 + $0xf1] sm:$0xff]
  %v1152 = vld [vmem:[%s0 + $0xf9] sm:$0xff]
  %v1153 = vld [vmem:[%s0 + $0x101] sm:$0xff]
  %v1154 = vld [vmem:[%s0 + $0x109] sm:$0xff]
  %v1155 = vld [vmem:[%s0 + $0x111] sm:$0xff]
  %v1156 = vld [vmem:[%s0 + $0x119] sm:$0xff]
  %v1157 = vld [vmem:[%s0 + $0x121] sm:$0xff]
  %v1158 = vld [vmem:[%s0 + $0x129] sm:$0xff]
  %v1159 = vld [vmem:[%s0 + $0x131] sm:$0xff]
  %v1160 = vld [vmem:[%s0 + $0x139] sm:$0xff]
  %v1161 = vld [vmem:[%s0 + $0x141] sm:$0xff]
  %v1162 = vld [vmem:[%s0 + $0x149] sm:$0xff]
  %v1163 = vld [vmem:[%s0 + $0x151] sm:$0xff]
  %v1164 = vld [vmem:[%s0 + $0x159] sm:$0xff]
  %v1165 = vld [vmem:[%s0 + $0x161] sm:$0xff]
  %v1166 = vld [vmem:[%s0 + $0x169] sm:$0xff]
  %v1167 = vld [vmem:[%s0 + $0x171] sm:$0xff]
  %v1168 = vld [vmem:[%s0 + $0x179] sm:$0xff]
  %v1169 = vld [vmem:[%s0 + $0x181] sm:$0xff]
  %v1170 = vld [vmem:[%s0 + $0x189] sm:$0xff]
  %v1171 = vld [vmem:[%s0 + $0x191] sm:$0xff]
  %v1172 = vld [vmem:[%s0 + $0x199] sm:$0xff]
  %v1173 = vld [vmem:[%s0 + $0x1a1] sm:$0xff]
  %v1174 = vld [vmem:[%s0 + $0x1a9] sm:$0xff]
  %v1175 = vld [vmem:[%s0 + $0x1b1] sm:$0xff]
  %v1176 = vld [vmem:[%s0 + $0x1b9] sm:$0xff]
  %v1177 = vld [vmem:[%s0 + $0x1c1] sm:$0xff]
  %v1178 = vld [vmem:[%s0 + $0x1c9] sm:$0xff]
  %v1179 = vld [vmem:[%s0 + $0x1d1] sm:$0xff]
  %v1180 = vld [vmem:[%s0 + $0x1d9] sm:$0xff]
  %v1181 = vld [vmem:[%s0 + $0x1e1] sm:$0xff]
  %v1182 = vld [vmem:[%s0 + $0x1e9] sm:$0xff]
  %v1183 = vld [vmem:[%s0 + $0x1f1] sm:$0xff]
  %v1184 = vld [vmem:[%s0 + $0x1f9] sm:$0xff]
  %v1185 = vld [vmem:[%s0 + $0x201] sm:$0xff]
  %v1186 = vld [vmem:[%s0 + $0x209] sm:$0xff]
  %v1187 = vld [vmem:[%s0 + $0x211] sm:$0xff]
  %v1188 = vld [vmem:[%s0 + $0x219] sm:$0xff]
  %v1189 = vld [vmem:[%s0 + $0x221] sm:$0xff]
  %v1190 = vld [vmem:[%s0 + $0x229] sm:$0xff]
  %v1191 = vld [vmem:[%s0 + $0x231] sm:$0xff]
  %v1192 = vld [vmem:[%s0 + $0x239] sm:$0xff]
  %v1193 = vld [vmem:[%s0 + $0x241] sm:$0xff]
  %v1194 = vld [vmem:[%s0 + $0x249] sm:$0xff]
  %v1195 = vld [vmem:[%s0 + $0x251] sm:$0xff]
  %v1196 = vld [vmem:[%s0 + $0x259] sm:$0xff]
  %v1197 = vld [vmem:[%s0 + $0x261] sm:$0xff]
  %v1198 = vld [vmem:[%s0 + $0x269] sm:$0xff]
  %v1199 = vld [vmem:[%s0 + $0x271] sm:$0xff]
  %v1200 = vld [vmem:[%s0 + $0x279] sm:$0xff]
  %v1201 = vld [vmem:[%s0 + $0x281] sm:$0xff]
  %v1202 = vld [vmem:[%s0 + $0x289] sm:$0xff]
  %v1203 = vld [vmem:[%s0 + $0x291] sm:$0xff]
  %v1204 = vld [vmem:[%s0 + $0x299] sm:$0xff]
  %v1205 = vld [vmem:[%s0 + $0x2a1] sm:$0xff]
  %v1206 = vld [vmem:[%s0 + $0x2a9] sm:$0xff]
  %v1207 = vld [vmem:[%s0 + $0x2b1] sm:$0xff]
  %v1208 = vld [vmem:[%s0 + $0x2b9] sm:$0xff]
  %v1209 = vld [vmem:[%s0 + $0x2c1] sm:$0xff]
  %v1210 = vld [vmem:[%s0 + $0x2c9] sm:$0xff]
  %v1211 = vld [vmem:[%s0 + $0x2d1] sm:$0xff]
  %v1212 = vld [vmem:[%s0 + $0x2d9] sm:$0xff]
  %v1213 = vld [vmem:[%s0 + $0x2e1] sm:$0xff]
  %v1214 = vld [vmem:[%s0 + $0x2e9] sm:$0xff]
  %v1215 = vld [vmem:[%s0 + $0x2f1] sm:$0xff]
  %v1216 = vld [vmem:[%s0 + $0x2f9] sm:$0xff]
  %v1217 = vpack.c.bf16 %v1122, %v1121
  %v1218 = vpack.c.bf16 %v1124, %v1123
  %v1219 = vpack.c.bf16 %v1126, %v1125
  %v1220 = vpack.c.bf16 %v1128, %v1127
  %v1221 = vpack.c.bf16 %v1130, %v1129
  %v1222 = vpack.c.bf16 %v1132, %v1131
  %v1223 = vpack.c.bf16 %v1134, %v1133
  %v1224 = vpack.c.bf16 %v1136, %v1135
  %v1225 = vpack.c.bf16 %v1138, %v1137
  %v1226 = vpack.c.bf16 %v1140, %v1139
  %v1227 = vpack.c.bf16 %v1142, %v1141
  %v1228 = vpack.c.bf16 %v1144, %v1143
  %v1229 = vpack.c.bf16 %v1146, %v1145
  %v1230 = vpack.c.bf16 %v1148, %v1147
  %v1231 = vpack.c.bf16 %v1150, %v1149
  %v1232 = vpack.c.bf16 %v1152, %v1151
  %v1233 = vpack.c.bf16 %v1154, %v1153
  %v1234 = vpack.c.bf16 %v1156, %v1155
  %v1235 = vpack.c.bf16 %v1158, %v1157
  %v1236 = vpack.c.bf16 %v1160, %v1159
  %v1237 = vpack.c.bf16 %v1162, %v1161
  %v1238 = vpack.c.bf16 %v1164, %v1163
  %v1239 = vpack.c.bf16 %v1166, %v1165
  %v1240 = vpack.c.bf16 %v1168, %v1167
  %v1241 = vpack.c.bf16 %v1170, %v1169
  %v1242 = vpack.c.bf16 %v1172, %v1171
  %v1243 = vpack.c.bf16 %v1174, %v1173
  %v1244 = vpack.c.bf16 %v1176, %v1175
  %v1245 = vpack.c.bf16 %v1178, %v1177
  %v1246 = vpack.c.bf16 %v1180, %v1179
  %v1247 = vpack.c.bf16 %v1182, %v1181
  %v1248 = vpack.c.bf16 %v1184, %v1183
  %v1249 = vpack.c.bf16 %v1186, %v1185
  %v1250 = vpack.c.bf16 %v1188, %v1187
  %v1251 = vpack.c.bf16 %v1190, %v1189
  %v1252 = vpack.c.bf16 %v1192, %v1191
  %v1253 = vpack.c.bf16 %v1194, %v1193
  %v1254 = vpack.c.bf16 %v1196, %v1195
  %v1255 = vpack.c.bf16 %v1198, %v1197
  %v1256 = vpack.c.bf16 %v1200, %v1199
  %v1257 = vpack.c.bf16 %v1202, %v1201
  %v1258 = vpack.c.bf16 %v1204, %v1203
  %v1259 = vpack.c.bf16 %v1206, %v1205
  %v1260 = vpack.c.bf16 %v1208, %v1207
  %v1261 = vpack.c.bf16 %v1210, %v1209
  %v1262 = vpack.c.bf16 %v1212, %v1211
  %v1263 = vpack.c.bf16 %v1214, %v1213
  %v1264 = vpack.c.bf16 %v1216, %v1215
  %s1265 = scalar_lea.vmem %s1, 4
  %v1266 = vld [vmem:[%s1265] sm:$0xf]
  %v1268 = vsel %vm163, %v1217, 0
  %v1271 = vsel %vm163, %v1218, 0
  %v1274 = vsel %vm163, %v1219, 0
  %v1277 = vsel %vm163, %v1220, 0
  %v1280 = vsel %vm163, %v1221, 0
  %v1283 = vsel %vm163, %v1222, 0
  %v1286 = vsel %vm163, %v1223, 0
  %v1289 = vsel %vm163, %v1224, 0
  %v1292 = vsel %vm163, %v1225, 0
  %v1295 = vsel %vm163, %v1226, 0
  %v1298 = vsel %vm163, %v1227, 0
  %v1301 = vsel %vm163, %v1228, 0
  %v1304 = vsel %vm163, %v1229, 0
  %v1307 = vsel %vm163, %v1230, 0
  %v1310 = vsel %vm163, %v1231, 0
  %v1313 = vsel %vm163, %v1232, 0
  %v1316 = vsel %vm163, %v1233, 0
  %v1319 = vsel %vm163, %v1234, 0
  %v1322 = vsel %vm163, %v1235, 0
  %v1325 = vsel %vm163, %v1236, 0
  %v1328 = vsel %vm163, %v1237, 0
  %v1331 = vsel %vm163, %v1238, 0
  %v1334 = vsel %vm163, %v1239, 0
  %v1337 = vsel %vm163, %v1240, 0
  %v1340 = vsel %vm163, %v1241, 0
  %v1343 = vsel %vm163, %v1242, 0
  %v1346 = vsel %vm163, %v1243, 0
  %v1349 = vsel %vm163, %v1244, 0
  %v1352 = vsel %vm163, %v1245, 0
  %v1355 = vsel %vm163, %v1246, 0
  %v1358 = vsel %vm163, %v1247, 0
  %v1361 = vsel %vm163, %v1248, 0
  %v1364 = vsel %vm163, %v1249, 0
  %v1367 = vsel %vm163, %v1250, 0
  %v1370 = vsel %vm163, %v1251, 0
  %v1373 = vsel %vm163, %v1252, 0
  %v1376 = vsel %vm163, %v1253, 0
  %v1379 = vsel %vm163, %v1254, 0
  %v1382 = vsel %vm163, %v1255, 0
  %v1385 = vsel %vm163, %v1256, 0
  %v1388 = vsel %vm163, %v1257, 0
  %v1391 = vsel %vm163, %v1258, 0
  %v1394 = vsel %vm163, %v1259, 0
  %v1397 = vsel %vm163, %v1260, 0
  %v1400 = vsel %vm163, %v1261, 0
  %v1403 = vsel %vm163, %v1262, 0
  %v1406 = vsel %vm163, %v1263, 0
  %v1409 = vsel %vm163, %v1264, 0
  %v1412 = vsel %vm308, %v1266, 0
  %1414 = vmatprep.subr.bf16.mxu0 0
  %1415 = vmatpush1.bf16.msra.mxu0 %v1412
  %1416 = vmatprep.subr.bf16.mxu0 0
  %1417 = vmatpush1.bf16.msra.mxu0 0
  %1418 = vmatprep.subr.bf16.mxu0 0
  %1419 = vmatpush1.bf16.msra.mxu0 0
  %1420 = vmatprep.subr.bf16.mxu0 0
  %1421 = vmatpush1.bf16.msra.mxu0 0
  %1422 = vmatprep.subr.bf16.mxu0 0
  %1423 = vmatpush1.bf16.msra.mxu0 0
  %1424 = vmatprep.subr.bf16.mxu0 0
  %1425 = vmatpush1.bf16.msra.mxu0 0
  %1426 = vmatprep.subr.bf16.mxu0 0
  %1427 = vmatpush1.bf16.msra.mxu0 0
  %1428 = vmatprep.subr.bf16.mxu0 0
  %1429 = vmatpush1.bf16.msra.mxu0 0
  %1430 = vmatprep.subr.bf16.mxu0 0
  %1431 = vmatpush1.bf16.msra.mxu0 0
  %1432 = vmatprep.subr.bf16.mxu0 0
  %1433 = vmatpush1.bf16.msra.mxu0 0
  %1434 = vmatprep.subr.bf16.mxu0 0
  %1435 = vmatpush1.bf16.msra.mxu0 0
  %1436 = vmatprep.subr.bf16.mxu0 0
  %1437 = vmatpush1.bf16.msra.mxu0 0
  %1438 = vmatprep.subr.bf16.mxu0 0
  %1439 = vmatpush1.bf16.msra.mxu0 0
  %1440 = vmatprep.subr.bf16.mxu0 0
  %1441 = vmatpush1.bf16.msra.mxu0 0
  %1442 = vmatprep.subr.bf16.mxu0 0
  %1443 = vmatpush1.bf16.msra.mxu0 0
  %1444 = vmatprep.subr.bf16.mxu0 0
  %1445 = vmatpush1.bf16.msra.mxu0 0
  %1446 = vmatprep.mubr.bf16.mxu0 0
  %1447 = vmatmul.mubr.bf16.gmra.mrb[0].mxu0 %v1268
  %v1448 = vpop.f32.mrb[0].mxu0
  %v1449 = vadd.f32 0.0, %v1448
  %v1450 = vpop.f32.mrb[0].mxu0
  %v1451 = vpop.f32.mrb[0].mxu0
  %v1452 = vadd.f32 0.0, %v1451
  %v1453 = vpop.f32.mrb[0].mxu0
  %1454 = vmatprep.mubr.bf16.mxu0 0
  %1455 = vmatmul.mubr.bf16.gmra.mrb[0].mxu0 %v1271
  %v1456 = vpop.f32.mrb[0].mxu0
  %v1457 = vadd.f32 0.0, %v1456
  %v1458 = vpop.f32.mrb[0].mxu0
  %v1459 = vpop.f32.mrb[0].mxu0
  %v1460 = vadd.f32 0.0, %v1459
  %v1461 = vpop.f32.mrb[0].mxu0
  %1462 = vmatprep.mubr.bf16.mxu0 0
  %1463 = vmatmul.mubr.bf16.gmra.mrb[0].mxu0 %v1274
  %v1464 = vpop.f32.mrb[0].mxu0
  %v1465 = vadd.f32 0.0, %v1464
  %v1466 = vpop.f32.mrb[0].mxu0
  %v1467 = vpop.f32.mrb[0].mxu0
  %v1468 = vadd.f32 0.0, %v1467
  %v1469 = vpop.f32.mrb[0].mxu0
  %1470 = vmatprep.mubr.bf16.mxu0 0
  %1471 = vmatmul.mubr.bf16.gmra.mrb[0].mxu0 %v1277
  %v1472 = vpop.f32.mrb[0].mxu0
  %v1473 = vadd.f32 0.0, %v1472
  %v1474 = vpop.f32.mrb[0].mxu0
  %v1475 = vpop.f32.mrb[0].mxu0
  %v1476 = vadd.f32 0.0, %v1475
  %v1477 = vpop.f32.mrb[0].mxu0
  %1478 = vmatprep.mubr.bf16.mxu0 0
  %1479 = vmatmul.mubr.bf16.gmra.mrb[0].mxu0 %v1280
  %v1480 = vpop.f32.mrb[0].mxu0
  %v1481 = vadd.f32 0.0, %v1480
  %v1482 = vpop.f32.mrb[0].mxu0
  %v1483 = vpop.f32.mrb[0].mxu0
  %v1484 = vadd.f32 0.0, %v1483
  %v1485 = vpop.f32.mrb[0].mxu0
  %1486 = vmatprep.mubr.bf16.mxu0 0
  %1487 = vmatmul.mubr.bf16.gmra.mrb[0].mxu0 %v1283
  %v1488 = vpop.f32.mrb[0].mxu0
  %v1489 = vadd.f32 0.0, %v1488
  %v1490 = vpop.f32.mrb[0].mxu0
  %v1491 = vpop.f32.mrb[0].mxu0
  %v1492 = vadd.f32 0.0, %v1491
  %v1493 = vpop.f32.mrb[0].mxu0
  %1494 = vmatprep.mubr.bf16.mxu0 0
  %1495 = vmatmul.mubr.bf16.gmra.mrb[0].mxu0 %v1286
  %v1496 = vpop.f32.mrb[0].mxu0
  %v1497 = vadd.f32 0.0, %v1496
  %v1498 = vpop.f32.mrb[0].mxu0
  %v1499 = vpop.f32.mrb[0].mxu0
  %v1500 = vadd.f32 0.0, %v1499
  %v1501 = vpop.f32.mrb[0].mxu0
  %1502 = vmatprep.mubr.bf16.mxu0 0
  %1503 = vmatmul.mubr.bf16.gmra.mrb[0].mxu0 %v1289
  %v1504 = vpop.f32.mrb[0].mxu0
  %v1505 = vadd.f32 0.0, %v1504
  %v1506 = vpop.f32.mrb[0].mxu0
  %v1507 = vpop.f32.mrb[0].mxu0
  %v1508 = vadd.f32 0.0, %v1507
  %v1509 = vpop.f32.mrb[0].mxu0
  %1510 = vmatprep.mubr.bf16.mxu0 0
  %1511 = vmatmul.mubr.bf16.gmra.mrb[0].mxu0 %v1292
  %v1512 = vpop.f32.mrb[0].mxu0
  %v1513 = vadd.f32 0.0, %v1512
  %v1514 = vpop.f32.mrb[0].mxu0
  %v1515 = vpop.f32.mrb[0].mxu0
  %v1516 = vadd.f32 0.0, %v1515
  %v1517 = vpop.f32.mrb[0].mxu0
  %1518 = vmatprep.mubr.bf16.mxu0 0
  %1519 = vmatmul.mubr.bf16.gmra.mrb[0].mxu0 %v1295
  %v1520 = vpop.f32.mrb[0].mxu0
  %v1521 = vadd.f32 0.0, %v1520
  %v1522 = vpop.f32.mrb[0].mxu0
  %v1523 = vpop.f32.mrb[0].mxu0
  %v1524 = vadd.f32 0.0, %v1523
  %v1525 = vpop.f32.mrb[0].mxu0
  %1526 = vmatprep.mubr.bf16.mxu0 0
  %1527 = vmatmul.mubr.bf16.gmra.mrb[0].mxu0 %v1298
  %v1528 = vpop.f32.mrb[0].mxu0
  %v1529 = vadd.f32 0.0, %v1528
  %v1530 = vpop.f32.mrb[0].mxu0
  %v1531 = vpop.f32.mrb[0].mxu0
  %v1532 = vadd.f32 0.0, %v1531
  %v1533 = vpop.f32.mrb[0].mxu0
  %1534 = vmatprep.mubr.bf16.mxu0 0
  %1535 = vmatmul.mubr.bf16.gmra.mrb[0].mxu0 %v1301
  %v1536 = vpop.f32.mrb[0].mxu0
  %v1537 = vadd.f32 0.0, %v1536
  %v1538 = vpop.f32.mrb[0].mxu0
  %v1539 = vpop.f32.mrb[0].mxu0
  %v1540 = vadd.f32 0.0, %v1539
  %v1541 = vpop.f32.mrb[0].mxu0
  %1542 = vmatprep.mubr.bf16.mxu0 0
  %1543 = vmatmul.mubr.bf16.gmra.mrb[0].mxu0 %v1304
  %v1544 = vpop.f32.mrb[0].mxu0
  %v1545 = vadd.f32 0.0, %v1544
  %v1546 = vpop.f32.mrb[0].mxu0
  %v1547 = vpop.f32.mrb[0].mxu0
  %v1548 = vadd.f32 0.0, %v1547
  %v1549 = vpop.f32.mrb[0].mxu0
  %1550 = vmatprep.mubr.bf16.mxu0 0
  %1551 = vmatmul.mubr.bf16.gmra.mrb[0].mxu0 %v1307
  %v1552 = vpop.f32.mrb[0].mxu0
  %v1553 = vadd.f32 0.0, %v1552
  %v1554 = vpop.f32.mrb[0].mxu0
  %v1555 = vpop.f32.mrb[0].mxu0
  %v1556 = vadd.f32 0.0, %v1555
  %v1557 = vpop.f32.mrb[0].mxu0
  %1558 = vmatprep.mubr.bf16.mxu0 0
  %1559 = vmatmul.mubr.bf16.gmra.mrb[0].mxu0 %v1310
  %v1560 = vpop.f32.mrb[0].mxu0
  %v1561 = vadd.f32 0.0, %v1560
  %v1562 = vpop.f32.mrb[0].mxu0
  %v1563 = vpop.f32.mrb[0].mxu0
  %v1564 = vadd.f32 0.0, %v1563
  %v1565 = vpop.f32.mrb[0].mxu0
  %1566 = vmatprep.mubr.bf16.mxu0 0
  %1567 = vmatmul.mubr.bf16.gmra.mrb[0].mxu0 %v1313
  %v1568 = vpop.f32.mrb[0].mxu0
  %v1569 = vadd.f32 0.0, %v1568
  %v1570 = vpop.f32.mrb[0].mxu0
  %v1571 = vpop.f32.mrb[0].mxu0
  %v1572 = vadd.f32 0.0, %v1571
  %v1573 = vpop.f32.mrb[0].mxu0
  %1574 = vmatprep.mubr.bf16.mxu0 0
  %1575 = vmatmul.mubr.bf16.gmra.mrb[0].mxu0 %v1316
  %v1576 = vpop.f32.mrb[0].mxu0
  %v1577 = vadd.f32 0.0, %v1576
  %v1578 = vpop.f32.mrb[0].mxu0
  %v1579 = vpop.f32.mrb[0].mxu0
  %v1580 = vadd.f32 0.0, %v1579
  %v1581 = vpop.f32.mrb[0].mxu0
  %1582 = vmatprep.mubr.bf16.mxu0 0
  %1583 = vmatmul.mubr.bf16.gmra.mrb[0].mxu0 %v1319
  %v1584 = vpop.f32.mrb[0].mxu0
  %v1585 = vadd.f32 0.0, %v1584
  %v1586 = vpop.f32.mrb[0].mxu0
  %v1587 = vpop.f32.mrb[0].mxu0
  %v1588 = vadd.f32 0.0, %v1587
  %v1589 = vpop.f32.mrb[0].mxu0
  %1590 = vmatprep.mubr.bf16.mxu0 0
  %1591 = vmatmul.mubr.bf16.gmra.mrb[0].mxu0 %v1322
  %v1592 = vpop.f32.mrb[0].mxu0
  %v1593 = vadd.f32 0.0, %v1592
  %v1594 = vpop.f32.mrb[0].mxu0
  %v1595 = vpop.f32.mrb[0].mxu0
  %v1596 = vadd.f32 0.0, %v1595
  %v1597 = vpop.f32.mrb[0].mxu0
  %1598 = vmatprep.mubr.bf16.mxu0 0
  %1599 = vmatmul.mubr.bf16.gmra.mrb[0].mxu0 %v1325
  %v1600 = vpop.f32.mrb[0].mxu0
  %v1601 = vadd.f32 0.0, %v1600
  %v1602 = vpop.f32.mrb[0].mxu0
  %v1603 = vpop.f32.mrb[0].mxu0
  %v1604 = vadd.f32 0.0, %v1603
  %v1605 = vpop.f32.mrb[0].mxu0
  %1606 = vmatprep.mubr.bf16.mxu0 0
  %1607 = vmatmul.mubr.bf16.gmra.mrb[0].mxu0 %v1328
  %v1608 = vpop.f32.mrb[0].mxu0
  %v1609 = vadd.f32 0.0, %v1608
  %v1610 = vpop.f32.mrb[0].mxu0
  %v1611 = vpop.f32.mrb[0].mxu0
  %v1612 = vadd.f32 0.0, %v1611
  %v1613 = vpop.f32.mrb[0].mxu0
  %1614 = vmatprep.mubr.bf16.mxu0 0
  %1615 = vmatmul.mubr.bf16.gmra.mrb[0].mxu0 %v1331
  %v1616 = vpop.f32.mrb[0].mxu0
  %v1617 = vadd.f32 0.0, %v1616
  %v1618 = vpop.f32.mrb[0].mxu0
  %v1619 = vpop.f32.mrb[0].mxu0
  %v1620 = vadd.f32 0.0, %v1619
  %v1621 = vpop.f32.mrb[0].mxu0
  %1622 = vmatprep.mubr.bf16.mxu0 0
  %1623 = vmatmul.mubr.bf16.gmra.mrb[0].mxu0 %v1334
  %v1624 = vpop.f32.mrb[0].mxu0
  %v1625 = vadd.f32 0.0, %v1624
  %v1626 = vpop.f32.mrb[0].mxu0
  %v1627 = vpop.f32.mrb[0].mxu0
  %v1628 = vadd.f32 0.0, %v1627
  %v1629 = vpop.f32.mrb[0].mxu0
  %1630 = vmatprep.mubr.bf16.mxu0 0
  %1631 = vmatmul.mubr.bf16.gmra.mrb[0].mxu0 %v1337
  %v1632 = vpop.f32.mrb[0].mxu0
  %v1633 = vadd.f32 0.0, %v1632
  %v1634 = vpop.f32.mrb[0].mxu0
  %v1635 = vpop.f32.mrb[0].mxu0
  %v1636 = vadd.f32 0.0, %v1635
  %v1637 = vpop.f32.mrb[0].mxu0
  %1638 = vmatprep.mubr.bf16.mxu0 0
  %1639 = vmatmul.mubr.bf16.gmra.mrb[0].mxu0 %v1340
  %v1640 = vpop.f32.mrb[0].mxu0
  %v1641 = vadd.f32 0.0, %v1640
  %v1642 = vpop.f32.mrb[0].mxu0
  %v1643 = vpop.f32.mrb[0].mxu0
  %v1644 = vadd.f32 0.0, %v1643
  %v1645 = vpop.f32.mrb[0].mxu0
  %1646 = vmatprep.mubr.bf16.mxu0 0
  %1647 = vmatmul.mubr.bf16.gmra.mrb[0].mxu0 %v1343
  %v1648 = vpop.f32.mrb[0].mxu0
  %v1649 = vadd.f32 0.0, %v1648
  %v1650 = vpop.f32.mrb[0].mxu0
  %v1651 = vpop.f32.mrb[0].mxu0
  %v1652 = vadd.f32 0.0, %v1651
  %v1653 = vpop.f32.mrb[0].mxu0
  %1654 = vmatprep.mubr.bf16.mxu0 0
  %1655 = vmatmul.mubr.bf16.gmra.mrb[0].mxu0 %v1346
  %v1656 = vpop.f32.mrb[0].mxu0
  %v1657 = vadd.f32 0.0, %v1656
  %v1658 = vpop.f32.mrb[0].mxu0
  %v1659 = vpop.f32.mrb[0].mxu0
  %v1660 = vadd.f32 0.0, %v1659
  %v1661 = vpop.f32.mrb[0].mxu0
  %1662 = vmatprep.mubr.bf16.mxu0 0
  %1663 = vmatmul.mubr.bf16.gmra.mrb[0].mxu0 %v1349
  %v1664 = vpop.f32.mrb[0].mxu0
  %v1665 = vadd.f32 0.0, %v1664
  %v1666 = vpop.f32.mrb[0].mxu0
  %v1667 = vpop.f32.mrb[0].mxu0
  %v1668 = vadd.f32 0.0, %v1667
  %v1669 = vpop.f32.mrb[0].mxu0
  %1670 = vmatprep.mubr.bf16.mxu0 0
  %1671 = vmatmul.mubr.bf16.gmra.mrb[0].mxu0 %v1352
  %v1672 = vpop.f32.mrb[0].mxu0
  %v1673 = vadd.f32 0.0, %v1672
  %v1674 = vpop.f32.mrb[0].mxu0
  %v1675 = vpop.f32.mrb[0].mxu0
  %v1676 = vadd.f32 0.0, %v1675
  %v1677 = vpop.f32.mrb[0].mxu0
  %1678 = vmatprep.mubr.bf16.mxu0 0
  %1679 = vmatmul.mubr.bf16.gmra.mrb[0].mxu0 %v1355
  %v1680 = vpop.f32.mrb[0].mxu0
  %v1681 = vadd.f32 0.0, %v1680
  %v1682 = vpop.f32.mrb[0].mxu0
  %v1683 = vpop.f32.mrb[0].mxu0
  %v1684 = vadd.f32 0.0, %v1683
  %v1685 = vpop.f32.mrb[0].mxu0
  %1686 = vmatprep.mubr.bf16.mxu0 0
  %1687 = vmatmul.mubr.bf16.gmra.mrb[0].mxu0 %v1358
  %v1688 = vpop.f32.mrb[0].mxu0
  %v1689 = vadd.f32 0.0, %v1688
  %v1690 = vpop.f32.mrb[0].mxu0
  %v1691 = vpop.f32.mrb[0].mxu0
  %v1692 = vadd.f32 0.0, %v1691
  %v1693 = vpop.f32.mrb[0].mxu0
  %1694 = vmatprep.mubr.bf16.mxu0 0
  %1695 = vmatmul.mubr.bf16.gmra.mrb[0].mxu0 %v1361
  %v1696 = vpop.f32.mrb[0].mxu0
  %v1697 = vadd.f32 0.0, %v1696
  %v1698 = vpop.f32.mrb[0].mxu0
  %v1699 = vpop.f32.mrb[0].mxu0
  %v1700 = vadd.f32 0.0, %v1699
  %v1701 = vpop.f32.mrb[0].mxu0
  %1702 = vmatprep.mubr.bf16.mxu0 0
  %1703 = vmatmul.mubr.bf16.gmra.mrb[0].mxu0 %v1364
  %v1704 = vpop.f32.mrb[0].mxu0
  %v1705 = vadd.f32 0.0, %v1704
  %v1706 = vpop.f32.mrb[0].mxu0
  %v1707 = vpop.f32.mrb[0].mxu0
  %v1708 = vadd.f32 0.0, %v1707
  %v1709 = vpop.f32.mrb[0].mxu0
  %1710 = vmatprep.mubr.bf16.mxu0 0
  %1711 = vmatmul.mubr.bf16.gmra.mrb[0].mxu0 %v1367
  %v1712 = vpop.f32.mrb[0].mxu0
  %v1713 = vadd.f32 0.0, %v1712
  %v1714 = vpop.f32.mrb[0].mxu0
  %v1715 = vpop.f32.mrb[0].mxu0
  %v1716 = vadd.f32 0.0, %v1715
  %v1717 = vpop.f32.mrb[0].mxu0
  %1718 = vmatprep.mubr.bf16.mxu0 0
  %1719 = vmatmul.mubr.bf16.gmra.mrb[0].mxu0 %v1370
  %v1720 = vpop.f32.mrb[0].mxu0
  %v1721 = vadd.f32 0.0, %v1720
  %v1722 = vpop.f32.mrb[0].mxu0
  %v1723 = vpop.f32.mrb[0].mxu0
  %v1724 = vadd.f32 0.0, %v1723
  %v1725 = vpop.f32.mrb[0].mxu0
  %1726 = vmatprep.mubr.bf16.mxu0 0
  %1727 = vmatmul.mubr.bf16.gmra.mrb[0].mxu0 %v1373
  %v1728 = vpop.f32.mrb[0].mxu0
  %v1729 = vadd.f32 0.0, %v1728
  %v1730 = vpop.f32.mrb[0].mxu0
  %v1731 = vpop.f32.mrb[0].mxu0
  %v1732 = vadd.f32 0.0, %v1731
  %v1733 = vpop.f32.mrb[0].mxu0
  %1734 = vmatprep.mubr.bf16.mxu0 0
  %1735 = vmatmul.mubr.bf16.gmra.mrb[0].mxu0 %v1376
  %v1736 = vpop.f32.mrb[0].mxu0
  %v1737 = vadd.f32 0.0, %v1736
  %v1738 = vpop.f32.mrb[0].mxu0
  %v1739 = vpop.f32.mrb[0].mxu0
  %v1740 = vadd.f32 0.0, %v1739
  %v1741 = vpop.f32.mrb[0].mxu0
  %1742 = vmatprep.mubr.bf16.mxu0 0
  %1743 = vmatmul.mubr.bf16.gmra.mrb[0].mxu0 %v1379
  %v1744 = vpop.f32.mrb[0].mxu0
  %v1745 = vadd.f32 0.0, %v1744
  %v1746 = vpop.f32.mrb[0].mxu0
  %v1747 = vpop.f32.mrb[0].mxu0
  %v1748 = vadd.f32 0.0, %v1747
  %v1749 = vpop.f32.mrb[0].mxu0
  %1750 = vmatprep.mubr.bf16.mxu0 0
  %1751 = vmatmul.mubr.bf16.gmra.mrb[0].mxu0 %v1382
  %v1752 = vpop.f32.mrb[0].mxu0
  %v1753 = vadd.f32 0.0, %v1752
  %v1754 = vpop.f32.mrb[0].mxu0
  %v1755 = vpop.f32.mrb[0].mxu0
  %v1756 = vadd.f32 0.0, %v1755
  %v1757 = vpop.f32.mrb[0].mxu0
  %1758 = vmatprep.mubr.bf16.mxu0 0
  %1759 = vmatmul.mubr.bf16.gmra.mrb[0].mxu0 %v1385
  %v1760 = vpop.f32.mrb[0].mxu0
  %v1761 = vadd.f32 0.0, %v1760
  %v1762 = vpop.f32.mrb[0].mxu0
  %v1763 = vpop.f32.mrb[0].mxu0
  %v1764 = vadd.f32 0.0, %v1763
  %v1765 = vpop.f32.mrb[0].mxu0
  %1766 = vmatprep.mubr.bf16.mxu0 0
  %1767 = vmatmul.mubr.bf16.gmra.mrb[0].mxu0 %v1388
  %v1768 = vpop.f32.mrb[0].mxu0
  %v1769 = vadd.f32 0.0, %v1768
  %v1770 = vpop.f32.mrb[0].mxu0
  %v1771 = vpop.f32.mrb[0].mxu0
  %v1772 = vadd.f32 0.0, %v1771
  %v1773 = vpop.f32.mrb[0].mxu0
  %1774 = vmatprep.mubr.bf16.mxu0 0
  %1775 = vmatmul.mubr.bf16.gmra.mrb[0].mxu0 %v1391
  %v1776 = vpop.f32.mrb[0].mxu0
  %v1777 = vadd.f32 0.0, %v1776
  %v1778 = vpop.f32.mrb[0].mxu0
  %v1779 = vpop.f32.mrb[0].mxu0
  %v1780 = vadd.f32 0.0, %v1779
  %v1781 = vpop.f32.mrb[0].mxu0
  %1782 = vmatprep.mubr.bf16.mxu0 0
  %1783 = vmatmul.mubr.bf16.gmra.mrb[0].mxu0 %v1394
  %v1784 = vpop.f32.mrb[0].mxu0
  %v1785 = vadd.f32 0.0, %v1784
  %v1786 = vpop.f32.mrb[0].mxu0
  %v1787 = vpop.f32.mrb[0].mxu0
  %v1788 = vadd.f32 0.0, %v1787
  %v1789 = vpop.f32.mrb[0].mxu0
  %1790 = vmatprep.mubr.bf16.mxu0 0
  %1791 = vmatmul.mubr.bf16.gmra.mrb[0].mxu0 %v1397
  %v1792 = vpop.f32.mrb[0].mxu0
  %v1793 = vadd.f32 0.0, %v1792
  %v1794 = vpop.f32.mrb[0].mxu0
  %v1795 = vpop.f32.mrb[0].mxu0
  %v1796 = vadd.f32 0.0, %v1795
  %v1797 = vpop.f32.mrb[0].mxu0
  %1798 = vmatprep.mubr.bf16.mxu0 0
  %1799 = vmatmul.mubr.bf16.gmra.mrb[0].mxu0 %v1400
  %v1800 = vpop.f32.mrb[0].mxu0
  %v1801 = vadd.f32 0.0, %v1800
  %v1802 = vpop.f32.mrb[0].mxu0
  %v1803 = vpop.f32.mrb[0].mxu0
  %v1804 = vadd.f32 0.0, %v1803
  %v1805 = vpop.f32.mrb[0].mxu0
  %1806 = vmatprep.mubr.bf16.mxu0 0
  %1807 = vmatmul.mubr.bf16.gmra.mrb[0].mxu0 %v1403
  %v1808 = vpop.f32.mrb[0].mxu0
  %v1809 = vadd.f32 0.0, %v1808
  %v1810 = vpop.f32.mrb[0].mxu0
  %v1811 = vpop.f32.mrb[0].mxu0
  %v1812 = vadd.f32 0.0, %v1811
  %v1813 = vpop.f32.mrb[0].mxu0
  %1814 = vmatprep.mubr.bf16.mxu0 0
  %1815 = vmatmul.mubr.bf16.gmra.mrb[0].mxu0 %v1406
  %v1816 = vpop.f32.mrb[0].mxu0
  %v1817 = vadd.f32 0.0, %v1816
  %v1818 = vpop.f32.mrb[0].mxu0
  %v1819 = vpop.f32.mrb[0].mxu0
  %v1820 = vadd.f32 0.0, %v1819
  %v1821 = vpop.f32.mrb[0].mxu0
  %1822 = vmatprep.mubr.bf16.mxu0 0
  %1823 = vmatmul.mubr.bf16.gmra.mrb[0].mxu0 %v1409
  %v1824 = vpop.f32.mrb[0].mxu0
  %v1825 = vadd.f32 0.0, %v1824
  %v1826 = vpop.f32.mrb[0].mxu0
  %v1827 = vpop.f32.mrb[0].mxu0
  %v1828 = vadd.f32 0.0, %v1827
  %v1829 = vpop.f32.mrb[0].mxu0
  %1830 = vdwg.mxu0
  %v1831 = vld [vmem:[#allocation2] sm:$0xff]
  %v1832 = vld [vmem:[#allocation2 + $0x8] sm:$0xff]
  %v1833 = vld [vmem:[#allocation2 + $0x10] sm:$0xff]
  %v1834 = vld [vmem:[#allocation2 + $0x18] sm:$0xff]
  %v1835 = vld [vmem:[#allocation2 + $0x20] sm:$0xff]
  %v1836 = vld [vmem:[#allocation2 + $0x28] sm:$0xff]
  %v1837 = vld [vmem:[#allocation2 + $0x30] sm:$0xff]
  %v1838 = vld [vmem:[#allocation2 + $0x38] sm:$0xff]
  %v1839 = vld [vmem:[#allocation2 + $0x40] sm:$0xff]
  %v1840 = vld [vmem:[#allocation2 + $0x48] sm:$0xff]
  %v1841 = vld [vmem:[#allocation2 + $0x50] sm:$0xff]
  %v1842 = vld [vmem:[#allocation2 + $0x58] sm:$0xff]
  %v1843 = vld [vmem:[#allocation2 + $0x60] sm:$0xff]
  %v1844 = vld [vmem:[#allocation2 + $0x68] sm:$0xff]
  %v1845 = vld [vmem:[#allocation2 + $0x70] sm:$0xff]
  %v1846 = vld [vmem:[#allocation2 + $0x78] sm:$0xff]
  %v1847 = vld [vmem:[#allocation2 + $0x80] sm:$0xff]
  %v1848 = vld [vmem:[#allocation2 + $0x88] sm:$0xff]
  %v1849 = vld [vmem:[#allocation2 + $0x90] sm:$0xff]
  %v1850 = vld [vmem:[#allocation2 + $0x98] sm:$0xff]
  %v1851 = vld [vmem:[#allocation2 + $0xa0] sm:$0xff]
  %v1852 = vld [vmem:[#allocation2 + $0xa8] sm:$0xff]
  %v1853 = vld [vmem:[#allocation2 + $0xb0] sm:$0xff]
  %v1854 = vld [vmem:[#allocation2 + $0xb8] sm:$0xff]
  %v1855 = vld [vmem:[#allocation2 + $0xc0] sm:$0xff]
  %v1856 = vld [vmem:[#allocation2 + $0xc8] sm:$0xff]
  %v1857 = vld [vmem:[#allocation2 + $0xd0] sm:$0xff]
  %v1858 = vld [vmem:[#allocation2 + $0xd8] sm:$0xff]
  %v1859 = vld [vmem:[#allocation2 + $0xe0] sm:$0xff]
  %v1860 = vld [vmem:[#allocation2 + $0xe8] sm:$0xff]
  %v1861 = vld [vmem:[#allocation2 + $0xf0] sm:$0xff]
  %v1862 = vld [vmem:[#allocation2 + $0xf8] sm:$0xff]
  %v1863 = vld [vmem:[#allocation2 + $0x100] sm:$0xff]
  %v1864 = vld [vmem:[#allocation2 + $0x108] sm:$0xff]
  %v1865 = vld [vmem:[#allocation2 + $0x110] sm:$0xff]
  %v1866 = vld [vmem:[#allocation2 + $0x118] sm:$0xff]
  %v1867 = vld [vmem:[#allocation2 + $0x120] sm:$0xff]
  %v1868 = vld [vmem:[#allocation2 + $0x128] sm:$0xff]
  %v1869 = vld [vmem:[#allocation2 + $0x130] sm:$0xff]
  %v1870 = vld [vmem:[#allocation2 + $0x138] sm:$0xff]
  %v1871 = vld [vmem:[#allocation2 + $0x140] sm:$0xff]
  %v1872 = vld [vmem:[#allocation2 + $0x148] sm:$0xff]
  %v1873 = vld [vmem:[#allocation2 + $0x150] sm:$0xff]
  %v1874 = vld [vmem:[#allocation2 + $0x158] sm:$0xff]
  %v1875 = vld [vmem:[#allocation2 + $0x160] sm:$0xff]
  %v1876 = vld [vmem:[#allocation2 + $0x168] sm:$0xff]
  %v1877 = vld [vmem:[#allocation2 + $0x170] sm:$0xff]
  %v1878 = vld [vmem:[#allocation2 + $0x178] sm:$0xff]
  %v1879 = vld [vmem:[#allocation2 + $0x180] sm:$0xff]
  %v1880 = vld [vmem:[#allocation2 + $0x188] sm:$0xff]
  %v1881 = vld [vmem:[#allocation2 + $0x190] sm:$0xff]
  %v1882 = vld [vmem:[#allocation2 + $0x198] sm:$0xff]
  %v1883 = vld [vmem:[#allocation2 + $0x1a0] sm:$0xff]
  %v1884 = vld [vmem:[#allocation2 + $0x1a8] sm:$0xff]
  %v1885 = vld [vmem:[#allocation2 + $0x1b0] sm:$0xff]
  %v1886 = vld [vmem:[#allocation2 + $0x1b8] sm:$0xff]
  %v1887 = vld [vmem:[#allocation2 + $0x1c0] sm:$0xff]
  %v1888 = vld [vmem:[#allocation2 + $0x1c8] sm:$0xff]
  %v1889 = vld [vmem:[#allocation2 + $0x1d0] sm:$0xff]
  %v1890 = vld [vmem:[#allocation2 + $0x1d8] sm:$0xff]
  %v1891 = vld [vmem:[#allocation2 + $0x1e0] sm:$0xff]
  %v1892 = vld [vmem:[#allocation2 + $0x1e8] sm:$0xff]
  %v1893 = vld [vmem:[#allocation2 + $0x1f0] sm:$0xff]
  %v1894 = vld [vmem:[#allocation2 + $0x1f8] sm:$0xff]
  %v1895 = vld [vmem:[#allocation2 + $0x200] sm:$0xff]
  %v1896 = vld [vmem:[#allocation2 + $0x208] sm:$0xff]
  %v1897 = vld [vmem:[#allocation2 + $0x210] sm:$0xff]
  %v1898 = vld [vmem:[#allocation2 + $0x218] sm:$0xff]
  %v1899 = vld [vmem:[#allocation2 + $0x220] sm:$0xff]
  %v1900 = vld [vmem:[#allocation2 + $0x228] sm:$0xff]
  %v1901 = vld [vmem:[#allocation2 + $0x230] sm:$0xff]
  %v1902 = vld [vmem:[#allocation2 + $0x238] sm:$0xff]
  %v1903 = vld [vmem:[#allocation2 + $0x240] sm:$0xff]
  %v1904 = vld [vmem:[#allocation2 + $0x248] sm:$0xff]
  %v1905 = vld [vmem:[#allocation2 + $0x250] sm:$0xff]
  %v1906 = vld [vmem:[#allocation2 + $0x258] sm:$0xff]
  %v1907 = vld [vmem:[#allocation2 + $0x260] sm:$0xff]
  %v1908 = vld [vmem:[#allocation2 + $0x268] sm:$0xff]
  %v1909 = vld [vmem:[#allocation2 + $0x270] sm:$0xff]
  %v1910 = vld [vmem:[#allocation2 + $0x278] sm:$0xff]
  %v1911 = vld [vmem:[#allocation2 + $0x280] sm:$0xff]
  %v1912 = vld [vmem:[#allocation2 + $0x288] sm:$0xff]
  %v1913 = vld [vmem:[#allocation2 + $0x290] sm:$0xff]
  %v1914 = vld [vmem:[#allocation2 + $0x298] sm:$0xff]
  %v1915 = vld [vmem:[#allocation2 + $0x2a0] sm:$0xff]
  %v1916 = vld [vmem:[#allocation2 + $0x2a8] sm:$0xff]
  %v1917 = vld [vmem:[#allocation2 + $0x2b0] sm:$0xff]
  %v1918 = vld [vmem:[#allocation2 + $0x2b8] sm:$0xff]
  %v1919 = vld [vmem:[#allocation2 + $0x2c0] sm:$0xff]
  %v1920 = vld [vmem:[#allocation2 + $0x2c8] sm:$0xff]
  %v1921 = vld [vmem:[#allocation2 + $0x2d0] sm:$0xff]
  %v1922 = vld [vmem:[#allocation2 + $0x2d8] sm:$0xff]
  %v1923 = vld [vmem:[#allocation2 + $0x2e0] sm:$0xff]
  %v1924 = vld [vmem:[#allocation2 + $0x2e8] sm:$0xff]
  %v1925 = vld [vmem:[#allocation2 + $0x2f0] sm:$0xff]
  %v1926 = vld [vmem:[#allocation2 + $0x2f8] sm:$0xff]
  %v1927 = vadd.f32 %v1831, %v1449
  %v1928 = vadd.f32 %v1832, %v1452
  %v1929 = vadd.f32 %v1833, %v1457
  %v1930 = vadd.f32 %v1834, %v1460
  %v1931 = vadd.f32 %v1835, %v1465
  %v1932 = vadd.f32 %v1836, %v1468
  %v1933 = vadd.f32 %v1837, %v1473
  %v1934 = vadd.f32 %v1838, %v1476
  %v1935 = vadd.f32 %v1839, %v1481
  %v1936 = vadd.f32 %v1840, %v1484
  %v1937 = vadd.f32 %v1841, %v1489
  %v1938 = vadd.f32 %v1842, %v1492
  %v1939 = vadd.f32 %v1843, %v1497
  %v1940 = vadd.f32 %v1844, %v1500
  %v1941 = vadd.f32 %v1845, %v1505
  %v1942 = vadd.f32 %v1846, %v1508
  %v1943 = vadd.f32 %v1847, %v1513
  %v1944 = vadd.f32 %v1848, %v1516
  %v1945 = vadd.f32 %v1849, %v1521
  %v1946 = vadd.f32 %v1850, %v1524
  %v1947 = vadd.f32 %v1851, %v1529
  %v1948 = vadd.f32 %v1852, %v1532
  %v1949 = vadd.f32 %v1853, %v1537
  %v1950 = vadd.f32 %v1854, %v1540
  %v1951 = vadd.f32 %v1855, %v1545
  %v1952 = vadd.f32 %v1856, %v1548
  %v1953 = vadd.f32 %v1857, %v1553
  %v1954 = vadd.f32 %v1858, %v1556
  %v1955 = vadd.f32 %v1859, %v1561
  %v1956 = vadd.f32 %v1860, %v1564
  %v1957 = vadd.f32 %v1861, %v1569
  %v1958 = vadd.f32 %v1862, %v1572
  %v1959 = vadd.f32 %v1863, %v1577
  %v1960 = vadd.f32 %v1864, %v1580
  %v1961 = vadd.f32 %v1865, %v1585
  %v1962 = vadd.f32 %v1866, %v1588
  %v1963 = vadd.f32 %v1867, %v1593
  %v1964 = vadd.f32 %v1868, %v1596
  %v1965 = vadd.f32 %v1869, %v1601
  %v1966 = vadd.f32 %v1870, %v1604
  %v1967 = vadd.f32 %v1871, %v1609
  %v1968 = vadd.f32 %v1872, %v1612
  %v1969 = vadd.f32 %v1873, %v1617
  %v1970 = vadd.f32 %v1874, %v1620
  %v1971 = vadd.f32 %v1875, %v1625
  %v1972 = vadd.f32 %v1876, %v1628
  %v1973 = vadd.f32 %v1877, %v1633
  %v1974 = vadd.f32 %v1878, %v1636
  %v1975 = vadd.f32 %v1879, %v1641
  %v1976 = vadd.f32 %v1880, %v1644
  %v1977 = vadd.f32 %v1881, %v1649
  %v1978 = vadd.f32 %v1882, %v1652
  %v1979 = vadd.f32 %v1883, %v1657
  %v1980 = vadd.f32 %v1884, %v1660
  %v1981 = vadd.f32 %v1885, %v1665
  %v1982 = vadd.f32 %v1886, %v1668
  %v1983 = vadd.f32 %v1887, %v1673
  %v1984 = vadd.f32 %v1888, %v1676
  %v1985 = vadd.f32 %v1889, %v1681
  %v1986 = vadd.f32 %v1890, %v1684
  %v1987 = vadd.f32 %v1891, %v1689
  %v1988 = vadd.f32 %v1892, %v1692
  %v1989 = vadd.f32 %v1893, %v1697
  %v1990 = vadd.f32 %v1894, %v1700
  %v1991 = vadd.f32 %v1895, %v1705
  %v1992 = vadd.f32 %v1896, %v1708
  %v1993 = vadd.f32 %v1897, %v1713
  %v1994 = vadd.f32 %v1898, %v1716
  %v1995 = vadd.f32 %v1899, %v1721
  %v1996 = vadd.f32 %v1900, %v1724
  %v1997 = vadd.f32 %v1901, %v1729
  %v1998 = vadd.f32 %v1902, %v1732
  %v1999 = vadd.f32 %v1903, %v1737
  %v2000 = vadd.f32 %v1904, %v1740
  %v2001 = vadd.f32 %v1905, %v1745
  %v2002 = vadd.f32 %v1906, %v1748
  %v2003 = vadd.f32 %v1907, %v1753
  %v2004 = vadd.f32 %v1908, %v1756
  %v2005 = vadd.f32 %v1909, %v1761
  %v2006 = vadd.f32 %v1910, %v1764
  %v2007 = vadd.f32 %v1911, %v1769
  %v2008 = vadd.f32 %v1912, %v1772
  %v2009 = vadd.f32 %v1913, %v1777
  %v2010 = vadd.f32 %v1914, %v1780
  %v2011 = vadd.f32 %v1915, %v1785
  %v2012 = vadd.f32 %v1916, %v1788
  %v2013 = vadd.f32 %v1917, %v1793
  %v2014 = vadd.f32 %v1918, %v1796
  %v2015 = vadd.f32 %v1919, %v1801
  %v2016 = vadd.f32 %v1920, %v1804
  %v2017 = vadd.f32 %v1921, %v1809
  %v2018 = vadd.f32 %v1922, %v1812
  %v2019 = vadd.f32 %v1923, %v1817
  %v2020 = vadd.f32 %v1924, %v1820
  %v2021 = vadd.f32 %v1925, %v1825
  %v2022 = vadd.f32 %v1926, %v1828
  %2023 = vst [vmem:[#allocation2] sm:$0xff] %v1927
  %2024 = vst [vmem:[#allocation2 + $0x8] sm:$0xff] %v1928
  %2025 = vst [vmem:[#allocation2 + $0x10] sm:$0xff] %v1929
  %2026 = vst [vmem:[#allocation2 + $0x18] sm:$0xff] %v1930
  %2027 = vst [vmem:[#allocation2 + $0x20] sm:$0xff] %v1931
  %2028 = vst [vmem:[#allocation2 + $0x28] sm:$0xff] %v1932
  %2029 = vst [vmem:[#allocation2 + $0x30] sm:$0xff] %v1933
  %2030 = vst [vmem:[#allocation2 + $0x38] sm:$0xff] %v1934
  %2031 = vst [vmem:[#allocation2 + $0x40] sm:$0xff] %v1935
  %2032 = vst [vmem:[#allocation2 + $0x48] sm:$0xff] %v1936
  %2033 = vst [vmem:[#allocation2 + $0x50] sm:$0xff] %v1937
  %2034 = vst [vmem:[#allocation2 + $0x58] sm:$0xff] %v1938
  %2035 = vst [vmem:[#allocation2 + $0x60] sm:$0xff] %v1939
  %2036 = vst [vmem:[#allocation2 + $0x68] sm:$0xff] %v1940
  %2037 = vst [vmem:[#allocation2 + $0x70] sm:$0xff] %v1941
  %2038 = vst [vmem:[#allocation2 + $0x78] sm:$0xff] %v1942
  %2039 = vst [vmem:[#allocation2 + $0x80] sm:$0xff] %v1943
  %2040 = vst [vmem:[#allocation2 + $0x88] sm:$0xff] %v1944
  %2041 = vst [vmem:[#allocation2 + $0x90] sm:$0xff] %v1945
  %2042 = vst [vmem:[#allocation2 + $0x98] sm:$0xff] %v1946
  %2043 = vst [vmem:[#allocation2 + $0xa0] sm:$0xff] %v1947
  %2044 = vst [vmem:[#allocation2 + $0xa8] sm:$0xff] %v1948
  %2045 = vst [vmem:[#allocation2 + $0xb0] sm:$0xff] %v1949
  %2046 = vst [vmem:[#allocation2 + $0xb8] sm:$0xff] %v1950
  %2047 = vst [vmem:[#allocation2 + $0xc0] sm:$0xff] %v1951
  %2048 = vst [vmem:[#allocation2 + $0xc8] sm:$0xff] %v1952
  %2049 = vst [vmem:[#allocation2 + $0xd0] sm:$0xff] %v1953
  %2050 = vst [vmem:[#allocation2 + $0xd8] sm:$0xff] %v1954
  %2051 = vst [vmem:[#allocation2 + $0xe0] sm:$0xff] %v1955
  %2052 = vst [vmem:[#allocation2 + $0xe8] sm:$0xff] %v1956
  %2053 = vst [vmem:[#allocation2 + $0xf0] sm:$0xff] %v1957
  %2054 = vst [vmem:[#allocation2 + $0xf8] sm:$0xff] %v1958
  %2055 = vst [vmem:[#allocation2 + $0x100] sm:$0xff] %v1959
  %2056 = vst [vmem:[#allocation2 + $0x108] sm:$0xff] %v1960
  %2057 = vst [vmem:[#allocation2 + $0x110] sm:$0xff] %v1961
  %2058 = vst [vmem:[#allocation2 + $0x118] sm:$0xff] %v1962
  %2059 = vst [vmem:[#allocation2 + $0x120] sm:$0xff] %v1963
  %2060 = vst [vmem:[#allocation2 + $0x128] sm:$0xff] %v1964
  %2061 = vst [vmem:[#allocation2 + $0x130] sm:$0xff] %v1965
  %2062 = vst [vmem:[#allocation2 + $0x138] sm:$0xff] %v1966
  %2063 = vst [vmem:[#allocation2 + $0x140] sm:$0xff] %v1967
  %2064 = vst [vmem:[#allocation2 + $0x148] sm:$0xff] %v1968
  %2065 = vst [vmem:[#allocation2 + $0x150] sm:$0xff] %v1969
  %2066 = vst [vmem:[#allocation2 + $0x158] sm:$0xff] %v1970
  %2067 = vst [vmem:[#allocation2 + $0x160] sm:$0xff] %v1971
  %2068 = vst [vmem:[#allocation2 + $0x168] sm:$0xff] %v1972
  %2069 = vst [vmem:[#allocation2 + $0x170] sm:$0xff] %v1973
  %2070 = vst [vmem:[#allocation2 + $0x178] sm:$0xff] %v1974
  %2071 = vst [vmem:[#allocation2 + $0x180] sm:$0xff] %v1975
  %2072 = vst [vmem:[#allocation2 + $0x188] sm:$0xff] %v1976
  %2073 = vst [vmem:[#allocation2 + $0x190] sm:$0xff] %v1977
  %2074 = vst [vmem:[#allocation2 + $0x198] sm:$0xff] %v1978
  %2075 = vst [vmem:[#allocation2 + $0x1a0] sm:$0xff] %v1979
  %2076 = vst [vmem:[#allocation2 + $0x1a8] sm:$0xff] %v1980
  %2077 = vst [vmem:[#allocation2 + $0x1b0] sm:$0xff] %v1981
  %2078 = vst [vmem:[#allocation2 + $0x1b8] sm:$0xff] %v1982
  %2079 = vst [vmem:[#allocation2 + $0x1c0] sm:$0xff] %v1983
  %2080 = vst [vmem:[#allocation2 + $0x1c8] sm:$0xff] %v1984
  %2081 = vst [vmem:[#allocation2 + $0x1d0] sm:$0xff] %v1985
  %2082 = vst [vmem:[#allocation2 + $0x1d8] sm:$0xff] %v1986
  %2083 = vst [vmem:[#allocation2 + $0x1e0] sm:$0xff] %v1987
  %2084 = vst [vmem:[#allocation2 + $0x1e8] sm:$0xff] %v1988
  %2085 = vst [vmem:[#allocation2 + $0x1f0] sm:$0xff] %v1989
  %2086 = vst [vmem:[#allocation2 + $0x1f8] sm:$0xff] %v1990
  %2087 = vst [vmem:[#allocation2 + $0x200] sm:$0xff] %v1991
  %2088 = vst [vmem:[#allocation2 + $0x208] sm:$0xff] %v1992
  %2089 = vst [vmem:[#allocation2 + $0x210] sm:$0xff] %v1993
  %2090 = vst [vmem:[#allocation2 + $0x218] sm:$0xff] %v1994
  %2091 = vst [vmem:[#allocation2 + $0x220] sm:$0xff] %v1995
  %2092 = vst [vmem:[#allocation2 + $0x228] sm:$0xff] %v1996
  %2093 = vst [vmem:[#allocation2 + $0x230] sm:$0xff] %v1997
  %2094 = vst [vmem:[#allocation2 + $0x238] sm:$0xff] %v1998
  %2095 = vst [vmem:[#allocation2 + $0x240] sm:$0xff] %v1999
  %2096 = vst [vmem:[#allocation2 + $0x248] sm:$0xff] %v2000
  %2097 = vst [vmem:[#allocation2 + $0x250] sm:$0xff] %v2001
  %2098 = vst [vmem:[#allocation2 + $0x258] sm:$0xff] %v2002
  %2099 = vst [vmem:[#allocation2 + $0x260] sm:$0xff] %v2003
  %2100 = vst [vmem:[#allocation2 + $0x268] sm:$0xff] %v2004
  %2101 = vst [vmem:[#allocation2 + $0x270] sm:$0xff] %v2005
  %2102 = vst [vmem:[#allocation2 + $0x278] sm:$0xff] %v2006
  %2103 = vst [vmem:[#allocation2 + $0x280] sm:$0xff] %v2007
  %2104 = vst [vmem:[#allocation2 + $0x288] sm:$0xff] %v2008
  %2105 = vst [vmem:[#allocation2 + $0x290] sm:$0xff] %v2009
  %2106 = vst [vmem:[#allocation2 + $0x298] sm:$0xff] %v2010
  %2107 = vst [vmem:[#allocation2 + $0x2a0] sm:$0xff] %v2011
  %2108 = vst [vmem:[#allocation2 + $0x2a8] sm:$0xff] %v2012
  %2109 = vst [vmem:[#allocation2 + $0x2b0] sm:$0xff] %v2013
  %2110 = vst [vmem:[#allocation2 + $0x2b8] sm:$0xff] %v2014
  %2111 = vst [vmem:[#allocation2 + $0x2c0] sm:$0xff] %v2015
  %2112 = vst [vmem:[#allocation2 + $0x2c8] sm:$0xff] %v2016
  %2113 = vst [vmem:[#allocation2 + $0x2d0] sm:$0xff] %v2017
  %2114 = vst [vmem:[#allocation2 + $0x2d8] sm:$0xff] %v2018
  %2115 = vst [vmem:[#allocation2 + $0x2e0] sm:$0xff] %v2019
  %2116 = vst [vmem:[#allocation2 + $0x2e8] sm:$0xff] %v2020
  %2117 = vst [vmem:[#allocation2 + $0x2f0] sm:$0xff] %v2021
  %2118 = vst [vmem:[#allocation2 + $0x2f8] sm:$0xff] %v2022
  %v2119 = vld [vmem:[%s0 + $0x2] sm:$0xff]
  %v2120 = vld [vmem:[%s0 + $0xa] sm:$0xff]
  %v2121 = vld [vmem:[%s0 + $0x12] sm:$0xff]
  %v2122 = vld [vmem:[%s0 + $0x1a] sm:$0xff]
  %v2123 = vld [vmem:[%s0 + $0x22] sm:$0xff]
  %v2124 = vld [vmem:[%s0 + $0x2a] sm:$0xff]
  %v2125 = vld [vmem:[%s0 + $0x32] sm:$0xff]
  %v2126 = vld [vmem:[%s0 + $0x3a] sm:$0xff]
  %v2127 = vld [vmem:[%s0 + $0x42] sm:$0xff]
  %v2128 = vld [vmem:[%s0 + $0x4a] sm:$0xff]
  %v2129 = vld [vmem:[%s0 + $0x52] sm:$0xff]
  %v2130 = vld [vmem:[%s0 + $0x5a] sm:$0xff]
  %v2131 = vld [vmem:[%s0 + $0x62] sm:$0xff]
  %v2132 = vld [vmem:[%s0 + $0x6a] sm:$0xff]
  %v2133 = vld [vmem:[%s0 + $0x72] sm:$0xff]
  %v2134 = vld [vmem:[%s0 + $0x7a] sm:$0xff]
  %v2135 = vld [vmem:[%s0 + $0x82] sm:$0xff]
  %v2136 = vld [vmem:[%s0 + $0x8a] sm:$0xff]
  %v2137 = vld [vmem:[%s0 + $0x92] sm:$0xff]
  %v2138 = vld [vmem:[%s0 + $0x9a] sm:$0xff]
  %v2139 = vld [vmem:[%s0 + $0xa2] sm:$0xff]
  %v2140 = vld [vmem:[%s0 + $0xaa] sm:$0xff]
  %v2141 = vld [vmem:[%s0 + $0xb2] sm:$0xff]
  %v2142 = vld [vmem:[%s0 + $0xba] sm:$0xff]
  %v2143 = vld [vmem:[%s0 + $0xc2] sm:$0xff]
  %v2144 = vld [vmem:[%s0 + $0xca] sm:$0xff]
  %v2145 = vld [vmem:[%s0 + $0xd2] sm:$0xff]
  %v2146 = vld [vmem:[%s0 + $0xda] sm:$0xff]
  %v2147 = vld [vmem:[%s0 + $0xe2] sm:$0xff]
  %v2148 = vld [vmem:[%s0 + $0xea] sm:$0xff]
  %v2149 = vld [vmem:[%s0 + $0xf2] sm:$0xff]
  %v2150 = vld [vmem:[%s0 + $0xfa] sm:$0xff]
  %v2151 = vld [vmem:[%s0 + $0x102] sm:$0xff]
  %v2152 = vld [vmem:[%s0 + $0x10a] sm:$0xff]
  %v2153 = vld [vmem:[%s0 + $0x112] sm:$0xff]
  %v2154 = vld [vmem:[%s0 + $0x11a] sm:$0xff]
  %v2155 = vld [vmem:[%s0 + $0x122] sm:$0xff]
  %v2156 = vld [vmem:[%s0 + $0x12a] sm:$0xff]
  %v2157 = vld [vmem:[%s0 + $0x132] sm:$0xff]
  %v2158 = vld [vmem:[%s0 + $0x13a] sm:$0xff]
  %v2159 = vld [vmem:[%s0 + $0x142] sm:$0xff]
  %v2160 = vld [vmem:[%s0 + $0x14a] sm:$0xff]
  %v2161 = vld [vmem:[%s0 + $0x152] sm:$0xff]
  %v2162 = vld [vmem:[%s0 + $0x15a] sm:$0xff]
  %v2163 = vld [vmem:[%s0 + $0x162] sm:$0xff]
  %v2164 = vld [vmem:[%s0 + $0x16a] sm:$0xff]
  %v2165 = vld [vmem:[%s0 + $0x172] sm:$0xff]
  %v2166 = vld [vmem:[%s0 + $0x17a] sm:$0xff]
  %v2167 = vld [vmem:[%s0 + $0x182] sm:$0xff]
  %v2168 = vld [vmem:[%s0 + $0x18a] sm:$0xff]
  %v2169 = vld [vmem:[%s0 + $0x192] sm:$0xff]
  %v2170 = vld [vmem:[%s0 + $0x19a] sm:$0xff]
  %v2171 = vld [vmem:[%s0 + $0x1a2] sm:$0xff]
  %v2172 = vld [vmem:[%s0 + $0x1aa] sm:$0xff]
  %v2173 = vld [vmem:[%s0 + $0x1b2] sm:$0xff]
  %v2174 = vld [vmem:[%s0 + $0x1ba] sm:$0xff]
  %v2175 = vld [vmem:[%s0 + $0x1c2] sm:$0xff]
  %v2176 = vld [vmem:[%s0 + $0x1ca] sm:$0xff]
  %v2177 = vld [vmem:[%s0 + $0x1d2] sm:$0xff]
  %v2178 = vld [vmem:[%s0 + $0x1da] sm:$0xff]
  %v2179 = vld [vmem:[%s0 + $0x1e2] sm:$0xff]
  %v2180 = vld [vmem:[%s0 + $0x1ea] sm:$0xff]
  %v2181 = vld [vmem:[%s0 + $0x1f2] sm:$0xff]
  %v2182 = vld [vmem:[%s0 + $0x1fa] sm:$0xff]
  %v2183 = vld [vmem:[%s0 + $0x202] sm:$0xff]
  %v2184 = vld [vmem:[%s0 + $0x20a] sm:$0xff]
  %v2185 = vld [vmem:[%s0 + $0x212] sm:$0xff]
  %v2186 = vld [vmem:[%s0 + $0x21a] sm:$0xff]
  %v2187 = vld [vmem:[%s0 + $0x222] sm:$0xff]
  %v2188 = vld [vmem:[%s0 + $0x22a] sm:$0xff]
  %v2189 = vld [vmem:[%s0 + $0x232] sm:$0xff]
  %v2190 = vld [vmem:[%s0 + $0x23a] sm:$0xff]
  %v2191 = vld [vmem:[%s0 + $0x242] sm:$0xff]
  %v2192 = vld [vmem:[%s0 + $0x24a] sm:$0xff]
  %v2193 = vld [vmem:[%s0 + $0x252] sm:$0xff]
  %v2194 = vld [vmem:[%s0 + $0x25a] sm:$0xff]
  %v2195 = vld [vmem:[%s0 + $0x262] sm:$0xff]
  %v2196 = vld [vmem:[%s0 + $0x26a] sm:$0xff]
  %v2197 = vld [vmem:[%s0 + $0x272] sm:$0xff]
  %v2198 = vld [vmem:[%s0 + $0x27a] sm:$0xff]
  %v2199 = vld [vmem:[%s0 + $0x282] sm:$0xff]
  %v2200 = vld [vmem:[%s0 + $0x28a] sm:$0xff]
  %v2201 = vld [vmem:[%s0 + $0x292] sm:$0xff]
  %v2202 = vld [vmem:[%s0 + $0x29a] sm:$0xff]
  %v2203 = vld [vmem:[%s0 + $0x2a2] sm:$0xff]
  %v2204 = vld [vmem:[%s0 + $0x2aa] sm:$0xff]
  %v2205 = vld [vmem:[%s0 + $0x2b2] sm:$0xff]
  %v2206 = vld [vmem:[%s0 + $0x2ba] sm:$0xff]
  %v2207 = vld [vmem:[%s0 + $0x2c2] sm:$0xff]
  %v2208 = vld [vmem:[%s0 + $0x2ca] sm:$0xff]
  %v2209 = vld [vmem:[%s0 + $0x2d2] sm:$0xff]
  %v2210 = vld [vmem:[%s0 + $0x2da] sm:$0xff]
  %v2211 = vld [vmem:[%s0 + $0x2e2] sm:$0xff]
  %v2212 = vld [vmem:[%s0 + $0x2ea] sm:$0xff]
  %v2213 = vld [vmem:[%s0 + $0x2f2] sm:$0xff]
  %v2214 = vld [vmem:[%s0 + $0x2fa] sm:$0xff]
  %v2215 = vpack.c.bf16 %v2120, %v2119
  %v2216 = vpack.c.bf16 %v2122, %v2121
  %v2217 = vpack.c.bf16 %v2124, %v2123
  %v2218 = vpack.c.bf16 %v2126, %v2125
  %v2219 = vpack.c.bf16 %v2128, %v2127
  %v2220 = vpack.c.bf16 %v2130, %v2129
  %v2221 = vpack.c.bf16 %v2132, %v2131
  %v2222 = vpack.c.bf16 %v2134, %v2133
  %v2223 = vpack.c.bf16 %v2136, %v2135
  %v2224 = vpack.c.bf16 %v2138, %v2137
  %v2225 = vpack.c.bf16 %v2140, %v2139
  %v2226 = vpack.c.bf16 %v2142, %v2141
  %v2227 = vpack.c.bf16 %v2144, %v2143
  %v2228 = vpack.c.bf16 %v2146, %v2145
  %v2229 = vpack.c.bf16 %v2148, %v2147
  %v2230 = vpack.c.bf16 %v2150, %v2149
  %v2231 = vpack.c.bf16 %v2152, %v2151
  %v2232 = vpack.c.bf16 %v2154, %v2153
  %v2233 = vpack.c.bf16 %v2156, %v2155
  %v2234 = vpack.c.bf16 %v2158, %v2157
  %v2235 = vpack.c.bf16 %v2160, %v2159
  %v2236 = vpack.c.bf16 %v2162, %v2161
  %v2237 = vpack.c.bf16 %v2164, %v2163
  %v2238 = vpack.c.bf16 %v2166, %v2165
  %v2239 = vpack.c.bf16 %v2168, %v2167
  %v2240 = vpack.c.bf16 %v2170, %v2169
  %v2241 = vpack.c.bf16 %v2172, %v2171
  %v2242 = vpack.c.bf16 %v2174, %v2173
  %v2243 = vpack.c.bf16 %v2176, %v2175
  %v2244 = vpack.c.bf16 %v2178, %v2177
  %v2245 = vpack.c.bf16 %v2180, %v2179
  %v2246 = vpack.c.bf16 %v2182, %v2181
  %v2247 = vpack.c.bf16 %v2184, %v2183
  %v2248 = vpack.c.bf16 %v2186, %v2185
  %v2249 = vpack.c.bf16 %v2188, %v2187
  %v2250 = vpack.c.bf16 %v2190, %v2189
  %v2251 = vpack.c.bf16 %v2192, %v2191
  %v2252 = vpack.c.bf16 %v2194, %v2193
  %v2253 = vpack.c.bf16 %v2196, %v2195
  %v2254 = vpack.c.bf16 %v2198, %v2197
  %v2255 = vpack.c.bf16 %v2200, %v2199
  %v2256 = vpack.c.bf16 %v2202, %v2201
  %v2257 = vpack.c.bf16 %v2204, %v2203
  %v2258 = vpack.c.bf16 %v2206, %v2205
  %v2259 = vpack.c.bf16 %v2208, %v2207
  %v2260 = vpack.c.bf16 %v2210, %v2209
  %v2261 = vpack.c.bf16 %v2212, %v2211
  %v2262 = vpack.c.bf16 %v2214, %v2213
  %s2263 = scalar_lea.vmem %s1, 8
  %v2264 = vld [vmem:[%s2263] sm:$0xf]
  %v2266 = vsel %vm163, %v2215, 0
  %v2269 = vsel %vm163, %v2216, 0
  %v2272 = vsel %vm163, %v2217, 0
  %v2275 = vsel %vm163, %v2218, 0
  %v2278 = vsel %vm163, %v2219, 0
  %v2281 = vsel %vm163, %v2220, 0
  %v2284 = vsel %vm163, %v2221, 0
  %v2287 = vsel %vm163, %v2222, 0
  %v2290 = vsel %vm163, %v2223, 0
  %v2293 = vsel %vm163, %v2224, 0
  %v2296 = vsel %vm163, %v2225, 0
  %v2299 = vsel %vm163, %v2226, 0
  %v2302 = vsel %vm163, %v2227, 0
  %v2305 = vsel %vm163, %v2228, 0
  %v2308 = vsel %vm163, %v2229, 0
  %v2311 = vsel %vm163, %v2230, 0
  %v2314 = vsel %vm163, %v2231, 0
  %v2317 = vsel %vm163, %v2232, 0
  %v2320 = vsel %vm163, %v2233, 0
  %v2323 = vsel %vm163, %v2234, 0
  %v2326 = vsel %vm163, %v2235, 0
  %v2329 = vsel %vm163, %v2236, 0
  %v2332 = vsel %vm163, %v2237, 0
  %v2335 = vsel %vm163, %v2238, 0
  %v2338 = vsel %vm163, %v2239, 0
  %v2341 = vsel %vm163, %v2240, 0
  %v2344 = vsel %vm163, %v2241, 0
  %v2347 = vsel %vm163, %v2242, 0
  %v2350 = vsel %vm163, %v2243, 0
  %v2353 = vsel %vm163, %v2244, 0
  %v2356 = vsel %vm163, %v2245, 0
  %v2359 = vsel %vm163, %v2246, 0
  %v2362 = vsel %vm163, %v2247, 0
  %v2365 = vsel %vm163, %v2248, 0
  %v2368 = vsel %vm163, %v2249, 0
  %v2371 = vsel %vm163, %v2250, 0
  %v2374 = vsel %vm163, %v2251, 0
  %v2377 = vsel %vm163, %v2252, 0
  %v2380 = vsel %vm163, %v2253, 0
  %v2383 = vsel %vm163, %v2254, 0
  %v2386 = vsel %vm163, %v2255, 0
  %v2389 = vsel %vm163, %v2256, 0
  %v2392 = vsel %vm163, %v2257, 0
  %v2395 = vsel %vm163, %v2258, 0
  %v2398 = vsel %vm163, %v2259, 0
  %v2401 = vsel %vm163, %v2260, 0
  %v2404 = vsel %vm163, %v2261, 0
  %v2407 = vsel %vm163, %v2262, 0
  %v2410 = vsel %vm308, %v2264, 0
  %2412 = vmatprep.subr.bf16.mxu0 0
  %2413 = vmatpush1.bf16.msra.mxu0 %v2410
  %2414 = vmatprep.subr.bf16.mxu0 0
  %2415 = vmatpush1.bf16.msra.mxu0 0
  %2416 = vmatprep.subr.bf16.mxu0 0
  %2417 = vmatpush1.bf16.msra.mxu0 0
  %2418 = vmatprep.subr.bf16.mxu0 0
  %2419 = vmatpush1.bf16.msra.mxu0 0
  %2420 = vmatprep.subr.bf16.mxu0 0
  %2421 = vmatpush1.bf16.msra.mxu0 0
  %2422 = vmatprep.subr.bf16.mxu0 0
  %2423 = vmatpush1.bf16.msra.mxu0 0
  %2424 = vmatprep.subr.bf16.mxu0 0
  %2425 = vmatpush1.bf16.msra.mxu0 0
  %2426 = vmatprep.subr.bf16.mxu0 0
  %2427 = vmatpush1.bf16.msra.mxu0 0
  %2428 = vmatprep.subr.bf16.mxu0 0
  %2429 = vmatpush1.bf16.msra.mxu0 0
  %2430 = vmatprep.subr.bf16.mxu0 0
  %2431 = vmatpush1.bf16.msra.mxu0 0
  %2432 = vmatprep.subr.bf16.mxu0 0
  %2433 = vmatpush1.bf16.msra.mxu0 0
  %2434 = vmatprep.subr.bf16.mxu0 0
  %2435 = vmatpush1.bf16.msra.mxu0 0
  %2436 = vmatprep.subr.bf16.mxu0 0
  %2437 = vmatpush1.bf16.msra.mxu0 0
  %2438 = vmatprep.subr.bf16.mxu0 0
  %2439 = vmatpush1.bf16.msra.mxu0 0
  %2440 = vmatprep.subr.bf16.mxu0 0
  %2441 = vmatpush1.bf16.msra.mxu0 0
  %2442 = vmatprep.subr.bf16.mxu0 0
  %2443 = vmatpush1.bf16.msra.mxu0 0
  %2444 = vmatprep.mubr.bf16.mxu0 0
  %2445 = vmatmul.mubr.bf16.gmra.mrb[0].mxu0 %v2266
  %v2446 = vpop.f32.mrb[0].mxu0
  %v2447 = vadd.f32 0.0, %v2446
  %v2448 = vpop.f32.mrb[0].mxu0
  %v2449 = vpop.f32.mrb[0].mxu0
  %v2450 = vadd.f32 0.0, %v2449
  %v2451 = vpop.f32.mrb[0].mxu0
  %2452 = vmatprep.mubr.bf16.mxu0 0
  %2453 = vmatmul.mubr.bf16.gmra.mrb[0].mxu0 %v2269
  %v2454 = vpop.f32.mrb[0].mxu0
  %v2455 = vadd.f32 0.0, %v2454
  %v2456 = vpop.f32.mrb[0].mxu0
  %v2457 = vpop.f32.mrb[0].mxu0
  %v2458 = vadd.f32 0.0, %v2457
  %v2459 = vpop.f32.mrb[0].mxu0
  %2460 = vmatprep.mubr.bf16.mxu0 0
  %2461 = vmatmul.mubr.bf16.gmra.mrb[0].mxu0 %v2272
  %v2462 = vpop.f32.mrb[0].mxu0
  %v2463 = vadd.f32 0.0, %v2462
  %v2464 = vpop.f32.mrb[0].mxu0
  %v2465 = vpop.f32.mrb[0].mxu0
  %v2466 = vadd.f32 0.0, %v2465
  %v2467 = vpop.f32.mrb[0].mxu0
  %2468 = vmatprep.mubr.bf16.mxu0 0
  %2469 = vmatmul.mubr.bf16.gmra.mrb[0].mxu0 %v2275
  %v2470 = vpop.f32.mrb[0].mxu0
  %v2471 = vadd.f32 0.0, %v2470
  %v2472 = vpop.f32.mrb[0].mxu0
  %v2473 = vpop.f32.mrb[0].mxu0
  %v2474 = vadd.f32 0.0, %v2473
  %v2475 = vpop.f32.mrb[0].mxu0
  %2476 = vmatprep.mubr.bf16.mxu0 0
  %2477 = vmatmul.mubr.bf16.gmra.mrb[0].mxu0 %v2278
  %v2478 = vpop.f32.mrb[0].mxu0
  %v2479 = vadd.f32 0.0, %v2478
  %v2480 = vpop.f32.mrb[0].mxu0
  %v2481 = vpop.f32.mrb[0].mxu0
  %v2482 = vadd.f32 0.0, %v2481
  %v2483 = vpop.f32.mrb[0].mxu0
  %2484 = vmatprep.mubr.bf16.mxu0 0
  %2485 = vmatmul.mubr.bf16.gmra.mrb[0].mxu0 %v2281
  %v2486 = vpop.f32.mrb[0].mxu0
  %v2487 = vadd.f32 0.0, %v2486
  %v2488 = vpop.f32.mrb[0].mxu0
  %v2489 = vpop.f32.mrb[0].mxu0
  %v2490 = vadd.f32 0.0, %v2489
  %v2491 = vpop.f32.mrb[0].mxu0
  %2492 = vmatprep.mubr.bf16.mxu0 0
  %2493 = vmatmul.mubr.bf16.gmra.mrb[0].mxu0 %v2284
  %v2494 = vpop.f32.mrb[0].mxu0
  %v2495 = vadd.f32 0.0, %v2494
  %v2496 = vpop.f32.mrb[0].mxu0
  %v2497 = vpop.f32.mrb[0].mxu0
  %v2498 = vadd.f32 0.0, %v2497
  %v2499 = vpop.f32.mrb[0].mxu0
  %2500 = vmatprep.mubr.bf16.mxu0 0
  %2501 = vmatmul.mubr.bf16.gmra.mrb[0].mxu0 %v2287
  %v2502 = vpop.f32.mrb[0].mxu0
  %v2503 = vadd.f32 0.0, %v2502
  %v2504 = vpop.f32.mrb[0].mxu0
  %v2505 = vpop.f32.mrb[0].mxu0
  %v2506 = vadd.f32 0.0, %v2505
  %v2507 = vpop.f32.mrb[0].mxu0
  %2508 = vmatprep.mubr.bf16.mxu0 0
  %2509 = vmatmul.mubr.bf16.gmra.mrb[0].mxu0 %v2290
  %v2510 = vpop.f32.mrb[0].mxu0
  %v2511 = vadd.f32 0.0, %v2510
  %v2512 = vpop.f32.mrb[0].mxu0
  %v2513 = vpop.f32.mrb[0].mxu0
  %v2514 = vadd.f32 0.0, %v2513
  %v2515 = vpop.f32.mrb[0].mxu0
  %2516 = vmatprep.mubr.bf16.mxu0 0
  %2517 = vmatmul.mubr.bf16.gmra.mrb[0].mxu0 %v2293
  %v2518 = vpop.f32.mrb[0].mxu0
  %v2519 = vadd.f32 0.0, %v2518
  %v2520 = vpop.f32.mrb[0].mxu0
  %v2521 = vpop.f32.mrb[0].mxu0
  %v2522 = vadd.f32 0.0, %v2521
  %v2523 = vpop.f32.mrb[0].mxu0
  %2524 = vmatprep.mubr.bf16.mxu0 0
  %2525 = vmatmul.mubr.bf16.gmra.mrb[0].mxu0 %v2296
  %v2526 = vpop.f32.mrb[0].mxu0
  %v2527 = vadd.f32 0.0, %v2526
  %v2528 = vpop.f32.mrb[0].mxu0
  %v2529 = vpop.f32.mrb[0].mxu0
  %v2530 = vadd.f32 0.0, %v2529
  %v2531 = vpop.f32.mrb[0].mxu0
  %2532 = vmatprep.mubr.bf16.mxu0 0
  %2533 = vmatmul.mubr.bf16.gmra.mrb[0].mxu0 %v2299
  %v2534 = vpop.f32.mrb[0].mxu0
  %v2535 = vadd.f32 0.0, %v2534
  %v2536 = vpop.f32.mrb[0].mxu0
  %v2537 = vpop.f32.mrb[0].mxu0
  %v2538 = vadd.f32 0.0, %v2537
  %v2539 = vpop.f32.mrb[0].mxu0
  %2540 = vmatprep.mubr.bf16.mxu0 0
  %2541 = vmatmul.mubr.bf16.gmra.mrb[0].mxu0 %v2302
  %v2542 = vpop.f32.mrb[0].mxu0
  %v2543 = vadd.f32 0.0, %v2542
  %v2544 = vpop.f32.mrb[0].mxu0
  %v2545 = vpop.f32.mrb[0].mxu0
  %v2546 = vadd.f32 0.0, %v2545
  %v2547 = vpop.f32.mrb[0].mxu0
  %2548 = vmatprep.mubr.bf16.mxu0 0
  %2549 = vmatmul.mubr.bf16.gmra.mrb[0].mxu0 %v2305
  %v2550 = vpop.f32.mrb[0].mxu0
  %v2551 = vadd.f32 0.0, %v2550
  %v2552 = vpop.f32.mrb[0].mxu0
  %v2553 = vpop.f32.mrb[0].mxu0
  %v2554 = vadd.f32 0.0, %v2553
  %v2555 = vpop.f32.mrb[0].mxu0
  %2556 = vmatprep.mubr.bf16.mxu0 0
  %2557 = vmatmul.mubr.bf16.gmra.mrb[0].mxu0 %v2308
  %v2558 = vpop.f32.mrb[0].mxu0
  %v2559 = vadd.f32 0.0, %v2558
  %v2560 = vpop.f32.mrb[0].mxu0
  %v2561 = vpop.f32.mrb[0].mxu0
  %v2562 = vadd.f32 0.0, %v2561
  %v2563 = vpop.f32.mrb[0].mxu0
  %2564 = vmatprep.mubr.bf16.mxu0 0
  %2565 = vmatmul.mubr.bf16.gmra.mrb[0].mxu0 %v2311
  %v2566 = vpop.f32.mrb[0].mxu0
  %v2567 = vadd.f32 0.0, %v2566
  %v2568 = vpop.f32.mrb[0].mxu0
  %v2569 = vpop.f32.mrb[0].mxu0
  %v2570 = vadd.f32 0.0, %v2569
  %v2571 = vpop.f32.mrb[0].mxu0
  %2572 = vmatprep.mubr.bf16.mxu0 0
  %2573 = vmatmul.mubr.bf16.gmra.mrb[0].mxu0 %v2314
  %v2574 = vpop.f32.mrb[0].mxu0
  %v2575 = vadd.f32 0.0, %v2574
  %v2576 = vpop.f32.mrb[0].mxu0
  %v2577 = vpop.f32.mrb[0].mxu0
  %v2578 = vadd.f32 0.0, %v2577
  %v2579 = vpop.f32.mrb[0].mxu0
  %2580 = vmatprep.mubr.bf16.mxu0 0
  %2581 = vmatmul.mubr.bf16.gmra.mrb[0].mxu0 %v2317
  %v2582 = vpop.f32.mrb[0].mxu0
  %v2583 = vadd.f32 0.0, %v2582
  %v2584 = vpop.f32.mrb[0].mxu0
  %v2585 = vpop.f32.mrb[0].mxu0
  %v2586 = vadd.f32 0.0, %v2585
  %v2587 = vpop.f32.mrb[0].mxu0
  %2588 = vmatprep.mubr.bf16.mxu0 0
  %2589 = vmatmul.mubr.bf16.gmra.mrb[0].mxu0 %v2320
  %v2590 = vpop.f32.mrb[0].mxu0
  %v2591 = vadd.f32 0.0, %v2590
  %v2592 = vpop.f32.mrb[0].mxu0
  %v2593 = vpop.f32.mrb[0].mxu0
  %v2594 = vadd.f32 0.0, %v2593
  %v2595 = vpop.f32.mrb[0].mxu0
  %2596 = vmatprep.mubr.bf16.mxu0 0
  %2597 = vmatmul.mubr.bf16.gmra.mrb[0].mxu0 %v2323
  %v2598 = vpop.f32.mrb[0].mxu0
  %v2599 = vadd.f32 0.0, %v2598
  %v2600 = vpop.f32.mrb[0].mxu0
  %v2601 = vpop.f32.mrb[0].mxu0
  %v2602 = vadd.f32 0.0, %v2601
  %v2603 = vpop.f32.mrb[0].mxu0
  %2604 = vmatprep.mubr.bf16.mxu0 0
  %2605 = vmatmul.mubr.bf16.gmra.mrb[0].mxu0 %v2326
  %v2606 = vpop.f32.mrb[0].mxu0
  %v2607 = vadd.f32 0.0, %v2606
  %v2608 = vpop.f32.mrb[0].mxu0
  %v2609 = vpop.f32.mrb[0].mxu0
  %v2610 = vadd.f32 0.0, %v2609
  %v2611 = vpop.f32.mrb[0].mxu0
  %2612 = vmatprep.mubr.bf16.mxu0 0
  %2613 = vmatmul.mubr.bf16.gmra.mrb[0].mxu0 %v2329
  %v2614 = vpop.f32.mrb[0].mxu0
  %v2615 = vadd.f32 0.0, %v2614
  %v2616 = vpop.f32.mrb[0].mxu0
  %v2617 = vpop.f32.mrb[0].mxu0
  %v2618 = vadd.f32 0.0, %v2617
  %v2619 = vpop.f32.mrb[0].mxu0
  %2620 = vmatprep.mubr.bf16.mxu0 0
  %2621 = vmatmul.mubr.bf16.gmra.mrb[0].mxu0 %v2332
  %v2622 = vpop.f32.mrb[0].mxu0
  %v2623 = vadd.f32 0.0, %v2622
  %v2624 = vpop.f32.mrb[0].mxu0
  %v2625 = vpop.f32.mrb[0].mxu0
  %v2626 = vadd.f32 0.0, %v2625
  %v2627 = vpop.f32.mrb[0].mxu0
  %2628 = vmatprep.mubr.bf16.mxu0 0
  %2629 = vmatmul.mubr.bf16.gmra.mrb[0].mxu0 %v2335
  %v2630 = vpop.f32.mrb[0].mxu0
  %v2631 = vadd.f32 0.0, %v2630
  %v2632 = vpop.f32.mrb[0].mxu0
  %v2633 = vpop.f32.mrb[0].mxu0
  %v2634 = vadd.f32 0.0, %v2633
  %v2635 = vpop.f32.mrb[0].mxu0
  %2636 = vmatprep.mubr.bf16.mxu0 0
  %2637 = vmatmul.mubr.bf16.gmra.mrb[0].mxu0 %v2338
  %v2638 = vpop.f32.mrb[0].mxu0
  %v2639 = vadd.f32 0.0, %v2638
  %v2640 = vpop.f32.mrb[0].mxu0
  %v2641 = vpop.f32.mrb[0].mxu0
  %v2642 = vadd.f32 0.0, %v2641
  %v2643 = vpop.f32.mrb[0].mxu0
  %2644 = vmatprep.mubr.bf16.mxu0 0
  %2645 = vmatmul.mubr.bf16.gmra.mrb[0].mxu0 %v2341
  %v2646 = vpop.f32.mrb[0].mxu0
  %v2647 = vadd.f32 0.0, %v2646
  %v2648 = vpop.f32.mrb[0].mxu0
  %v2649 = vpop.f32.mrb[0].mxu0
  %v2650 = vadd.f32 0.0, %v2649
  %v2651 = vpop.f32.mrb[0].mxu0
  %2652 = vmatprep.mubr.bf16.mxu0 0
  %2653 = vmatmul.mubr.bf16.gmra.mrb[0].mxu0 %v2344
  %v2654 = vpop.f32.mrb[0].mxu0
  %v2655 = vadd.f32 0.0, %v2654
  %v2656 = vpop.f32.mrb[0].mxu0
  %v2657 = vpop.f32.mrb[0].mxu0
  %v2658 = vadd.f32 0.0, %v2657
  %v2659 = vpop.f32.mrb[0].mxu0
  %2660 = vmatprep.mubr.bf16.mxu0 0
  %2661 = vmatmul.mubr.bf16.gmra.mrb[0].mxu0 %v2347
  %v2662 = vpop.f32.mrb[0].mxu0
  %v2663 = vadd.f32 0.0, %v2662
  %v2664 = vpop.f32.mrb[0].mxu0
  %v2665 = vpop.f32.mrb[0].mxu0
  %v2666 = vadd.f32 0.0, %v2665
  %v2667 = vpop.f32.mrb[0].mxu0
  %2668 = vmatprep.mubr.bf16.mxu0 0
  %2669 = vmatmul.mubr.bf16.gmra.mrb[0].mxu0 %v2350
  %v2670 = vpop.f32.mrb[0].mxu0
  %v2671 = vadd.f32 0.0, %v2670
  %v2672 = vpop.f32.mrb[0].mxu0
  %v2673 = vpop.f32.mrb[0].mxu0
  %v2674 = vadd.f32 0.0, %v2673
  %v2675 = vpop.f32.mrb[0].mxu0
  %2676 = vmatprep.mubr.bf16.mxu0 0
  %2677 = vmatmul.mubr.bf16.gmra.mrb[0].mxu0 %v2353
  %v2678 = vpop.f32.mrb[0].mxu0
  %v2679 = vadd.f32 0.0, %v2678
  %v2680 = vpop.f32.mrb[0].mxu0
  %v2681 = vpop.f32.mrb[0].mxu0
  %v2682 = vadd.f32 0.0, %v2681
  %v2683 = vpop.f32.mrb[0].mxu0
  %2684 = vmatprep.mubr.bf16.mxu0 0
  %2685 = vmatmul.mubr.bf16.gmra.mrb[0].mxu0 %v2356
  %v2686 = vpop.f32.mrb[0].mxu0
  %v2687 = vadd.f32 0.0, %v2686
  %v2688 = vpop.f32.mrb[0].mxu0
  %v2689 = vpop.f32.mrb[0].mxu0
  %v2690 = vadd.f32 0.0, %v2689
  %v2691 = vpop.f32.mrb[0].mxu0
  %2692 = vmatprep.mubr.bf16.mxu0 0
  %2693 = vmatmul.mubr.bf16.gmra.mrb[0].mxu0 %v2359
  %v2694 = vpop.f32.mrb[0].mxu0
  %v2695 = vadd.f32 0.0, %v2694
  %v2696 = vpop.f32.mrb[0].mxu0
  %v2697 = vpop.f32.mrb[0].mxu0
  %v2698 = vadd.f32 0.0, %v2697
  %v2699 = vpop.f32.mrb[0].mxu0
  %2700 = vmatprep.mubr.bf16.mxu0 0
  %2701 = vmatmul.mubr.bf16.gmra.mrb[0].mxu0 %v2362
  %v2702 = vpop.f32.mrb[0].mxu0
  %v2703 = vadd.f32 0.0, %v2702
  %v2704 = vpop.f32.mrb[0].mxu0
  %v2705 = vpop.f32.mrb[0].mxu0
  %v2706 = vadd.f32 0.0, %v2705
  %v2707 = vpop.f32.mrb[0].mxu0
  %2708 = vmatprep.mubr.bf16.mxu0 0
  %2709 = vmatmul.mubr.bf16.gmra.mrb[0].mxu0 %v2365
  %v2710 = vpop.f32.mrb[0].mxu0
  %v2711 = vadd.f32 0.0, %v2710
  %v2712 = vpop.f32.mrb[0].mxu0
  %v2713 = vpop.f32.mrb[0].mxu0
  %v2714 = vadd.f32 0.0, %v2713
  %v2715 = vpop.f32.mrb[0].mxu0
  %2716 = vmatprep.mubr.bf16.mxu0 0
  %2717 = vmatmul.mubr.bf16.gmra.mrb[0].mxu0 %v2368
  %v2718 = vpop.f32.mrb[0].mxu0
  %v2719 = vadd.f32 0.0, %v2718
  %v2720 = vpop.f32.mrb[0].mxu0
  %v2721 = vpop.f32.mrb[0].mxu0
  %v2722 = vadd.f32 0.0, %v2721
  %v2723 = vpop.f32.mrb[0].mxu0
  %2724 = vmatprep.mubr.bf16.mxu0 0
  %2725 = vmatmul.mubr.bf16.gmra.mrb[0].mxu0 %v2371
  %v2726 = vpop.f32.mrb[0].mxu0
  %v2727 = vadd.f32 0.0, %v2726
  %v2728 = vpop.f32.mrb[0].mxu0
  %v2729 = vpop.f32.mrb[0].mxu0
  %v2730 = vadd.f32 0.0, %v2729
  %v2731 = vpop.f32.mrb[0].mxu0
  %2732 = vmatprep.mubr.bf16.mxu0 0
  %2733 = vmatmul.mubr.bf16.gmra.mrb[0].mxu0 %v2374
  %v2734 = vpop.f32.mrb[0].mxu0
  %v2735 = vadd.f32 0.0, %v2734
  %v2736 = vpop.f32.mrb[0].mxu0
  %v2737 = vpop.f32.mrb[0].mxu0
  %v2738 = vadd.f32 0.0, %v2737
  %v2739 = vpop.f32.mrb[0].mxu0
  %2740 = vmatprep.mubr.bf16.mxu0 0
  %2741 = vmatmul.mubr.bf16.gmra.mrb[0].mxu0 %v2377
  %v2742 = vpop.f32.mrb[0].mxu0
  %v2743 = vadd.f32 0.0, %v2742
  %v2744 = vpop.f32.mrb[0].mxu0
  %v2745 = vpop.f32.mrb[0].mxu0
  %v2746 = vadd.f32 0.0, %v2745
  %v2747 = vpop.f32.mrb[0].mxu0
  %2748 = vmatprep.mubr.bf16.mxu0 0
  %2749 = vmatmul.mubr.bf16.gmra.mrb[0].mxu0 %v2380
  %v2750 = vpop.f32.mrb[0].mxu0
  %v2751 = vadd.f32 0.0, %v2750
  %v2752 = vpop.f32.mrb[0].mxu0
  %v2753 = vpop.f32.mrb[0].mxu0
  %v2754 = vadd.f32 0.0, %v2753
  %v2755 = vpop.f32.mrb[0].mxu0
  %2756 = vmatprep.mubr.bf16.mxu0 0
  %2757 = vmatmul.mubr.bf16.gmra.mrb[0].mxu0 %v2383
  %v2758 = vpop.f32.mrb[0].mxu0
  %v2759 = vadd.f32 0.0, %v2758
  %v2760 = vpop.f32.mrb[0].mxu0
  %v2761 = vpop.f32.mrb[0].mxu0
  %v2762 = vadd.f32 0.0, %v2761
  %v2763 = vpop.f32.mrb[0].mxu0
  %2764 = vmatprep.mubr.bf16.mxu0 0
  %2765 = vmatmul.mubr.bf16.gmra.mrb[0].mxu0 %v2386
  %v2766 = vpop.f32.mrb[0].mxu0
  %v2767 = vadd.f32 0.0, %v2766
  %v2768 = vpop.f32.mrb[0].mxu0
  %v2769 = vpop.f32.mrb[0].mxu0
  %v2770 = vadd.f32 0.0, %v2769
  %v2771 = vpop.f32.mrb[0].mxu0
  %2772 = vmatprep.mubr.bf16.mxu0 0
  %2773 = vmatmul.mubr.bf16.gmra.mrb[0].mxu0 %v2389
  %v2774 = vpop.f32.mrb[0].mxu0
  %v2775 = vadd.f32 0.0, %v2774
  %v2776 = vpop.f32.mrb[0].mxu0
  %v2777 = vpop.f32.mrb[0].mxu0
  %v2778 = vadd.f32 0.0, %v2777
  %v2779 = vpop.f32.mrb[0].mxu0
  %2780 = vmatprep.mubr.bf16.mxu0 0
  %2781 = vmatmul.mubr.bf16.gmra.mrb[0].mxu0 %v2392
  %v2782 = vpop.f32.mrb[0].mxu0
  %v2783 = vadd.f32 0.0, %v2782
  %v2784 = vpop.f32.mrb[0].mxu0
  %v2785 = vpop.f32.mrb[0].mxu0
  %v2786 = vadd.f32 0.0, %v2785
  %v2787 = vpop.f32.mrb[0].mxu0
  %2788 = vmatprep.mubr.bf16.mxu0 0
  %2789 = vmatmul.mubr.bf16.gmra.mrb[0].mxu0 %v2395
  %v2790 = vpop.f32.mrb[0].mxu0
  %v2791 = vadd.f32 0.0, %v2790
  %v2792 = vpop.f32.mrb[0].mxu0
  %v2793 = vpop.f32.mrb[0].mxu0
  %v2794 = vadd.f32 0.0, %v2793
  %v2795 = vpop.f32.mrb[0].mxu0
  %2796 = vmatprep.mubr.bf16.mxu0 0
  %2797 = vmatmul.mubr.bf16.gmra.mrb[0].mxu0 %v2398
  %v2798 = vpop.f32.mrb[0].mxu0
  %v2799 = vadd.f32 0.0, %v2798
  %v2800 = vpop.f32.mrb[0].mxu0
  %v2801 = vpop.f32.mrb[0].mxu0
  %v2802 = vadd.f32 0.0, %v2801
  %v2803 = vpop.f32.mrb[0].mxu0
  %2804 = vmatprep.mubr.bf16.mxu0 0
  %2805 = vmatmul.mubr.bf16.gmra.mrb[0].mxu0 %v2401
  %v2806 = vpop.f32.mrb[0].mxu0
  %v2807 = vadd.f32 0.0, %v2806
  %v2808 = vpop.f32.mrb[0].mxu0
  %v2809 = vpop.f32.mrb[0].mxu0
  %v2810 = vadd.f32 0.0, %v2809
  %v2811 = vpop.f32.mrb[0].mxu0
  %2812 = vmatprep.mubr.bf16.mxu0 0
  %2813 = vmatmul.mubr.bf16.gmra.mrb[0].mxu0 %v2404
  %v2814 = vpop.f32.mrb[0].mxu0
  %v2815 = vadd.f32 0.0, %v2814
  %v2816 = vpop.f32.mrb[0].mxu0
  %v2817 = vpop.f32.mrb[0].mxu0
  %v2818 = vadd.f32 0.0, %v2817
  %v2819 = vpop.f32.mrb[0].mxu0
  %2820 = vmatprep.mubr.bf16.mxu0 0
  %2821 = vmatmul.mubr.bf16.gmra.mrb[0].mxu0 %v2407
  %v2822 = vpop.f32.mrb[0].mxu0
  %v2823 = vadd.f32 0.0, %v2822
  %v2824 = vpop.f32.mrb[0].mxu0
  %v2825 = vpop.f32.mrb[0].mxu0
  %v2826 = vadd.f32 0.0, %v2825
  %v2827 = vpop.f32.mrb[0].mxu0
  %2828 = vdwg.mxu0
  %v2829 = vld [vmem:[#allocation2] sm:$0xff]
  %v2830 = vld [vmem:[#allocation2 + $0x8] sm:$0xff]
  %v2831 = vld [vmem:[#allocation2 + $0x10] sm:$0xff]
  %v2832 = vld [vmem:[#allocation2 + $0x18] sm:$0xff]
  %v2833 = vld [vmem:[#allocation2 + $0x20] sm:$0xff]
  %v2834 = vld [vmem:[#allocation2 + $0x28] sm:$0xff]
  %v2835 = vld [vmem:[#allocation2 + $0x30] sm:$0xff]
  %v2836 = vld [vmem:[#allocation2 + $0x38] sm:$0xff]
  %v2837 = vld [vmem:[#allocation2 + $0x40] sm:$0xff]
  %v2838 = vld [vmem:[#allocation2 + $0x48] sm:$0xff]
  %v2839 = vld [vmem:[#allocation2 + $0x50] sm:$0xff]
  %v2840 = vld [vmem:[#allocation2 + $0x58] sm:$0xff]
  %v2841 = vld [vmem:[#allocation2 + $0x60] sm:$0xff]
  %v2842 = vld [vmem:[#allocation2 + $0x68] sm:$0xff]
  %v2843 = vld [vmem:[#allocation2 + $0x70] sm:$0xff]
  %v2844 = vld [vmem:[#allocation2 + $0x78] sm:$0xff]
  %v2845 = vld [vmem:[#allocation2 + $0x80] sm:$0xff]
  %v2846 = vld [vmem:[#allocation2 + $0x88] sm:$0xff]
  %v2847 = vld [vmem:[#allocation2 + $0x90] sm:$0xff]
  %v2848 = vld [vmem:[#allocation2 + $0x98] sm:$0xff]
  %v2849 = vld [vmem:[#allocation2 + $0xa0] sm:$0xff]
  %v2850 = vld [vmem:[#allocation2 + $0xa8] sm:$0xff]
  %v2851 = vld [vmem:[#allocation2 + $0xb0] sm:$0xff]
  %v2852 = vld [vmem:[#allocation2 + $0xb8] sm:$0xff]
  %v2853 = vld [vmem:[#allocation2 + $0xc0] sm:$0xff]
  %v2854 = vld [vmem:[#allocation2 + $0xc8] sm:$0xff]
  %v2855 = vld [vmem:[#allocation2 + $0xd0] sm:$0xff]
  %v2856 = vld [vmem:[#allocation2 + $0xd8] sm:$0xff]
  %v2857 = vld [vmem:[#allocation2 + $0xe0] sm:$0xff]
  %v2858 = vld [vmem:[#allocation2 + $0xe8] sm:$0xff]
  %v2859 = vld [vmem:[#allocation2 + $0xf0] sm:$0xff]
  %v2860 = vld [vmem:[#allocation2 + $0xf8] sm:$0xff]
  %v2861 = vld [vmem:[#allocation2 + $0x100] sm:$0xff]
  %v2862 = vld [vmem:[#allocation2 + $0x108] sm:$0xff]
  %v2863 = vld [vmem:[#allocation2 + $0x110] sm:$0xff]
  %v2864 = vld [vmem:[#allocation2 + $0x118] sm:$0xff]
  %v2865 = vld [vmem:[#allocation2 + $0x120] sm:$0xff]
  %v2866 = vld [vmem:[#allocation2 + $0x128] sm:$0xff]
  %v2867 = vld [vmem:[#allocation2 + $0x130] sm:$0xff]
  %v2868 = vld [vmem:[#allocation2 + $0x138] sm:$0xff]
  %v2869 = vld [vmem:[#allocation2 + $0x140] sm:$0xff]
  %v2870 = vld [vmem:[#allocation2 + $0x148] sm:$0xff]
  %v2871 = vld [vmem:[#allocation2 + $0x150] sm:$0xff]
  %v2872 = vld [vmem:[#allocation2 + $0x158] sm:$0xff]
  %v2873 = vld [vmem:[#allocation2 + $0x160] sm:$0xff]
  %v2874 = vld [vmem:[#allocation2 + $0x168] sm:$0xff]
  %v2875 = vld [vmem:[#allocation2 + $0x170] sm:$0xff]
  %v2876 = vld [vmem:[#allocation2 + $0x178] sm:$0xff]
  %v2877 = vld [vmem:[#allocation2 + $0x180] sm:$0xff]
  %v2878 = vld [vmem:[#allocation2 + $0x188] sm:$0xff]
  %v2879 = vld [vmem:[#allocation2 + $0x190] sm:$0xff]
  %v2880 = vld [vmem:[#allocation2 + $0x198] sm:$0xff]
  %v2881 = vld [vmem:[#allocation2 + $0x1a0] sm:$0xff]
  %v2882 = vld [vmem:[#allocation2 + $0x1a8] sm:$0xff]
  %v2883 = vld [vmem:[#allocation2 + $0x1b0] sm:$0xff]
  %v2884 = vld [vmem:[#allocation2 + $0x1b8] sm:$0xff]
  %v2885 = vld [vmem:[#allocation2 + $0x1c0] sm:$0xff]
  %v2886 = vld [vmem:[#allocation2 + $0x1c8] sm:$0xff]
  %v2887 = vld [vmem:[#allocation2 + $0x1d0] sm:$0xff]
  %v2888 = vld [vmem:[#allocation2 + $0x1d8] sm:$0xff]
  %v2889 = vld [vmem:[#allocation2 + $0x1e0] sm:$0xff]
  %v2890 = vld [vmem:[#allocation2 + $0x1e8] sm:$0xff]
  %v2891 = vld [vmem:[#allocation2 + $0x1f0] sm:$0xff]
  %v2892 = vld [vmem:[#allocation2 + $0x1f8] sm:$0xff]
  %v2893 = vld [vmem:[#allocation2 + $0x200] sm:$0xff]
  %v2894 = vld [vmem:[#allocation2 + $0x208] sm:$0xff]
  %v2895 = vld [vmem:[#allocation2 + $0x210] sm:$0xff]
  %v2896 = vld [vmem:[#allocation2 + $0x218] sm:$0xff]
  %v2897 = vld [vmem:[#allocation2 + $0x220] sm:$0xff]
  %v2898 = vld [vmem:[#allocation2 + $0x228] sm:$0xff]
  %v2899 = vld [vmem:[#allocation2 + $0x230] sm:$0xff]
  %v2900 = vld [vmem:[#allocation2 + $0x238] sm:$0xff]
  %v2901 = vld [vmem:[#allocation2 + $0x240] sm:$0xff]
  %v2902 = vld [vmem:[#allocation2 + $0x248] sm:$0xff]
  %v2903 = vld [vmem:[#allocation2 + $0x250] sm:$0xff]
  %v2904 = vld [vmem:[#allocation2 + $0x258] sm:$0xff]
  %v2905 = vld [vmem:[#allocation2 + $0x260] sm:$0xff]
  %v2906 = vld [vmem:[#allocation2 + $0x268] sm:$0xff]
  %v2907 = vld [vmem:[#allocation2 + $0x270] sm:$0xff]
  %v2908 = vld [vmem:[#allocation2 + $0x278] sm:$0xff]
  %v2909 = vld [vmem:[#allocation2 + $0x280] sm:$0xff]
  %v2910 = vld [vmem:[#allocation2 + $0x288] sm:$0xff]
  %v2911 = vld [vmem:[#allocation2 + $0x290] sm:$0xff]
  %v2912 = vld [vmem:[#allocation2 + $0x298] sm:$0xff]
  %v2913 = vld [vmem:[#allocation2 + $0x2a0] sm:$0xff]
  %v2914 = vld [vmem:[#allocation2 + $0x2a8] sm:$0xff]
  %v2915 = vld [vmem:[#allocation2 + $0x2b0] sm:$0xff]
  %v2916 = vld [vmem:[#allocation2 + $0x2b8] sm:$0xff]
  %v2917 = vld [vmem:[#allocation2 + $0x2c0] sm:$0xff]
  %v2918 = vld [vmem:[#allocation2 + $0x2c8] sm:$0xff]
  %v2919 = vld [vmem:[#allocation2 + $0x2d0] sm:$0xff]
  %v2920 = vld [vmem:[#allocation2 + $0x2d8] sm:$0xff]
  %v2921 = vld [vmem:[#allocation2 + $0x2e0] sm:$0xff]
  %v2922 = vld [vmem:[#allocation2 + $0x2e8] sm:$0xff]
  %v2923 = vld [vmem:[#allocation2 + $0x2f0] sm:$0xff]
  %v2924 = vld [vmem:[#allocation2 + $0x2f8] sm:$0xff]
  %v2925 = vadd.f32 %v2829, %v2447
  %v2926 = vadd.f32 %v2830, %v2450
  %v2927 = vadd.f32 %v2831, %v2455
  %v2928 = vadd.f32 %v2832, %v2458
  %v2929 = vadd.f32 %v2833, %v2463
  %v2930 = vadd.f32 %v2834, %v2466
  %v2931 = vadd.f32 %v2835, %v2471
  %v2932 = vadd.f32 %v2836, %v2474
  %v2933 = vadd.f32 %v2837, %v2479
  %v2934 = vadd.f32 %v2838, %v2482
  %v2935 = vadd.f32 %v2839, %v2487
  %v2936 = vadd.f32 %v2840, %v2490
  %v2937 = vadd.f32 %v2841, %v2495
  %v2938 = vadd.f32 %v2842, %v2498
  %v2939 = vadd.f32 %v2843, %v2503
  %v2940 = vadd.f32 %v2844, %v2506
  %v2941 = vadd.f32 %v2845, %v2511
  %v2942 = vadd.f32 %v2846, %v2514
  %v2943 = vadd.f32 %v2847, %v2519
  %v2944 = vadd.f32 %v2848, %v2522
  %v2945 = vadd.f32 %v2849, %v2527
  %v2946 = vadd.f32 %v2850, %v2530
  %v2947 = vadd.f32 %v2851, %v2535
  %v2948 = vadd.f32 %v2852, %v2538
  %v2949 = vadd.f32 %v2853, %v2543
  %v2950 = vadd.f32 %v2854, %v2546
  %v2951 = vadd.f32 %v2855, %v2551
  %v2952 = vadd.f32 %v2856, %v2554
  %v2953 = vadd.f32 %v2857, %v2559
  %v2954 = vadd.f32 %v2858, %v2562
  %v2955 = vadd.f32 %v2859, %v2567
  %v2956 = vadd.f32 %v2860, %v2570
  %v2957 = vadd.f32 %v2861, %v2575
  %v2958 = vadd.f32 %v2862, %v2578
  %v2959 = vadd.f32 %v2863, %v2583
  %v2960 = vadd.f32 %v2864, %v2586
  %v2961 = vadd.f32 %v2865, %v2591
  %v2962 = vadd.f32 %v2866, %v2594
  %v2963 = vadd.f32 %v2867, %v2599
  %v2964 = vadd.f32 %v2868, %v2602
  %v2965 = vadd.f32 %v2869, %v2607
  %v2966 = vadd.f32 %v2870, %v2610
  %v2967 = vadd.f32 %v2871, %v2615
  %v2968 = vadd.f32 %v2872, %v2618
  %v2969 = vadd.f32 %v2873, %v2623
  %v2970 = vadd.f32 %v2874, %v2626
  %v2971 = vadd.f32 %v2875, %v2631
  %v2972 = vadd.f32 %v2876, %v2634
  %v2973 = vadd.f32 %v2877, %v2639
  %v2974 = vadd.f32 %v2878, %v2642
  %v2975 = vadd.f32 %v2879, %v2647
  %v2976 = vadd.f32 %v2880, %v2650
  %v2977 = vadd.f32 %v2881, %v2655
  %v2978 = vadd.f32 %v2882, %v2658
  %v2979 = vadd.f32 %v2883, %v2663
  %v2980 = vadd.f32 %v2884, %v2666
  %v2981 = vadd.f32 %v2885, %v2671
  %v2982 = vadd.f32 %v2886, %v2674
  %v2983 = vadd.f32 %v2887, %v2679
  %v2984 = vadd.f32 %v2888, %v2682
  %v2985 = vadd.f32 %v2889, %v2687
  %v2986 = vadd.f32 %v2890, %v2690
  %v2987 = vadd.f32 %v2891, %v2695
  %v2988 = vadd.f32 %v2892, %v2698
  %v2989 = vadd.f32 %v2893, %v2703
  %v2990 = vadd.f32 %v2894, %v2706
  %v2991 = vadd.f32 %v2895, %v2711
  %v2992 = vadd.f32 %v2896, %v2714
  %v2993 = vadd.f32 %v2897, %v2719
  %v2994 = vadd.f32 %v2898, %v2722
  %v2995 = vadd.f32 %v2899, %v2727
  %v2996 = vadd.f32 %v2900, %v2730
  %v2997 = vadd.f32 %v2901, %v2735
  %v2998 = vadd.f32 %v2902, %v2738
  %v2999 = vadd.f32 %v2903, %v2743
  %v3000 = vadd.f32 %v2904, %v2746
  %v3001 = vadd.f32 %v2905, %v2751
  %v3002 = vadd.f32 %v2906, %v2754
  %v3003 = vadd.f32 %v2907, %v2759
  %v3004 = vadd.f32 %v2908, %v2762
  %v3005 = vadd.f32 %v2909, %v2767
  %v3006 = vadd.f32 %v2910, %v2770
  %v3007 = vadd.f32 %v2911, %v2775
  %v3008 = vadd.f32 %v2912, %v2778
  %v3009 = vadd.f32 %v2913, %v2783
  %v3010 = vadd.f32 %v2914, %v2786
  %v3011 = vadd.f32 %v2915, %v2791
  %v3012 = vadd.f32 %v2916, %v2794
  %v3013 = vadd.f32 %v2917, %v2799
  %v3014 = vadd.f32 %v2918, %v2802
  %v3015 = vadd.f32 %v2919, %v2807
  %v3016 = vadd.f32 %v2920, %v2810
  %v3017 = vadd.f32 %v2921, %v2815
  %v3018 = vadd.f32 %v2922, %v2818
  %v3019 = vadd.f32 %v2923, %v2823
  %v3020 = vadd.f32 %v2924, %v2826
  %3021 = vst [vmem:[#allocation2] sm:$0xff] %v2925
  %3022 = vst [vmem:[#allocation2 + $0x8] sm:$0xff] %v2926
  %3023 = vst [vmem:[#allocation2 + $0x10] sm:$0xff] %v2927
  %3024 = vst [vmem:[#allocation2 + $0x18] sm:$0xff] %v2928
  %3025 = vst [vmem:[#allocation2 + $0x20] sm:$0xff] %v2929
  %3026 = vst [vmem:[#allocation2 + $0x28] sm:$0xff] %v2930
  %3027 = vst [vmem:[#allocation2 + $0x30] sm:$0xff] %v2931
  %3028 = vst [vmem:[#allocation2 + $0x38] sm:$0xff] %v2932
  %3029 = vst [vmem:[#allocation2 + $0x40] sm:$0xff] %v2933
  %3030 = vst [vmem:[#allocation2 + $0x48] sm:$0xff] %v2934
  %3031 = vst [vmem:[#allocation2 + $0x50] sm:$0xff] %v2935
  %3032 = vst [vmem:[#allocation2 + $0x58] sm:$0xff] %v2936
  %3033 = vst [vmem:[#allocation2 + $0x60] sm:$0xff] %v2937
  %3034 = vst [vmem:[#allocation2 + $0x68] sm:$0xff] %v2938
  %3035 = vst [vmem:[#allocation2 + $0x70] sm:$0xff] %v2939
  %3036 = vst [vmem:[#allocation2 + $0x78] sm:$0xff] %v2940
  %3037 = vst [vmem:[#allocation2 + $0x80] sm:$0xff] %v2941
  %3038 = vst [vmem:[#allocation2 + $0x88] sm:$0xff] %v2942
  %3039 = vst [vmem:[#allocation2 + $0x90] sm:$0xff] %v2943
  %3040 = vst [vmem:[#allocation2 + $0x98] sm:$0xff] %v2944
  %3041 = vst [vmem:[#allocation2 + $0xa0] sm:$0xff] %v2945
  %3042 = vst [vmem:[#allocation2 + $0xa8] sm:$0xff] %v2946
  %3043 = vst [vmem:[#allocation2 + $0xb0] sm:$0xff] %v2947
  %3044 = vst [vmem:[#allocation2 + $0xb8] sm:$0xff] %v2948
  %3045 = vst [vmem:[#allocation2 + $0xc0] sm:$0xff] %v2949
  %3046 = vst [vmem:[#allocation2 + $0xc8] sm:$0xff] %v2950
  %3047 = vst [vmem:[#allocation2 + $0xd0] sm:$0xff] %v2951
  %3048 = vst [vmem:[#allocation2 + $0xd8] sm:$0xff] %v2952
  %3049 = vst [vmem:[#allocation2 + $0xe0] sm:$0xff] %v2953
  %3050 = vst [vmem:[#allocation2 + $0xe8] sm:$0xff] %v2954
  %3051 = vst [vmem:[#allocation2 + $0xf0] sm:$0xff] %v2955
  %3052 = vst [vmem:[#allocation2 + $0xf8] sm:$0xff] %v2956
  %3053 = vst [vmem:[#allocation2 + $0x100] sm:$0xff] %v2957
  %3054 = vst [vmem:[#allocation2 + $0x108] sm:$0xff] %v2958
  %3055 = vst [vmem:[#allocation2 + $0x110] sm:$0xff] %v2959
  %3056 = vst [vmem:[#allocation2 + $0x118] sm:$0xff] %v2960
  %3057 = vst [vmem:[#allocation2 + $0x120] sm:$0xff] %v2961
  %3058 = vst [vmem:[#allocation2 + $0x128] sm:$0xff] %v2962
  %3059 = vst [vmem:[#allocation2 + $0x130] sm:$0xff] %v2963
  %3060 = vst [vmem:[#allocation2 + $0x138] sm:$0xff] %v2964
  %3061 = vst [vmem:[#allocation2 + $0x140] sm:$0xff] %v2965
  %3062 = vst [vmem:[#allocation2 + $0x148] sm:$0xff] %v2966
  %3063 = vst [vmem:[#allocation2 + $0x150] sm:$0xff] %v2967
  %3064 = vst [vmem:[#allocation2 + $0x158] sm:$0xff] %v2968
  %3065 = vst [vmem:[#allocation2 + $0x160] sm:$0xff] %v2969
  %3066 = vst [vmem:[#allocation2 + $0x168] sm:$0xff] %v2970
  %3067 = vst [vmem:[#allocation2 + $0x170] sm:$0xff] %v2971
  %3068 = vst [vmem:[#allocation2 + $0x178] sm:$0xff] %v2972
  %3069 = vst [vmem:[#allocation2 + $0x180] sm:$0xff] %v2973
  %3070 = vst [vmem:[#allocation2 + $0x188] sm:$0xff] %v2974
  %3071 = vst [vmem:[#allocation2 + $0x190] sm:$0xff] %v2975
  %3072 = vst [vmem:[#allocation2 + $0x198] sm:$0xff] %v2976
  %3073 = vst [vmem:[#allocation2 + $0x1a0] sm:$0xff] %v2977
  %3074 = vst [vmem:[#allocation2 + $0x1a8] sm:$0xff] %v2978
  %3075 = vst [vmem:[#allocation2 + $0x1b0] sm:$0xff] %v2979
  %3076 = vst [vmem:[#allocation2 + $0x1b8] sm:$0xff] %v2980
  %3077 = vst [vmem:[#allocation2 + $0x1c0] sm:$0xff] %v2981
  %3078 = vst [vmem:[#allocation2 + $0x1c8] sm:$0xff] %v2982
  %3079 = vst [vmem:[#allocation2 + $0x1d0] sm:$0xff] %v2983
  %3080 = vst [vmem:[#allocation2 + $0x1d8] sm:$0xff] %v2984
  %3081 = vst [vmem:[#allocation2 + $0x1e0] sm:$0xff] %v2985
  %3082 = vst [vmem:[#allocation2 + $0x1e8] sm:$0xff] %v2986
  %3083 = vst [vmem:[#allocation2 + $0x1f0] sm:$0xff] %v2987
  %3084 = vst [vmem:[#allocation2 + $0x1f8] sm:$0xff] %v2988
  %3085 = vst [vmem:[#allocation2 + $0x200] sm:$0xff] %v2989
  %3086 = vst [vmem:[#allocation2 + $0x208] sm:$0xff] %v2990
  %3087 = vst [vmem:[#allocation2 + $0x210] sm:$0xff] %v2991
  %3088 = vst [vmem:[#allocation2 + $0x218] sm:$0xff] %v2992
  %3089 = vst [vmem:[#allocation2 + $0x220] sm:$0xff] %v2993
  %3090 = vst [vmem:[#allocation2 + $0x228] sm:$0xff] %v2994
  %3091 = vst [vmem:[#allocation2 + $0x230] sm:$0xff] %v2995
  %3092 = vst [vmem:[#allocation2 + $0x238] sm:$0xff] %v2996
  %3093 = vst [vmem:[#allocation2 + $0x240] sm:$0xff] %v2997
  %3094 = vst [vmem:[#allocation2 + $0x248] sm:$0xff] %v2998
  %3095 = vst [vmem:[#allocation2 + $0x250] sm:$0xff] %v2999
  %3096 = vst [vmem:[#allocation2 + $0x258] sm:$0xff] %v3000
  %3097 = vst [vmem:[#allocation2 + $0x260] sm:$0xff] %v3001
  %3098 = vst [vmem:[#allocation2 + $0x268] sm:$0xff] %v3002
  %3099 = vst [vmem:[#allocation2 + $0x270] sm:$0xff] %v3003
  %3100 = vst [vmem:[#allocation2 + $0x278] sm:$0xff] %v3004
  %3101 = vst [vmem:[#allocation2 + $0x280] sm:$0xff] %v3005
  %3102 = vst [vmem:[#allocation2 + $0x288] sm:$0xff] %v3006
  %3103 = vst [vmem:[#allocation2 + $0x290] sm:$0xff] %v3007
  %3104 = vst [vmem:[#allocation2 + $0x298] sm:$0xff] %v3008
  %3105 = vst [vmem:[#allocation2 + $0x2a0] sm:$0xff] %v3009
  %3106 = vst [vmem:[#allocation2 + $0x2a8] sm:$0xff] %v3010
  %3107 = vst [vmem:[#allocation2 + $0x2b0] sm:$0xff] %v3011
  %3108 = vst [vmem:[#allocation2 + $0x2b8] sm:$0xff] %v3012
  %3109 = vst [vmem:[#allocation2 + $0x2c0] sm:$0xff] %v3013
  %3110 = vst [vmem:[#allocation2 + $0x2c8] sm:$0xff] %v3014
  %3111 = vst [vmem:[#allocation2 + $0x2d0] sm:$0xff] %v3015
  %3112 = vst [vmem:[#allocation2 + $0x2d8] sm:$0xff] %v3016
  %3113 = vst [vmem:[#allocation2 + $0x2e0] sm:$0xff] %v3017
  %3114 = vst [vmem:[#allocation2 + $0x2e8] sm:$0xff] %v3018
  %3115 = vst [vmem:[#allocation2 + $0x2f0] sm:$0xff] %v3019
  %3116 = vst [vmem:[#allocation2 + $0x2f8] sm:$0xff] %v3020
  %v3117 = vld [vmem:[%s0 + $0x12] sm:$0xff]
  %v3118 = vld [vmem:[%s0 + $0x1a] sm:$0xff]
  %v3119 = vld [vmem:[%s0 + $0x22] sm:$0xff]
  %v3120 = vld [vmem:[%s0 + $0x2a] sm:$0xff]
  %v3121 = vld [vmem:[%s0 + $0x32] sm:$0xff]
  %v3122 = vld [vmem:[%s0 + $0x3a] sm:$0xff]
  %v3123 = vld [vmem:[%s0 + $0x42] sm:$0xff]
  %v3124 = vld [vmem:[%s0 + $0x4a] sm:$0xff]
  %v3125 = vld [vmem:[%s0 + $0x52] sm:$0xff]
  %v3126 = vld [vmem:[%s0 + $0x5a] sm:$0xff]
  %v3127 = vld [vmem:[%s0 + $0x62] sm:$0xff]
  %v3128 = vld [vmem:[%s0 + $0x6a] sm:$0xff]
  %v3129 = vld [vmem:[%s0 + $0x72] sm:$0xff]
  %v3130 = vld [vmem:[%s0 + $0x7a] sm:$0xff]
  %v3131 = vld [vmem:[%s0 + $0x82] sm:$0xff]
  %v3132 = vld [vmem:[%s0 + $0x8a] sm:$0xff]
  %v3133 = vld [vmem:[%s0 + $0x92] sm:$0xff]
  %v3134 = vld [vmem:[%s0 + $0x9a] sm:$0xff]
  %v3135 = vld [vmem:[%s0 + $0xa2] sm:$0xff]
  %v3136 = vld [vmem:[%s0 + $0xaa] sm:$0xff]
  %v3137 = vld [vmem:[%s0 + $0xb2] sm:$0xff]
  %v3138 = vld [vmem:[%s0 + $0xba] sm:$0xff]
  %v3139 = vld [vmem:[%s0 + $0xc2] sm:$0xff]
  %v3140 = vld [vmem:[%s0 + $0xca] sm:$0xff]
  %v3141 = vld [vmem:[%s0 + $0xd2] sm:$0xff]
  %v3142 = vld [vmem:[%s0 + $0xda] sm:$0xff]
  %v3143 = vld [vmem:[%s0 + $0xe2] sm:$0xff]
  %v3144 = vld [vmem:[%s0 + $0xea] sm:$0xff]
  %v3145 = vld [vmem:[%s0 + $0xf2] sm:$0xff]
  %v3146 = vld [vmem:[%s0 + $0xfa] sm:$0xff]
  %v3147 = vld [vmem:[%s0 + $0x102] sm:$0xff]
  %v3148 = vld [vmem:[%s0 + $0x10a] sm:$0xff]
  %v3149 = vld [vmem:[%s0 + $0x112] sm:$0xff]
  %v3150 = vld [vmem:[%s0 + $0x11a] sm:$0xff]
  %v3151 = vld [vmem:[%s0 + $0x122] sm:$0xff]
  %v3152 = vld [vmem:[%s0 + $0x12a] sm:$0xff]
  %v3153 = vld [vmem:[%s0 + $0x132] sm:$0xff]
  %v3154 = vld [vmem:[%s0 + $0x13a] sm:$0xff]
  %v3155 = vld [vmem:[%s0 + $0x142] sm:$0xff]
  %v3156 = vld [vmem:[%s0 + $0x14a] sm:$0xff]
  %v3157 = vld [vmem:[%s0 + $0x152] sm:$0xff]
  %v3158 = vld [vmem:[%s0 + $0x15a] sm:$0xff]
  %v3159 = vld [vmem:[%s0 + $0x162] sm:$0xff]
  %v3160 = vld [vmem:[%s0 + $0x16a] sm:$0xff]
  %v3161 = vld [vmem:[%s0 + $0x172] sm:$0xff]
  %v3162 = vld [vmem:[%s0 + $0x17a] sm:$0xff]
  %v3163 = vld [vmem:[%s0 + $0x182] sm:$0xff]
  %v3164 = vld [vmem:[%s0 + $0x18a] sm:$0xff]
  %v3165 = vld [vmem:[%s0 + $0x192] sm:$0xff]
  %v3166 = vld [vmem:[%s0 + $0x19a] sm:$0xff]
  %v3167 = vld [vmem:[%s0 + $0x1a2] sm:$0xff]
  %v3168 = vld [vmem:[%s0 + $0x1aa] sm:$0xff]
  %v3169 = vld [vmem:[%s0 + $0x1b2] sm:$0xff]
  %v3170 = vld [vmem:[%s0 + $0x1ba] sm:$0xff]
  %v3171 = vld [vmem:[%s0 + $0x1c2] sm:$0xff]
  %v3172 = vld [vmem:[%s0 + $0x1ca] sm:$0xff]
  %v3173 = vld [vmem:[%s0 + $0x1d2] sm:$0xff]
  %v3174 = vld [vmem:[%s0 + $0x1da] sm:$0xff]
  %v3175 = vld [vmem:[%s0 + $0x1e2] sm:$0xff]
  %v3176 = vld [vmem:[%s0 + $0x1ea] sm:$0xff]
  %v3177 = vld [vmem:[%s0 + $0x1f2] sm:$0xff]
  %v3178 = vld [vmem:[%s0 + $0x1fa] sm:$0xff]
  %v3179 = vld [vmem:[%s0 + $0x202] sm:$0xff]
  %v3180 = vld [vmem:[%s0 + $0x20a] sm:$0xff]
  %v3181 = vld [vmem:[%s0 + $0x212] sm:$0xff]
  %v3182 = vld [vmem:[%s0 + $0x21a] sm:$0xff]
  %v3183 = vld [vmem:[%s0 + $0x222] sm:$0xff]
  %v3184 = vld [vmem:[%s0 + $0x22a] sm:$0xff]
  %v3185 = vld [vmem:[%s0 + $0x232] sm:$0xff]
  %v3186 = vld [vmem:[%s0 + $0x23a] sm:$0xff]
  %v3187 = vld [vmem:[%s0 + $0x242] sm:$0xff]
  %v3188 = vld [vmem:[%s0 + $0x24a] sm:$0xff]
  %v3189 = vld [vmem:[%s0 + $0x252] sm:$0xff]
  %v3190 = vld [vmem:[%s0 + $0x25a] sm:$0xff]
  %v3191 = vld [vmem:[%s0 + $0x262] sm:$0xff]
  %v3192 = vld [vmem:[%s0 + $0x26a] sm:$0xff]
  %v3193 = vld [vmem:[%s0 + $0x272] sm:$0xff]
  %v3194 = vld [vmem:[%s0 + $0x27a] sm:$0xff]
  %v3195 = vld [vmem:[%s0 + $0x282] sm:$0xff]
  %v3196 = vld [vmem:[%s0 + $0x28a] sm:$0xff]
  %v3197 = vld [vmem:[%s0 + $0x292] sm:$0xff]
  %v3198 = vld [vmem:[%s0 + $0x29a] sm:$0xff]
  %v3199 = vld [vmem:[%s0 + $0x2a2] sm:$0xff]
  %v3200 = vld [vmem:[%s0 + $0x2aa] sm:$0xff]
  %v3201 = vld [vmem:[%s0 + $0x2b2] sm:$0xff]
  %v3202 = vld [vmem:[%s0 + $0x2ba] sm:$0xff]
  %v3203 = vld [vmem:[%s0 + $0x2c2] sm:$0xff]
  %v3204 = vld [vmem:[%s0 + $0x2ca] sm:$0xff]
  %v3205 = vld [vmem:[%s0 + $0x2d2] sm:$0xff]
  %v3206 = vld [vmem:[%s0 + $0x2da] sm:$0xff]
  %v3207 = vld [vmem:[%s0 + $0x2e2] sm:$0xff]
  %v3208 = vld [vmem:[%s0 + $0x2ea] sm:$0xff]
  %v3209 = vld [vmem:[%s0 + $0x2f2] sm:$0xff]
  %v3210 = vld [vmem:[%s0 + $0x2fa] sm:$0xff]
  %v3211 = vld [vmem:[%s0 + $0x302] sm:$0xff]
  %v3212 = vld [vmem:[%s0 + $0x30a] sm:$0xff]
  %v3213 = vpack.c.bf16 %v3118, %v3117
  %v3214 = vpack.c.bf16 %v3120, %v3119
  %v3215 = vpack.c.bf16 %v3122, %v3121
  %v3216 = vpack.c.bf16 %v3124, %v3123
  %v3217 = vpack.c.bf16 %v3126, %v3125
  %v3218 = vpack.c.bf16 %v3128, %v3127
  %v3219 = vpack.c.bf16 %v3130, %v3129
  %v3220 = vpack.c.bf16 %v3132, %v3131
  %v3221 = vpack.c.bf16 %v3134, %v3133
  %v3222 = vpack.c.bf16 %v3136, %v3135
  %v3223 = vpack.c.bf16 %v3138, %v3137
  %v3224 = vpack.c.bf16 %v3140, %v3139
  %v3225 = vpack.c.bf16 %v3142, %v3141
  %v3226 = vpack.c.bf16 %v3144, %v3143
  %v3227 = vpack.c.bf16 %v3146, %v3145
  %v3228 = vpack.c.bf16 %v3148, %v3147
  %v3229 = vpack.c.bf16 %v3150, %v3149
  %v3230 = vpack.c.bf16 %v3152, %v3151
  %v3231 = vpack.c.bf16 %v3154, %v3153
  %v3232 = vpack.c.bf16 %v3156, %v3155
  %v3233 = vpack.c.bf16 %v3158, %v3157
  %v3234 = vpack.c.bf16 %v3160, %v3159
  %v3235 = vpack.c.bf16 %v3162, %v3161
  %v3236 = vpack.c.bf16 %v3164, %v3163
  %v3237 = vpack.c.bf16 %v3166, %v3165
  %v3238 = vpack.c.bf16 %v3168, %v3167
  %v3239 = vpack.c.bf16 %v3170, %v3169
  %v3240 = vpack.c.bf16 %v3172, %v3171
  %v3241 = vpack.c.bf16 %v3174, %v3173
  %v3242 = vpack.c.bf16 %v3176, %v3175
  %v3243 = vpack.c.bf16 %v3178, %v3177
  %v3244 = vpack.c.bf16 %v3180, %v3179
  %v3245 = vpack.c.bf16 %v3182, %v3181
  %v3246 = vpack.c.bf16 %v3184, %v3183
  %v3247 = vpack.c.bf16 %v3186, %v3185
  %v3248 = vpack.c.bf16 %v3188, %v3187
  %v3249 = vpack.c.bf16 %v3190, %v3189
  %v3250 = vpack.c.bf16 %v3192, %v3191
  %v3251 = vpack.c.bf16 %v3194, %v3193
  %v3252 = vpack.c.bf16 %v3196, %v3195
  %v3253 = vpack.c.bf16 %v3198, %v3197
  %v3254 = vpack.c.bf16 %v3200, %v3199
  %v3255 = vpack.c.bf16 %v3202, %v3201
  %v3256 = vpack.c.bf16 %v3204, %v3203
  %v3257 = vpack.c.bf16 %v3206, %v3205
  %v3258 = vpack.c.bf16 %v3208, %v3207
  %v3259 = vpack.c.bf16 %v3210, %v3209
  %v3260 = vpack.c.bf16 %v3212, %v3211
  %s3261 = scalar_lea.vmem %s1, 12
  %v3262 = vld [vmem:[%s3261] sm:$0xf]
  %v3264 = vsel %vm163, %v3213, 0
  %v3267 = vsel %vm163, %v3214, 0
  %v3270 = vsel %vm163, %v3215, 0
  %v3273 = vsel %vm163, %v3216, 0
  %v3276 = vsel %vm163, %v3217, 0
  %v3279 = vsel %vm163, %v3218, 0
  %v3282 = vsel %vm163, %v3219, 0
  %v3285 = vsel %vm163, %v3220, 0
  %v3288 = vsel %vm163, %v3221, 0
  %v3291 = vsel %vm163, %v3222, 0
  %v3294 = vsel %vm163, %v3223, 0
  %v3297 = vsel %vm163, %v3224, 0
  %v3300 = vsel %vm163, %v3225, 0
  %v3303 = vsel %vm163, %v3226, 0
  %v3306 = vsel %vm163, %v3227, 0
  %v3309 = vsel %vm163, %v3228, 0
  %v3312 = vsel %vm163, %v3229, 0
  %v3315 = vsel %vm163, %v3230, 0
  %v3318 = vsel %vm163, %v3231, 0
  %v3321 = vsel %vm163, %v3232, 0
  %v3324 = vsel %vm163, %v3233, 0
  %v3327 = vsel %vm163, %v3234, 0
  %v3330 = vsel %vm163, %v3235, 0
  %v3333 = vsel %vm163, %v3236, 0
  %v3336 = vsel %vm163, %v3237, 0
  %v3339 = vsel %vm163, %v3238, 0
  %v3342 = vsel %vm163, %v3239, 0
  %v3345 = vsel %vm163, %v3240, 0
  %v3348 = vsel %vm163, %v3241, 0
  %v3351 = vsel %vm163, %v3242, 0
  %v3354 = vsel %vm163, %v3243, 0
  %v3357 = vsel %vm163, %v3244, 0
  %v3360 = vsel %vm163, %v3245, 0
  %v3363 = vsel %vm163, %v3246, 0
  %v3366 = vsel %vm163, %v3247, 0
  %v3369 = vsel %vm163, %v3248, 0
  %v3372 = vsel %vm163, %v3249, 0
  %v3375 = vsel %vm163, %v3250, 0
  %v3378 = vsel %vm163, %v3251, 0
  %v3381 = vsel %vm163, %v3252, 0
  %v3384 = vsel %vm163, %v3253, 0
  %v3387 = vsel %vm163, %v3254, 0
  %v3390 = vsel %vm163, %v3255, 0
  %v3393 = vsel %vm163, %v3256, 0
  %v3396 = vsel %vm163, %v3257, 0
  %v3399 = vsel %vm163, %v3258, 0
  %v3402 = vsel %vm163, %v3259, 0
  %v3405 = vsel %vm163, %v3260, 0
  %v3408 = vsel %vm308, %v3262, 0
  %3410 = vmatprep.subr.bf16.mxu0 0
  %3411 = vmatpush1.bf16.msra.mxu0 %v3408
  %3412 = vmatprep.subr.bf16.mxu0 0
  %3413 = vmatpush1.bf16.msra.mxu0 0
  %3414 = vmatprep.subr.bf16.mxu0 0
  %3415 = vmatpush1.bf16.msra.mxu0 0
  %3416 = vmatprep.subr.bf16.mxu0 0
  %3417 = vmatpush1.bf16.msra.mxu0 0
  %3418 = vmatprep.subr.bf16.mxu0 0
  %3419 = vmatpush1.bf16.msra.mxu0 0
  %3420 = vmatprep.subr.bf16.mxu0 0
  %3421 = vmatpush1.bf16.msra.mxu0 0
  %3422 = vmatprep.subr.bf16.mxu0 0
  %3423 = vmatpush1.bf16.msra.mxu0 0
  %3424 = vmatprep.subr.bf16.mxu0 0
  %3425 = vmatpush1.bf16.msra.mxu0 0
  %3426 = vmatprep.subr.bf16.mxu0 0
  %3427 = vmatpush1.bf16.msra.mxu0 0
  %3428 = vmatprep.subr.bf16.mxu0 0
  %3429 = vmatpush1.bf16.msra.mxu0 0
  %3430 = vmatprep.subr.bf16.mxu0 0
  %3431 = vmatpush1.bf16.msra.mxu0 0
  %3432 = vmatprep.subr.bf16.mxu0 0
  %3433 = vmatpush1.bf16.msra.mxu0 0
  %3434 = vmatprep.subr.bf16.mxu0 0
  %3435 = vmatpush1.bf16.msra.mxu0 0
  %3436 = vmatprep.subr.bf16.mxu0 0
  %3437 = vmatpush1.bf16.msra.mxu0 0
  %3438 = vmatprep.subr.bf16.mxu0 0
  %3439 = vmatpush1.bf16.msra.mxu0 0
  %3440 = vmatprep.subr.bf16.mxu0 0
  %3441 = vmatpush1.bf16.msra.mxu0 0
  %3442 = vmatprep.mubr.bf16.mxu0 0
  %3443 = vmatmul.mubr.bf16.gmra.mrb[0].mxu0 %v3264
  %v3444 = vpop.f32.mrb[0].mxu0
  %v3445 = vadd.f32 0.0, %v3444
  %v3446 = vpop.f32.mrb[0].mxu0
  %v3447 = vpop.f32.mrb[0].mxu0
  %v3448 = vadd.f32 0.0, %v3447
  %v3449 = vpop.f32.mrb[0].mxu0
  %3450 = vmatprep.mubr.bf16.mxu0 0
  %3451 = vmatmul.mubr.bf16.gmra.mrb[0].mxu0 %v3267
  %v3452 = vpop.f32.mrb[0].mxu0
  %v3453 = vadd.f32 0.0, %v3452
  %v3454 = vpop.f32.mrb[0].mxu0
  %v3455 = vpop.f32.mrb[0].mxu0
  %v3456 = vadd.f32 0.0, %v3455
  %v3457 = vpop.f32.mrb[0].mxu0
  %3458 = vmatprep.mubr.bf16.mxu0 0
  %3459 = vmatmul.mubr.bf16.gmra.mrb[0].mxu0 %v3270
  %v3460 = vpop.f32.mrb[0].mxu0
  %v3461 = vadd.f32 0.0, %v3460
  %v3462 = vpop.f32.mrb[0].mxu0
  %v3463 = vpop.f32.mrb[0].mxu0
  %v3464 = vadd.f32 0.0, %v3463
  %v3465 = vpop.f32.mrb[0].mxu0
  %3466 = vmatprep.mubr.bf16.mxu0 0
  %3467 = vmatmul.mubr.bf16.gmra.mrb[0].mxu0 %v3273
  %v3468 = vpop.f32.mrb[0].mxu0
  %v3469 = vadd.f32 0.0, %v3468
  %v3470 = vpop.f32.mrb[0].mxu0
  %v3471 = vpop.f32.mrb[0].mxu0
  %v3472 = vadd.f32 0.0, %v3471
  %v3473 = vpop.f32.mrb[0].mxu0
  %3474 = vmatprep.mubr.bf16.mxu0 0
  %3475 = vmatmul.mubr.bf16.gmra.mrb[0].mxu0 %v3276
  %v3476 = vpop.f32.mrb[0].mxu0
  %v3477 = vadd.f32 0.0, %v3476
  %v3478 = vpop.f32.mrb[0].mxu0
  %v3479 = vpop.f32.mrb[0].mxu0
  %v3480 = vadd.f32 0.0, %v3479
  %v3481 = vpop.f32.mrb[0].mxu0
  %3482 = vmatprep.mubr.bf16.mxu0 0
  %3483 = vmatmul.mubr.bf16.gmra.mrb[0].mxu0 %v3279
  %v3484 = vpop.f32.mrb[0].mxu0
  %v3485 = vadd.f32 0.0, %v3484
  %v3486 = vpop.f32.mrb[0].mxu0
  %v3487 = vpop.f32.mrb[0].mxu0
  %v3488 = vadd.f32 0.0, %v3487
  %v3489 = vpop.f32.mrb[0].mxu0
  %3490 = vmatprep.mubr.bf16.mxu0 0
  %3491 = vmatmul.mubr.bf16.gmra.mrb[0].mxu0 %v3282
  %v3492 = vpop.f32.mrb[0].mxu0
  %v3493 = vadd.f32 0.0, %v3492
  %v3494 = vpop.f32.mrb[0].mxu0
  %v3495 = vpop.f32.mrb[0].mxu0
  %v3496 = vadd.f32 0.0, %v3495
  %v3497 = vpop.f32.mrb[0].mxu0
  %3498 = vmatprep.mubr.bf16.mxu0 0
  %3499 = vmatmul.mubr.bf16.gmra.mrb[0].mxu0 %v3285
  %v3500 = vpop.f32.mrb[0].mxu0
  %v3501 = vadd.f32 0.0, %v3500
  %v3502 = vpop.f32.mrb[0].mxu0
  %v3503 = vpop.f32.mrb[0].mxu0
  %v3504 = vadd.f32 0.0, %v3503
  %v3505 = vpop.f32.mrb[0].mxu0
  %3506 = vmatprep.mubr.bf16.mxu0 0
  %3507 = vmatmul.mubr.bf16.gmra.mrb[0].mxu0 %v3288
  %v3508 = vpop.f32.mrb[0].mxu0
  %v3509 = vadd.f32 0.0, %v3508
  %v3510 = vpop.f32.mrb[0].mxu0
  %v3511 = vpop.f32.mrb[0].mxu0
  %v3512 = vadd.f32 0.0, %v3511
  %v3513 = vpop.f32.mrb[0].mxu0
  %3514 = vmatprep.mubr.bf16.mxu0 0
  %3515 = vmatmul.mubr.bf16.gmra.mrb[0].mxu0 %v3291
  %v3516 = vpop.f32.mrb[0].mxu0
  %v3517 = vadd.f32 0.0, %v3516
  %v3518 = vpop.f32.mrb[0].mxu0
  %v3519 = vpop.f32.mrb[0].mxu0
  %v3520 = vadd.f32 0.0, %v3519
  %v3521 = vpop.f32.mrb[0].mxu0
  %3522 = vmatprep.mubr.bf16.mxu0 0
  %3523 = vmatmul.mubr.bf16.gmra.mrb[0].mxu0 %v3294
  %v3524 = vpop.f32.mrb[0].mxu0
  %v3525 = vadd.f32 0.0, %v3524
  %v3526 = vpop.f32.mrb[0].mxu0
  %v3527 = vpop.f32.mrb[0].mxu0
  %v3528 = vadd.f32 0.0, %v3527
  %v3529 = vpop.f32.mrb[0].mxu0
  %3530 = vmatprep.mubr.bf16.mxu0 0
  %3531 = vmatmul.mubr.bf16.gmra.mrb[0].mxu0 %v3297
  %v3532 = vpop.f32.mrb[0].mxu0
  %v3533 = vadd.f32 0.0, %v3532
  %v3534 = vpop.f32.mrb[0].mxu0
  %v3535 = vpop.f32.mrb[0].mxu0
  %v3536 = vadd.f32 0.0, %v3535
  %v3537 = vpop.f32.mrb[0].mxu0
  %3538 = vmatprep.mubr.bf16.mxu0 0
  %3539 = vmatmul.mubr.bf16.gmra.mrb[0].mxu0 %v3300
  %v3540 = vpop.f32.mrb[0].mxu0
  %v3541 = vadd.f32 0.0, %v3540
  %v3542 = vpop.f32.mrb[0].mxu0
  %v3543 = vpop.f32.mrb[0].mxu0
  %v3544 = vadd.f32 0.0, %v3543
  %v3545 = vpop.f32.mrb[0].mxu0
  %3546 = vmatprep.mubr.bf16.mxu0 0
  %3547 = vmatmul.mubr.bf16.gmra.mrb[0].mxu0 %v3303
  %v3548 = vpop.f32.mrb[0].mxu0
  %v3549 = vadd.f32 0.0, %v3548
  %v3550 = vpop.f32.mrb[0].mxu0
  %v3551 = vpop.f32.mrb[0].mxu0
  %v3552 = vadd.f32 0.0, %v3551
  %v3553 = vpop.f32.mrb[0].mxu0
  %3554 = vmatprep.mubr.bf16.mxu0 0
  %3555 = vmatmul.mubr.bf16.gmra.mrb[0].mxu0 %v3306
  %v3556 = vpop.f32.mrb[0].mxu0
  %v3557 = vadd.f32 0.0, %v3556
  %v3558 = vpop.f32.mrb[0].mxu0
  %v3559 = vpop.f32.mrb[0].mxu0
  %v3560 = vadd.f32 0.0, %v3559
  %v3561 = vpop.f32.mrb[0].mxu0
  %3562 = vmatprep.mubr.bf16.mxu0 0
  %3563 = vmatmul.mubr.bf16.gmra.mrb[0].mxu0 %v3309
  %v3564 = vpop.f32.mrb[0].mxu0
  %v3565 = vadd.f32 0.0, %v3564
  %v3566 = vpop.f32.mrb[0].mxu0
  %v3567 = vpop.f32.mrb[0].mxu0
  %v3568 = vadd.f32 0.0, %v3567
  %v3569 = vpop.f32.mrb[0].mxu0
  %3570 = vmatprep.mubr.bf16.mxu0 0
  %3571 = vmatmul.mubr.bf16.gmra.mrb[0].mxu0 %v3312
  %v3572 = vpop.f32.mrb[0].mxu0
  %v3573 = vadd.f32 0.0, %v3572
  %v3574 = vpop.f32.mrb[0].mxu0
  %v3575 = vpop.f32.mrb[0].mxu0
  %v3576 = vadd.f32 0.0, %v3575
  %v3577 = vpop.f32.mrb[0].mxu0
  %3578 = vmatprep.mubr.bf16.mxu0 0
  %3579 = vmatmul.mubr.bf16.gmra.mrb[0].mxu0 %v3315
  %v3580 = vpop.f32.mrb[0].mxu0
  %v3581 = vadd.f32 0.0, %v3580
  %v3582 = vpop.f32.mrb[0].mxu0
  %v3583 = vpop.f32.mrb[0].mxu0
  %v3584 = vadd.f32 0.0, %v3583
  %v3585 = vpop.f32.mrb[0].mxu0
  %3586 = vmatprep.mubr.bf16.mxu0 0
  %3587 = vmatmul.mubr.bf16.gmra.mrb[0].mxu0 %v3318
  %v3588 = vpop.f32.mrb[0].mxu0
  %v3589 = vadd.f32 0.0, %v3588
  %v3590 = vpop.f32.mrb[0].mxu0
  %v3591 = vpop.f32.mrb[0].mxu0
  %v3592 = vadd.f32 0.0, %v3591
  %v3593 = vpop.f32.mrb[0].mxu0
  %3594 = vmatprep.mubr.bf16.mxu0 0
  %3595 = vmatmul.mubr.bf16.gmra.mrb[0].mxu0 %v3321
  %v3596 = vpop.f32.mrb[0].mxu0
  %v3597 = vadd.f32 0.0, %v3596
  %v3598 = vpop.f32.mrb[0].mxu0
  %v3599 = vpop.f32.mrb[0].mxu0
  %v3600 = vadd.f32 0.0, %v3599
  %v3601 = vpop.f32.mrb[0].mxu0
  %3602 = vmatprep.mubr.bf16.mxu0 0
  %3603 = vmatmul.mubr.bf16.gmra.mrb[0].mxu0 %v3324
  %v3604 = vpop.f32.mrb[0].mxu0
  %v3605 = vadd.f32 0.0, %v3604
  %v3606 = vpop.f32.mrb[0].mxu0
  %v3607 = vpop.f32.mrb[0].mxu0
  %v3608 = vadd.f32 0.0, %v3607
  %v3609 = vpop.f32.mrb[0].mxu0
  %3610 = vmatprep.mubr.bf16.mxu0 0
  %3611 = vmatmul.mubr.bf16.gmra.mrb[0].mxu0 %v3327
  %v3612 = vpop.f32.mrb[0].mxu0
  %v3613 = vadd.f32 0.0, %v3612
  %v3614 = vpop.f32.mrb[0].mxu0
  %v3615 = vpop.f32.mrb[0].mxu0
  %v3616 = vadd.f32 0.0, %v3615
  %v3617 = vpop.f32.mrb[0].mxu0
  %3618 = vmatprep.mubr.bf16.mxu0 0
  %3619 = vmatmul.mubr.bf16.gmra.mrb[0].mxu0 %v3330
  %v3620 = vpop.f32.mrb[0].mxu0
  %v3621 = vadd.f32 0.0, %v3620
  %v3622 = vpop.f32.mrb[0].mxu0
  %v3623 = vpop.f32.mrb[0].mxu0
  %v3624 = vadd.f32 0.0, %v3623
  %v3625 = vpop.f32.mrb[0].mxu0
  %3626 = vmatprep.mubr.bf16.mxu0 0
  %3627 = vmatmul.mubr.bf16.gmra.mrb[0].mxu0 %v3333
  %v3628 = vpop.f32.mrb[0].mxu0
  %v3629 = vadd.f32 0.0, %v3628
  %v3630 = vpop.f32.mrb[0].mxu0
  %v3631 = vpop.f32.mrb[0].mxu0
  %v3632 = vadd.f32 0.0, %v3631
  %v3633 = vpop.f32.mrb[0].mxu0
  %3634 = vmatprep.mubr.bf16.mxu0 0
  %3635 = vmatmul.mubr.bf16.gmra.mrb[0].mxu0 %v3336
  %v3636 = vpop.f32.mrb[0].mxu0
  %v3637 = vadd.f32 0.0, %v3636
  %v3638 = vpop.f32.mrb[0].mxu0
  %v3639 = vpop.f32.mrb[0].mxu0
  %v3640 = vadd.f32 0.0, %v3639
  %v3641 = vpop.f32.mrb[0].mxu0
  %3642 = vmatprep.mubr.bf16.mxu0 0
  %3643 = vmatmul.mubr.bf16.gmra.mrb[0].mxu0 %v3339
  %v3644 = vpop.f32.mrb[0].mxu0
  %v3645 = vadd.f32 0.0, %v3644
  %v3646 = vpop.f32.mrb[0].mxu0
  %v3647 = vpop.f32.mrb[0].mxu0
  %v3648 = vadd.f32 0.0, %v3647
  %v3649 = vpop.f32.mrb[0].mxu0
  %3650 = vmatprep.mubr.bf16.mxu0 0
  %3651 = vmatmul.mubr.bf16.gmra.mrb[0].mxu0 %v3342
  %v3652 = vpop.f32.mrb[0].mxu0
  %v3653 = vadd.f32 0.0, %v3652
  %v3654 = vpop.f32.mrb[0].mxu0
  %v3655 = vpop.f32.mrb[0].mxu0
  %v3656 = vadd.f32 0.0, %v3655
  %v3657 = vpop.f32.mrb[0].mxu0
  %3658 = vmatprep.mubr.bf16.mxu0 0
  %3659 = vmatmul.mubr.bf16.gmra.mrb[0].mxu0 %v3345
  %v3660 = vpop.f32.mrb[0].mxu0
  %v3661 = vadd.f32 0.0, %v3660
  %v3662 = vpop.f32.mrb[0].mxu0
  %v3663 = vpop.f32.mrb[0].mxu0
  %v3664 = vadd.f32 0.0, %v3663
  %v3665 = vpop.f32.mrb[0].mxu0
  %3666 = vmatprep.mubr.bf16.mxu0 0
  %3667 = vmatmul.mubr.bf16.gmra.mrb[0].mxu0 %v3348
  %v3668 = vpop.f32.mrb[0].mxu0
  %v3669 = vadd.f32 0.0, %v3668
  %v3670 = vpop.f32.mrb[0].mxu0
  %v3671 = vpop.f32.mrb[0].mxu0
  %v3672 = vadd.f32 0.0, %v3671
  %v3673 = vpop.f32.mrb[0].mxu0
  %3674 = vmatprep.mubr.bf16.mxu0 0
  %3675 = vmatmul.mubr.bf16.gmra.mrb[0].mxu0 %v3351
  %v3676 = vpop.f32.mrb[0].mxu0
  %v3677 = vadd.f32 0.0, %v3676
  %v3678 = vpop.f32.mrb[0].mxu0
  %v3679 = vpop.f32.mrb[0].mxu0
  %v3680 = vadd.f32 0.0, %v3679
  %v3681 = vpop.f32.mrb[0].mxu0
  %3682 = vmatprep.mubr.bf16.mxu0 0
  %3683 = vmatmul.mubr.bf16.gmra.mrb[0].mxu0 %v3354
  %v3684 = vpop.f32.mrb[0].mxu0
  %v3685 = vadd.f32 0.0, %v3684
  %v3686 = vpop.f32.mrb[0].mxu0
  %v3687 = vpop.f32.mrb[0].mxu0
  %v3688 = vadd.f32 0.0, %v3687
  %v3689 = vpop.f32.mrb[0].mxu0
  %3690 = vmatprep.mubr.bf16.mxu0 0
  %3691 = vmatmul.mubr.bf16.gmra.mrb[0].mxu0 %v3357
  %v3692 = vpop.f32.mrb[0].mxu0
  %v3693 = vadd.f32 0.0, %v3692
  %v3694 = vpop.f32.mrb[0].mxu0
  %v3695 = vpop.f32.mrb[0].mxu0
  %v3696 = vadd.f32 0.0, %v3695
  %v3697 = vpop.f32.mrb[0].mxu0
  %3698 = vmatprep.mubr.bf16.mxu0 0
  %3699 = vmatmul.mubr.bf16.gmra.mrb[0].mxu0 %v3360
  %v3700 = vpop.f32.mrb[0].mxu0
  %v3701 = vadd.f32 0.0, %v3700
  %v3702 = vpop.f32.mrb[0].mxu0
  %v3703 = vpop.f32.mrb[0].mxu0
  %v3704 = vadd.f32 0.0, %v3703
  %v3705 = vpop.f32.mrb[0].mxu0
  %3706 = vmatprep.mubr.bf16.mxu0 0
  %3707 = vmatmul.mubr.bf16.gmra.mrb[0].mxu0 %v3363
  %v3708 = vpop.f32.mrb[0].mxu0
  %v3709 = vadd.f32 0.0, %v3708
  %v3710 = vpop.f32.mrb[0].mxu0
  %v3711 = vpop.f32.mrb[0].mxu0
  %v3712 = vadd.f32 0.0, %v3711
  %v3713 = vpop.f32.mrb[0].mxu0
  %3714 = vmatprep.mubr.bf16.mxu0 0
  %3715 = vmatmul.mubr.bf16.gmra.mrb[0].mxu0 %v3366
  %v3716 = vpop.f32.mrb[0].mxu0
  %v3717 = vadd.f32 0.0, %v3716
  %v3718 = vpop.f32.mrb[0].mxu0
  %v3719 = vpop.f32.mrb[0].mxu0
  %v3720 = vadd.f32 0.0, %v3719
  %v3721 = vpop.f32.mrb[0].mxu0
  %3722 = vmatprep.mubr.bf16.mxu0 0
  %3723 = vmatmul.mubr.bf16.gmra.mrb[0].mxu0 %v3369
  %v3724 = vpop.f32.mrb[0].mxu0
  %v3725 = vadd.f32 0.0, %v3724
  %v3726 = vpop.f32.mrb[0].mxu0
  %v3727 = vpop.f32.mrb[0].mxu0
  %v3728 = vadd.f32 0.0, %v3727
  %v3729 = vpop.f32.mrb[0].mxu0
  %3730 = vmatprep.mubr.bf16.mxu0 0
  %3731 = vmatmul.mubr.bf16.gmra.mrb[0].mxu0 %v3372
  %v3732 = vpop.f32.mrb[0].mxu0
  %v3733 = vadd.f32 0.0, %v3732
  %v3734 = vpop.f32.mrb[0].mxu0
  %v3735 = vpop.f32.mrb[0].mxu0
  %v3736 = vadd.f32 0.0, %v3735
  %v3737 = vpop.f32.mrb[0].mxu0
  %3738 = vmatprep.mubr.bf16.mxu0 0
  %3739 = vmatmul.mubr.bf16.gmra.mrb[0].mxu0 %v3375
  %v3740 = vpop.f32.mrb[0].mxu0
  %v3741 = vadd.f32 0.0, %v3740
  %v3742 = vpop.f32.mrb[0].mxu0
  %v3743 = vpop.f32.mrb[0].mxu0
  %v3744 = vadd.f32 0.0, %v3743
  %v3745 = vpop.f32.mrb[0].mxu0
  %3746 = vmatprep.mubr.bf16.mxu0 0
  %3747 = vmatmul.mubr.bf16.gmra.mrb[0].mxu0 %v3378
  %v3748 = vpop.f32.mrb[0].mxu0
  %v3749 = vadd.f32 0.0, %v3748
  %v3750 = vpop.f32.mrb[0].mxu0
  %v3751 = vpop.f32.mrb[0].mxu0
  %v3752 = vadd.f32 0.0, %v3751
  %v3753 = vpop.f32.mrb[0].mxu0
  %3754 = vmatprep.mubr.bf16.mxu0 0
  %3755 = vmatmul.mubr.bf16.gmra.mrb[0].mxu0 %v3381
  %v3756 = vpop.f32.mrb[0].mxu0
  %v3757 = vadd.f32 0.0, %v3756
  %v3758 = vpop.f32.mrb[0].mxu0
  %v3759 = vpop.f32.mrb[0].mxu0
  %v3760 = vadd.f32 0.0, %v3759
  %v3761 = vpop.f32.mrb[0].mxu0
  %3762 = vmatprep.mubr.bf16.mxu0 0
  %3763 = vmatmul.mubr.bf16.gmra.mrb[0].mxu0 %v3384
  %v3764 = vpop.f32.mrb[0].mxu0
  %v3765 = vadd.f32 0.0, %v3764
  %v3766 = vpop.f32.mrb[0].mxu0
  %v3767 = vpop.f32.mrb[0].mxu0
  %v3768 = vadd.f32 0.0, %v3767
  %v3769 = vpop.f32.mrb[0].mxu0
  %3770 = vmatprep.mubr.bf16.mxu0 0
  %3771 = vmatmul.mubr.bf16.gmra.mrb[0].mxu0 %v3387
  %v3772 = vpop.f32.mrb[0].mxu0
  %v3773 = vadd.f32 0.0, %v3772
  %v3774 = vpop.f32.mrb[0].mxu0
  %v3775 = vpop.f32.mrb[0].mxu0
  %v3776 = vadd.f32 0.0, %v3775
  %v3777 = vpop.f32.mrb[0].mxu0
  %3778 = vmatprep.mubr.bf16.mxu0 0
  %3779 = vmatmul.mubr.bf16.gmra.mrb[0].mxu0 %v3390
  %v3780 = vpop.f32.mrb[0].mxu0
  %v3781 = vadd.f32 0.0, %v3780
  %v3782 = vpop.f32.mrb[0].mxu0
  %v3783 = vpop.f32.mrb[0].mxu0
  %v3784 = vadd.f32 0.0, %v3783
  %v3785 = vpop.f32.mrb[0].mxu0
  %3786 = vmatprep.mubr.bf16.mxu0 0
  %3787 = vmatmul.mubr.bf16.gmra.mrb[0].mxu0 %v3393
  %v3788 = vpop.f32.mrb[0].mxu0
  %v3789 = vadd.f32 0.0, %v3788
  %v3790 = vpop.f32.mrb[0].mxu0
  %v3791 = vpop.f32.mrb[0].mxu0
  %v3792 = vadd.f32 0.0, %v3791
  %v3793 = vpop.f32.mrb[0].mxu0
  %3794 = vmatprep.mubr.bf16.mxu0 0
  %3795 = vmatmul.mubr.bf16.gmra.mrb[0].mxu0 %v3396
  %v3796 = vpop.f32.mrb[0].mxu0
  %v3797 = vadd.f32 0.0, %v3796
  %v3798 = vpop.f32.mrb[0].mxu0
  %v3799 = vpop.f32.mrb[0].mxu0
  %v3800 = vadd.f32 0.0, %v3799
  %v3801 = vpop.f32.mrb[0].mxu0
  %3802 = vmatprep.mubr.bf16.mxu0 0
  %3803 = vmatmul.mubr.bf16.gmra.mrb[0].mxu0 %v3399
  %v3804 = vpop.f32.mrb[0].mxu0
  %v3805 = vadd.f32 0.0, %v3804
  %v3806 = vpop.f32.mrb[0].mxu0
  %v3807 = vpop.f32.mrb[0].mxu0
  %v3808 = vadd.f32 0.0, %v3807
  %v3809 = vpop.f32.mrb[0].mxu0
  %3810 = vmatprep.mubr.bf16.mxu0 0
  %3811 = vmatmul.mubr.bf16.gmra.mrb[0].mxu0 %v3402
  %v3812 = vpop.f32.mrb[0].mxu0
  %v3813 = vadd.f32 0.0, %v3812
  %v3814 = vpop.f32.mrb[0].mxu0
  %v3815 = vpop.f32.mrb[0].mxu0
  %v3816 = vadd.f32 0.0, %v3815
  %v3817 = vpop.f32.mrb[0].mxu0
  %3818 = vmatprep.mubr.bf16.mxu0 0
  %3819 = vmatmul.mubr.bf16.gmra.mrb[0].mxu0 %v3405
  %v3820 = vpop.f32.mrb[0].mxu0
  %v3821 = vadd.f32 0.0, %v3820
  %v3822 = vpop.f32.mrb[0].mxu0
  %v3823 = vpop.f32.mrb[0].mxu0
  %v3824 = vadd.f32 0.0, %v3823
  %v3825 = vpop.f32.mrb[0].mxu0
  %3826 = vdwg.mxu0
  %v3827 = vld [vmem:[#allocation2] sm:$0xff]
  %v3828 = vld [vmem:[#allocation2 + $0x8] sm:$0xff]
  %v3829 = vld [vmem:[#allocation2 + $0x10] sm:$0xff]
  %v3830 = vld [vmem:[#allocation2 + $0x18] sm:$0xff]
  %v3831 = vld [vmem:[#allocation2 + $0x20] sm:$0xff]
  %v3832 = vld [vmem:[#allocation2 + $0x28] sm:$0xff]
  %v3833 = vld [vmem:[#allocation2 + $0x30] sm:$0xff]
  %v3834 = vld [vmem:[#allocation2 + $0x38] sm:$0xff]
  %v3835 = vld [vmem:[#allocation2 + $0x40] sm:$0xff]
  %v3836 = vld [vmem:[#allocation2 + $0x48] sm:$0xff]
  %v3837 = vld [vmem:[#allocation2 + $0x50] sm:$0xff]
  %v3838 = vld [vmem:[#allocation2 + $0x58] sm:$0xff]
  %v3839 = vld [vmem:[#allocation2 + $0x60] sm:$0xff]
  %v3840 = vld [vmem:[#allocation2 + $0x68] sm:$0xff]
  %v3841 = vld [vmem:[#allocation2 + $0x70] sm:$0xff]
  %v3842 = vld [vmem:[#allocation2 + $0x78] sm:$0xff]
  %v3843 = vld [vmem:[#allocation2 + $0x80] sm:$0xff]
  %v3844 = vld [vmem:[#allocation2 + $0x88] sm:$0xff]
  %v3845 = vld [vmem:[#allocation2 + $0x90] sm:$0xff]
  %v3846 = vld [vmem:[#allocation2 + $0x98] sm:$0xff]
  %v3847 = vld [vmem:[#allocation2 + $0xa0] sm:$0xff]
  %v3848 = vld [vmem:[#allocation2 + $0xa8] sm:$0xff]
  %v3849 = vld [vmem:[#allocation2 + $0xb0] sm:$0xff]
  %v3850 = vld [vmem:[#allocation2 + $0xb8] sm:$0xff]
  %v3851 = vld [vmem:[#allocation2 + $0xc0] sm:$0xff]
  %v3852 = vld [vmem:[#allocation2 + $0xc8] sm:$0xff]
  %v3853 = vld [vmem:[#allocation2 + $0xd0] sm:$0xff]
  %v3854 = vld [vmem:[#allocation2 + $0xd8] sm:$0xff]
  %v3855 = vld [vmem:[#allocation2 + $0xe0] sm:$0xff]
  %v3856 = vld [vmem:[#allocation2 + $0xe8] sm:$0xff]
  %v3857 = vld [vmem:[#allocation2 + $0xf0] sm:$0xff]
  %v3858 = vld [vmem:[#allocation2 + $0xf8] sm:$0xff]
  %v3859 = vld [vmem:[#allocation2 + $0x100] sm:$0xff]
  %v3860 = vld [vmem:[#allocation2 + $0x108] sm:$0xff]
  %v3861 = vld [vmem:[#allocation2 + $0x110] sm:$0xff]
  %v3862 = vld [vmem:[#allocation2 + $0x118] sm:$0xff]
  %v3863 = vld [vmem:[#allocation2 + $0x120] sm:$0xff]
  %v3864 = vld [vmem:[#allocation2 + $0x128] sm:$0xff]
  %v3865 = vld [vmem:[#allocation2 + $0x130] sm:$0xff]
  %v3866 = vld [vmem:[#allocation2 + $0x138] sm:$0xff]
  %v3867 = vld [vmem:[#allocation2 + $0x140] sm:$0xff]
  %v3868 = vld [vmem:[#allocation2 + $0x148] sm:$0xff]
  %v3869 = vld [vmem:[#allocation2 + $0x150] sm:$0xff]
  %v3870 = vld [vmem:[#allocation2 + $0x158] sm:$0xff]
  %v3871 = vld [vmem:[#allocation2 + $0x160] sm:$0xff]
  %v3872 = vld [vmem:[#allocation2 + $0x168] sm:$0xff]
  %v3873 = vld [vmem:[#allocation2 + $0x170] sm:$0xff]
  %v3874 = vld [vmem:[#allocation2 + $0x178] sm:$0xff]
  %v3875 = vld [vmem:[#allocation2 + $0x180] sm:$0xff]
  %v3876 = vld [vmem:[#allocation2 + $0x188] sm:$0xff]
  %v3877 = vld [vmem:[#allocation2 + $0x190] sm:$0xff]
  %v3878 = vld [vmem:[#allocation2 + $0x198] sm:$0xff]
  %v3879 = vld [vmem:[#allocation2 + $0x1a0] sm:$0xff]
  %v3880 = vld [vmem:[#allocation2 + $0x1a8] sm:$0xff]
  %v3881 = vld [vmem:[#allocation2 + $0x1b0] sm:$0xff]
  %v3882 = vld [vmem:[#allocation2 + $0x1b8] sm:$0xff]
  %v3883 = vld [vmem:[#allocation2 + $0x1c0] sm:$0xff]
  %v3884 = vld [vmem:[#allocation2 + $0x1c8] sm:$0xff]
  %v3885 = vld [vmem:[#allocation2 + $0x1d0] sm:$0xff]
  %v3886 = vld [vmem:[#allocation2 + $0x1d8] sm:$0xff]
  %v3887 = vld [vmem:[#allocation2 + $0x1e0] sm:$0xff]
  %v3888 = vld [vmem:[#allocation2 + $0x1e8] sm:$0xff]
  %v3889 = vld [vmem:[#allocation2 + $0x1f0] sm:$0xff]
  %v3890 = vld [vmem:[#allocation2 + $0x1f8] sm:$0xff]
  %v3891 = vld [vmem:[#allocation2 + $0x200] sm:$0xff]
  %v3892 = vld [vmem:[#allocation2 + $0x208] sm:$0xff]
  %v3893 = vld [vmem:[#allocation2 + $0x210] sm:$0xff]
  %v3894 = vld [vmem:[#allocation2 + $0x218] sm:$0xff]
  %v3895 = vld [vmem:[#allocation2 + $0x220] sm:$0xff]
  %v3896 = vld [vmem:[#allocation2 + $0x228] sm:$0xff]
  %v3897 = vld [vmem:[#allocation2 + $0x230] sm:$0xff]
  %v3898 = vld [vmem:[#allocation2 + $0x238] sm:$0xff]
  %v3899 = vld [vmem:[#allocation2 + $0x240] sm:$0xff]
  %v3900 = vld [vmem:[#allocation2 + $0x248] sm:$0xff]
  %v3901 = vld [vmem:[#allocation2 + $0x250] sm:$0xff]
  %v3902 = vld [vmem:[#allocation2 + $0x258] sm:$0xff]
  %v3903 = vld [vmem:[#allocation2 + $0x260] sm:$0xff]
  %v3904 = vld [vmem:[#allocation2 + $0x268] sm:$0xff]
  %v3905 = vld [vmem:[#allocation2 + $0x270] sm:$0xff]
  %v3906 = vld [vmem:[#allocation2 + $0x278] sm:$0xff]
  %v3907 = vld [vmem:[#allocation2 + $0x280] sm:$0xff]
  %v3908 = vld [vmem:[#allocation2 + $0x288] sm:$0xff]
  %v3909 = vld [vmem:[#allocation2 + $0x290] sm:$0xff]
  %v3910 = vld [vmem:[#allocation2 + $0x298] sm:$0xff]
  %v3911 = vld [vmem:[#allocation2 + $0x2a0] sm:$0xff]
  %v3912 = vld [vmem:[#allocation2 + $0x2a8] sm:$0xff]
  %v3913 = vld [vmem:[#allocation2 + $0x2b0] sm:$0xff]
  %v3914 = vld [vmem:[#allocation2 + $0x2b8] sm:$0xff]
  %v3915 = vld [vmem:[#allocation2 + $0x2c0] sm:$0xff]
  %v3916 = vld [vmem:[#allocation2 + $0x2c8] sm:$0xff]
  %v3917 = vld [vmem:[#allocation2 + $0x2d0] sm:$0xff]
  %v3918 = vld [vmem:[#allocation2 + $0x2d8] sm:$0xff]
  %v3919 = vld [vmem:[#allocation2 + $0x2e0] sm:$0xff]
  %v3920 = vld [vmem:[#allocation2 + $0x2e8] sm:$0xff]
  %v3921 = vld [vmem:[#allocation2 + $0x2f0] sm:$0xff]
  %v3922 = vld [vmem:[#allocation2 + $0x2f8] sm:$0xff]
  %v3923 = vadd.f32 %v3827, %v3445
  %v3924 = vadd.f32 %v3828, %v3448
  %v3925 = vadd.f32 %v3829, %v3453
  %v3926 = vadd.f32 %v3830, %v3456
  %v3927 = vadd.f32 %v3831, %v3461
  %v3928 = vadd.f32 %v3832, %v3464
  %v3929 = vadd.f32 %v3833, %v3469
  %v3930 = vadd.f32 %v3834, %v3472
  %v3931 = vadd.f32 %v3835, %v3477
  %v3932 = vadd.f32 %v3836, %v3480
  %v3933 = vadd.f32 %v3837, %v3485
  %v3934 = vadd.f32 %v3838, %v3488
  %v3935 = vadd.f32 %v3839, %v3493
  %v3936 = vadd.f32 %v3840, %v3496
  %v3937 = vadd.f32 %v3841, %v3501
  %v3938 = vadd.f32 %v3842, %v3504
  %v3939 = vadd.f32 %v3843, %v3509
  %v3940 = vadd.f32 %v3844, %v3512
  %v3941 = vadd.f32 %v3845, %v3517
  %v3942 = vadd.f32 %v3846, %v3520
  %v3943 = vadd.f32 %v3847, %v3525
  %v3944 = vadd.f32 %v3848, %v3528
  %v3945 = vadd.f32 %v3849, %v3533
  %v3946 = vadd.f32 %v3850, %v3536
  %v3947 = vadd.f32 %v3851, %v3541
  %v3948 = vadd.f32 %v3852, %v3544
  %v3949 = vadd.f32 %v3853, %v3549
  %v3950 = vadd.f32 %v3854, %v3552
  %v3951 = vadd.f32 %v3855, %v3557
  %v3952 = vadd.f32 %v3856, %v3560
  %v3953 = vadd.f32 %v3857, %v3565
  %v3954 = vadd.f32 %v3858, %v3568
  %v3955 = vadd.f32 %v3859, %v3573
  %v3956 = vadd.f32 %v3860, %v3576
  %v3957 = vadd.f32 %v3861, %v3581
  %v3958 = vadd.f32 %v3862, %v3584
  %v3959 = vadd.f32 %v3863, %v3589
  %v3960 = vadd.f32 %v3864, %v3592
  %v3961 = vadd.f32 %v3865, %v3597
  %v3962 = vadd.f32 %v3866, %v3600
  %v3963 = vadd.f32 %v3867, %v3605
  %v3964 = vadd.f32 %v3868, %v3608
  %v3965 = vadd.f32 %v3869, %v3613
  %v3966 = vadd.f32 %v3870, %v3616
  %v3967 = vadd.f32 %v3871, %v3621
  %v3968 = vadd.f32 %v3872, %v3624
  %v3969 = vadd.f32 %v3873, %v3629
  %v3970 = vadd.f32 %v3874, %v3632
  %v3971 = vadd.f32 %v3875, %v3637
  %v3972 = vadd.f32 %v3876, %v3640
  %v3973 = vadd.f32 %v3877, %v3645
  %v3974 = vadd.f32 %v3878, %v3648
  %v3975 = vadd.f32 %v3879, %v3653
  %v3976 = vadd.f32 %v3880, %v3656
  %v3977 = vadd.f32 %v3881, %v3661
  %v3978 = vadd.f32 %v3882, %v3664
  %v3979 = vadd.f32 %v3883, %v3669
  %v3980 = vadd.f32 %v3884, %v3672
  %v3981 = vadd.f32 %v3885, %v3677
  %v3982 = vadd.f32 %v3886, %v3680
  %v3983 = vadd.f32 %v3887, %v3685
  %v3984 = vadd.f32 %v3888, %v3688
  %v3985 = vadd.f32 %v3889, %v3693
  %v3986 = vadd.f32 %v3890, %v3696
  %v3987 = vadd.f32 %v3891, %v3701
  %v3988 = vadd.f32 %v3892, %v3704
  %v3989 = vadd.f32 %v3893, %v3709
  %v3990 = vadd.f32 %v3894, %v3712
  %v3991 = vadd.f32 %v3895, %v3717
  %v3992 = vadd.f32 %v3896, %v3720
  %v3993 = vadd.f32 %v3897, %v3725
  %v3994 = vadd.f32 %v3898, %v3728
  %v3995 = vadd.f32 %v3899, %v3733
  %v3996 = vadd.f32 %v3900, %v3736
  %v3997 = vadd.f32 %v3901, %v3741
  %v3998 = vadd.f32 %v3902, %v3744
  %v3999 = vadd.f32 %v3903, %v3749
  %v4000 = vadd.f32 %v3904, %v3752
  %v4001 = vadd.f32 %v3905, %v3757
  %v4002 = vadd.f32 %v3906, %v3760
  %v4003 = vadd.f32 %v3907, %v3765
  %v4004 = vadd.f32 %v3908, %v3768
  %v4005 = vadd.f32 %v3909, %v3773
  %v4006 = vadd.f32 %v3910, %v3776
  %v4007 = vadd.f32 %v3911, %v3781
  %v4008 = vadd.f32 %v3912, %v3784
  %v4009 = vadd.f32 %v3913, %v3789
  %v4010 = vadd.f32 %v3914, %v3792
  %v4011 = vadd.f32 %v3915, %v3797
  %v4012 = vadd.f32 %v3916, %v3800
  %v4013 = vadd.f32 %v3917, %v3805
  %v4014 = vadd.f32 %v3918, %v3808
  %v4015 = vadd.f32 %v3919, %v3813
  %v4016 = vadd.f32 %v3920, %v3816
  %v4017 = vadd.f32 %v3921, %v3821
  %v4018 = vadd.f32 %v3922, %v3824
  %4019 = vst [vmem:[#allocation2] sm:$0xff] %v3923
  %4020 = vst [vmem:[#allocation2 + $0x8] sm:$0xff] %v3924
  %4021 = vst [vmem:[#allocation2 + $0x10] sm:$0xff] %v3925
  %4022 = vst [vmem:[#allocation2 + $0x18] sm:$0xff] %v3926
  %4023 = vst [vmem:[#allocation2 + $0x20] sm:$0xff] %v3927
  %4024 = vst [vmem:[#allocation2 + $0x28] sm:$0xff] %v3928
  %4025 = vst [vmem:[#allocation2 + $0x30] sm:$0xff] %v3929
  %4026 = vst [vmem:[#allocation2 + $0x38] sm:$0xff] %v3930
  %4027 = vst [vmem:[#allocation2 + $0x40] sm:$0xff] %v3931
  %4028 = vst [vmem:[#allocation2 + $0x48] sm:$0xff] %v3932
  %4029 = vst [vmem:[#allocation2 + $0x50] sm:$0xff] %v3933
  %4030 = vst [vmem:[#allocation2 + $0x58] sm:$0xff] %v3934
  %4031 = vst [vmem:[#allocation2 + $0x60] sm:$0xff] %v3935
  %4032 = vst [vmem:[#allocation2 + $0x68] sm:$0xff] %v3936
  %4033 = vst [vmem:[#allocation2 + $0x70] sm:$0xff] %v3937
  %4034 = vst [vmem:[#allocation2 + $0x78] sm:$0xff] %v3938
  %4035 = vst [vmem:[#allocation2 + $0x80] sm:$0xff] %v3939
  %4036 = vst [vmem:[#allocation2 + $0x88] sm:$0xff] %v3940
  %4037 = vst [vmem:[#allocation2 + $0x90] sm:$0xff] %v3941
  %4038 = vst [vmem:[#allocation2 + $0x98] sm:$0xff] %v3942
  %4039 = vst [vmem:[#allocation2 + $0xa0] sm:$0xff] %v3943
  %4040 = vst [vmem:[#allocation2 + $0xa8] sm:$0xff] %v3944
  %4041 = vst [vmem:[#allocation2 + $0xb0] sm:$0xff] %v3945
  %4042 = vst [vmem:[#allocation2 + $0xb8] sm:$0xff] %v3946
  %4043 = vst [vmem:[#allocation2 + $0xc0] sm:$0xff] %v3947
  %4044 = vst [vmem:[#allocation2 + $0xc8] sm:$0xff] %v3948
  %4045 = vst [vmem:[#allocation2 + $0xd0] sm:$0xff] %v3949
  %4046 = vst [vmem:[#allocation2 + $0xd8] sm:$0xff] %v3950
  %4047 = vst [vmem:[#allocation2 + $0xe0] sm:$0xff] %v3951
  %4048 = vst [vmem:[#allocation2 + $0xe8] sm:$0xff] %v3952
  %4049 = vst [vmem:[#allocation2 + $0xf0] sm:$0xff] %v3953
  %4050 = vst [vmem:[#allocation2 + $0xf8] sm:$0xff] %v3954
  %4051 = vst [vmem:[#allocation2 + $0x100] sm:$0xff] %v3955
  %4052 = vst [vmem:[#allocation2 + $0x108] sm:$0xff] %v3956
  %4053 = vst [vmem:[#allocation2 + $0x110] sm:$0xff] %v3957
  %4054 = vst [vmem:[#allocation2 + $0x118] sm:$0xff] %v3958
  %4055 = vst [vmem:[#allocation2 + $0x120] sm:$0xff] %v3959
  %4056 = vst [vmem:[#allocation2 + $0x128] sm:$0xff] %v3960
  %4057 = vst [vmem:[#allocation2 + $0x130] sm:$0xff] %v3961
  %4058 = vst [vmem:[#allocation2 + $0x138] sm:$0xff] %v3962
  %4059 = vst [vmem:[#allocation2 + $0x140] sm:$0xff] %v3963
  %4060 = vst [vmem:[#allocation2 + $0x148] sm:$0xff] %v3964
  %4061 = vst [vmem:[#allocation2 + $0x150] sm:$0xff] %v3965
  %4062 = vst [vmem:[#allocation2 + $0x158] sm:$0xff] %v3966
  %4063 = vst [vmem:[#allocation2 + $0x160] sm:$0xff] %v3967
  %4064 = vst [vmem:[#allocation2 + $0x168] sm:$0xff] %v3968
  %4065 = vst [vmem:[#allocation2 + $0x170] sm:$0xff] %v3969
  %4066 = vst [vmem:[#allocation2 + $0x178] sm:$0xff] %v3970
  %4067 = vst [vmem:[#allocation2 + $0x180] sm:$0xff] %v3971
  %4068 = vst [vmem:[#allocation2 + $0x188] sm:$0xff] %v3972
  %4069 = vst [vmem:[#allocation2 + $0x190] sm:$0xff] %v3973
  %4070 = vst [vmem:[#allocation2 + $0x198] sm:$0xff] %v3974
  %4071 = vst [vmem:[#allocation2 + $0x1a0] sm:$0xff] %v3975
  %4072 = vst [vmem:[#allocation2 + $0x1a8] sm:$0xff] %v3976
  %4073 = vst [vmem:[#allocation2 + $0x1b0] sm:$0xff] %v3977
  %4074 = vst [vmem:[#allocation2 + $0x1b8] sm:$0xff] %v3978
  %4075 = vst [vmem:[#allocation2 + $0x1c0] sm:$0xff] %v3979
  %4076 = vst [vmem:[#allocation2 + $0x1c8] sm:$0xff] %v3980
  %4077 = vst [vmem:[#allocation2 + $0x1d0] sm:$0xff] %v3981
  %4078 = vst [vmem:[#allocation2 + $0x1d8] sm:$0xff] %v3982
  %4079 = vst [vmem:[#allocation2 + $0x1e0] sm:$0xff] %v3983
  %4080 = vst [vmem:[#allocation2 + $0x1e8] sm:$0xff] %v3984
  %4081 = vst [vmem:[#allocation2 + $0x1f0] sm:$0xff] %v3985
  %4082 = vst [vmem:[#allocation2 + $0x1f8] sm:$0xff] %v3986
  %4083 = vst [vmem:[#allocation2 + $0x200] sm:$0xff] %v3987
  %4084 = vst [vmem:[#allocation2 + $0x208] sm:$0xff] %v3988
  %4085 = vst [vmem:[#allocation2 + $0x210] sm:$0xff] %v3989
  %4086 = vst [vmem:[#allocation2 + $0x218] sm:$0xff] %v3990
  %4087 = vst [vmem:[#allocation2 + $0x220] sm:$0xff] %v3991
  %4088 = vst [vmem:[#allocation2 + $0x228] sm:$0xff] %v3992
  %4089 = vst [vmem:[#allocation2 + $0x230] sm:$0xff] %v3993
  %4090 = vst [vmem:[#allocation2 + $0x238] sm:$0xff] %v3994
  %4091 = vst [vmem:[#allocation2 + $0x240] sm:$0xff] %v3995
  %4092 = vst [vmem:[#allocation2 + $0x248] sm:$0xff] %v3996
  %4093 = vst [vmem:[#allocation2 + $0x250] sm:$0xff] %v3997
  %4094 = vst [vmem:[#allocation2 + $0x258] sm:$0xff] %v3998
  %4095 = vst [vmem:[#allocation2 + $0x260] sm:$0xff] %v3999
  %4096 = vst [vmem:[#allocation2 + $0x268] sm:$0xff] %v4000
  %4097 = vst [vmem:[#allocation2 + $0x270] sm:$0xff] %v4001
  %4098 = vst [vmem:[#allocation2 + $0x278] sm:$0xff] %v4002
  %4099 = vst [vmem:[#allocation2 + $0x280] sm:$0xff] %v4003
  %4100 = vst [vmem:[#allocation2 + $0x288] sm:$0xff] %v4004
  %4101 = vst [vmem:[#allocation2 + $0x290] sm:$0xff] %v4005
  %4102 = vst [vmem:[#allocation2 + $0x298] sm:$0xff] %v4006
  %4103 = vst [vmem:[#allocation2 + $0x2a0] sm:$0xff] %v4007
  %4104 = vst [vmem:[#allocation2 + $0x2a8] sm:$0xff] %v4008
  %4105 = vst [vmem:[#allocation2 + $0x2b0] sm:$0xff] %v4009
  %4106 = vst [vmem:[#allocation2 + $0x2b8] sm:$0xff] %v4010
  %4107 = vst [vmem:[#allocation2 + $0x2c0] sm:$0xff] %v4011
  %4108 = vst [vmem:[#allocation2 + $0x2c8] sm:$0xff] %v4012
  %4109 = vst [vmem:[#allocation2 + $0x2d0] sm:$0xff] %v4013
  %4110 = vst [vmem:[#allocation2 + $0x2d8] sm:$0xff] %v4014
  %4111 = vst [vmem:[#allocation2 + $0x2e0] sm:$0xff] %v4015
  %4112 = vst [vmem:[#allocation2 + $0x2e8] sm:$0xff] %v4016
  %4113 = vst [vmem:[#allocation2 + $0x2f0] sm:$0xff] %v4017
  %4114 = vst [vmem:[#allocation2 + $0x2f8] sm:$0xff] %v4018
  %v4115 = vld [vmem:[%s0 + $0x13] sm:$0xff]
  %v4116 = vld [vmem:[%s0 + $0x1b] sm:$0xff]
  %v4117 = vld [vmem:[%s0 + $0x23] sm:$0xff]
  %v4118 = vld [vmem:[%s0 + $0x2b] sm:$0xff]
  %v4119 = vld [vmem:[%s0 + $0x33] sm:$0xff]
  %v4120 = vld [vmem:[%s0 + $0x3b] sm:$0xff]
  %v4121 = vld [vmem:[%s0 + $0x43] sm:$0xff]
  %v4122 = vld [vmem:[%s0 + $0x4b] sm:$0xff]
  %v4123 = vld [vmem:[%s0 + $0x53] sm:$0xff]
  %v4124 = vld [vmem:[%s0 + $0x5b] sm:$0xff]
  %v4125 = vld [vmem:[%s0 + $0x63] sm:$0xff]
  %v4126 = vld [vmem:[%s0 + $0x6b] sm:$0xff]
  %v4127 = vld [vmem:[%s0 + $0x73] sm:$0xff]
  %v4128 = vld [vmem:[%s0 + $0x7b] sm:$0xff]
  %v4129 = vld [vmem:[%s0 + $0x83] sm:$0xff]
  %v4130 = vld [vmem:[%s0 + $0x8b] sm:$0xff]
  %v4131 = vld [vmem:[%s0 + $0x93] sm:$0xff]
  %v4132 = vld [vmem:[%s0 + $0x9b] sm:$0xff]
  %v4133 = vld [vmem:[%s0 + $0xa3] sm:$0xff]
  %v4134 = vld [vmem:[%s0 + $0xab] sm:$0xff]
  %v4135 = vld [vmem:[%s0 + $0xb3] sm:$0xff]
  %v4136 = vld [vmem:[%s0 + $0xbb] sm:$0xff]
  %v4137 = vld [vmem:[%s0 + $0xc3] sm:$0xff]
  %v4138 = vld [vmem:[%s0 + $0xcb] sm:$0xff]
  %v4139 = vld [vmem:[%s0 + $0xd3] sm:$0xff]
  %v4140 = vld [vmem:[%s0 + $0xdb] sm:$0xff]
  %v4141 = vld [vmem:[%s0 + $0xe3] sm:$0xff]
  %v4142 = vld [vmem:[%s0 + $0xeb] sm:$0xff]
  %v4143 = vld [vmem:[%s0 + $0xf3] sm:$0xff]
  %v4144 = vld [vmem:[%s0 + $0xfb] sm:$0xff]
  %v4145 = vld [vmem:[%s0 + $0x103] sm:$0xff]
  %v4146 = vld [vmem:[%s0 + $0x10b] sm:$0xff]
  %v4147 = vld [vmem:[%s0 + $0x113] sm:$0xff]
  %v4148 = vld [vmem:[%s0 + $0x11b] sm:$0xff]
  %v4149 = vld [vmem:[%s0 + $0x123] sm:$0xff]
  %v4150 = vld [vmem:[%s0 + $0x12b] sm:$0xff]
  %v4151 = vld [vmem:[%s0 + $0x133] sm:$0xff]
  %v4152 = vld [vmem:[%s0 + $0x13b] sm:$0xff]
  %v4153 = vld [vmem:[%s0 + $0x143] sm:$0xff]
  %v4154 = vld [vmem:[%s0 + $0x14b] sm:$0xff]
  %v4155 = vld [vmem:[%s0 + $0x153] sm:$0xff]
  %v4156 = vld [vmem:[%s0 + $0x15b] sm:$0xff]
  %v4157 = vld [vmem:[%s0 + $0x163] sm:$0xff]
  %v4158 = vld [vmem:[%s0 + $0x16b] sm:$0xff]
  %v4159 = vld [vmem:[%s0 + $0x173] sm:$0xff]
  %v4160 = vld [vmem:[%s0 + $0x17b] sm:$0xff]
  %v4161 = vld [vmem:[%s0 + $0x183] sm:$0xff]
  %v4162 = vld [vmem:[%s0 + $0x18b] sm:$0xff]
  %v4163 = vld [vmem:[%s0 + $0x193] sm:$0xff]
  %v4164 = vld [vmem:[%s0 + $0x19b] sm:$0xff]
  %v4165 = vld [vmem:[%s0 + $0x1a3] sm:$0xff]
  %v4166 = vld [vmem:[%s0 + $0x1ab] sm:$0xff]
  %v4167 = vld [vmem:[%s0 + $0x1b3] sm:$0xff]
  %v4168 = vld [vmem:[%s0 + $0x1bb] sm:$0xff]
  %v4169 = vld [vmem:[%s0 + $0x1c3] sm:$0xff]
  %v4170 = vld [vmem:[%s0 + $0x1cb] sm:$0xff]
  %v4171 = vld [vmem:[%s0 + $0x1d3] sm:$0xff]
  %v4172 = vld [vmem:[%s0 + $0x1db] sm:$0xff]
  %v4173 = vld [vmem:[%s0 + $0x1e3] sm:$0xff]
  %v4174 = vld [vmem:[%s0 + $0x1eb] sm:$0xff]
  %v4175 = vld [vmem:[%s0 + $0x1f3] sm:$0xff]
  %v4176 = vld [vmem:[%s0 + $0x1fb] sm:$0xff]
  %v4177 = vld [vmem:[%s0 + $0x203] sm:$0xff]
  %v4178 = vld [vmem:[%s0 + $0x20b] sm:$0xff]
  %v4179 = vld [vmem:[%s0 + $0x213] sm:$0xff]
  %v4180 = vld [vmem:[%s0 + $0x21b] sm:$0xff]
  %v4181 = vld [vmem:[%s0 + $0x223] sm:$0xff]
  %v4182 = vld [vmem:[%s0 + $0x22b] sm:$0xff]
  %v4183 = vld [vmem:[%s0 + $0x233] sm:$0xff]
  %v4184 = vld [vmem:[%s0 + $0x23b] sm:$0xff]
  %v4185 = vld [vmem:[%s0 + $0x243] sm:$0xff]
  %v4186 = vld [vmem:[%s0 + $0x24b] sm:$0xff]
  %v4187 = vld [vmem:[%s0 + $0x253] sm:$0xff]
  %v4188 = vld [vmem:[%s0 + $0x25b] sm:$0xff]
  %v4189 = vld [vmem:[%s0 + $0x263] sm:$0xff]
  %v4190 = vld [vmem:[%s0 + $0x26b] sm:$0xff]
  %v4191 = vld [vmem:[%s0 + $0x273] sm:$0xff]
  %v4192 = vld [vmem:[%s0 + $0x27b] sm:$0xff]
  %v4193 = vld [vmem:[%s0 + $0x283] sm:$0xff]
  %v4194 = vld [vmem:[%s0 + $0x28b] sm:$0xff]
  %v4195 = vld [vmem:[%s0 + $0x293] sm:$0xff]
  %v4196 = vld [vmem:[%s0 + $0x29b] sm:$0xff]
  %v4197 = vld [vmem:[%s0 + $0x2a3] sm:$0xff]
  %v4198 = vld [vmem:[%s0 + $0x2ab] sm:$0xff]
  %v4199 = vld [vmem:[%s0 + $0x2b3] sm:$0xff]
  %v4200 = vld [vmem:[%s0 + $0x2bb] sm:$0xff]
  %v4201 = vld [vmem:[%s0 + $0x2c3] sm:$0xff]
  %v4202 = vld [vmem:[%s0 + $0x2cb] sm:$0xff]
  %v4203 = vld [vmem:[%s0 + $0x2d3] sm:$0xff]
  %v4204 = vld [vmem:[%s0 + $0x2db] sm:$0xff]
  %v4205 = vld [vmem:[%s0 + $0x2e3] sm:$0xff]
  %v4206 = vld [vmem:[%s0 + $0x2eb] sm:$0xff]
  %v4207 = vld [vmem:[%s0 + $0x2f3] sm:$0xff]
  %v4208 = vld [vmem:[%s0 + $0x2fb] sm:$0xff]
  %v4209 = vld [vmem:[%s0 + $0x303] sm:$0xff]
  %v4210 = vld [vmem:[%s0 + $0x30b] sm:$0xff]
  %v4211 = vpack.c.bf16 %v4116, %v4115
  %v4212 = vpack.c.bf16 %v4118, %v4117
  %v4213 = vpack.c.bf16 %v4120, %v4119
  %v4214 = vpack.c.bf16 %v4122, %v4121
  %v4215 = vpack.c.bf16 %v4124, %v4123
  %v4216 = vpack.c.bf16 %v4126, %v4125
  %v4217 = vpack.c.bf16 %v4128, %v4127
  %v4218 = vpack.c.bf16 %v4130, %v4129
  %v4219 = vpack.c.bf16 %v4132, %v4131
  %v4220 = vpack.c.bf16 %v4134, %v4133
  %v4221 = vpack.c.bf16 %v4136, %v4135
  %v4222 = vpack.c.bf16 %v4138, %v4137
  %v4223 = vpack.c.bf16 %v4140, %v4139
  %v4224 = vpack.c.bf16 %v4142, %v4141
  %v4225 = vpack.c.bf16 %v4144, %v4143
  %v4226 = vpack.c.bf16 %v4146, %v4145
  %v4227 = vpack.c.bf16 %v4148, %v4147
  %v4228 = vpack.c.bf16 %v4150, %v4149
  %v4229 = vpack.c.bf16 %v4152, %v4151
  %v4230 = vpack.c.bf16 %v4154, %v4153
  %v4231 = vpack.c.bf16 %v4156, %v4155
  %v4232 = vpack.c.bf16 %v4158, %v4157
  %v4233 = vpack.c.bf16 %v4160, %v4159
  %v4234 = vpack.c.bf16 %v4162, %v4161
  %v4235 = vpack.c.bf16 %v4164, %v4163
  %v4236 = vpack.c.bf16 %v4166, %v4165
  %v4237 = vpack.c.bf16 %v4168, %v4167
  %v4238 = vpack.c.bf16 %v4170, %v4169
  %v4239 = vpack.c.bf16 %v4172, %v4171
  %v4240 = vpack.c.bf16 %v4174, %v4173
  %v4241 = vpack.c.bf16 %v4176, %v4175
  %v4242 = vpack.c.bf16 %v4178, %v4177
  %v4243 = vpack.c.bf16 %v4180, %v4179
  %v4244 = vpack.c.bf16 %v4182, %v4181
  %v4245 = vpack.c.bf16 %v4184, %v4183
  %v4246 = vpack.c.bf16 %v4186, %v4185
  %v4247 = vpack.c.bf16 %v4188, %v4187
  %v4248 = vpack.c.bf16 %v4190, %v4189
  %v4249 = vpack.c.bf16 %v4192, %v4191
  %v4250 = vpack.c.bf16 %v4194, %v4193
  %v4251 = vpack.c.bf16 %v4196, %v4195
  %v4252 = vpack.c.bf16 %v4198, %v4197
  %v4253 = vpack.c.bf16 %v4200, %v4199
  %v4254 = vpack.c.bf16 %v4202, %v4201
  %v4255 = vpack.c.bf16 %v4204, %v4203
  %v4256 = vpack.c.bf16 %v4206, %v4205
  %v4257 = vpack.c.bf16 %v4208, %v4207
  %v4258 = vpack.c.bf16 %v4210, %v4209
  %s4259 = scalar_lea.vmem %s1, 16
  %v4260 = vld [vmem:[%s4259] sm:$0xf]
  %v4262 = vsel %vm163, %v4211, 0
  %v4265 = vsel %vm163, %v4212, 0
  %v4268 = vsel %vm163, %v4213, 0
  %v4271 = vsel %vm163, %v4214, 0
  %v4274 = vsel %vm163, %v4215, 0
  %v4277 = vsel %vm163, %v4216, 0
  %v4280 = vsel %vm163, %v4217, 0
  %v4283 = vsel %vm163, %v4218, 0
  %v4286 = vsel %vm163, %v4219, 0
  %v4289 = vsel %vm163, %v4220, 0
  %v4292 = vsel %vm163, %v4221, 0
  %v4295 = vsel %vm163, %v4222, 0
  %v4298 = vsel %vm163, %v4223, 0
  %v4301 = vsel %vm163, %v4224, 0
  %v4304 = vsel %vm163, %v4225, 0
  %v4307 = vsel %vm163, %v4226, 0
  %v4310 = vsel %vm163, %v4227, 0
  %v4313 = vsel %vm163, %v4228, 0
  %v4316 = vsel %vm163, %v4229, 0
  %v4319 = vsel %vm163, %v4230, 0
  %v4322 = vsel %vm163, %v4231, 0
  %v4325 = vsel %vm163, %v4232, 0
  %v4328 = vsel %vm163, %v4233, 0
  %v4331 = vsel %vm163, %v4234, 0
  %v4334 = vsel %vm163, %v4235, 0
  %v4337 = vsel %vm163, %v4236, 0
  %v4340 = vsel %vm163, %v4237, 0
  %v4343 = vsel %vm163, %v4238, 0
  %v4346 = vsel %vm163, %v4239, 0
  %v4349 = vsel %vm163, %v4240, 0
  %v4352 = vsel %vm163, %v4241, 0
  %v4355 = vsel %vm163, %v4242, 0
  %v4358 = vsel %vm163, %v4243, 0
  %v4361 = vsel %vm163, %v4244, 0
  %v4364 = vsel %vm163, %v4245, 0
  %v4367 = vsel %vm163, %v4246, 0
  %v4370 = vsel %vm163, %v4247, 0
  %v4373 = vsel %vm163, %v4248, 0
  %v4376 = vsel %vm163, %v4249, 0
  %v4379 = vsel %vm163, %v4250, 0
  %v4382 = vsel %vm163, %v4251, 0
  %v4385 = vsel %vm163, %v4252, 0
  %v4388 = vsel %vm163, %v4253, 0
  %v4391 = vsel %vm163, %v4254, 0
  %v4394 = vsel %vm163, %v4255, 0
  %v4397 = vsel %vm163, %v4256, 0
  %v4400 = vsel %vm163, %v4257, 0
  %v4403 = vsel %vm163, %v4258, 0
  %v4406 = vsel %vm308, %v4260, 0
  %4408 = vmatprep.subr.bf16.mxu0 0
  %4409 = vmatpush1.bf16.msra.mxu0 %v4406
  %4410 = vmatprep.subr.bf16.mxu0 0
  %4411 = vmatpush1.bf16.msra.mxu0 0
  %4412 = vmatprep.subr.bf16.mxu0 0
  %4413 = vmatpush1.bf16.msra.mxu0 0
  %4414 = vmatprep.subr.bf16.mxu0 0
  %4415 = vmatpush1.bf16.msra.mxu0 0
  %4416 = vmatprep.subr.bf16.mxu0 0
  %4417 = vmatpush1.bf16.msra.mxu0 0
  %4418 = vmatprep.subr.bf16.mxu0 0
  %4419 = vmatpush1.bf16.msra.mxu0 0
  %4420 = vmatprep.subr.bf16.mxu0 0
  %4421 = vmatpush1.bf16.msra.mxu0 0
  %4422 = vmatprep.subr.bf16.mxu0 0
  %4423 = vmatpush1.bf16.msra.mxu0 0
  %4424 = vmatprep.subr.bf16.mxu0 0
  %4425 = vmatpush1.bf16.msra.mxu0 0
  %4426 = vmatprep.subr.bf16.mxu0 0
  %4427 = vmatpush1.bf16.msra.mxu0 0
  %4428 = vmatprep.subr.bf16.mxu0 0
  %4429 = vmatpush1.bf16.msra.mxu0 0
  %4430 = vmatprep.subr.bf16.mxu0 0
  %4431 = vmatpush1.bf16.msra.mxu0 0
  %4432 = vmatprep.subr.bf16.mxu0 0
  %4433 = vmatpush1.bf16.msra.mxu0 0
  %4434 = vmatprep.subr.bf16.mxu0 0
  %4435 = vmatpush1.bf16.msra.mxu0 0
  %4436 = vmatprep.subr.bf16.mxu0 0
  %4437 = vmatpush1.bf16.msra.mxu0 0
  %4438 = vmatprep.subr.bf16.mxu0 0
  %4439 = vmatpush1.bf16.msra.mxu0 0
  %4440 = vmatprep.mubr.bf16.mxu0 0
  %4441 = vmatmul.mubr.bf16.gmra.mrb[0].mxu0 %v4262
  %v4442 = vpop.f32.mrb[0].mxu0
  %v4443 = vadd.f32 0.0, %v4442
  %v4444 = vpop.f32.mrb[0].mxu0
  %v4445 = vpop.f32.mrb[0].mxu0
  %v4446 = vadd.f32 0.0, %v4445
  %v4447 = vpop.f32.mrb[0].mxu0
  %4448 = vmatprep.mubr.bf16.mxu0 0
  %4449 = vmatmul.mubr.bf16.gmra.mrb[0].mxu0 %v4265
  %v4450 = vpop.f32.mrb[0].mxu0
  %v4451 = vadd.f32 0.0, %v4450
  %v4452 = vpop.f32.mrb[0].mxu0
  %v4453 = vpop.f32.mrb[0].mxu0
  %v4454 = vadd.f32 0.0, %v4453
  %v4455 = vpop.f32.mrb[0].mxu0
  %4456 = vmatprep.mubr.bf16.mxu0 0
  %4457 = vmatmul.mubr.bf16.gmra.mrb[0].mxu0 %v4268
  %v4458 = vpop.f32.mrb[0].mxu0
  %v4459 = vadd.f32 0.0, %v4458
  %v4460 = vpop.f32.mrb[0].mxu0
  %v4461 = vpop.f32.mrb[0].mxu0
  %v4462 = vadd.f32 0.0, %v4461
  %v4463 = vpop.f32.mrb[0].mxu0
  %4464 = vmatprep.mubr.bf16.mxu0 0
  %4465 = vmatmul.mubr.bf16.gmra.mrb[0].mxu0 %v4271
  %v4466 = vpop.f32.mrb[0].mxu0
  %v4467 = vadd.f32 0.0, %v4466
  %v4468 = vpop.f32.mrb[0].mxu0
  %v4469 = vpop.f32.mrb[0].mxu0
  %v4470 = vadd.f32 0.0, %v4469
  %v4471 = vpop.f32.mrb[0].mxu0
  %4472 = vmatprep.mubr.bf16.mxu0 0
  %4473 = vmatmul.mubr.bf16.gmra.mrb[0].mxu0 %v4274
  %v4474 = vpop.f32.mrb[0].mxu0
  %v4475 = vadd.f32 0.0, %v4474
  %v4476 = vpop.f32.mrb[0].mxu0
  %v4477 = vpop.f32.mrb[0].mxu0
  %v4478 = vadd.f32 0.0, %v4477
  %v4479 = vpop.f32.mrb[0].mxu0
  %4480 = vmatprep.mubr.bf16.mxu0 0
  %4481 = vmatmul.mubr.bf16.gmra.mrb[0].mxu0 %v4277
  %v4482 = vpop.f32.mrb[0].mxu0
  %v4483 = vadd.f32 0.0, %v4482
  %v4484 = vpop.f32.mrb[0].mxu0
  %v4485 = vpop.f32.mrb[0].mxu0
  %v4486 = vadd.f32 0.0, %v4485
  %v4487 = vpop.f32.mrb[0].mxu0
  %4488 = vmatprep.mubr.bf16.mxu0 0
  %4489 = vmatmul.mubr.bf16.gmra.mrb[0].mxu0 %v4280
  %v4490 = vpop.f32.mrb[0].mxu0
  %v4491 = vadd.f32 0.0, %v4490
  %v4492 = vpop.f32.mrb[0].mxu0
  %v4493 = vpop.f32.mrb[0].mxu0
  %v4494 = vadd.f32 0.0, %v4493
  %v4495 = vpop.f32.mrb[0].mxu0
  %4496 = vmatprep.mubr.bf16.mxu0 0
  %4497 = vmatmul.mubr.bf16.gmra.mrb[0].mxu0 %v4283
  %v4498 = vpop.f32.mrb[0].mxu0
  %v4499 = vadd.f32 0.0, %v4498
  %v4500 = vpop.f32.mrb[0].mxu0
  %v4501 = vpop.f32.mrb[0].mxu0
  %v4502 = vadd.f32 0.0, %v4501
  %v4503 = vpop.f32.mrb[0].mxu0
  %4504 = vmatprep.mubr.bf16.mxu0 0
  %4505 = vmatmul.mubr.bf16.gmra.mrb[0].mxu0 %v4286
  %v4506 = vpop.f32.mrb[0].mxu0
  %v4507 = vadd.f32 0.0, %v4506
  %v4508 = vpop.f32.mrb[0].mxu0
  %v4509 = vpop.f32.mrb[0].mxu0
  %v4510 = vadd.f32 0.0, %v4509
  %v4511 = vpop.f32.mrb[0].mxu0
  %4512 = vmatprep.mubr.bf16.mxu0 0
  %4513 = vmatmul.mubr.bf16.gmra.mrb[0].mxu0 %v4289
  %v4514 = vpop.f32.mrb[0].mxu0
  %v4515 = vadd.f32 0.0, %v4514
  %v4516 = vpop.f32.mrb[0].mxu0
  %v4517 = vpop.f32.mrb[0].mxu0
  %v4518 = vadd.f32 0.0, %v4517
  %v4519 = vpop.f32.mrb[0].mxu0
  %4520 = vmatprep.mubr.bf16.mxu0 0
  %4521 = vmatmul.mubr.bf16.gmra.mrb[0].mxu0 %v4292
  %v4522 = vpop.f32.mrb[0].mxu0
  %v4523 = vadd.f32 0.0, %v4522
  %v4524 = vpop.f32.mrb[0].mxu0
  %v4525 = vpop.f32.mrb[0].mxu0
  %v4526 = vadd.f32 0.0, %v4525
  %v4527 = vpop.f32.mrb[0].mxu0
  %4528 = vmatprep.mubr.bf16.mxu0 0
  %4529 = vmatmul.mubr.bf16.gmra.mrb[0].mxu0 %v4295
  %v4530 = vpop.f32.mrb[0].mxu0
  %v4531 = vadd.f32 0.0, %v4530
  %v4532 = vpop.f32.mrb[0].mxu0
  %v4533 = vpop.f32.mrb[0].mxu0
  %v4534 = vadd.f32 0.0, %v4533
  %v4535 = vpop.f32.mrb[0].mxu0
  %4536 = vmatprep.mubr.bf16.mxu0 0
  %4537 = vmatmul.mubr.bf16.gmra.mrb[0].mxu0 %v4298
  %v4538 = vpop.f32.mrb[0].mxu0
  %v4539 = vadd.f32 0.0, %v4538
  %v4540 = vpop.f32.mrb[0].mxu0
  %v4541 = vpop.f32.mrb[0].mxu0
  %v4542 = vadd.f32 0.0, %v4541
  %v4543 = vpop.f32.mrb[0].mxu0
  %4544 = vmatprep.mubr.bf16.mxu0 0
  %4545 = vmatmul.mubr.bf16.gmra.mrb[0].mxu0 %v4301
  %v4546 = vpop.f32.mrb[0].mxu0
  %v4547 = vadd.f32 0.0, %v4546
  %v4548 = vpop.f32.mrb[0].mxu0
  %v4549 = vpop.f32.mrb[0].mxu0
  %v4550 = vadd.f32 0.0, %v4549
  %v4551 = vpop.f32.mrb[0].mxu0
  %4552 = vmatprep.mubr.bf16.mxu0 0
  %4553 = vmatmul.mubr.bf16.gmra.mrb[0].mxu0 %v4304
  %v4554 = vpop.f32.mrb[0].mxu0
  %v4555 = vadd.f32 0.0, %v4554
  %v4556 = vpop.f32.mrb[0].mxu0
  %v4557 = vpop.f32.mrb[0].mxu0
  %v4558 = vadd.f32 0.0, %v4557
  %v4559 = vpop.f32.mrb[0].mxu0
  %4560 = vmatprep.mubr.bf16.mxu0 0
  %4561 = vmatmul.mubr.bf16.gmra.mrb[0].mxu0 %v4307
  %v4562 = vpop.f32.mrb[0].mxu0
  %v4563 = vadd.f32 0.0, %v4562
  %v4564 = vpop.f32.mrb[0].mxu0
  %v4565 = vpop.f32.mrb[0].mxu0
  %v4566 = vadd.f32 0.0, %v4565
  %v4567 = vpop.f32.mrb[0].mxu0
  %4568 = vmatprep.mubr.bf16.mxu0 0
  %4569 = vmatmul.mubr.bf16.gmra.mrb[0].mxu0 %v4310
  %v4570 = vpop.f32.mrb[0].mxu0
  %v4571 = vadd.f32 0.0, %v4570
  %v4572 = vpop.f32.mrb[0].mxu0
  %v4573 = vpop.f32.mrb[0].mxu0
  %v4574 = vadd.f32 0.0, %v4573
  %v4575 = vpop.f32.mrb[0].mxu0
  %4576 = vmatprep.mubr.bf16.mxu0 0
  %4577 = vmatmul.mubr.bf16.gmra.mrb[0].mxu0 %v4313
  %v4578 = vpop.f32.mrb[0].mxu0
  %v4579 = vadd.f32 0.0, %v4578
  %v4580 = vpop.f32.mrb[0].mxu0
  %v4581 = vpop.f32.mrb[0].mxu0
  %v4582 = vadd.f32 0.0, %v4581
  %v4583 = vpop.f32.mrb[0].mxu0
  %4584 = vmatprep.mubr.bf16.mxu0 0
  %4585 = vmatmul.mubr.bf16.gmra.mrb[0].mxu0 %v4316
  %v4586 = vpop.f32.mrb[0].mxu0
  %v4587 = vadd.f32 0.0, %v4586
  %v4588 = vpop.f32.mrb[0].mxu0
  %v4589 = vpop.f32.mrb[0].mxu0
  %v4590 = vadd.f32 0.0, %v4589
  %v4591 = vpop.f32.mrb[0].mxu0
  %4592 = vmatprep.mubr.bf16.mxu0 0
  %4593 = vmatmul.mubr.bf16.gmra.mrb[0].mxu0 %v4319
  %v4594 = vpop.f32.mrb[0].mxu0
  %v4595 = vadd.f32 0.0, %v4594
  %v4596 = vpop.f32.mrb[0].mxu0
  %v4597 = vpop.f32.mrb[0].mxu0
  %v4598 = vadd.f32 0.0, %v4597
  %v4599 = vpop.f32.mrb[0].mxu0
  %4600 = vmatprep.mubr.bf16.mxu0 0
  %4601 = vmatmul.mubr.bf16.gmra.mrb[0].mxu0 %v4322
  %v4602 = vpop.f32.mrb[0].mxu0
  %v4603 = vadd.f32 0.0, %v4602
  %v4604 = vpop.f32.mrb[0].mxu0
  %v4605 = vpop.f32.mrb[0].mxu0
  %v4606 = vadd.f32 0.0, %v4605
  %v4607 = vpop.f32.mrb[0].mxu0
  %4608 = vmatprep.mubr.bf16.mxu0 0
  %4609 = vmatmul.mubr.bf16.gmra.mrb[0].mxu0 %v4325
  %v4610 = vpop.f32.mrb[0].mxu0
  %v4611 = vadd.f32 0.0, %v4610
  %v4612 = vpop.f32.mrb[0].mxu0
  %v4613 = vpop.f32.mrb[0].mxu0
  %v4614 = vadd.f32 0.0, %v4613
  %v4615 = vpop.f32.mrb[0].mxu0
  %4616 = vmatprep.mubr.bf16.mxu0 0
  %4617 = vmatmul.mubr.bf16.gmra.mrb[0].mxu0 %v4328
  %v4618 = vpop.f32.mrb[0].mxu0
  %v4619 = vadd.f32 0.0, %v4618
  %v4620 = vpop.f32.mrb[0].mxu0
  %v4621 = vpop.f32.mrb[0].mxu0
  %v4622 = vadd.f32 0.0, %v4621
  %v4623 = vpop.f32.mrb[0].mxu0
  %4624 = vmatprep.mubr.bf16.mxu0 0
  %4625 = vmatmul.mubr.bf16.gmra.mrb[0].mxu0 %v4331
  %v4626 = vpop.f32.mrb[0].mxu0
  %v4627 = vadd.f32 0.0, %v4626
  %v4628 = vpop.f32.mrb[0].mxu0
  %v4629 = vpop.f32.mrb[0].mxu0
  %v4630 = vadd.f32 0.0, %v4629
  %v4631 = vpop.f32.mrb[0].mxu0
  %4632 = vmatprep.mubr.bf16.mxu0 0
  %4633 = vmatmul.mubr.bf16.gmra.mrb[0].mxu0 %v4334
  %v4634 = vpop.f32.mrb[0].mxu0
  %v4635 = vadd.f32 0.0, %v4634
  %v4636 = vpop.f32.mrb[0].mxu0
  %v4637 = vpop.f32.mrb[0].mxu0
  %v4638 = vadd.f32 0.0, %v4637
  %v4639 = vpop.f32.mrb[0].mxu0
  %4640 = vmatprep.mubr.bf16.mxu0 0
  %4641 = vmatmul.mubr.bf16.gmra.mrb[0].mxu0 %v4337
  %v4642 = vpop.f32.mrb[0].mxu0
  %v4643 = vadd.f32 0.0, %v4642
  %v4644 = vpop.f32.mrb[0].mxu0
  %v4645 = vpop.f32.mrb[0].mxu0
  %v4646 = vadd.f32 0.0, %v4645
  %v4647 = vpop.f32.mrb[0].mxu0
  %4648 = vmatprep.mubr.bf16.mxu0 0
  %4649 = vmatmul.mubr.bf16.gmra.mrb[0].mxu0 %v4340
  %v4650 = vpop.f32.mrb[0].mxu0
  %v4651 = vadd.f32 0.0, %v4650
  %v4652 = vpop.f32.mrb[0].mxu0
  %v4653 = vpop.f32.mrb[0].mxu0
  %v4654 = vadd.f32 0.0, %v4653
  %v4655 = vpop.f32.mrb[0].mxu0
  %4656 = vmatprep.mubr.bf16.mxu0 0
  %4657 = vmatmul.mubr.bf16.gmra.mrb[0].mxu0 %v4343
  %v4658 = vpop.f32.mrb[0].mxu0
  %v4659 = vadd.f32 0.0, %v4658
  %v4660 = vpop.f32.mrb[0].mxu0
  %v4661 = vpop.f32.mrb[0].mxu0
  %v4662 = vadd.f32 0.0, %v4661
  %v4663 = vpop.f32.mrb[0].mxu0
  %4664 = vmatprep.mubr.bf16.mxu0 0
  %4665 = vmatmul.mubr.bf16.gmra.mrb[0].mxu0 %v4346
  %v4666 = vpop.f32.mrb[0].mxu0
  %v4667 = vadd.f32 0.0, %v4666
  %v4668 = vpop.f32.mrb[0].mxu0
  %v4669 = vpop.f32.mrb[0].mxu0
  %v4670 = vadd.f32 0.0, %v4669
  %v4671 = vpop.f32.mrb[0].mxu0
  %4672 = vmatprep.mubr.bf16.mxu0 0
  %4673 = vmatmul.mubr.bf16.gmra.mrb[0].mxu0 %v4349
  %v4674 = vpop.f32.mrb[0].mxu0
  %v4675 = vadd.f32 0.0, %v4674
  %v4676 = vpop.f32.mrb[0].mxu0
  %v4677 = vpop.f32.mrb[0].mxu0
  %v4678 = vadd.f32 0.0, %v4677
  %v4679 = vpop.f32.mrb[0].mxu0
  %4680 = vmatprep.mubr.bf16.mxu0 0
  %4681 = vmatmul.mubr.bf16.gmra.mrb[0].mxu0 %v4352
  %v4682 = vpop.f32.mrb[0].mxu0
  %v4683 = vadd.f32 0.0, %v4682
  %v4684 = vpop.f32.mrb[0].mxu0
  %v4685 = vpop.f32.mrb[0].mxu0
  %v4686 = vadd.f32 0.0, %v4685
  %v4687 = vpop.f32.mrb[0].mxu0
  %4688 = vmatprep.mubr.bf16.mxu0 0
  %4689 = vmatmul.mubr.bf16.gmra.mrb[0].mxu0 %v4355
  %v4690 = vpop.f32.mrb[0].mxu0
  %v4691 = vadd.f32 0.0, %v4690
  %v4692 = vpop.f32.mrb[0].mxu0
  %v4693 = vpop.f32.mrb[0].mxu0
  %v4694 = vadd.f32 0.0, %v4693
  %v4695 = vpop.f32.mrb[0].mxu0
  %4696 = vmatprep.mubr.bf16.mxu0 0
  %4697 = vmatmul.mubr.bf16.gmra.mrb[0].mxu0 %v4358
  %v4698 = vpop.f32.mrb[0].mxu0
  %v4699 = vadd.f32 0.0, %v4698
  %v4700 = vpop.f32.mrb[0].mxu0
  %v4701 = vpop.f32.mrb[0].mxu0
  %v4702 = vadd.f32 0.0, %v4701
  %v4703 = vpop.f32.mrb[0].mxu0
  %4704 = vmatprep.mubr.bf16.mxu0 0
  %4705 = vmatmul.mubr.bf16.gmra.mrb[0].mxu0 %v4361
  %v4706 = vpop.f32.mrb[0].mxu0
  %v4707 = vadd.f32 0.0, %v4706
  %v4708 = vpop.f32.mrb[0].mxu0
  %v4709 = vpop.f32.mrb[0].mxu0
  %v4710 = vadd.f32 0.0, %v4709
  %v4711 = vpop.f32.mrb[0].mxu0
  %4712 = vmatprep.mubr.bf16.mxu0 0
  %4713 = vmatmul.mubr.bf16.gmra.mrb[0].mxu0 %v4364
  %v4714 = vpop.f32.mrb[0].mxu0
  %v4715 = vadd.f32 0.0, %v4714
  %v4716 = vpop.f32.mrb[0].mxu0
  %v4717 = vpop.f32.mrb[0].mxu0
  %v4718 = vadd.f32 0.0, %v4717
  %v4719 = vpop.f32.mrb[0].mxu0
  %4720 = vmatprep.mubr.bf16.mxu0 0
  %4721 = vmatmul.mubr.bf16.gmra.mrb[0].mxu0 %v4367
  %v4722 = vpop.f32.mrb[0].mxu0
  %v4723 = vadd.f32 0.0, %v4722
  %v4724 = vpop.f32.mrb[0].mxu0
  %v4725 = vpop.f32.mrb[0].mxu0
  %v4726 = vadd.f32 0.0, %v4725
  %v4727 = vpop.f32.mrb[0].mxu0
  %4728 = vmatprep.mubr.bf16.mxu0 0
  %4729 = vmatmul.mubr.bf16.gmra.mrb[0].mxu0 %v4370
  %v4730 = vpop.f32.mrb[0].mxu0
  %v4731 = vadd.f32 0.0, %v4730
  %v4732 = vpop.f32.mrb[0].mxu0
  %v4733 = vpop.f32.mrb[0].mxu0
  %v4734 = vadd.f32 0.0, %v4733
  %v4735 = vpop.f32.mrb[0].mxu0
  %4736 = vmatprep.mubr.bf16.mxu0 0
  %4737 = vmatmul.mubr.bf16.gmra.mrb[0].mxu0 %v4373
  %v4738 = vpop.f32.mrb[0].mxu0
  %v4739 = vadd.f32 0.0, %v4738
  %v4740 = vpop.f32.mrb[0].mxu0
  %v4741 = vpop.f32.mrb[0].mxu0
  %v4742 = vadd.f32 0.0, %v4741
  %v4743 = vpop.f32.mrb[0].mxu0
  %4744 = vmatprep.mubr.bf16.mxu0 0
  %4745 = vmatmul.mubr.bf16.gmra.mrb[0].mxu0 %v4376
  %v4746 = vpop.f32.mrb[0].mxu0
  %v4747 = vadd.f32 0.0, %v4746
  %v4748 = vpop.f32.mrb[0].mxu0
  %v4749 = vpop.f32.mrb[0].mxu0
  %v4750 = vadd.f32 0.0, %v4749
  %v4751 = vpop.f32.mrb[0].mxu0
  %4752 = vmatprep.mubr.bf16.mxu0 0
  %4753 = vmatmul.mubr.bf16.gmra.mrb[0].mxu0 %v4379
  %v4754 = vpop.f32.mrb[0].mxu0
  %v4755 = vadd.f32 0.0, %v4754
  %v4756 = vpop.f32.mrb[0].mxu0
  %v4757 = vpop.f32.mrb[0].mxu0
  %v4758 = vadd.f32 0.0, %v4757
  %v4759 = vpop.f32.mrb[0].mxu0
  %4760 = vmatprep.mubr.bf16.mxu0 0
  %4761 = vmatmul.mubr.bf16.gmra.mrb[0].mxu0 %v4382
  %v4762 = vpop.f32.mrb[0].mxu0
  %v4763 = vadd.f32 0.0, %v4762
  %v4764 = vpop.f32.mrb[0].mxu0
  %v4765 = vpop.f32.mrb[0].mxu0
  %v4766 = vadd.f32 0.0, %v4765
  %v4767 = vpop.f32.mrb[0].mxu0
  %4768 = vmatprep.mubr.bf16.mxu0 0
  %4769 = vmatmul.mubr.bf16.gmra.mrb[0].mxu0 %v4385
  %v4770 = vpop.f32.mrb[0].mxu0
  %v4771 = vadd.f32 0.0, %v4770
  %v4772 = vpop.f32.mrb[0].mxu0
  %v4773 = vpop.f32.mrb[0].mxu0
  %v4774 = vadd.f32 0.0, %v4773
  %v4775 = vpop.f32.mrb[0].mxu0
  %4776 = vmatprep.mubr.bf16.mxu0 0
  %4777 = vmatmul.mubr.bf16.gmra.mrb[0].mxu0 %v4388
  %v4778 = vpop.f32.mrb[0].mxu0
  %v4779 = vadd.f32 0.0, %v4778
  %v4780 = vpop.f32.mrb[0].mxu0
  %v4781 = vpop.f32.mrb[0].mxu0
  %v4782 = vadd.f32 0.0, %v4781
  %v4783 = vpop.f32.mrb[0].mxu0
  %4784 = vmatprep.mubr.bf16.mxu0 0
  %4785 = vmatmul.mubr.bf16.gmra.mrb[0].mxu0 %v4391
  %v4786 = vpop.f32.mrb[0].mxu0
  %v4787 = vadd.f32 0.0, %v4786
  %v4788 = vpop.f32.mrb[0].mxu0
  %v4789 = vpop.f32.mrb[0].mxu0
  %v4790 = vadd.f32 0.0, %v4789
  %v4791 = vpop.f32.mrb[0].mxu0
  %4792 = vmatprep.mubr.bf16.mxu0 0
  %4793 = vmatmul.mubr.bf16.gmra.mrb[0].mxu0 %v4394
  %v4794 = vpop.f32.mrb[0].mxu0
  %v4795 = vadd.f32 0.0, %v4794
  %v4796 = vpop.f32.mrb[0].mxu0
  %v4797 = vpop.f32.mrb[0].mxu0
  %v4798 = vadd.f32 0.0, %v4797
  %v4799 = vpop.f32.mrb[0].mxu0
  %4800 = vmatprep.mubr.bf16.mxu0 0
  %4801 = vmatmul.mubr.bf16.gmra.mrb[0].mxu0 %v4397
  %v4802 = vpop.f32.mrb[0].mxu0
  %v4803 = vadd.f32 0.0, %v4802
  %v4804 = vpop.f32.mrb[0].mxu0
  %v4805 = vpop.f32.mrb[0].mxu0
  %v4806 = vadd.f32 0.0, %v4805
  %v4807 = vpop.f32.mrb[0].mxu0
  %4808 = vmatprep.mubr.bf16.mxu0 0
  %4809 = vmatmul.mubr.bf16.gmra.mrb[0].mxu0 %v4400
  %v4810 = vpop.f32.mrb[0].mxu0
  %v4811 = vadd.f32 0.0, %v4810
  %v4812 = vpop.f32.mrb[0].mxu0
  %v4813 = vpop.f32.mrb[0].mxu0
  %v4814 = vadd.f32 0.0, %v4813
  %v4815 = vpop.f32.mrb[0].mxu0
  %4816 = vmatprep.mubr.bf16.mxu0 0
  %4817 = vmatmul.mubr.bf16.gmra.mrb[0].mxu0 %v4403
  %v4818 = vpop.f32.mrb[0].mxu0
  %v4819 = vadd.f32 0.0, %v4818
  %v4820 = vpop.f32.mrb[0].mxu0
  %v4821 = vpop.f32.mrb[0].mxu0
  %v4822 = vadd.f32 0.0, %v4821
  %v4823 = vpop.f32.mrb[0].mxu0
  %4824 = vdwg.mxu0
  %v4825 = vld [vmem:[#allocation2] sm:$0xff]
  %v4826 = vld [vmem:[#allocation2 + $0x8] sm:$0xff]
  %v4827 = vld [vmem:[#allocation2 + $0x10] sm:$0xff]
  %v4828 = vld [vmem:[#allocation2 + $0x18] sm:$0xff]
  %v4829 = vld [vmem:[#allocation2 + $0x20] sm:$0xff]
  %v4830 = vld [vmem:[#allocation2 + $0x28] sm:$0xff]
  %v4831 = vld [vmem:[#allocation2 + $0x30] sm:$0xff]
  %v4832 = vld [vmem:[#allocation2 + $0x38] sm:$0xff]
  %v4833 = vld [vmem:[#allocation2 + $0x40] sm:$0xff]
  %v4834 = vld [vmem:[#allocation2 + $0x48] sm:$0xff]
  %v4835 = vld [vmem:[#allocation2 + $0x50] sm:$0xff]
  %v4836 = vld [vmem:[#allocation2 + $0x58] sm:$0xff]
  %v4837 = vld [vmem:[#allocation2 + $0x60] sm:$0xff]
  %v4838 = vld [vmem:[#allocation2 + $0x68] sm:$0xff]
  %v4839 = vld [vmem:[#allocation2 + $0x70] sm:$0xff]
  %v4840 = vld [vmem:[#allocation2 + $0x78] sm:$0xff]
  %v4841 = vld [vmem:[#allocation2 + $0x80] sm:$0xff]
  %v4842 = vld [vmem:[#allocation2 + $0x88] sm:$0xff]
  %v4843 = vld [vmem:[#allocation2 + $0x90] sm:$0xff]
  %v4844 = vld [vmem:[#allocation2 + $0x98] sm:$0xff]
  %v4845 = vld [vmem:[#allocation2 + $0xa0] sm:$0xff]
  %v4846 = vld [vmem:[#allocation2 + $0xa8] sm:$0xff]
  %v4847 = vld [vmem:[#allocation2 + $0xb0] sm:$0xff]
  %v4848 = vld [vmem:[#allocation2 + $0xb8] sm:$0xff]
  %v4849 = vld [vmem:[#allocation2 + $0xc0] sm:$0xff]
  %v4850 = vld [vmem:[#allocation2 + $0xc8] sm:$0xff]
  %v4851 = vld [vmem:[#allocation2 + $0xd0] sm:$0xff]
  %v4852 = vld [vmem:[#allocation2 + $0xd8] sm:$0xff]
  %v4853 = vld [vmem:[#allocation2 + $0xe0] sm:$0xff]
  %v4854 = vld [vmem:[#allocation2 + $0xe8] sm:$0xff]
  %v4855 = vld [vmem:[#allocation2 + $0xf0] sm:$0xff]
  %v4856 = vld [vmem:[#allocation2 + $0xf8] sm:$0xff]
  %v4857 = vld [vmem:[#allocation2 + $0x100] sm:$0xff]
  %v4858 = vld [vmem:[#allocation2 + $0x108] sm:$0xff]
  %v4859 = vld [vmem:[#allocation2 + $0x110] sm:$0xff]
  %v4860 = vld [vmem:[#allocation2 + $0x118] sm:$0xff]
  %v4861 = vld [vmem:[#allocation2 + $0x120] sm:$0xff]
  %v4862 = vld [vmem:[#allocation2 + $0x128] sm:$0xff]
  %v4863 = vld [vmem:[#allocation2 + $0x130] sm:$0xff]
  %v4864 = vld [vmem:[#allocation2 + $0x138] sm:$0xff]
  %v4865 = vld [vmem:[#allocation2 + $0x140] sm:$0xff]
  %v4866 = vld [vmem:[#allocation2 + $0x148] sm:$0xff]
  %v4867 = vld [vmem:[#allocation2 + $0x150] sm:$0xff]
  %v4868 = vld [vmem:[#allocation2 + $0x158] sm:$0xff]
  %v4869 = vld [vmem:[#allocation2 + $0x160] sm:$0xff]
  %v4870 = vld [vmem:[#allocation2 + $0x168] sm:$0xff]
  %v4871 = vld [vmem:[#allocation2 + $0x170] sm:$0xff]
  %v4872 = vld [vmem:[#allocation2 + $0x178] sm:$0xff]
  %v4873 = vld [vmem:[#allocation2 + $0x180] sm:$0xff]
  %v4874 = vld [vmem:[#allocation2 + $0x188] sm:$0xff]
  %v4875 = vld [vmem:[#allocation2 + $0x190] sm:$0xff]
  %v4876 = vld [vmem:[#allocation2 + $0x198] sm:$0xff]
  %v4877 = vld [vmem:[#allocation2 + $0x1a0] sm:$0xff]
  %v4878 = vld [vmem:[#allocation2 + $0x1a8] sm:$0xff]
  %v4879 = vld [vmem:[#allocation2 + $0x1b0] sm:$0xff]
  %v4880 = vld [vmem:[#allocation2 + $0x1b8] sm:$0xff]
  %v4881 = vld [vmem:[#allocation2 + $0x1c0] sm:$0xff]
  %v4882 = vld [vmem:[#allocation2 + $0x1c8] sm:$0xff]
  %v4883 = vld [vmem:[#allocation2 + $0x1d0] sm:$0xff]
  %v4884 = vld [vmem:[#allocation2 + $0x1d8] sm:$0xff]
  %v4885 = vld [vmem:[#allocation2 + $0x1e0] sm:$0xff]
  %v4886 = vld [vmem:[#allocation2 + $0x1e8] sm:$0xff]
  %v4887 = vld [vmem:[#allocation2 + $0x1f0] sm:$0xff]
  %v4888 = vld [vmem:[#allocation2 + $0x1f8] sm:$0xff]
  %v4889 = vld [vmem:[#allocation2 + $0x200] sm:$0xff]
  %v4890 = vld [vmem:[#allocation2 + $0x208] sm:$0xff]
  %v4891 = vld [vmem:[#allocation2 + $0x210] sm:$0xff]
  %v4892 = vld [vmem:[#allocation2 + $0x218] sm:$0xff]
  %v4893 = vld [vmem:[#allocation2 + $0x220] sm:$0xff]
  %v4894 = vld [vmem:[#allocation2 + $0x228] sm:$0xff]
  %v4895 = vld [vmem:[#allocation2 + $0x230] sm:$0xff]
  %v4896 = vld [vmem:[#allocation2 + $0x238] sm:$0xff]
  %v4897 = vld [vmem:[#allocation2 + $0x240] sm:$0xff]
  %v4898 = vld [vmem:[#allocation2 + $0x248] sm:$0xff]
  %v4899 = vld [vmem:[#allocation2 + $0x250] sm:$0xff]
  %v4900 = vld [vmem:[#allocation2 + $0x258] sm:$0xff]
  %v4901 = vld [vmem:[#allocation2 + $0x260] sm:$0xff]
  %v4902 = vld [vmem:[#allocation2 + $0x268] sm:$0xff]
  %v4903 = vld [vmem:[#allocation2 + $0x270] sm:$0xff]
  %v4904 = vld [vmem:[#allocation2 + $0x278] sm:$0xff]
  %v4905 = vld [vmem:[#allocation2 + $0x280] sm:$0xff]
  %v4906 = vld [vmem:[#allocation2 + $0x288] sm:$0xff]
  %v4907 = vld [vmem:[#allocation2 + $0x290] sm:$0xff]
  %v4908 = vld [vmem:[#allocation2 + $0x298] sm:$0xff]
  %v4909 = vld [vmem:[#allocation2 + $0x2a0] sm:$0xff]
  %v4910 = vld [vmem:[#allocation2 + $0x2a8] sm:$0xff]
  %v4911 = vld [vmem:[#allocation2 + $0x2b0] sm:$0xff]
  %v4912 = vld [vmem:[#allocation2 + $0x2b8] sm:$0xff]
  %v4913 = vld [vmem:[#allocation2 + $0x2c0] sm:$0xff]
  %v4914 = vld [vmem:[#allocation2 + $0x2c8] sm:$0xff]
  %v4915 = vld [vmem:[#allocation2 + $0x2d0] sm:$0xff]
  %v4916 = vld [vmem:[#allocation2 + $0x2d8] sm:$0xff]
  %v4917 = vld [vmem:[#allocation2 + $0x2e0] sm:$0xff]
  %v4918 = vld [vmem:[#allocation2 + $0x2e8] sm:$0xff]
  %v4919 = vld [vmem:[#allocation2 + $0x2f0] sm:$0xff]
  %v4920 = vld [vmem:[#allocation2 + $0x2f8] sm:$0xff]
  %v4921 = vadd.f32 %v4825, %v4443
  %v4922 = vadd.f32 %v4826, %v4446
  %v4923 = vadd.f32 %v4827, %v4451
  %v4924 = vadd.f32 %v4828, %v4454
  %v4925 = vadd.f32 %v4829, %v4459
  %v4926 = vadd.f32 %v4830, %v4462
  %v4927 = vadd.f32 %v4831, %v4467
  %v4928 = vadd.f32 %v4832, %v4470
  %v4929 = vadd.f32 %v4833, %v4475
  %v4930 = vadd.f32 %v4834, %v4478
  %v4931 = vadd.f32 %v4835, %v4483
  %v4932 = vadd.f32 %v4836, %v4486
  %v4933 = vadd.f32 %v4837, %v4491
  %v4934 = vadd.f32 %v4838, %v4494
  %v4935 = vadd.f32 %v4839, %v4499
  %v4936 = vadd.f32 %v4840, %v4502
  %v4937 = vadd.f32 %v4841, %v4507
  %v4938 = vadd.f32 %v4842, %v4510
  %v4939 = vadd.f32 %v4843, %v4515
  %v4940 = vadd.f32 %v4844, %v4518
  %v4941 = vadd.f32 %v4845, %v4523
  %v4942 = vadd.f32 %v4846, %v4526
  %v4943 = vadd.f32 %v4847, %v4531
  %v4944 = vadd.f32 %v4848, %v4534
  %v4945 = vadd.f32 %v4849, %v4539
  %v4946 = vadd.f32 %v4850, %v4542
  %v4947 = vadd.f32 %v4851, %v4547
  %v4948 = vadd.f32 %v4852, %v4550
  %v4949 = vadd.f32 %v4853, %v4555
  %v4950 = vadd.f32 %v4854, %v4558
  %v4951 = vadd.f32 %v4855, %v4563
  %v4952 = vadd.f32 %v4856, %v4566
  %v4953 = vadd.f32 %v4857, %v4571
  %v4954 = vadd.f32 %v4858, %v4574
  %v4955 = vadd.f32 %v4859, %v4579
  %v4956 = vadd.f32 %v4860, %v4582
  %v4957 = vadd.f32 %v4861, %v4587
  %v4958 = vadd.f32 %v4862, %v4590
  %v4959 = vadd.f32 %v4863, %v4595
  %v4960 = vadd.f32 %v4864, %v4598
  %v4961 = vadd.f32 %v4865, %v4603
  %v4962 = vadd.f32 %v4866, %v4606
  %v4963 = vadd.f32 %v4867, %v4611
  %v4964 = vadd.f32 %v4868, %v4614
  %v4965 = vadd.f32 %v4869, %v4619
  %v4966 = vadd.f32 %v4870, %v4622
  %v4967 = vadd.f32 %v4871, %v4627
  %v4968 = vadd.f32 %v4872, %v4630
  %v4969 = vadd.f32 %v4873, %v4635
  %v4970 = vadd.f32 %v4874, %v4638
  %v4971 = vadd.f32 %v4875, %v4643
  %v4972 = vadd.f32 %v4876, %v4646
  %v4973 = vadd.f32 %v4877, %v4651
  %v4974 = vadd.f32 %v4878, %v4654
  %v4975 = vadd.f32 %v4879, %v4659
  %v4976 = vadd.f32 %v4880, %v4662
  %v4977 = vadd.f32 %v4881, %v4667
  %v4978 = vadd.f32 %v4882, %v4670
  %v4979 = vadd.f32 %v4883, %v4675
  %v4980 = vadd.f32 %v4884, %v4678
  %v4981 = vadd.f32 %v4885, %v4683
  %v4982 = vadd.f32 %v4886, %v4686
  %v4983 = vadd.f32 %v4887, %v4691
  %v4984 = vadd.f32 %v4888, %v4694
  %v4985 = vadd.f32 %v4889, %v4699
  %v4986 = vadd.f32 %v4890, %v4702
  %v4987 = vadd.f32 %v4891, %v4707
  %v4988 = vadd.f32 %v4892, %v4710
  %v4989 = vadd.f32 %v4893, %v4715
  %v4990 = vadd.f32 %v4894, %v4718
  %v4991 = vadd.f32 %v4895, %v4723
  %v4992 = vadd.f32 %v4896, %v4726
  %v4993 = vadd.f32 %v4897, %v4731
  %v4994 = vadd.f32 %v4898, %v4734
  %v4995 = vadd.f32 %v4899, %v4739
  %v4996 = vadd.f32 %v4900, %v4742
  %v4997 = vadd.f32 %v4901, %v4747
  %v4998 = vadd.f32 %v4902, %v4750
  %v4999 = vadd.f32 %v4903, %v4755
  %v5000 = vadd.f32 %v4904, %v4758
  %v5001 = vadd.f32 %v4905, %v4763
  %v5002 = vadd.f32 %v4906, %v4766
  %v5003 = vadd.f32 %v4907, %v4771
  %v5004 = vadd.f32 %v4908, %v4774
  %v5005 = vadd.f32 %v4909, %v4779
  %v5006 = vadd.f32 %v4910, %v4782
  %v5007 = vadd.f32 %v4911, %v4787
  %v5008 = vadd.f32 %v4912, %v4790
  %v5009 = vadd.f32 %v4913, %v4795
  %v5010 = vadd.f32 %v4914, %v4798
  %v5011 = vadd.f32 %v4915, %v4803
  %v5012 = vadd.f32 %v4916, %v4806
  %v5013 = vadd.f32 %v4917, %v4811
  %v5014 = vadd.f32 %v4918, %v4814
  %v5015 = vadd.f32 %v4919, %v4819
  %v5016 = vadd.f32 %v4920, %v4822
  %5017 = vst [vmem:[#allocation2] sm:$0xff] %v4921
  %5018 = vst [vmem:[#allocation2 + $0x8] sm:$0xff] %v4922
  %5019 = vst [vmem:[#allocation2 + $0x10] sm:$0xff] %v4923
  %5020 = vst [vmem:[#allocation2 + $0x18] sm:$0xff] %v4924
  %5021 = vst [vmem:[#allocation2 + $0x20] sm:$0xff] %v4925
  %5022 = vst [vmem:[#allocation2 + $0x28] sm:$0xff] %v4926
  %5023 = vst [vmem:[#allocation2 + $0x30] sm:$0xff] %v4927
  %5024 = vst [vmem:[#allocation2 + $0x38] sm:$0xff] %v4928
  %5025 = vst [vmem:[#allocation2 + $0x40] sm:$0xff] %v4929
  %5026 = vst [vmem:[#allocation2 + $0x48] sm:$0xff] %v4930
  %5027 = vst [vmem:[#allocation2 + $0x50] sm:$0xff] %v4931
  %5028 = vst [vmem:[#allocation2 + $0x58] sm:$0xff] %v4932
  %5029 = vst [vmem:[#allocation2 + $0x60] sm:$0xff] %v4933
  %5030 = vst [vmem:[#allocation2 + $0x68] sm:$0xff] %v4934
  %5031 = vst [vmem:[#allocation2 + $0x70] sm:$0xff] %v4935
  %5032 = vst [vmem:[#allocation2 + $0x78] sm:$0xff] %v4936
  %5033 = vst [vmem:[#allocation2 + $0x80] sm:$0xff] %v4937
  %5034 = vst [vmem:[#allocation2 + $0x88] sm:$0xff] %v4938
  %5035 = vst [vmem:[#allocation2 + $0x90] sm:$0xff] %v4939
  %5036 = vst [vmem:[#allocation2 + $0x98] sm:$0xff] %v4940
  %5037 = vst [vmem:[#allocation2 + $0xa0] sm:$0xff] %v4941
  %5038 = vst [vmem:[#allocation2 + $0xa8] sm:$0xff] %v4942
  %5039 = vst [vmem:[#allocation2 + $0xb0] sm:$0xff] %v4943
  %5040 = vst [vmem:[#allocation2 + $0xb8] sm:$0xff] %v4944
  %5041 = vst [vmem:[#allocation2 + $0xc0] sm:$0xff] %v4945
  %5042 = vst [vmem:[#allocation2 + $0xc8] sm:$0xff] %v4946
  %5043 = vst [vmem:[#allocation2 + $0xd0] sm:$0xff] %v4947
  %5044 = vst [vmem:[#allocation2 + $0xd8] sm:$0xff] %v4948
  %5045 = vst [vmem:[#allocation2 + $0xe0] sm:$0xff] %v4949
  %5046 = vst [vmem:[#allocation2 + $0xe8] sm:$0xff] %v4950
  %5047 = vst [vmem:[#allocation2 + $0xf0] sm:$0xff] %v4951
  %5048 = vst [vmem:[#allocation2 + $0xf8] sm:$0xff] %v4952
  %5049 = vst [vmem:[#allocation2 + $0x100] sm:$0xff] %v4953
  %5050 = vst [vmem:[#allocation2 + $0x108] sm:$0xff] %v4954
  %5051 = vst [vmem:[#allocation2 + $0x110] sm:$0xff] %v4955
  %5052 = vst [vmem:[#allocation2 + $0x118] sm:$0xff] %v4956
  %5053 = vst [vmem:[#allocation2 + $0x120] sm:$0xff] %v4957
  %5054 = vst [vmem:[#allocation2 + $0x128] sm:$0xff] %v4958
  %5055 = vst [vmem:[#allocation2 + $0x130] sm:$0xff] %v4959
  %5056 = vst [vmem:[#allocation2 + $0x138] sm:$0xff] %v4960
  %5057 = vst [vmem:[#allocation2 + $0x140] sm:$0xff] %v4961
  %5058 = vst [vmem:[#allocation2 + $0x148] sm:$0xff] %v4962
  %5059 = vst [vmem:[#allocation2 + $0x150] sm:$0xff] %v4963
  %5060 = vst [vmem:[#allocation2 + $0x158] sm:$0xff] %v4964
  %5061 = vst [vmem:[#allocation2 + $0x160] sm:$0xff] %v4965
  %5062 = vst [vmem:[#allocation2 + $0x168] sm:$0xff] %v4966
  %5063 = vst [vmem:[#allocation2 + $0x170] sm:$0xff] %v4967
  %5064 = vst [vmem:[#allocation2 + $0x178] sm:$0xff] %v4968
  %5065 = vst [vmem:[#allocation2 + $0x180] sm:$0xff] %v4969
  %5066 = vst [vmem:[#allocation2 + $0x188] sm:$0xff] %v4970
  %5067 = vst [vmem:[#allocation2 + $0x190] sm:$0xff] %v4971
  %5068 = vst [vmem:[#allocation2 + $0x198] sm:$0xff] %v4972
  %5069 = vst [vmem:[#allocation2 + $0x1a0] sm:$0xff] %v4973
  %5070 = vst [vmem:[#allocation2 + $0x1a8] sm:$0xff] %v4974
  %5071 = vst [vmem:[#allocation2 + $0x1b0] sm:$0xff] %v4975
  %5072 = vst [vmem:[#allocation2 + $0x1b8] sm:$0xff] %v4976
  %5073 = vst [vmem:[#allocation2 + $0x1c0] sm:$0xff] %v4977
  %5074 = vst [vmem:[#allocation2 + $0x1c8] sm:$0xff] %v4978
  %5075 = vst [vmem:[#allocation2 + $0x1d0] sm:$0xff] %v4979
  %5076 = vst [vmem:[#allocation2 + $0x1d8] sm:$0xff] %v4980
  %5077 = vst [vmem:[#allocation2 + $0x1e0] sm:$0xff] %v4981
  %5078 = vst [vmem:[#allocation2 + $0x1e8] sm:$0xff] %v4982
  %5079 = vst [vmem:[#allocation2 + $0x1f0] sm:$0xff] %v4983
  %5080 = vst [vmem:[#allocation2 + $0x1f8] sm:$0xff] %v4984
  %5081 = vst [vmem:[#allocation2 + $0x200] sm:$0xff] %v4985
  %5082 = vst [vmem:[#allocation2 + $0x208] sm:$0xff] %v4986
  %5083 = vst [vmem:[#allocation2 + $0x210] sm:$0xff] %v4987
  %5084 = vst [vmem:[#allocation2 + $0x218] sm:$0xff] %v4988
  %5085 = vst [vmem:[#allocation2 + $0x220] sm:$0xff] %v4989
  %5086 = vst [vmem:[#allocation2 + $0x228] sm:$0xff] %v4990
  %5087 = vst [vmem:[#allocation2 + $0x230] sm:$0xff] %v4991
  %5088 = vst [vmem:[#allocation2 + $0x238] sm:$0xff] %v4992
  %5089 = vst [vmem:[#allocation2 + $0x240] sm:$0xff] %v4993
  %5090 = vst [vmem:[#allocation2 + $0x248] sm:$0xff] %v4994
  %5091 = vst [vmem:[#allocation2 + $0x250] sm:$0xff] %v4995
  %5092 = vst [vmem:[#allocation2 + $0x258] sm:$0xff] %v4996
  %5093 = vst [vmem:[#allocation2 + $0x260] sm:$0xff] %v4997
  %5094 = vst [vmem:[#allocation2 + $0x268] sm:$0xff] %v4998
  %5095 = vst [vmem:[#allocation2 + $0x270] sm:$0xff] %v4999
  %5096 = vst [vmem:[#allocation2 + $0x278] sm:$0xff] %v5000
  %5097 = vst [vmem:[#allocation2 + $0x280] sm:$0xff] %v5001
  %5098 = vst [vmem:[#allocation2 + $0x288] sm:$0xff] %v5002
  %5099 = vst [vmem:[#allocation2 + $0x290] sm:$0xff] %v5003
  %5100 = vst [vmem:[#allocation2 + $0x298] sm:$0xff] %v5004
  %5101 = vst [vmem:[#allocation2 + $0x2a0] sm:$0xff] %v5005
  %5102 = vst [vmem:[#allocation2 + $0x2a8] sm:$0xff] %v5006
  %5103 = vst [vmem:[#allocation2 + $0x2b0] sm:$0xff] %v5007
  %5104 = vst [vmem:[#allocation2 + $0x2b8] sm:$0xff] %v5008
  %5105 = vst [vmem:[#allocation2 + $0x2c0] sm:$0xff] %v5009
  %5106 = vst [vmem:[#allocation2 + $0x2c8] sm:$0xff] %v5010
  %5107 = vst [vmem:[#allocation2 + $0x2d0] sm:$0xff] %v5011
  %5108 = vst [vmem:[#allocation2 + $0x2d8] sm:$0xff] %v5012
  %5109 = vst [vmem:[#allocation2 + $0x2e0] sm:$0xff] %v5013
  %5110 = vst [vmem:[#allocation2 + $0x2e8] sm:$0xff] %v5014
  %5111 = vst [vmem:[#allocation2 + $0x2f0] sm:$0xff] %v5015
  %5112 = vst [vmem:[#allocation2 + $0x2f8] sm:$0xff] %v5016
  %v5113 = vld [vmem:[%s0 + $0x14] sm:$0xff]
  %v5114 = vld [vmem:[%s0 + $0x1c] sm:$0xff]
  %v5115 = vld [vmem:[%s0 + $0x24] sm:$0xff]
  %v5116 = vld [vmem:[%s0 + $0x2c] sm:$0xff]
  %v5117 = vld [vmem:[%s0 + $0x34] sm:$0xff]
  %v5118 = vld [vmem:[%s0 + $0x3c] sm:$0xff]
  %v5119 = vld [vmem:[%s0 + $0x44] sm:$0xff]
  %v5120 = vld [vmem:[%s0 + $0x4c] sm:$0xff]
  %v5121 = vld [vmem:[%s0 + $0x54] sm:$0xff]
  %v5122 = vld [vmem:[%s0 + $0x5c] sm:$0xff]
  %v5123 = vld [vmem:[%s0 + $0x64] sm:$0xff]
  %v5124 = vld [vmem:[%s0 + $0x6c] sm:$0xff]
  %v5125 = vld [vmem:[%s0 + $0x74] sm:$0xff]
  %v5126 = vld [vmem:[%s0 + $0x7c] sm:$0xff]
  %v5127 = vld [vmem:[%s0 + $0x84] sm:$0xff]
  %v5128 = vld [vmem:[%s0 + $0x8c] sm:$0xff]
  %v5129 = vld [vmem:[%s0 + $0x94] sm:$0xff]
  %v5130 = vld [vmem:[%s0 + $0x9c] sm:$0xff]
  %v5131 = vld [vmem:[%s0 + $0xa4] sm:$0xff]
  %v5132 = vld [vmem:[%s0 + $0xac] sm:$0xff]
  %v5133 = vld [vmem:[%s0 + $0xb4] sm:$0xff]
  %v5134 = vld [vmem:[%s0 + $0xbc] sm:$0xff]
  %v5135 = vld [vmem:[%s0 + $0xc4] sm:$0xff]
  %v5136 = vld [vmem:[%s0 + $0xcc] sm:$0xff]
  %v5137 = vld [vmem:[%s0 + $0xd4] sm:$0xff]
  %v5138 = vld [vmem:[%s0 + $0xdc] sm:$0xff]
  %v5139 = vld [vmem:[%s0 + $0xe4] sm:$0xff]
  %v5140 = vld [vmem:[%s0 + $0xec] sm:$0xff]
  %v5141 = vld [vmem:[%s0 + $0xf4] sm:$0xff]
  %v5142 = vld [vmem:[%s0 + $0xfc] sm:$0xff]
  %v5143 = vld [vmem:[%s0 + $0x104] sm:$0xff]
  %v5144 = vld [vmem:[%s0 + $0x10c] sm:$0xff]
  %v5145 = vld [vmem:[%s0 + $0x114] sm:$0xff]
  %v5146 = vld [vmem:[%s0 + $0x11c] sm:$0xff]
  %v5147 = vld [vmem:[%s0 + $0x124] sm:$0xff]
  %v5148 = vld [vmem:[%s0 + $0x12c] sm:$0xff]
  %v5149 = vld [vmem:[%s0 + $0x134] sm:$0xff]
  %v5150 = vld [vmem:[%s0 + $0x13c] sm:$0xff]
  %v5151 = vld [vmem:[%s0 + $0x144] sm:$0xff]
  %v5152 = vld [vmem:[%s0 + $0x14c] sm:$0xff]
  %v5153 = vld [vmem:[%s0 + $0x154] sm:$0xff]
  %v5154 = vld [vmem:[%s0 + $0x15c] sm:$0xff]
  %v5155 = vld [vmem:[%s0 + $0x164] sm:$0xff]
  %v5156 = vld [vmem:[%s0 + $0x16c] sm:$0xff]
  %v5157 = vld [vmem:[%s0 + $0x174] sm:$0xff]
  %v5158 = vld [vmem:[%s0 + $0x17c] sm:$0xff]
  %v5159 = vld [vmem:[%s0 + $0x184] sm:$0xff]
  %v5160 = vld [vmem:[%s0 + $0x18c] sm:$0xff]
  %v5161 = vld [vmem:[%s0 + $0x194] sm:$0xff]
  %v5162 = vld [vmem:[%s0 + $0x19c] sm:$0xff]
  %v5163 = vld [vmem:[%s0 + $0x1a4] sm:$0xff]
  %v5164 = vld [vmem:[%s0 + $0x1ac] sm:$0xff]
  %v5165 = vld [vmem:[%s0 + $0x1b4] sm:$0xff]
  %v5166 = vld [vmem:[%s0 + $0x1bc] sm:$0xff]
  %v5167 = vld [vmem:[%s0 + $0x1c4] sm:$0xff]
  %v5168 = vld [vmem:[%s0 + $0x1cc] sm:$0xff]
  %v5169 = vld [vmem:[%s0 + $0x1d4] sm:$0xff]
  %v5170 = vld [vmem:[%s0 + $0x1dc] sm:$0xff]
  %v5171 = vld [vmem:[%s0 + $0x1e4] sm:$0xff]
  %v5172 = vld [vmem:[%s0 + $0x1ec] sm:$0xff]
  %v5173 = vld [vmem:[%s0 + $0x1f4] sm:$0xff]
  %v5174 = vld [vmem:[%s0 + $0x1fc] sm:$0xff]
  %v5175 = vld [vmem:[%s0 + $0x204] sm:$0xff]
  %v5176 = vld [vmem:[%s0 + $0x20c] sm:$0xff]
  %v5177 = vld [vmem:[%s0 + $0x214] sm:$0xff]
  %v5178 = vld [vmem:[%s0 + $0x21c] sm:$0xff]
  %v5179 = vld [vmem:[%s0 + $0x224] sm:$0xff]
  %v5180 = vld [vmem:[%s0 + $0x22c] sm:$0xff]
  %v5181 = vld [vmem:[%s0 + $0x234] sm:$0xff]
  %v5182 = vld [vmem:[%s0 + $0x23c] sm:$0xff]
  %v5183 = vld [vmem:[%s0 + $0x244] sm:$0xff]
  %v5184 = vld [vmem:[%s0 + $0x24c] sm:$0xff]
  %v5185 = vld [vmem:[%s0 + $0x254] sm:$0xff]
  %v5186 = vld [vmem:[%s0 + $0x25c] sm:$0xff]
  %v5187 = vld [vmem:[%s0 + $0x264] sm:$0xff]
  %v5188 = vld [vmem:[%s0 + $0x26c] sm:$0xff]
  %v5189 = vld [vmem:[%s0 + $0x274] sm:$0xff]
  %v5190 = vld [vmem:[%s0 + $0x27c] sm:$0xff]
  %v5191 = vld [vmem:[%s0 + $0x284] sm:$0xff]
  %v5192 = vld [vmem:[%s0 + $0x28c] sm:$0xff]
  %v5193 = vld [vmem:[%s0 + $0x294] sm:$0xff]
  %v5194 = vld [vmem:[%s0 + $0x29c] sm:$0xff]
  %v5195 = vld [vmem:[%s0 + $0x2a4] sm:$0xff]
  %v5196 = vld [vmem:[%s0 + $0x2ac] sm:$0xff]
  %v5197 = vld [vmem:[%s0 + $0x2b4] sm:$0xff]
  %v5198 = vld [vmem:[%s0 + $0x2bc] sm:$0xff]
  %v5199 = vld [vmem:[%s0 + $0x2c4] sm:$0xff]
  %v5200 = vld [vmem:[%s0 + $0x2cc] sm:$0xff]
  %v5201 = vld [vmem:[%s0 + $0x2d4] sm:$0xff]
  %v5202 = vld [vmem:[%s0 + $0x2dc] sm:$0xff]
  %v5203 = vld [vmem:[%s0 + $0x2e4] sm:$0xff]
  %v5204 = vld [vmem:[%s0 + $0x2ec] sm:$0xff]
  %v5205 = vld [vmem:[%s0 + $0x2f4] sm:$0xff]
  %v5206 = vld [vmem:[%s0 + $0x2fc] sm:$0xff]
  %v5207 = vld [vmem:[%s0 + $0x304] sm:$0xff]
  %v5208 = vld [vmem:[%s0 + $0x30c] sm:$0xff]
  %v5209 = vpack.c.bf16 %v5114, %v5113
  %v5210 = vpack.c.bf16 %v5116, %v5115
  %v5211 = vpack.c.bf16 %v5118, %v5117
  %v5212 = vpack.c.bf16 %v5120, %v5119
  %v5213 = vpack.c.bf16 %v5122, %v5121
  %v5214 = vpack.c.bf16 %v5124, %v5123
  %v5215 = vpack.c.bf16 %v5126, %v5125
  %v5216 = vpack.c.bf16 %v5128, %v5127
  %v5217 = vpack.c.bf16 %v5130, %v5129
  %v5218 = vpack.c.bf16 %v5132, %v5131
  %v5219 = vpack.c.bf16 %v5134, %v5133
  %v5220 = vpack.c.bf16 %v5136, %v5135
  %v5221 = vpack.c.bf16 %v5138, %v5137
  %v5222 = vpack.c.bf16 %v5140, %v5139
  %v5223 = vpack.c.bf16 %v5142, %v5141
  %v5224 = vpack.c.bf16 %v5144, %v5143
  %v5225 = vpack.c.bf16 %v5146, %v5145
  %v5226 = vpack.c.bf16 %v5148, %v5147
  %v5227 = vpack.c.bf16 %v5150, %v5149
  %v5228 = vpack.c.bf16 %v5152, %v5151
  %v5229 = vpack.c.bf16 %v5154, %v5153
  %v5230 = vpack.c.bf16 %v5156, %v5155
  %v5231 = vpack.c.bf16 %v5158, %v5157
  %v5232 = vpack.c.bf16 %v5160, %v5159
  %v5233 = vpack.c.bf16 %v5162, %v5161
  %v5234 = vpack.c.bf16 %v5164, %v5163
  %v5235 = vpack.c.bf16 %v5166, %v5165
  %v5236 = vpack.c.bf16 %v5168, %v5167
  %v5237 = vpack.c.bf16 %v5170, %v5169
  %v5238 = vpack.c.bf16 %v5172, %v5171
  %v5239 = vpack.c.bf16 %v5174, %v5173
  %v5240 = vpack.c.bf16 %v5176, %v5175
  %v5241 = vpack.c.bf16 %v5178, %v5177
  %v5242 = vpack.c.bf16 %v5180, %v5179
  %v5243 = vpack.c.bf16 %v5182, %v5181
  %v5244 = vpack.c.bf16 %v5184, %v5183
  %v5245 = vpack.c.bf16 %v5186, %v5185
  %v5246 = vpack.c.bf16 %v5188, %v5187
  %v5247 = vpack.c.bf16 %v5190, %v5189
  %v5248 = vpack.c.bf16 %v5192, %v5191
  %v5249 = vpack.c.bf16 %v5194, %v5193
  %v5250 = vpack.c.bf16 %v5196, %v5195
  %v5251 = vpack.c.bf16 %v5198, %v5197
  %v5252 = vpack.c.bf16 %v5200, %v5199
  %v5253 = vpack.c.bf16 %v5202, %v5201
  %v5254 = vpack.c.bf16 %v5204, %v5203
  %v5255 = vpack.c.bf16 %v5206, %v5205
  %v5256 = vpack.c.bf16 %v5208, %v5207
  %s5257 = scalar_lea.vmem %s1, 20
  %v5258 = vld [vmem:[%s5257] sm:$0xf]
  %v5260 = vsel %vm163, %v5209, 0
  %v5263 = vsel %vm163, %v5210, 0
  %v5266 = vsel %vm163, %v5211, 0
  %v5269 = vsel %vm163, %v5212, 0
  %v5272 = vsel %vm163, %v5213, 0
  %v5275 = vsel %vm163, %v5214, 0
  %v5278 = vsel %vm163, %v5215, 0
  %v5281 = vsel %vm163, %v5216, 0
  %v5284 = vsel %vm163, %v5217, 0
  %v5287 = vsel %vm163, %v5218, 0
  %v5290 = vsel %vm163, %v5219, 0
  %v5293 = vsel %vm163, %v5220, 0
  %v5296 = vsel %vm163, %v5221, 0
  %v5299 = vsel %vm163, %v5222, 0
  %v5302 = vsel %vm163, %v5223, 0
  %v5305 = vsel %vm163, %v5224, 0
  %v5308 = vsel %vm163, %v5225, 0
  %v5311 = vsel %vm163, %v5226, 0
  %v5314 = vsel %vm163, %v5227, 0
  %v5317 = vsel %vm163, %v5228, 0
  %v5320 = vsel %vm163, %v5229, 0
  %v5323 = vsel %vm163, %v5230, 0
  %v5326 = vsel %vm163, %v5231, 0
  %v5329 = vsel %vm163, %v5232, 0
  %v5332 = vsel %vm163, %v5233, 0
  %v5335 = vsel %vm163, %v5234, 0
  %v5338 = vsel %vm163, %v5235, 0
  %v5341 = vsel %vm163, %v5236, 0
  %v5344 = vsel %vm163, %v5237, 0
  %v5347 = vsel %vm163, %v5238, 0
  %v5350 = vsel %vm163, %v5239, 0
  %v5353 = vsel %vm163, %v5240, 0
  %v5356 = vsel %vm163, %v5241, 0
  %v5359 = vsel %vm163, %v5242, 0
  %v5362 = vsel %vm163, %v5243, 0
  %v5365 = vsel %vm163, %v5244, 0
  %v5368 = vsel %vm163, %v5245, 0
  %v5371 = vsel %vm163, %v5246, 0
  %v5374 = vsel %vm163, %v5247, 0
  %v5377 = vsel %vm163, %v5248, 0
  %v5380 = vsel %vm163, %v5249, 0
  %v5383 = vsel %vm163, %v5250, 0
  %v5386 = vsel %vm163, %v5251, 0
  %v5389 = vsel %vm163, %v5252, 0
  %v5392 = vsel %vm163, %v5253, 0
  %v5395 = vsel %vm163, %v5254, 0
  %v5398 = vsel %vm163, %v5255, 0
  %v5401 = vsel %vm163, %v5256, 0
  %v5404 = vsel %vm308, %v5258, 0
  %5406 = vmatprep.subr.bf16.mxu0 0
  %5407 = vmatpush1.bf16.msra.mxu0 %v5404
  %5408 = vmatprep.subr.bf16.mxu0 0
  %5409 = vmatpush1.bf16.msra.mxu0 0
  %5410 = vmatprep.subr.bf16.mxu0 0
  %5411 = vmatpush1.bf16.msra.mxu0 0
  %5412 = vmatprep.subr.bf16.mxu0 0
  %5413 = vmatpush1.bf16.msra.mxu0 0
  %5414 = vmatprep.subr.bf16.mxu0 0
  %5415 = vmatpush1.bf16.msra.mxu0 0
  %5416 = vmatprep.subr.bf16.mxu0 0
  %5417 = vmatpush1.bf16.msra.mxu0 0
  %5418 = vmatprep.subr.bf16.mxu0 0
  %5419 = vmatpush1.bf16.msra.mxu0 0
  %5420 = vmatprep.subr.bf16.mxu0 0
  %5421 = vmatpush1.bf16.msra.mxu0 0
  %5422 = vmatprep.subr.bf16.mxu0 0
  %5423 = vmatpush1.bf16.msra.mxu0 0
  %5424 = vmatprep.subr.bf16.mxu0 0
  %5425 = vmatpush1.bf16.msra.mxu0 0
  %5426 = vmatprep.subr.bf16.mxu0 0
  %5427 = vmatpush1.bf16.msra.mxu0 0
  %5428 = vmatprep.subr.bf16.mxu0 0
  %5429 = vmatpush1.bf16.msra.mxu0 0
  %5430 = vmatprep.subr.bf16.mxu0 0
  %5431 = vmatpush1.bf16.msra.mxu0 0
  %5432 = vmatprep.subr.bf16.mxu0 0
  %5433 = vmatpush1.bf16.msra.mxu0 0
  %5434 = vmatprep.subr.bf16.mxu0 0
  %5435 = vmatpush1.bf16.msra.mxu0 0
  %5436 = vmatprep.subr.bf16.mxu0 0
  %5437 = vmatpush1.bf16.msra.mxu0 0
  %5438 = vmatprep.mubr.bf16.mxu0 0
  %5439 = vmatmul.mubr.bf16.gmra.mrb[0].mxu0 %v5260
  %v5440 = vpop.f32.mrb[0].mxu0
  %v5441 = vadd.f32 0.0, %v5440
  %v5442 = vpop.f32.mrb[0].mxu0
  %v5443 = vpop.f32.mrb[0].mxu0
  %v5444 = vadd.f32 0.0, %v5443
  %v5445 = vpop.f32.mrb[0].mxu0
  %5446 = vmatprep.mubr.bf16.mxu0 0
  %5447 = vmatmul.mubr.bf16.gmra.mrb[0].mxu0 %v5263
  %v5448 = vpop.f32.mrb[0].mxu0
  %v5449 = vadd.f32 0.0, %v5448
  %v5450 = vpop.f32.mrb[0].mxu0
  %v5451 = vpop.f32.mrb[0].mxu0
  %v5452 = vadd.f32 0.0, %v5451
  %v5453 = vpop.f32.mrb[0].mxu0
  %5454 = vmatprep.mubr.bf16.mxu0 0
  %5455 = vmatmul.mubr.bf16.gmra.mrb[0].mxu0 %v5266
  %v5456 = vpop.f32.mrb[0].mxu0
  %v5457 = vadd.f32 0.0, %v5456
  %v5458 = vpop.f32.mrb[0].mxu0
  %v5459 = vpop.f32.mrb[0].mxu0
  %v5460 = vadd.f32 0.0, %v5459
  %v5461 = vpop.f32.mrb[0].mxu0
  %5462 = vmatprep.mubr.bf16.mxu0 0
  %5463 = vmatmul.mubr.bf16.gmra.mrb[0].mxu0 %v5269
  %v5464 = vpop.f32.mrb[0].mxu0
  %v5465 = vadd.f32 0.0, %v5464
  %v5466 = vpop.f32.mrb[0].mxu0
  %v5467 = vpop.f32.mrb[0].mxu0
  %v5468 = vadd.f32 0.0, %v5467
  %v5469 = vpop.f32.mrb[0].mxu0
  %5470 = vmatprep.mubr.bf16.mxu0 0
  %5471 = vmatmul.mubr.bf16.gmra.mrb[0].mxu0 %v5272
  %v5472 = vpop.f32.mrb[0].mxu0
  %v5473 = vadd.f32 0.0, %v5472
  %v5474 = vpop.f32.mrb[0].mxu0
  %v5475 = vpop.f32.mrb[0].mxu0
  %v5476 = vadd.f32 0.0, %v5475
  %v5477 = vpop.f32.mrb[0].mxu0
  %5478 = vmatprep.mubr.bf16.mxu0 0
  %5479 = vmatmul.mubr.bf16.gmra.mrb[0].mxu0 %v5275
  %v5480 = vpop.f32.mrb[0].mxu0
  %v5481 = vadd.f32 0.0, %v5480
  %v5482 = vpop.f32.mrb[0].mxu0
  %v5483 = vpop.f32.mrb[0].mxu0
  %v5484 = vadd.f32 0.0, %v5483
  %v5485 = vpop.f32.mrb[0].mxu0
  %5486 = vmatprep.mubr.bf16.mxu0 0
  %5487 = vmatmul.mubr.bf16.gmra.mrb[0].mxu0 %v5278
  %v5488 = vpop.f32.mrb[0].mxu0
  %v5489 = vadd.f32 0.0, %v5488
  %v5490 = vpop.f32.mrb[0].mxu0
  %v5491 = vpop.f32.mrb[0].mxu0
  %v5492 = vadd.f32 0.0, %v5491
  %v5493 = vpop.f32.mrb[0].mxu0
  %5494 = vmatprep.mubr.bf16.mxu0 0
  %5495 = vmatmul.mubr.bf16.gmra.mrb[0].mxu0 %v5281
  %v5496 = vpop.f32.mrb[0].mxu0
  %v5497 = vadd.f32 0.0, %v5496
  %v5498 = vpop.f32.mrb[0].mxu0
  %v5499 = vpop.f32.mrb[0].mxu0
  %v5500 = vadd.f32 0.0, %v5499
  %v5501 = vpop.f32.mrb[0].mxu0
  %5502 = vmatprep.mubr.bf16.mxu0 0
  %5503 = vmatmul.mubr.bf16.gmra.mrb[0].mxu0 %v5284
  %v5504 = vpop.f32.mrb[0].mxu0
  %v5505 = vadd.f32 0.0, %v5504
  %v5506 = vpop.f32.mrb[0].mxu0
  %v5507 = vpop.f32.mrb[0].mxu0
  %v5508 = vadd.f32 0.0, %v5507
  %v5509 = vpop.f32.mrb[0].mxu0
  %5510 = vmatprep.mubr.bf16.mxu0 0
  %5511 = vmatmul.mubr.bf16.gmra.mrb[0].mxu0 %v5287
  %v5512 = vpop.f32.mrb[0].mxu0
  %v5513 = vadd.f32 0.0, %v5512
  %v5514 = vpop.f32.mrb[0].mxu0
  %v5515 = vpop.f32.mrb[0].mxu0
  %v5516 = vadd.f32 0.0, %v5515
  %v5517 = vpop.f32.mrb[0].mxu0
  %5518 = vmatprep.mubr.bf16.mxu0 0
  %5519 = vmatmul.mubr.bf16.gmra.mrb[0].mxu0 %v5290
  %v5520 = vpop.f32.mrb[0].mxu0
  %v5521 = vadd.f32 0.0, %v5520
  %v5522 = vpop.f32.mrb[0].mxu0
  %v5523 = vpop.f32.mrb[0].mxu0
  %v5524 = vadd.f32 0.0, %v5523
  %v5525 = vpop.f32.mrb[0].mxu0
  %5526 = vmatprep.mubr.bf16.mxu0 0
  %5527 = vmatmul.mubr.bf16.gmra.mrb[0].mxu0 %v5293
  %v5528 = vpop.f32.mrb[0].mxu0
  %v5529 = vadd.f32 0.0, %v5528
  %v5530 = vpop.f32.mrb[0].mxu0
  %v5531 = vpop.f32.mrb[0].mxu0
  %v5532 = vadd.f32 0.0, %v5531
  %v5533 = vpop.f32.mrb[0].mxu0
  %5534 = vmatprep.mubr.bf16.mxu0 0
  %5535 = vmatmul.mubr.bf16.gmra.mrb[0].mxu0 %v5296
  %v5536 = vpop.f32.mrb[0].mxu0
  %v5537 = vadd.f32 0.0, %v5536
  %v5538 = vpop.f32.mrb[0].mxu0
  %v5539 = vpop.f32.mrb[0].mxu0
  %v5540 = vadd.f32 0.0, %v5539
  %v5541 = vpop.f32.mrb[0].mxu0
  %5542 = vmatprep.mubr.bf16.mxu0 0
  %5543 = vmatmul.mubr.bf16.gmra.mrb[0].mxu0 %v5299
  %v5544 = vpop.f32.mrb[0].mxu0
  %v5545 = vadd.f32 0.0, %v5544
  %v5546 = vpop.f32.mrb[0].mxu0
  %v5547 = vpop.f32.mrb[0].mxu0
  %v5548 = vadd.f32 0.0, %v5547
  %v5549 = vpop.f32.mrb[0].mxu0
  %5550 = vmatprep.mubr.bf16.mxu0 0
  %5551 = vmatmul.mubr.bf16.gmra.mrb[0].mxu0 %v5302
  %v5552 = vpop.f32.mrb[0].mxu0
  %v5553 = vadd.f32 0.0, %v5552
  %v5554 = vpop.f32.mrb[0].mxu0
  %v5555 = vpop.f32.mrb[0].mxu0
  %v5556 = vadd.f32 0.0, %v5555
  %v5557 = vpop.f32.mrb[0].mxu0
  %5558 = vmatprep.mubr.bf16.mxu0 0
  %5559 = vmatmul.mubr.bf16.gmra.mrb[0].mxu0 %v5305
  %v5560 = vpop.f32.mrb[0].mxu0
  %v5561 = vadd.f32 0.0, %v5560
  %v5562 = vpop.f32.mrb[0].mxu0
  %v5563 = vpop.f32.mrb[0].mxu0
  %v5564 = vadd.f32 0.0, %v5563
  %v5565 = vpop.f32.mrb[0].mxu0
  %5566 = vmatprep.mubr.bf16.mxu0 0
  %5567 = vmatmul.mubr.bf16.gmra.mrb[0].mxu0 %v5308
  %v5568 = vpop.f32.mrb[0].mxu0
  %v5569 = vadd.f32 0.0, %v5568
  %v5570 = vpop.f32.mrb[0].mxu0
  %v5571 = vpop.f32.mrb[0].mxu0
  %v5572 = vadd.f32 0.0, %v5571
  %v5573 = vpop.f32.mrb[0].mxu0
  %5574 = vmatprep.mubr.bf16.mxu0 0
  %5575 = vmatmul.mubr.bf16.gmra.mrb[0].mxu0 %v5311
  %v5576 = vpop.f32.mrb[0].mxu0
  %v5577 = vadd.f32 0.0, %v5576
  %v5578 = vpop.f32.mrb[0].mxu0
  %v5579 = vpop.f32.mrb[0].mxu0
  %v5580 = vadd.f32 0.0, %v5579
  %v5581 = vpop.f32.mrb[0].mxu0
  %5582 = vmatprep.mubr.bf16.mxu0 0
  %5583 = vmatmul.mubr.bf16.gmra.mrb[0].mxu0 %v5314
  %v5584 = vpop.f32.mrb[0].mxu0
  %v5585 = vadd.f32 0.0, %v5584
  %v5586 = vpop.f32.mrb[0].mxu0
  %v5587 = vpop.f32.mrb[0].mxu0
  %v5588 = vadd.f32 0.0, %v5587
  %v5589 = vpop.f32.mrb[0].mxu0
  %5590 = vmatprep.mubr.bf16.mxu0 0
  %5591 = vmatmul.mubr.bf16.gmra.mrb[0].mxu0 %v5317
  %v5592 = vpop.f32.mrb[0].mxu0
  %v5593 = vadd.f32 0.0, %v5592
  %v5594 = vpop.f32.mrb[0].mxu0
  %v5595 = vpop.f32.mrb[0].mxu0
  %v5596 = vadd.f32 0.0, %v5595
  %v5597 = vpop.f32.mrb[0].mxu0
  %5598 = vmatprep.mubr.bf16.mxu0 0
  %5599 = vmatmul.mubr.bf16.gmra.mrb[0].mxu0 %v5320
  %v5600 = vpop.f32.mrb[0].mxu0
  %v5601 = vadd.f32 0.0, %v5600
  %v5602 = vpop.f32.mrb[0].mxu0
  %v5603 = vpop.f32.mrb[0].mxu0
  %v5604 = vadd.f32 0.0, %v5603
  %v5605 = vpop.f32.mrb[0].mxu0
  %5606 = vmatprep.mubr.bf16.mxu0 0
  %5607 = vmatmul.mubr.bf16.gmra.mrb[0].mxu0 %v5323
  %v5608 = vpop.f32.mrb[0].mxu0
  %v5609 = vadd.f32 0.0, %v5608
  %v5610 = vpop.f32.mrb[0].mxu0
  %v5611 = vpop.f32.mrb[0].mxu0
  %v5612 = vadd.f32 0.0, %v5611
  %v5613 = vpop.f32.mrb[0].mxu0
  %5614 = vmatprep.mubr.bf16.mxu0 0
  %5615 = vmatmul.mubr.bf16.gmra.mrb[0].mxu0 %v5326
  %v5616 = vpop.f32.mrb[0].mxu0
  %v5617 = vadd.f32 0.0, %v5616
  %v5618 = vpop.f32.mrb[0].mxu0
  %v5619 = vpop.f32.mrb[0].mxu0
  %v5620 = vadd.f32 0.0, %v5619
  %v5621 = vpop.f32.mrb[0].mxu0
  %5622 = vmatprep.mubr.bf16.mxu0 0
  %5623 = vmatmul.mubr.bf16.gmra.mrb[0].mxu0 %v5329
  %v5624 = vpop.f32.mrb[0].mxu0
  %v5625 = vadd.f32 0.0, %v5624
  %v5626 = vpop.f32.mrb[0].mxu0
  %v5627 = vpop.f32.mrb[0].mxu0
  %v5628 = vadd.f32 0.0, %v5627
  %v5629 = vpop.f32.mrb[0].mxu0
  %5630 = vmatprep.mubr.bf16.mxu0 0
  %5631 = vmatmul.mubr.bf16.gmra.mrb[0].mxu0 %v5332
  %v5632 = vpop.f32.mrb[0].mxu0
  %v5633 = vadd.f32 0.0, %v5632
  %v5634 = vpop.f32.mrb[0].mxu0
  %v5635 = vpop.f32.mrb[0].mxu0
  %v5636 = vadd.f32 0.0, %v5635
  %v5637 = vpop.f32.mrb[0].mxu0
  %5638 = vmatprep.mubr.bf16.mxu0 0
  %5639 = vmatmul.mubr.bf16.gmra.mrb[0].mxu0 %v5335
  %v5640 = vpop.f32.mrb[0].mxu0
  %v5641 = vadd.f32 0.0, %v5640
  %v5642 = vpop.f32.mrb[0].mxu0
  %v5643 = vpop.f32.mrb[0].mxu0
  %v5644 = vadd.f32 0.0, %v5643
  %v5645 = vpop.f32.mrb[0].mxu0
  %5646 = vmatprep.mubr.bf16.mxu0 0
  %5647 = vmatmul.mubr.bf16.gmra.mrb[0].mxu0 %v5338
  %v5648 = vpop.f32.mrb[0].mxu0
  %v5649 = vadd.f32 0.0, %v5648
  %v5650 = vpop.f32.mrb[0].mxu0
  %v5651 = vpop.f32.mrb[0].mxu0
  %v5652 = vadd.f32 0.0, %v5651
  %v5653 = vpop.f32.mrb[0].mxu0
  %5654 = vmatprep.mubr.bf16.mxu0 0
  %5655 = vmatmul.mubr.bf16.gmra.mrb[0].mxu0 %v5341
  %v5656 = vpop.f32.mrb[0].mxu0
  %v5657 = vadd.f32 0.0, %v5656
  %v5658 = vpop.f32.mrb[0].mxu0
  %v5659 = vpop.f32.mrb[0].mxu0
  %v5660 = vadd.f32 0.0, %v5659
  %v5661 = vpop.f32.mrb[0].mxu0
  %5662 = vmatprep.mubr.bf16.mxu0 0
  %5663 = vmatmul.mubr.bf16.gmra.mrb[0].mxu0 %v5344
  %v5664 = vpop.f32.mrb[0].mxu0
  %v5665 = vadd.f32 0.0, %v5664
  %v5666 = vpop.f32.mrb[0].mxu0
  %v5667 = vpop.f32.mrb[0].mxu0
  %v5668 = vadd.f32 0.0, %v5667
  %v5669 = vpop.f32.mrb[0].mxu0
  %5670 = vmatprep.mubr.bf16.mxu0 0
  %5671 = vmatmul.mubr.bf16.gmra.mrb[0].mxu0 %v5347
  %v5672 = vpop.f32.mrb[0].mxu0
  %v5673 = vadd.f32 0.0, %v5672
  %v5674 = vpop.f32.mrb[0].mxu0
  %v5675 = vpop.f32.mrb[0].mxu0
  %v5676 = vadd.f32 0.0, %v5675
  %v5677 = vpop.f32.mrb[0].mxu0
  %5678 = vmatprep.mubr.bf16.mxu0 0
  %5679 = vmatmul.mubr.bf16.gmra.mrb[0].mxu0 %v5350
  %v5680 = vpop.f32.mrb[0].mxu0
  %v5681 = vadd.f32 0.0, %v5680
  %v5682 = vpop.f32.mrb[0].mxu0
  %v5683 = vpop.f32.mrb[0].mxu0
  %v5684 = vadd.f32 0.0, %v5683
  %v5685 = vpop.f32.mrb[0].mxu0
  %5686 = vmatprep.mubr.bf16.mxu0 0
  %5687 = vmatmul.mubr.bf16.gmra.mrb[0].mxu0 %v5353
  %v5688 = vpop.f32.mrb[0].mxu0
  %v5689 = vadd.f32 0.0, %v5688
  %v5690 = vpop.f32.mrb[0].mxu0
  %v5691 = vpop.f32.mrb[0].mxu0
  %v5692 = vadd.f32 0.0, %v5691
  %v5693 = vpop.f32.mrb[0].mxu0
  %5694 = vmatprep.mubr.bf16.mxu0 0
  %5695 = vmatmul.mubr.bf16.gmra.mrb[0].mxu0 %v5356
  %v5696 = vpop.f32.mrb[0].mxu0
  %v5697 = vadd.f32 0.0, %v5696
  %v5698 = vpop.f32.mrb[0].mxu0
  %v5699 = vpop.f32.mrb[0].mxu0
  %v5700 = vadd.f32 0.0, %v5699
  %v5701 = vpop.f32.mrb[0].mxu0
  %5702 = vmatprep.mubr.bf16.mxu0 0
  %5703 = vmatmul.mubr.bf16.gmra.mrb[0].mxu0 %v5359
  %v5704 = vpop.f32.mrb[0].mxu0
  %v5705 = vadd.f32 0.0, %v5704
  %v5706 = vpop.f32.mrb[0].mxu0
  %v5707 = vpop.f32.mrb[0].mxu0
  %v5708 = vadd.f32 0.0, %v5707
  %v5709 = vpop.f32.mrb[0].mxu0
  %5710 = vmatprep.mubr.bf16.mxu0 0
  %5711 = vmatmul.mubr.bf16.gmra.mrb[0].mxu0 %v5362
  %v5712 = vpop.f32.mrb[0].mxu0
  %v5713 = vadd.f32 0.0, %v5712
  %v5714 = vpop.f32.mrb[0].mxu0
  %v5715 = vpop.f32.mrb[0].mxu0
  %v5716 = vadd.f32 0.0, %v5715
  %v5717 = vpop.f32.mrb[0].mxu0
  %5718 = vmatprep.mubr.bf16.mxu0 0
  %5719 = vmatmul.mubr.bf16.gmra.mrb[0].mxu0 %v5365
  %v5720 = vpop.f32.mrb[0].mxu0
  %v5721 = vadd.f32 0.0, %v5720
  %v5722 = vpop.f32.mrb[0].mxu0
  %v5723 = vpop.f32.mrb[0].mxu0
  %v5724 = vadd.f32 0.0, %v5723
  %v5725 = vpop.f32.mrb[0].mxu0
  %5726 = vmatprep.mubr.bf16.mxu0 0
  %5727 = vmatmul.mubr.bf16.gmra.mrb[0].mxu0 %v5368
  %v5728 = vpop.f32.mrb[0].mxu0
  %v5729 = vadd.f32 0.0, %v5728
  %v5730 = vpop.f32.mrb[0].mxu0
  %v5731 = vpop.f32.mrb[0].mxu0
  %v5732 = vadd.f32 0.0, %v5731
  %v5733 = vpop.f32.mrb[0].mxu0
  %5734 = vmatprep.mubr.bf16.mxu0 0
  %5735 = vmatmul.mubr.bf16.gmra.mrb[0].mxu0 %v5371
  %v5736 = vpop.f32.mrb[0].mxu0
  %v5737 = vadd.f32 0.0, %v5736
  %v5738 = vpop.f32.mrb[0].mxu0
  %v5739 = vpop.f32.mrb[0].mxu0
  %v5740 = vadd.f32 0.0, %v5739
  %v5741 = vpop.f32.mrb[0].mxu0
  %5742 = vmatprep.mubr.bf16.mxu0 0
  %5743 = vmatmul.mubr.bf16.gmra.mrb[0].mxu0 %v5374
  %v5744 = vpop.f32.mrb[0].mxu0
  %v5745 = vadd.f32 0.0, %v5744
  %v5746 = vpop.f32.mrb[0].mxu0
  %v5747 = vpop.f32.mrb[0].mxu0
  %v5748 = vadd.f32 0.0, %v5747
  %v5749 = vpop.f32.mrb[0].mxu0
  %5750 = vmatprep.mubr.bf16.mxu0 0
  %5751 = vmatmul.mubr.bf16.gmra.mrb[0].mxu0 %v5377
  %v5752 = vpop.f32.mrb[0].mxu0
  %v5753 = vadd.f32 0.0, %v5752
  %v5754 = vpop.f32.mrb[0].mxu0
  %v5755 = vpop.f32.mrb[0].mxu0
  %v5756 = vadd.f32 0.0, %v5755
  %v5757 = vpop.f32.mrb[0].mxu0
  %5758 = vmatprep.mubr.bf16.mxu0 0
  %5759 = vmatmul.mubr.bf16.gmra.mrb[0].mxu0 %v5380
  %v5760 = vpop.f32.mrb[0].mxu0
  %v5761 = vadd.f32 0.0, %v5760
  %v5762 = vpop.f32.mrb[0].mxu0
  %v5763 = vpop.f32.mrb[0].mxu0
  %v5764 = vadd.f32 0.0, %v5763
  %v5765 = vpop.f32.mrb[0].mxu0
  %5766 = vmatprep.mubr.bf16.mxu0 0
  %5767 = vmatmul.mubr.bf16.gmra.mrb[0].mxu0 %v5383
  %v5768 = vpop.f32.mrb[0].mxu0
  %v5769 = vadd.f32 0.0, %v5768
  %v5770 = vpop.f32.mrb[0].mxu0
  %v5771 = vpop.f32.mrb[0].mxu0
  %v5772 = vadd.f32 0.0, %v5771
  %v5773 = vpop.f32.mrb[0].mxu0
  %5774 = vmatprep.mubr.bf16.mxu0 0
  %5775 = vmatmul.mubr.bf16.gmra.mrb[0].mxu0 %v5386
  %v5776 = vpop.f32.mrb[0].mxu0
  %v5777 = vadd.f32 0.0, %v5776
  %v5778 = vpop.f32.mrb[0].mxu0
  %v5779 = vpop.f32.mrb[0].mxu0
  %v5780 = vadd.f32 0.0, %v5779
  %v5781 = vpop.f32.mrb[0].mxu0
  %5782 = vmatprep.mubr.bf16.mxu0 0
  %5783 = vmatmul.mubr.bf16.gmra.mrb[0].mxu0 %v5389
  %v5784 = vpop.f32.mrb[0].mxu0
  %v5785 = vadd.f32 0.0, %v5784
  %v5786 = vpop.f32.mrb[0].mxu0
  %v5787 = vpop.f32.mrb[0].mxu0
  %v5788 = vadd.f32 0.0, %v5787
  %v5789 = vpop.f32.mrb[0].mxu0
  %5790 = vmatprep.mubr.bf16.mxu0 0
  %5791 = vmatmul.mubr.bf16.gmra.mrb[0].mxu0 %v5392
  %v5792 = vpop.f32.mrb[0].mxu0
  %v5793 = vadd.f32 0.0, %v5792
  %v5794 = vpop.f32.mrb[0].mxu0
  %v5795 = vpop.f32.mrb[0].mxu0
  %v5796 = vadd.f32 0.0, %v5795
  %v5797 = vpop.f32.mrb[0].mxu0
  %5798 = vmatprep.mubr.bf16.mxu0 0
  %5799 = vmatmul.mubr.bf16.gmra.mrb[0].mxu0 %v5395
  %v5800 = vpop.f32.mrb[0].mxu0
  %v5801 = vadd.f32 0.0, %v5800
  %v5802 = vpop.f32.mrb[0].mxu0
  %v5803 = vpop.f32.mrb[0].mxu0
  %v5804 = vadd.f32 0.0, %v5803
  %v5805 = vpop.f32.mrb[0].mxu0
  %5806 = vmatprep.mubr.bf16.mxu0 0
  %5807 = vmatmul.mubr.bf16.gmra.mrb[0].mxu0 %v5398
  %v5808 = vpop.f32.mrb[0].mxu0
  %v5809 = vadd.f32 0.0, %v5808
  %v5810 = vpop.f32.mrb[0].mxu0
  %v5811 = vpop.f32.mrb[0].mxu0
  %v5812 = vadd.f32 0.0, %v5811
  %v5813 = vpop.f32.mrb[0].mxu0
  %5814 = vmatprep.mubr.bf16.mxu0 0
  %5815 = vmatmul.mubr.bf16.gmra.mrb[0].mxu0 %v5401
  %v5816 = vpop.f32.mrb[0].mxu0
  %v5817 = vadd.f32 0.0, %v5816
  %v5818 = vpop.f32.mrb[0].mxu0
  %v5819 = vpop.f32.mrb[0].mxu0
  %v5820 = vadd.f32 0.0, %v5819
  %v5821 = vpop.f32.mrb[0].mxu0
  %5822 = vdwg.mxu0
  %v5823 = vld [vmem:[#allocation2] sm:$0xff]
  %v5824 = vld [vmem:[#allocation2 + $0x8] sm:$0xff]
  %v5825 = vld [vmem:[#allocation2 + $0x10] sm:$0xff]
  %v5826 = vld [vmem:[#allocation2 + $0x18] sm:$0xff]
  %v5827 = vld [vmem:[#allocation2 + $0x20] sm:$0xff]
  %v5828 = vld [vmem:[#allocation2 + $0x28] sm:$0xff]
  %v5829 = vld [vmem:[#allocation2 + $0x30] sm:$0xff]
  %v5830 = vld [vmem:[#allocation2 + $0x38] sm:$0xff]
  %v5831 = vld [vmem:[#allocation2 + $0x40] sm:$0xff]
  %v5832 = vld [vmem:[#allocation2 + $0x48] sm:$0xff]
  %v5833 = vld [vmem:[#allocation2 + $0x50] sm:$0xff]
  %v5834 = vld [vmem:[#allocation2 + $0x58] sm:$0xff]
  %v5835 = vld [vmem:[#allocation2 + $0x60] sm:$0xff]
  %v5836 = vld [vmem:[#allocation2 + $0x68] sm:$0xff]
  %v5837 = vld [vmem:[#allocation2 + $0x70] sm:$0xff]
  %v5838 = vld [vmem:[#allocation2 + $0x78] sm:$0xff]
  %v5839 = vld [vmem:[#allocation2 + $0x80] sm:$0xff]
  %v5840 = vld [vmem:[#allocation2 + $0x88] sm:$0xff]
  %v5841 = vld [vmem:[#allocation2 + $0x90] sm:$0xff]
  %v5842 = vld [vmem:[#allocation2 + $0x98] sm:$0xff]
  %v5843 = vld [vmem:[#allocation2 + $0xa0] sm:$0xff]
  %v5844 = vld [vmem:[#allocation2 + $0xa8] sm:$0xff]
  %v5845 = vld [vmem:[#allocation2 + $0xb0] sm:$0xff]
  %v5846 = vld [vmem:[#allocation2 + $0xb8] sm:$0xff]
  %v5847 = vld [vmem:[#allocation2 + $0xc0] sm:$0xff]
  %v5848 = vld [vmem:[#allocation2 + $0xc8] sm:$0xff]
  %v5849 = vld [vmem:[#allocation2 + $0xd0] sm:$0xff]
  %v5850 = vld [vmem:[#allocation2 + $0xd8] sm:$0xff]
  %v5851 = vld [vmem:[#allocation2 + $0xe0] sm:$0xff]
  %v5852 = vld [vmem:[#allocation2 + $0xe8] sm:$0xff]
  %v5853 = vld [vmem:[#allocation2 + $0xf0] sm:$0xff]
  %v5854 = vld [vmem:[#allocation2 + $0xf8] sm:$0xff]
  %v5855 = vld [vmem:[#allocation2 + $0x100] sm:$0xff]
  %v5856 = vld [vmem:[#allocation2 + $0x108] sm:$0xff]
  %v5857 = vld [vmem:[#allocation2 + $0x110] sm:$0xff]
  %v5858 = vld [vmem:[#allocation2 + $0x118] sm:$0xff]
  %v5859 = vld [vmem:[#allocation2 + $0x120] sm:$0xff]
  %v5860 = vld [vmem:[#allocation2 + $0x128] sm:$0xff]
  %v5861 = vld [vmem:[#allocation2 + $0x130] sm:$0xff]
  %v5862 = vld [vmem:[#allocation2 + $0x138] sm:$0xff]
  %v5863 = vld [vmem:[#allocation2 + $0x140] sm:$0xff]
  %v5864 = vld [vmem:[#allocation2 + $0x148] sm:$0xff]
  %v5865 = vld [vmem:[#allocation2 + $0x150] sm:$0xff]
  %v5866 = vld [vmem:[#allocation2 + $0x158] sm:$0xff]
  %v5867 = vld [vmem:[#allocation2 + $0x160] sm:$0xff]
  %v5868 = vld [vmem:[#allocation2 + $0x168] sm:$0xff]
  %v5869 = vld [vmem:[#allocation2 + $0x170] sm:$0xff]
  %v5870 = vld [vmem:[#allocation2 + $0x178] sm:$0xff]
  %v5871 = vld [vmem:[#allocation2 + $0x180] sm:$0xff]
  %v5872 = vld [vmem:[#allocation2 + $0x188] sm:$0xff]
  %v5873 = vld [vmem:[#allocation2 + $0x190] sm:$0xff]
  %v5874 = vld [vmem:[#allocation2 + $0x198] sm:$0xff]
  %v5875 = vld [vmem:[#allocation2 + $0x1a0] sm:$0xff]
  %v5876 = vld [vmem:[#allocation2 + $0x1a8] sm:$0xff]
  %v5877 = vld [vmem:[#allocation2 + $0x1b0] sm:$0xff]
  %v5878 = vld [vmem:[#allocation2 + $0x1b8] sm:$0xff]
  %v5879 = vld [vmem:[#allocation2 + $0x1c0] sm:$0xff]
  %v5880 = vld [vmem:[#allocation2 + $0x1c8] sm:$0xff]
  %v5881 = vld [vmem:[#allocation2 + $0x1d0] sm:$0xff]
  %v5882 = vld [vmem:[#allocation2 + $0x1d8] sm:$0xff]
  %v5883 = vld [vmem:[#allocation2 + $0x1e0] sm:$0xff]
  %v5884 = vld [vmem:[#allocation2 + $0x1e8] sm:$0xff]
  %v5885 = vld [vmem:[#allocation2 + $0x1f0] sm:$0xff]
  %v5886 = vld [vmem:[#allocation2 + $0x1f8] sm:$0xff]
  %v5887 = vld [vmem:[#allocation2 + $0x200] sm:$0xff]
  %v5888 = vld [vmem:[#allocation2 + $0x208] sm:$0xff]
  %v5889 = vld [vmem:[#allocation2 + $0x210] sm:$0xff]
  %v5890 = vld [vmem:[#allocation2 + $0x218] sm:$0xff]
  %v5891 = vld [vmem:[#allocation2 + $0x220] sm:$0xff]
  %v5892 = vld [vmem:[#allocation2 + $0x228] sm:$0xff]
  %v5893 = vld [vmem:[#allocation2 + $0x230] sm:$0xff]
  %v5894 = vld [vmem:[#allocation2 + $0x238] sm:$0xff]
  %v5895 = vld [vmem:[#allocation2 + $0x240] sm:$0xff]
  %v5896 = vld [vmem:[#allocation2 + $0x248] sm:$0xff]
  %v5897 = vld [vmem:[#allocation2 + $0x250] sm:$0xff]
  %v5898 = vld [vmem:[#allocation2 + $0x258] sm:$0xff]
  %v5899 = vld [vmem:[#allocation2 + $0x260] sm:$0xff]
  %v5900 = vld [vmem:[#allocation2 + $0x268] sm:$0xff]
  %v5901 = vld [vmem:[#allocation2 + $0x270] sm:$0xff]
  %v5902 = vld [vmem:[#allocation2 + $0x278] sm:$0xff]
  %v5903 = vld [vmem:[#allocation2 + $0x280] sm:$0xff]
  %v5904 = vld [vmem:[#allocation2 + $0x288] sm:$0xff]
  %v5905 = vld [vmem:[#allocation2 + $0x290] sm:$0xff]
  %v5906 = vld [vmem:[#allocation2 + $0x298] sm:$0xff]
  %v5907 = vld [vmem:[#allocation2 + $0x2a0] sm:$0xff]
  %v5908 = vld [vmem:[#allocation2 + $0x2a8] sm:$0xff]
  %v5909 = vld [vmem:[#allocation2 + $0x2b0] sm:$0xff]
  %v5910 = vld [vmem:[#allocation2 + $0x2b8] sm:$0xff]
  %v5911 = vld [vmem:[#allocation2 + $0x2c0] sm:$0xff]
  %v5912 = vld [vmem:[#allocation2 + $0x2c8] sm:$0xff]
  %v5913 = vld [vmem:[#allocation2 + $0x2d0] sm:$0xff]
  %v5914 = vld [vmem:[#allocation2 + $0x2d8] sm:$0xff]
  %v5915 = vld [vmem:[#allocation2 + $0x2e0] sm:$0xff]
  %v5916 = vld [vmem:[#allocation2 + $0x2e8] sm:$0xff]
  %v5917 = vld [vmem:[#allocation2 + $0x2f0] sm:$0xff]
  %v5918 = vld [vmem:[#allocation2 + $0x2f8] sm:$0xff]
  %v5919 = vadd.f32 %v5823, %v5441
  %v5920 = vadd.f32 %v5824, %v5444
  %v5921 = vadd.f32 %v5825, %v5449
  %v5922 = vadd.f32 %v5826, %v5452
  %v5923 = vadd.f32 %v5827, %v5457
  %v5924 = vadd.f32 %v5828, %v5460
  %v5925 = vadd.f32 %v5829, %v5465
  %v5926 = vadd.f32 %v5830, %v5468
  %v5927 = vadd.f32 %v5831, %v5473
  %v5928 = vadd.f32 %v5832, %v5476
  %v5929 = vadd.f32 %v5833, %v5481
  %v5930 = vadd.f32 %v5834, %v5484
  %v5931 = vadd.f32 %v5835, %v5489
  %v5932 = vadd.f32 %v5836, %v5492
  %v5933 = vadd.f32 %v5837, %v5497
  %v5934 = vadd.f32 %v5838, %v5500
  %v5935 = vadd.f32 %v5839, %v5505
  %v5936 = vadd.f32 %v5840, %v5508
  %v5937 = vadd.f32 %v5841, %v5513
  %v5938 = vadd.f32 %v5842, %v5516
  %v5939 = vadd.f32 %v5843, %v5521
  %v5940 = vadd.f32 %v5844, %v5524
  %v5941 = vadd.f32 %v5845, %v5529
  %v5942 = vadd.f32 %v5846, %v5532
  %v5943 = vadd.f32 %v5847, %v5537
  %v5944 = vadd.f32 %v5848, %v5540
  %v5945 = vadd.f32 %v5849, %v5545
  %v5946 = vadd.f32 %v5850, %v5548
  %v5947 = vadd.f32 %v5851, %v5553
  %v5948 = vadd.f32 %v5852, %v5556
  %v5949 = vadd.f32 %v5853, %v5561
  %v5950 = vadd.f32 %v5854, %v5564
  %v5951 = vadd.f32 %v5855, %v5569
  %v5952 = vadd.f32 %v5856, %v5572
  %v5953 = vadd.f32 %v5857, %v5577
  %v5954 = vadd.f32 %v5858, %v5580
  %v5955 = vadd.f32 %v5859, %v5585
  %v5956 = vadd.f32 %v5860, %v5588
  %v5957 = vadd.f32 %v5861, %v5593
  %v5958 = vadd.f32 %v5862, %v5596
  %v5959 = vadd.f32 %v5863, %v5601
  %v5960 = vadd.f32 %v5864, %v5604
  %v5961 = vadd.f32 %v5865, %v5609
  %v5962 = vadd.f32 %v5866, %v5612
  %v5963 = vadd.f32 %v5867, %v5617
  %v5964 = vadd.f32 %v5868, %v5620
  %v5965 = vadd.f32 %v5869, %v5625
  %v5966 = vadd.f32 %v5870, %v5628
  %v5967 = vadd.f32 %v5871, %v5633
  %v5968 = vadd.f32 %v5872, %v5636
  %v5969 = vadd.f32 %v5873, %v5641
  %v5970 = vadd.f32 %v5874, %v5644
  %v5971 = vadd.f32 %v5875, %v5649
  %v5972 = vadd.f32 %v5876, %v5652
  %v5973 = vadd.f32 %v5877, %v5657
  %v5974 = vadd.f32 %v5878, %v5660
  %v5975 = vadd.f32 %v5879, %v5665
  %v5976 = vadd.f32 %v5880, %v5668
  %v5977 = vadd.f32 %v5881, %v5673
  %v5978 = vadd.f32 %v5882, %v5676
  %v5979 = vadd.f32 %v5883, %v5681
  %v5980 = vadd.f32 %v5884, %v5684
  %v5981 = vadd.f32 %v5885, %v5689
  %v5982 = vadd.f32 %v5886, %v5692
  %v5983 = vadd.f32 %v5887, %v5697
  %v5984 = vadd.f32 %v5888, %v5700
  %v5985 = vadd.f32 %v5889, %v5705
  %v5986 = vadd.f32 %v5890, %v5708
  %v5987 = vadd.f32 %v5891, %v5713
  %v5988 = vadd.f32 %v5892, %v5716
  %v5989 = vadd.f32 %v5893, %v5721
  %v5990 = vadd.f32 %v5894, %v5724
  %v5991 = vadd.f32 %v5895, %v5729
  %v5992 = vadd.f32 %v5896, %v5732
  %v5993 = vadd.f32 %v5897, %v5737
  %v5994 = vadd.f32 %v5898, %v5740
  %v5995 = vadd.f32 %v5899, %v5745
  %v5996 = vadd.f32 %v5900, %v5748
  %v5997 = vadd.f32 %v5901, %v5753
  %v5998 = vadd.f32 %v5902, %v5756
  %v5999 = vadd.f32 %v5903, %v5761
  %v6000 = vadd.f32 %v5904, %v5764
  %v6001 = vadd.f32 %v5905, %v5769
  %v6002 = vadd.f32 %v5906, %v5772
  %v6003 = vadd.f32 %v5907, %v5777
  %v6004 = vadd.f32 %v5908, %v5780
  %v6005 = vadd.f32 %v5909, %v5785
  %v6006 = vadd.f32 %v5910, %v5788
  %v6007 = vadd.f32 %v5911, %v5793
  %v6008 = vadd.f32 %v5912, %v5796
  %v6009 = vadd.f32 %v5913, %v5801
  %v6010 = vadd.f32 %v5914, %v5804
  %v6011 = vadd.f32 %v5915, %v5809
  %v6012 = vadd.f32 %v5916, %v5812
  %v6013 = vadd.f32 %v5917, %v5817
  %v6014 = vadd.f32 %v5918, %v5820
  %6015 = vst [vmem:[#allocation2] sm:$0xff] %v5919
  %6016 = vst [vmem:[#allocation2 + $0x8] sm:$0xff] %v5920
  %6017 = vst [vmem:[#allocation2 + $0x10] sm:$0xff] %v5921
  %6018 = vst [vmem:[#allocation2 + $0x18] sm:$0xff] %v5922
  %6019 = vst [vmem:[#allocation2 + $0x20] sm:$0xff] %v5923
  %6020 = vst [vmem:[#allocation2 + $0x28] sm:$0xff] %v5924
  %6021 = vst [vmem:[#allocation2 + $0x30] sm:$0xff] %v5925
  %6022 = vst [vmem:[#allocation2 + $0x38] sm:$0xff] %v5926
  %6023 = vst [vmem:[#allocation2 + $0x40] sm:$0xff] %v5927
  %6024 = vst [vmem:[#allocation2 + $0x48] sm:$0xff] %v5928
  %6025 = vst [vmem:[#allocation2 + $0x50] sm:$0xff] %v5929
  %6026 = vst [vmem:[#allocation2 + $0x58] sm:$0xff] %v5930
  %6027 = vst [vmem:[#allocation2 + $0x60] sm:$0xff] %v5931
  %6028 = vst [vmem:[#allocation2 + $0x68] sm:$0xff] %v5932
  %6029 = vst [vmem:[#allocation2 + $0x70] sm:$0xff] %v5933
  %6030 = vst [vmem:[#allocation2 + $0x78] sm:$0xff] %v5934
  %6031 = vst [vmem:[#allocation2 + $0x80] sm:$0xff] %v5935
  %6032 = vst [vmem:[#allocation2 + $0x88] sm:$0xff] %v5936
  %6033 = vst [vmem:[#allocation2 + $0x90] sm:$0xff] %v5937
  %6034 = vst [vmem:[#allocation2 + $0x98] sm:$0xff] %v5938
  %6035 = vst [vmem:[#allocation2 + $0xa0] sm:$0xff] %v5939
  %6036 = vst [vmem:[#allocation2 + $0xa8] sm:$0xff] %v5940
  %6037 = vst [vmem:[#allocation2 + $0xb0] sm:$0xff] %v5941
  %6038 = vst [vmem:[#allocation2 + $0xb8] sm:$0xff] %v5942
  %6039 = vst [vmem:[#allocation2 + $0xc0] sm:$0xff] %v5943
  %6040 = vst [vmem:[#allocation2 + $0xc8] sm:$0xff] %v5944
  %6041 = vst [vmem:[#allocation2 + $0xd0] sm:$0xff] %v5945
  %6042 = vst [vmem:[#allocation2 + $0xd8] sm:$0xff] %v5946
  %6043 = vst [vmem:[#allocation2 + $0xe0] sm:$0xff] %v5947
  %6044 = vst [vmem:[#allocation2 + $0xe8] sm:$0xff] %v5948
  %6045 = vst [vmem:[#allocation2 + $0xf0] sm:$0xff] %v5949
  %6046 = vst [vmem:[#allocation2 + $0xf8] sm:$0xff] %v5950
  %6047 = vst [vmem:[#allocation2 + $0x100] sm:$0xff] %v5951
  %6048 = vst [vmem:[#allocation2 + $0x108] sm:$0xff] %v5952
  %6049 = vst [vmem:[#allocation2 + $0x110] sm:$0xff] %v5953
  %6050 = vst [vmem:[#allocation2 + $0x118] sm:$0xff] %v5954
  %6051 = vst [vmem:[#allocation2 + $0x120] sm:$0xff] %v5955
  %6052 = vst [vmem:[#allocation2 + $0x128] sm:$0xff] %v5956
  %6053 = vst [vmem:[#allocation2 + $0x130] sm:$0xff] %v5957
  %6054 = vst [vmem:[#allocation2 + $0x138] sm:$0xff] %v5958
  %6055 = vst [vmem:[#allocation2 + $0x140] sm:$0xff] %v5959
  %6056 = vst [vmem:[#allocation2 + $0x148] sm:$0xff] %v5960
  %6057 = vst [vmem:[#allocation2 + $0x150] sm:$0xff] %v5961
  %6058 = vst [vmem:[#allocation2 + $0x158] sm:$0xff] %v5962
  %6059 = vst [vmem:[#allocation2 + $0x160] sm:$0xff] %v5963
  %6060 = vst [vmem:[#allocation2 + $0x168] sm:$0xff] %v5964
  %6061 = vst [vmem:[#allocation2 + $0x170] sm:$0xff] %v5965
  %6062 = vst [vmem:[#allocation2 + $0x178] sm:$0xff] %v5966
  %6063 = vst [vmem:[#allocation2 + $0x180] sm:$0xff] %v5967
  %6064 = vst [vmem:[#allocation2 + $0x188] sm:$0xff] %v5968
  %6065 = vst [vmem:[#allocation2 + $0x190] sm:$0xff] %v5969
  %6066 = vst [vmem:[#allocation2 + $0x198] sm:$0xff] %v5970
  %6067 = vst [vmem:[#allocation2 + $0x1a0] sm:$0xff] %v5971
  %6068 = vst [vmem:[#allocation2 + $0x1a8] sm:$0xff] %v5972
  %6069 = vst [vmem:[#allocation2 + $0x1b0] sm:$0xff] %v5973
  %6070 = vst [vmem:[#allocation2 + $0x1b8] sm:$0xff] %v5974
  %6071 = vst [vmem:[#allocation2 + $0x1c0] sm:$0xff] %v5975
  %6072 = vst [vmem:[#allocation2 + $0x1c8] sm:$0xff] %v5976
  %6073 = vst [vmem:[#allocation2 + $0x1d0] sm:$0xff] %v5977
  %6074 = vst [vmem:[#allocation2 + $0x1d8] sm:$0xff] %v5978
  %6075 = vst [vmem:[#allocation2 + $0x1e0] sm:$0xff] %v5979
  %6076 = vst [vmem:[#allocation2 + $0x1e8] sm:$0xff] %v5980
  %6077 = vst [vmem:[#allocation2 + $0x1f0] sm:$0xff] %v5981
  %6078 = vst [vmem:[#allocation2 + $0x1f8] sm:$0xff] %v5982
  %6079 = vst [vmem:[#allocation2 + $0x200] sm:$0xff] %v5983
  %6080 = vst [vmem:[#allocation2 + $0x208] sm:$0xff] %v5984
  %6081 = vst [vmem:[#allocation2 + $0x210] sm:$0xff] %v5985
  %6082 = vst [vmem:[#allocation2 + $0x218] sm:$0xff] %v5986
  %6083 = vst [vmem:[#allocation2 + $0x220] sm:$0xff] %v5987
  %6084 = vst [vmem:[#allocation2 + $0x228] sm:$0xff] %v5988
  %6085 = vst [vmem:[#allocation2 + $0x230] sm:$0xff] %v5989
  %6086 = vst [vmem:[#allocation2 + $0x238] sm:$0xff] %v5990
  %6087 = vst [vmem:[#allocation2 + $0x240] sm:$0xff] %v5991
  %6088 = vst [vmem:[#allocation2 + $0x248] sm:$0xff] %v5992
  %6089 = vst [vmem:[#allocation2 + $0x250] sm:$0xff] %v5993
  %6090 = vst [vmem:[#allocation2 + $0x258] sm:$0xff] %v5994
  %6091 = vst [vmem:[#allocation2 + $0x260] sm:$0xff] %v5995
  %6092 = vst [vmem:[#allocation2 + $0x268] sm:$0xff] %v5996
  %6093 = vst [vmem:[#allocation2 + $0x270] sm:$0xff] %v5997
  %6094 = vst [vmem:[#allocation2 + $0x278] sm:$0xff] %v5998
  %6095 = vst [vmem:[#allocation2 + $0x280] sm:$0xff] %v5999
  %6096 = vst [vmem:[#allocation2 + $0x288] sm:$0xff] %v6000
  %6097 = vst [vmem:[#allocation2 + $0x290] sm:$0xff] %v6001
  %6098 = vst [vmem:[#allocation2 + $0x298] sm:$0xff] %v6002
  %6099 = vst [vmem:[#allocation2 + $0x2a0] sm:$0xff] %v6003
  %6100 = vst [vmem:[#allocation2 + $0x2a8] sm:$0xff] %v6004
  %6101 = vst [vmem:[#allocation2 + $0x2b0] sm:$0xff] %v6005
  %6102 = vst [vmem:[#allocation2 + $0x2b8] sm:$0xff] %v6006
  %6103 = vst [vmem:[#allocation2 + $0x2c0] sm:$0xff] %v6007
  %6104 = vst [vmem:[#allocation2 + $0x2c8] sm:$0xff] %v6008
  %6105 = vst [vmem:[#allocation2 + $0x2d0] sm:$0xff] %v6009
  %6106 = vst [vmem:[#allocation2 + $0x2d8] sm:$0xff] %v6010
  %6107 = vst [vmem:[#allocation2 + $0x2e0] sm:$0xff] %v6011
  %6108 = vst [vmem:[#allocation2 + $0x2e8] sm:$0xff] %v6012
  %6109 = vst [vmem:[#allocation2 + $0x2f0] sm:$0xff] %v6013
  %6110 = vst [vmem:[#allocation2 + $0x2f8] sm:$0xff] %v6014
  %v6111 = vld [vmem:[%s0 + $0x24] sm:$0xff]
  %v6112 = vld [vmem:[%s0 + $0x2c] sm:$0xff]
  %v6113 = vld [vmem:[%s0 + $0x34] sm:$0xff]
  %v6114 = vld [vmem:[%s0 + $0x3c] sm:$0xff]
  %v6115 = vld [vmem:[%s0 + $0x44] sm:$0xff]
  %v6116 = vld [vmem:[%s0 + $0x4c] sm:$0xff]
  %v6117 = vld [vmem:[%s0 + $0x54] sm:$0xff]
  %v6118 = vld [vmem:[%s0 + $0x5c] sm:$0xff]
  %v6119 = vld [vmem:[%s0 + $0x64] sm:$0xff]
  %v6120 = vld [vmem:[%s0 + $0x6c] sm:$0xff]
  %v6121 = vld [vmem:[%s0 + $0x74] sm:$0xff]
  %v6122 = vld [vmem:[%s0 + $0x7c] sm:$0xff]
  %v6123 = vld [vmem:[%s0 + $0x84] sm:$0xff]
  %v6124 = vld [vmem:[%s0 + $0x8c] sm:$0xff]
  %v6125 = vld [vmem:[%s0 + $0x94] sm:$0xff]
  %v6126 = vld [vmem:[%s0 + $0x9c] sm:$0xff]
  %v6127 = vld [vmem:[%s0 + $0xa4] sm:$0xff]
  %v6128 = vld [vmem:[%s0 + $0xac] sm:$0xff]
  %v6129 = vld [vmem:[%s0 + $0xb4] sm:$0xff]
  %v6130 = vld [vmem:[%s0 + $0xbc] sm:$0xff]
  %v6131 = vld [vmem:[%s0 + $0xc4] sm:$0xff]
  %v6132 = vld [vmem:[%s0 + $0xcc] sm:$0xff]
  %v6133 = vld [vmem:[%s0 + $0xd4] sm:$0xff]
  %v6134 = vld [vmem:[%s0 + $0xdc] sm:$0xff]
  %v6135 = vld [vmem:[%s0 + $0xe4] sm:$0xff]
  %v6136 = vld [vmem:[%s0 + $0xec] sm:$0xff]
  %v6137 = vld [vmem:[%s0 + $0xf4] sm:$0xff]
  %v6138 = vld [vmem:[%s0 + $0xfc] sm:$0xff]
  %v6139 = vld [vmem:[%s0 + $0x104] sm:$0xff]
  %v6140 = vld [vmem:[%s0 + $0x10c] sm:$0xff]
  %v6141 = vld [vmem:[%s0 + $0x114] sm:$0xff]
  %v6142 = vld [vmem:[%s0 + $0x11c] sm:$0xff]
  %v6143 = vld [vmem:[%s0 + $0x124] sm:$0xff]
  %v6144 = vld [vmem:[%s0 + $0x12c] sm:$0xff]
  %v6145 = vld [vmem:[%s0 + $0x134] sm:$0xff]
  %v6146 = vld [vmem:[%s0 + $0x13c] sm:$0xff]
  %v6147 = vld [vmem:[%s0 + $0x144] sm:$0xff]
  %v6148 = vld [vmem:[%s0 + $0x14c] sm:$0xff]
  %v6149 = vld [vmem:[%s0 + $0x154] sm:$0xff]
  %v6150 = vld [vmem:[%s0 + $0x15c] sm:$0xff]
  %v6151 = vld [vmem:[%s0 + $0x164] sm:$0xff]
  %v6152 = vld [vmem:[%s0 + $0x16c] sm:$0xff]
  %v6153 = vld [vmem:[%s0 + $0x174] sm:$0xff]
  %v6154 = vld [vmem:[%s0 + $0x17c] sm:$0xff]
  %v6155 = vld [vmem:[%s0 + $0x184] sm:$0xff]
  %v6156 = vld [vmem:[%s0 + $0x18c] sm:$0xff]
  %v6157 = vld [vmem:[%s0 + $0x194] sm:$0xff]
  %v6158 = vld [vmem:[%s0 + $0x19c] sm:$0xff]
  %v6159 = vld [vmem:[%s0 + $0x1a4] sm:$0xff]
  %v6160 = vld [vmem:[%s0 + $0x1ac] sm:$0xff]
  %v6161 = vld [vmem:[%s0 + $0x1b4] sm:$0xff]
  %v6162 = vld [vmem:[%s0 + $0x1bc] sm:$0xff]
  %v6163 = vld [vmem:[%s0 + $0x1c4] sm:$0xff]
  %v6164 = vld [vmem:[%s0 + $0x1cc] sm:$0xff]
  %v6165 = vld [vmem:[%s0 + $0x1d4] sm:$0xff]
  %v6166 = vld [vmem:[%s0 + $0x1dc] sm:$0xff]
  %v6167 = vld [vmem:[%s0 + $0x1e4] sm:$0xff]
  %v6168 = vld [vmem:[%s0 + $0x1ec] sm:$0xff]
  %v6169 = vld [vmem:[%s0 + $0x1f4] sm:$0xff]
  %v6170 = vld [vmem:[%s0 + $0x1fc] sm:$0xff]
  %v6171 = vld [vmem:[%s0 + $0x204] sm:$0xff]
  %v6172 = vld [vmem:[%s0 + $0x20c] sm:$0xff]
  %v6173 = vld [vmem:[%s0 + $0x214] sm:$0xff]
  %v6174 = vld [vmem:[%s0 + $0x21c] sm:$0xff]
  %v6175 = vld [vmem:[%s0 + $0x224] sm:$0xff]
  %v6176 = vld [vmem:[%s0 + $0x22c] sm:$0xff]
  %v6177 = vld [vmem:[%s0 + $0x234] sm:$0xff]
  %v6178 = vld [vmem:[%s0 + $0x23c] sm:$0xff]
  %v6179 = vld [vmem:[%s0 + $0x244] sm:$0xff]
  %v6180 = vld [vmem:[%s0 + $0x24c] sm:$0xff]
  %v6181 = vld [vmem:[%s0 + $0x254] sm:$0xff]
  %v6182 = vld [vmem:[%s0 + $0x25c] sm:$0xff]
  %v6183 = vld [vmem:[%s0 + $0x264] sm:$0xff]
  %v6184 = vld [vmem:[%s0 + $0x26c] sm:$0xff]
  %v6185 = vld [vmem:[%s0 + $0x274] sm:$0xff]
  %v6186 = vld [vmem:[%s0 + $0x27c] sm:$0xff]
  %v6187 = vld [vmem:[%s0 + $0x284] sm:$0xff]
  %v6188 = vld [vmem:[%s0 + $0x28c] sm:$0xff]
  %v6189 = vld [vmem:[%s0 + $0x294] sm:$0xff]
  %v6190 = vld [vmem:[%s0 + $0x29c] sm:$0xff]
  %v6191 = vld [vmem:[%s0 + $0x2a4] sm:$0xff]
  %v6192 = vld [vmem:[%s0 + $0x2ac] sm:$0xff]
  %v6193 = vld [vmem:[%s0 + $0x2b4] sm:$0xff]
  %v6194 = vld [vmem:[%s0 + $0x2bc] sm:$0xff]
  %v6195 = vld [vmem:[%s0 + $0x2c4] sm:$0xff]
  %v6196 = vld [vmem:[%s0 + $0x2cc] sm:$0xff]
  %v6197 = vld [vmem:[%s0 + $0x2d4] sm:$0xff]
  %v6198 = vld [vmem:[%s0 + $0x2dc] sm:$0xff]
  %v6199 = vld [vmem:[%s0 + $0x2e4] sm:$0xff]
  %v6200 = vld [vmem:[%s0 + $0x2ec] sm:$0xff]
  %v6201 = vld [vmem:[%s0 + $0x2f4] sm:$0xff]
  %v6202 = vld [vmem:[%s0 + $0x2fc] sm:$0xff]
  %v6203 = vld [vmem:[%s0 + $0x304] sm:$0xff]
  %v6204 = vld [vmem:[%s0 + $0x30c] sm:$0xff]
  %v6205 = vld [vmem:[%s0 + $0x314] sm:$0xff]
  %v6206 = vld [vmem:[%s0 + $0x31c] sm:$0xff]
  %v6207 = vpack.c.bf16 %v6112, %v6111
  %v6208 = vpack.c.bf16 %v6114, %v6113
  %v6209 = vpack.c.bf16 %v6116, %v6115
  %v6210 = vpack.c.bf16 %v6118, %v6117
  %v6211 = vpack.c.bf16 %v6120, %v6119
  %v6212 = vpack.c.bf16 %v6122, %v6121
  %v6213 = vpack.c.bf16 %v6124, %v6123
  %v6214 = vpack.c.bf16 %v6126, %v6125
  %v6215 = vpack.c.bf16 %v6128, %v6127
  %v6216 = vpack.c.bf16 %v6130, %v6129
  %v6217 = vpack.c.bf16 %v6132, %v6131
  %v6218 = vpack.c.bf16 %v6134, %v6133
  %v6219 = vpack.c.bf16 %v6136, %v6135
  %v6220 = vpack.c.bf16 %v6138, %v6137
  %v6221 = vpack.c.bf16 %v6140, %v6139
  %v6222 = vpack.c.bf16 %v6142, %v6141
  %v6223 = vpack.c.bf16 %v6144, %v6143
  %v6224 = vpack.c.bf16 %v6146, %v6145
  %v6225 = vpack.c.bf16 %v6148, %v6147
  %v6226 = vpack.c.bf16 %v6150, %v6149
  %v6227 = vpack.c.bf16 %v6152, %v6151
  %v6228 = vpack.c.bf16 %v6154, %v6153
  %v6229 = vpack.c.bf16 %v6156, %v6155
  %v6230 = vpack.c.bf16 %v6158, %v6157
  %v6231 = vpack.c.bf16 %v6160, %v6159
  %v6232 = vpack.c.bf16 %v6162, %v6161
  %v6233 = vpack.c.bf16 %v6164, %v6163
  %v6234 = vpack.c.bf16 %v6166, %v6165
  %v6235 = vpack.c.bf16 %v6168, %v6167
  %v6236 = vpack.c.bf16 %v6170, %v6169
  %v6237 = vpack.c.bf16 %v6172, %v6171
  %v6238 = vpack.c.bf16 %v6174, %v6173
  %v6239 = vpack.c.bf16 %v6176, %v6175
  %v6240 = vpack.c.bf16 %v6178, %v6177
  %v6241 = vpack.c.bf16 %v6180, %v6179
  %v6242 = vpack.c.bf16 %v6182, %v6181
  %v6243 = vpack.c.bf16 %v6184, %v6183
  %v6244 = vpack.c.bf16 %v6186, %v6185
  %v6245 = vpack.c.bf16 %v6188, %v6187
  %v6246 = vpack.c.bf16 %v6190, %v6189
  %v6247 = vpack.c.bf16 %v6192, %v6191
  %v6248 = vpack.c.bf16 %v6194, %v6193
  %v6249 = vpack.c.bf16 %v6196, %v6195
  %v6250 = vpack.c.bf16 %v6198, %v6197
  %v6251 = vpack.c.bf16 %v6200, %v6199
  %v6252 = vpack.c.bf16 %v6202, %v6201
  %v6253 = vpack.c.bf16 %v6204, %v6203
  %v6254 = vpack.c.bf16 %v6206, %v6205
  %s6255 = scalar_lea.vmem %s1, 24
  %v6256 = vld [vmem:[%s6255] sm:$0xf]
  %v6258 = vsel %vm163, %v6207, 0
  %v6261 = vsel %vm163, %v6208, 0
  %v6264 = vsel %vm163, %v6209, 0
  %v6267 = vsel %vm163, %v6210, 0
  %v6270 = vsel %vm163, %v6211, 0
  %v6273 = vsel %vm163, %v6212, 0
  %v6276 = vsel %vm163, %v6213, 0
  %v6279 = vsel %vm163, %v6214, 0
  %v6282 = vsel %vm163, %v6215, 0
  %v6285 = vsel %vm163, %v6216, 0
  %v6288 = vsel %vm163, %v6217, 0
  %v6291 = vsel %vm163, %v6218, 0
  %v6294 = vsel %vm163, %v6219, 0
  %v6297 = vsel %vm163, %v6220, 0
  %v6300 = vsel %vm163, %v6221, 0
  %v6303 = vsel %vm163, %v6222, 0
  %v6306 = vsel %vm163, %v6223, 0
  %v6309 = vsel %vm163, %v6224, 0
  %v6312 = vsel %vm163, %v6225, 0
  %v6315 = vsel %vm163, %v6226, 0
  %v6318 = vsel %vm163, %v6227, 0
  %v6321 = vsel %vm163, %v6228, 0
  %v6324 = vsel %vm163, %v6229, 0
  %v6327 = vsel %vm163, %v6230, 0
  %v6330 = vsel %vm163, %v6231, 0
  %v6333 = vsel %vm163, %v6232, 0
  %v6336 = vsel %vm163, %v6233, 0
  %v6339 = vsel %vm163, %v6234, 0
  %v6342 = vsel %vm163, %v6235, 0
  %v6345 = vsel %vm163, %v6236, 0
  %v6348 = vsel %vm163, %v6237, 0
  %v6351 = vsel %vm163, %v6238, 0
  %v6354 = vsel %vm163, %v6239, 0
  %v6357 = vsel %vm163, %v6240, 0
  %v6360 = vsel %vm163, %v6241, 0
  %v6363 = vsel %vm163, %v6242, 0
  %v6366 = vsel %vm163, %v6243, 0
  %v6369 = vsel %vm163, %v6244, 0
  %v6372 = vsel %vm163, %v6245, 0
  %v6375 = vsel %vm163, %v6246, 0
  %v6378 = vsel %vm163, %v6247, 0
  %v6381 = vsel %vm163, %v6248, 0
  %v6384 = vsel %vm163, %v6249, 0
  %v6387 = vsel %vm163, %v6250, 0
  %v6390 = vsel %vm163, %v6251, 0
  %v6393 = vsel %vm163, %v6252, 0
  %v6396 = vsel %vm163, %v6253, 0
  %v6399 = vsel %vm163, %v6254, 0
  %v6402 = vsel %vm308, %v6256, 0
  %6404 = vmatprep.subr.bf16.mxu0 0
  %6405 = vmatpush1.bf16.msra.mxu0 %v6402
  %6406 = vmatprep.subr.bf16.mxu0 0
  %6407 = vmatpush1.bf16.msra.mxu0 0
  %6408 = vmatprep.subr.bf16.mxu0 0
  %6409 = vmatpush1.bf16.msra.mxu0 0
  %6410 = vmatprep.subr.bf16.mxu0 0
  %6411 = vmatpush1.bf16.msra.mxu0 0
  %6412 = vmatprep.subr.bf16.mxu0 0
  %6413 = vmatpush1.bf16.msra.mxu0 0
  %6414 = vmatprep.subr.bf16.mxu0 0
  %6415 = vmatpush1.bf16.msra.mxu0 0
  %6416 = vmatprep.subr.bf16.mxu0 0
  %6417 = vmatpush1.bf16.msra.mxu0 0
  %6418 = vmatprep.subr.bf16.mxu0 0
  %6419 = vmatpush1.bf16.msra.mxu0 0
  %6420 = vmatprep.subr.bf16.mxu0 0
  %6421 = vmatpush1.bf16.msra.mxu0 0
  %6422 = vmatprep.subr.bf16.mxu0 0
  %6423 = vmatpush1.bf16.msra.mxu0 0
  %6424 = vmatprep.subr.bf16.mxu0 0
  %6425 = vmatpush1.bf16.msra.mxu0 0
  %6426 = vmatprep.subr.bf16.mxu0 0
  %6427 = vmatpush1.bf16.msra.mxu0 0
  %6428 = vmatprep.subr.bf16.mxu0 0
  %6429 = vmatpush1.bf16.msra.mxu0 0
  %6430 = vmatprep.subr.bf16.mxu0 0
  %6431 = vmatpush1.bf16.msra.mxu0 0
  %6432 = vmatprep.subr.bf16.mxu0 0
  %6433 = vmatpush1.bf16.msra.mxu0 0
  %6434 = vmatprep.subr.bf16.mxu0 0
  %6435 = vmatpush1.bf16.msra.mxu0 0
  %6436 = vmatprep.mubr.bf16.mxu0 0
  %6437 = vmatmul.mubr.bf16.gmra.mrb[0].mxu0 %v6258
  %v6438 = vpop.f32.mrb[0].mxu0
  %v6439 = vadd.f32 0.0, %v6438
  %v6440 = vpop.f32.mrb[0].mxu0
  %v6441 = vpop.f32.mrb[0].mxu0
  %v6442 = vadd.f32 0.0, %v6441
  %v6443 = vpop.f32.mrb[0].mxu0
  %6444 = vmatprep.mubr.bf16.mxu0 0
  %6445 = vmatmul.mubr.bf16.gmra.mrb[0].mxu0 %v6261
  %v6446 = vpop.f32.mrb[0].mxu0
  %v6447 = vadd.f32 0.0, %v6446
  %v6448 = vpop.f32.mrb[0].mxu0
  %v6449 = vpop.f32.mrb[0].mxu0
  %v6450 = vadd.f32 0.0, %v6449
  %v6451 = vpop.f32.mrb[0].mxu0
  %6452 = vmatprep.mubr.bf16.mxu0 0
  %6453 = vmatmul.mubr.bf16.gmra.mrb[0].mxu0 %v6264
  %v6454 = vpop.f32.mrb[0].mxu0
  %v6455 = vadd.f32 0.0, %v6454
  %v6456 = vpop.f32.mrb[0].mxu0
  %v6457 = vpop.f32.mrb[0].mxu0
  %v6458 = vadd.f32 0.0, %v6457
  %v6459 = vpop.f32.mrb[0].mxu0
  %6460 = vmatprep.mubr.bf16.mxu0 0
  %6461 = vmatmul.mubr.bf16.gmra.mrb[0].mxu0 %v6267
  %v6462 = vpop.f32.mrb[0].mxu0
  %v6463 = vadd.f32 0.0, %v6462
  %v6464 = vpop.f32.mrb[0].mxu0
  %v6465 = vpop.f32.mrb[0].mxu0
  %v6466 = vadd.f32 0.0, %v6465
  %v6467 = vpop.f32.mrb[0].mxu0
  %6468 = vmatprep.mubr.bf16.mxu0 0
  %6469 = vmatmul.mubr.bf16.gmra.mrb[0].mxu0 %v6270
  %v6470 = vpop.f32.mrb[0].mxu0
  %v6471 = vadd.f32 0.0, %v6470
  %v6472 = vpop.f32.mrb[0].mxu0
  %v6473 = vpop.f32.mrb[0].mxu0
  %v6474 = vadd.f32 0.0, %v6473
  %v6475 = vpop.f32.mrb[0].mxu0
  %6476 = vmatprep.mubr.bf16.mxu0 0
  %6477 = vmatmul.mubr.bf16.gmra.mrb[0].mxu0 %v6273
  %v6478 = vpop.f32.mrb[0].mxu0
  %v6479 = vadd.f32 0.0, %v6478
  %v6480 = vpop.f32.mrb[0].mxu0
  %v6481 = vpop.f32.mrb[0].mxu0
  %v6482 = vadd.f32 0.0, %v6481
  %v6483 = vpop.f32.mrb[0].mxu0
  %6484 = vmatprep.mubr.bf16.mxu0 0
  %6485 = vmatmul.mubr.bf16.gmra.mrb[0].mxu0 %v6276
  %v6486 = vpop.f32.mrb[0].mxu0
  %v6487 = vadd.f32 0.0, %v6486
  %v6488 = vpop.f32.mrb[0].mxu0
  %v6489 = vpop.f32.mrb[0].mxu0
  %v6490 = vadd.f32 0.0, %v6489
  %v6491 = vpop.f32.mrb[0].mxu0
  %6492 = vmatprep.mubr.bf16.mxu0 0
  %6493 = vmatmul.mubr.bf16.gmra.mrb[0].mxu0 %v6279
  %v6494 = vpop.f32.mrb[0].mxu0
  %v6495 = vadd.f32 0.0, %v6494
  %v6496 = vpop.f32.mrb[0].mxu0
  %v6497 = vpop.f32.mrb[0].mxu0
  %v6498 = vadd.f32 0.0, %v6497
  %v6499 = vpop.f32.mrb[0].mxu0
  %6500 = vmatprep.mubr.bf16.mxu0 0
  %6501 = vmatmul.mubr.bf16.gmra.mrb[0].mxu0 %v6282
  %v6502 = vpop.f32.mrb[0].mxu0
  %v6503 = vadd.f32 0.0, %v6502
  %v6504 = vpop.f32.mrb[0].mxu0
  %v6505 = vpop.f32.mrb[0].mxu0
  %v6506 = vadd.f32 0.0, %v6505
  %v6507 = vpop.f32.mrb[0].mxu0
  %6508 = vmatprep.mubr.bf16.mxu0 0
  %6509 = vmatmul.mubr.bf16.gmra.mrb[0].mxu0 %v6285
  %v6510 = vpop.f32.mrb[0].mxu0
  %v6511 = vadd.f32 0.0, %v6510
  %v6512 = vpop.f32.mrb[0].mxu0
  %v6513 = vpop.f32.mrb[0].mxu0
  %v6514 = vadd.f32 0.0, %v6513
  %v6515 = vpop.f32.mrb[0].mxu0
  %6516 = vmatprep.mubr.bf16.mxu0 0
  %6517 = vmatmul.mubr.bf16.gmra.mrb[0].mxu0 %v6288
  %v6518 = vpop.f32.mrb[0].mxu0
  %v6519 = vadd.f32 0.0, %v6518
  %v6520 = vpop.f32.mrb[0].mxu0
  %v6521 = vpop.f32.mrb[0].mxu0
  %v6522 = vadd.f32 0.0, %v6521
  %v6523 = vpop.f32.mrb[0].mxu0
  %6524 = vmatprep.mubr.bf16.mxu0 0
  %6525 = vmatmul.mubr.bf16.gmra.mrb[0].mxu0 %v6291
  %v6526 = vpop.f32.mrb[0].mxu0
  %v6527 = vadd.f32 0.0, %v6526
  %v6528 = vpop.f32.mrb[0].mxu0
  %v6529 = vpop.f32.mrb[0].mxu0
  %v6530 = vadd.f32 0.0, %v6529
  %v6531 = vpop.f32.mrb[0].mxu0
  %6532 = vmatprep.mubr.bf16.mxu0 0
  %6533 = vmatmul.mubr.bf16.gmra.mrb[0].mxu0 %v6294
  %v6534 = vpop.f32.mrb[0].mxu0
  %v6535 = vadd.f32 0.0, %v6534
  %v6536 = vpop.f32.mrb[0].mxu0
  %v6537 = vpop.f32.mrb[0].mxu0
  %v6538 = vadd.f32 0.0, %v6537
  %v6539 = vpop.f32.mrb[0].mxu0
  %6540 = vmatprep.mubr.bf16.mxu0 0
  %6541 = vmatmul.mubr.bf16.gmra.mrb[0].mxu0 %v6297
  %v6542 = vpop.f32.mrb[0].mxu0
  %v6543 = vadd.f32 0.0, %v6542
  %v6544 = vpop.f32.mrb[0].mxu0
  %v6545 = vpop.f32.mrb[0].mxu0
  %v6546 = vadd.f32 0.0, %v6545
  %v6547 = vpop.f32.mrb[0].mxu0
  %6548 = vmatprep.mubr.bf16.mxu0 0
  %6549 = vmatmul.mubr.bf16.gmra.mrb[0].mxu0 %v6300
  %v6550 = vpop.f32.mrb[0].mxu0
  %v6551 = vadd.f32 0.0, %v6550
  %v6552 = vpop.f32.mrb[0].mxu0
  %v6553 = vpop.f32.mrb[0].mxu0
  %v6554 = vadd.f32 0.0, %v6553
  %v6555 = vpop.f32.mrb[0].mxu0
  %6556 = vmatprep.mubr.bf16.mxu0 0
  %6557 = vmatmul.mubr.bf16.gmra.mrb[0].mxu0 %v6303
  %v6558 = vpop.f32.mrb[0].mxu0
  %v6559 = vadd.f32 0.0, %v6558
  %v6560 = vpop.f32.mrb[0].mxu0
  %v6561 = vpop.f32.mrb[0].mxu0
  %v6562 = vadd.f32 0.0, %v6561
  %v6563 = vpop.f32.mrb[0].mxu0
  %6564 = vmatprep.mubr.bf16.mxu0 0
  %6565 = vmatmul.mubr.bf16.gmra.mrb[0].mxu0 %v6306
  %v6566 = vpop.f32.mrb[0].mxu0
  %v6567 = vadd.f32 0.0, %v6566
  %v6568 = vpop.f32.mrb[0].mxu0
  %v6569 = vpop.f32.mrb[0].mxu0
  %v6570 = vadd.f32 0.0, %v6569
  %v6571 = vpop.f32.mrb[0].mxu0
  %6572 = vmatprep.mubr.bf16.mxu0 0
  %6573 = vmatmul.mubr.bf16.gmra.mrb[0].mxu0 %v6309
  %v6574 = vpop.f32.mrb[0].mxu0
  %v6575 = vadd.f32 0.0, %v6574
  %v6576 = vpop.f32.mrb[0].mxu0
  %v6577 = vpop.f32.mrb[0].mxu0
  %v6578 = vadd.f32 0.0, %v6577
  %v6579 = vpop.f32.mrb[0].mxu0
  %6580 = vmatprep.mubr.bf16.mxu0 0
  %6581 = vmatmul.mubr.bf16.gmra.mrb[0].mxu0 %v6312
  %v6582 = vpop.f32.mrb[0].mxu0
  %v6583 = vadd.f32 0.0, %v6582
  %v6584 = vpop.f32.mrb[0].mxu0
  %v6585 = vpop.f32.mrb[0].mxu0
  %v6586 = vadd.f32 0.0, %v6585
  %v6587 = vpop.f32.mrb[0].mxu0
  %6588 = vmatprep.mubr.bf16.mxu0 0
  %6589 = vmatmul.mubr.bf16.gmra.mrb[0].mxu0 %v6315
  %v6590 = vpop.f32.mrb[0].mxu0
  %v6591 = vadd.f32 0.0, %v6590
  %v6592 = vpop.f32.mrb[0].mxu0
  %v6593 = vpop.f32.mrb[0].mxu0
  %v6594 = vadd.f32 0.0, %v6593
  %v6595 = vpop.f32.mrb[0].mxu0
  %6596 = vmatprep.mubr.bf16.mxu0 0
  %6597 = vmatmul.mubr.bf16.gmra.mrb[0].mxu0 %v6318
  %v6598 = vpop.f32.mrb[0].mxu0
  %v6599 = vadd.f32 0.0, %v6598
  %v6600 = vpop.f32.mrb[0].mxu0
  %v6601 = vpop.f32.mrb[0].mxu0
  %v6602 = vadd.f32 0.0, %v6601
  %v6603 = vpop.f32.mrb[0].mxu0
  %6604 = vmatprep.mubr.bf16.mxu0 0
  %6605 = vmatmul.mubr.bf16.gmra.mrb[0].mxu0 %v6321
  %v6606 = vpop.f32.mrb[0].mxu0
  %v6607 = vadd.f32 0.0, %v6606
  %v6608 = vpop.f32.mrb[0].mxu0
  %v6609 = vpop.f32.mrb[0].mxu0
  %v6610 = vadd.f32 0.0, %v6609
  %v6611 = vpop.f32.mrb[0].mxu0
  %6612 = vmatprep.mubr.bf16.mxu0 0
  %6613 = vmatmul.mubr.bf16.gmra.mrb[0].mxu0 %v6324
  %v6614 = vpop.f32.mrb[0].mxu0
  %v6615 = vadd.f32 0.0, %v6614
  %v6616 = vpop.f32.mrb[0].mxu0
  %v6617 = vpop.f32.mrb[0].mxu0
  %v6618 = vadd.f32 0.0, %v6617
  %v6619 = vpop.f32.mrb[0].mxu0
  %6620 = vmatprep.mubr.bf16.mxu0 0
  %6621 = vmatmul.mubr.bf16.gmra.mrb[0].mxu0 %v6327
  %v6622 = vpop.f32.mrb[0].mxu0
  %v6623 = vadd.f32 0.0, %v6622
  %v6624 = vpop.f32.mrb[0].mxu0
  %v6625 = vpop.f32.mrb[0].mxu0
  %v6626 = vadd.f32 0.0, %v6625
  %v6627 = vpop.f32.mrb[0].mxu0
  %6628 = vmatprep.mubr.bf16.mxu0 0
  %6629 = vmatmul.mubr.bf16.gmra.mrb[0].mxu0 %v6330
  %v6630 = vpop.f32.mrb[0].mxu0
  %v6631 = vadd.f32 0.0, %v6630
  %v6632 = vpop.f32.mrb[0].mxu0
  %v6633 = vpop.f32.mrb[0].mxu0
  %v6634 = vadd.f32 0.0, %v6633
  %v6635 = vpop.f32.mrb[0].mxu0
  %6636 = vmatprep.mubr.bf16.mxu0 0
  %6637 = vmatmul.mubr.bf16.gmra.mrb[0].mxu0 %v6333
  %v6638 = vpop.f32.mrb[0].mxu0
  %v6639 = vadd.f32 0.0, %v6638
  %v6640 = vpop.f32.mrb[0].mxu0
  %v6641 = vpop.f32.mrb[0].mxu0
  %v6642 = vadd.f32 0.0, %v6641
  %v6643 = vpop.f32.mrb[0].mxu0
  %6644 = vmatprep.mubr.bf16.mxu0 0
  %6645 = vmatmul.mubr.bf16.gmra.mrb[0].mxu0 %v6336
  %v6646 = vpop.f32.mrb[0].mxu0
  %v6647 = vadd.f32 0.0, %v6646
  %v6648 = vpop.f32.mrb[0].mxu0
  %v6649 = vpop.f32.mrb[0].mxu0
  %v6650 = vadd.f32 0.0, %v6649
  %v6651 = vpop.f32.mrb[0].mxu0
  %6652 = vmatprep.mubr.bf16.mxu0 0
  %6653 = vmatmul.mubr.bf16.gmra.mrb[0].mxu0 %v6339
  %v6654 = vpop.f32.mrb[0].mxu0
  %v6655 = vadd.f32 0.0, %v6654
  %v6656 = vpop.f32.mrb[0].mxu0
  %v6657 = vpop.f32.mrb[0].mxu0
  %v6658 = vadd.f32 0.0, %v6657
  %v6659 = vpop.f32.mrb[0].mxu0
  %6660 = vmatprep.mubr.bf16.mxu0 0
  %6661 = vmatmul.mubr.bf16.gmra.mrb[0].mxu0 %v6342
  %v6662 = vpop.f32.mrb[0].mxu0
  %v6663 = vadd.f32 0.0, %v6662
  %v6664 = vpop.f32.mrb[0].mxu0
  %v6665 = vpop.f32.mrb[0].mxu0
  %v6666 = vadd.f32 0.0, %v6665
  %v6667 = vpop.f32.mrb[0].mxu0
  %6668 = vmatprep.mubr.bf16.mxu0 0
  %6669 = vmatmul.mubr.bf16.gmra.mrb[0].mxu0 %v6345
  %v6670 = vpop.f32.mrb[0].mxu0
  %v6671 = vadd.f32 0.0, %v6670
  %v6672 = vpop.f32.mrb[0].mxu0
  %v6673 = vpop.f32.mrb[0].mxu0
  %v6674 = vadd.f32 0.0, %v6673
  %v6675 = vpop.f32.mrb[0].mxu0
  %6676 = vmatprep.mubr.bf16.mxu0 0
  %6677 = vmatmul.mubr.bf16.gmra.mrb[0].mxu0 %v6348
  %v6678 = vpop.f32.mrb[0].mxu0
  %v6679 = vadd.f32 0.0, %v6678
  %v6680 = vpop.f32.mrb[0].mxu0
  %v6681 = vpop.f32.mrb[0].mxu0
  %v6682 = vadd.f32 0.0, %v6681
  %v6683 = vpop.f32.mrb[0].mxu0
  %6684 = vmatprep.mubr.bf16.mxu0 0
  %6685 = vmatmul.mubr.bf16.gmra.mrb[0].mxu0 %v6351
  %v6686 = vpop.f32.mrb[0].mxu0
  %v6687 = vadd.f32 0.0, %v6686
  %v6688 = vpop.f32.mrb[0].mxu0
  %v6689 = vpop.f32.mrb[0].mxu0
  %v6690 = vadd.f32 0.0, %v6689
  %v6691 = vpop.f32.mrb[0].mxu0
  %6692 = vmatprep.mubr.bf16.mxu0 0
  %6693 = vmatmul.mubr.bf16.gmra.mrb[0].mxu0 %v6354
  %v6694 = vpop.f32.mrb[0].mxu0
  %v6695 = vadd.f32 0.0, %v6694
  %v6696 = vpop.f32.mrb[0].mxu0
  %v6697 = vpop.f32.mrb[0].mxu0
  %v6698 = vadd.f32 0.0, %v6697
  %v6699 = vpop.f32.mrb[0].mxu0
  %6700 = vmatprep.mubr.bf16.mxu0 0
  %6701 = vmatmul.mubr.bf16.gmra.mrb[0].mxu0 %v6357
  %v6702 = vpop.f32.mrb[0].mxu0
  %v6703 = vadd.f32 0.0, %v6702
  %v6704 = vpop.f32.mrb[0].mxu0
  %v6705 = vpop.f32.mrb[0].mxu0
  %v6706 = vadd.f32 0.0, %v6705
  %v6707 = vpop.f32.mrb[0].mxu0
  %6708 = vmatprep.mubr.bf16.mxu0 0
  %6709 = vmatmul.mubr.bf16.gmra.mrb[0].mxu0 %v6360
  %v6710 = vpop.f32.mrb[0].mxu0
  %v6711 = vadd.f32 0.0, %v6710
  %v6712 = vpop.f32.mrb[0].mxu0
  %v6713 = vpop.f32.mrb[0].mxu0
  %v6714 = vadd.f32 0.0, %v6713
  %v6715 = vpop.f32.mrb[0].mxu0
  %6716 = vmatprep.mubr.bf16.mxu0 0
  %6717 = vmatmul.mubr.bf16.gmra.mrb[0].mxu0 %v6363
  %v6718 = vpop.f32.mrb[0].mxu0
  %v6719 = vadd.f32 0.0, %v6718
  %v6720 = vpop.f32.mrb[0].mxu0
  %v6721 = vpop.f32.mrb[0].mxu0
  %v6722 = vadd.f32 0.0, %v6721
  %v6723 = vpop.f32.mrb[0].mxu0
  %6724 = vmatprep.mubr.bf16.mxu0 0
  %6725 = vmatmul.mubr.bf16.gmra.mrb[0].mxu0 %v6366
  %v6726 = vpop.f32.mrb[0].mxu0
  %v6727 = vadd.f32 0.0, %v6726
  %v6728 = vpop.f32.mrb[0].mxu0
  %v6729 = vpop.f32.mrb[0].mxu0
  %v6730 = vadd.f32 0.0, %v6729
  %v6731 = vpop.f32.mrb[0].mxu0
  %6732 = vmatprep.mubr.bf16.mxu0 0
  %6733 = vmatmul.mubr.bf16.gmra.mrb[0].mxu0 %v6369
  %v6734 = vpop.f32.mrb[0].mxu0
  %v6735 = vadd.f32 0.0, %v6734
  %v6736 = vpop.f32.mrb[0].mxu0
  %v6737 = vpop.f32.mrb[0].mxu0
  %v6738 = vadd.f32 0.0, %v6737
  %v6739 = vpop.f32.mrb[0].mxu0
  %6740 = vmatprep.mubr.bf16.mxu0 0
  %6741 = vmatmul.mubr.bf16.gmra.mrb[0].mxu0 %v6372
  %v6742 = vpop.f32.mrb[0].mxu0
  %v6743 = vadd.f32 0.0, %v6742
  %v6744 = vpop.f32.mrb[0].mxu0
  %v6745 = vpop.f32.mrb[0].mxu0
  %v6746 = vadd.f32 0.0, %v6745
  %v6747 = vpop.f32.mrb[0].mxu0
  %6748 = vmatprep.mubr.bf16.mxu0 0
  %6749 = vmatmul.mubr.bf16.gmra.mrb[0].mxu0 %v6375
  %v6750 = vpop.f32.mrb[0].mxu0
  %v6751 = vadd.f32 0.0, %v6750
  %v6752 = vpop.f32.mrb[0].mxu0
  %v6753 = vpop.f32.mrb[0].mxu0
  %v6754 = vadd.f32 0.0, %v6753
  %v6755 = vpop.f32.mrb[0].mxu0
  %6756 = vmatprep.mubr.bf16.mxu0 0
  %6757 = vmatmul.mubr.bf16.gmra.mrb[0].mxu0 %v6378
  %v6758 = vpop.f32.mrb[0].mxu0
  %v6759 = vadd.f32 0.0, %v6758
  %v6760 = vpop.f32.mrb[0].mxu0
  %v6761 = vpop.f32.mrb[0].mxu0
  %v6762 = vadd.f32 0.0, %v6761
  %v6763 = vpop.f32.mrb[0].mxu0
  %6764 = vmatprep.mubr.bf16.mxu0 0
  %6765 = vmatmul.mubr.bf16.gmra.mrb[0].mxu0 %v6381
  %v6766 = vpop.f32.mrb[0].mxu0
  %v6767 = vadd.f32 0.0, %v6766
  %v6768 = vpop.f32.mrb[0].mxu0
  %v6769 = vpop.f32.mrb[0].mxu0
  %v6770 = vadd.f32 0.0, %v6769
  %v6771 = vpop.f32.mrb[0].mxu0
  %6772 = vmatprep.mubr.bf16.mxu0 0
  %6773 = vmatmul.mubr.bf16.gmra.mrb[0].mxu0 %v6384
  %v6774 = vpop.f32.mrb[0].mxu0
  %v6775 = vadd.f32 0.0, %v6774
  %v6776 = vpop.f32.mrb[0].mxu0
  %v6777 = vpop.f32.mrb[0].mxu0
  %v6778 = vadd.f32 0.0, %v6777
  %v6779 = vpop.f32.mrb[0].mxu0
  %6780 = vmatprep.mubr.bf16.mxu0 0
  %6781 = vmatmul.mubr.bf16.gmra.mrb[0].mxu0 %v6387
  %v6782 = vpop.f32.mrb[0].mxu0
  %v6783 = vadd.f32 0.0, %v6782
  %v6784 = vpop.f32.mrb[0].mxu0
  %v6785 = vpop.f32.mrb[0].mxu0
  %v6786 = vadd.f32 0.0, %v6785
  %v6787 = vpop.f32.mrb[0].mxu0
  %6788 = vmatprep.mubr.bf16.mxu0 0
  %6789 = vmatmul.mubr.bf16.gmra.mrb[0].mxu0 %v6390
  %v6790 = vpop.f32.mrb[0].mxu0
  %v6791 = vadd.f32 0.0, %v6790
  %v6792 = vpop.f32.mrb[0].mxu0
  %v6793 = vpop.f32.mrb[0].mxu0
  %v6794 = vadd.f32 0.0, %v6793
  %v6795 = vpop.f32.mrb[0].mxu0
  %6796 = vmatprep.mubr.bf16.mxu0 0
  %6797 = vmatmul.mubr.bf16.gmra.mrb[0].mxu0 %v6393
  %v6798 = vpop.f32.mrb[0].mxu0
  %v6799 = vadd.f32 0.0, %v6798
  %v6800 = vpop.f32.mrb[0].mxu0
  %v6801 = vpop.f32.mrb[0].mxu0
  %v6802 = vadd.f32 0.0, %v6801
  %v6803 = vpop.f32.mrb[0].mxu0
  %6804 = vmatprep.mubr.bf16.mxu0 0
  %6805 = vmatmul.mubr.bf16.gmra.mrb[0].mxu0 %v6396
  %v6806 = vpop.f32.mrb[0].mxu0
  %v6807 = vadd.f32 0.0, %v6806
  %v6808 = vpop.f32.mrb[0].mxu0
  %v6809 = vpop.f32.mrb[0].mxu0
  %v6810 = vadd.f32 0.0, %v6809
  %v6811 = vpop.f32.mrb[0].mxu0
  %6812 = vmatprep.mubr.bf16.mxu0 0
  %6813 = vmatmul.mubr.bf16.gmra.mrb[0].mxu0 %v6399
  %v6814 = vpop.f32.mrb[0].mxu0
  %v6815 = vadd.f32 0.0, %v6814
  %v6816 = vpop.f32.mrb[0].mxu0
  %v6817 = vpop.f32.mrb[0].mxu0
  %v6818 = vadd.f32 0.0, %v6817
  %v6819 = vpop.f32.mrb[0].mxu0
  %6820 = vdwg.mxu0
  %v6821 = vld [vmem:[#allocation2] sm:$0xff]
  %v6822 = vld [vmem:[#allocation2 + $0x8] sm:$0xff]
  %v6823 = vld [vmem:[#allocation2 + $0x10] sm:$0xff]
  %v6824 = vld [vmem:[#allocation2 + $0x18] sm:$0xff]
  %v6825 = vld [vmem:[#allocation2 + $0x20] sm:$0xff]
  %v6826 = vld [vmem:[#allocation2 + $0x28] sm:$0xff]
  %v6827 = vld [vmem:[#allocation2 + $0x30] sm:$0xff]
  %v6828 = vld [vmem:[#allocation2 + $0x38] sm:$0xff]
  %v6829 = vld [vmem:[#allocation2 + $0x40] sm:$0xff]
  %v6830 = vld [vmem:[#allocation2 + $0x48] sm:$0xff]
  %v6831 = vld [vmem:[#allocation2 + $0x50] sm:$0xff]
  %v6832 = vld [vmem:[#allocation2 + $0x58] sm:$0xff]
  %v6833 = vld [vmem:[#allocation2 + $0x60] sm:$0xff]
  %v6834 = vld [vmem:[#allocation2 + $0x68] sm:$0xff]
  %v6835 = vld [vmem:[#allocation2 + $0x70] sm:$0xff]
  %v6836 = vld [vmem:[#allocation2 + $0x78] sm:$0xff]
  %v6837 = vld [vmem:[#allocation2 + $0x80] sm:$0xff]
  %v6838 = vld [vmem:[#allocation2 + $0x88] sm:$0xff]
  %v6839 = vld [vmem:[#allocation2 + $0x90] sm:$0xff]
  %v6840 = vld [vmem:[#allocation2 + $0x98] sm:$0xff]
  %v6841 = vld [vmem:[#allocation2 + $0xa0] sm:$0xff]
  %v6842 = vld [vmem:[#allocation2 + $0xa8] sm:$0xff]
  %v6843 = vld [vmem:[#allocation2 + $0xb0] sm:$0xff]
  %v6844 = vld [vmem:[#allocation2 + $0xb8] sm:$0xff]
  %v6845 = vld [vmem:[#allocation2 + $0xc0] sm:$0xff]
  %v6846 = vld [vmem:[#allocation2 + $0xc8] sm:$0xff]
  %v6847 = vld [vmem:[#allocation2 + $0xd0] sm:$0xff]
  %v6848 = vld [vmem:[#allocation2 + $0xd8] sm:$0xff]
  %v6849 = vld [vmem:[#allocation2 + $0xe0] sm:$0xff]
  %v6850 = vld [vmem:[#allocation2 + $0xe8] sm:$0xff]
  %v6851 = vld [vmem:[#allocation2 + $0xf0] sm:$0xff]
  %v6852 = vld [vmem:[#allocation2 + $0xf8] sm:$0xff]
  %v6853 = vld [vmem:[#allocation2 + $0x100] sm:$0xff]
  %v6854 = vld [vmem:[#allocation2 + $0x108] sm:$0xff]
  %v6855 = vld [vmem:[#allocation2 + $0x110] sm:$0xff]
  %v6856 = vld [vmem:[#allocation2 + $0x118] sm:$0xff]
  %v6857 = vld [vmem:[#allocation2 + $0x120] sm:$0xff]
  %v6858 = vld [vmem:[#allocation2 + $0x128] sm:$0xff]
  %v6859 = vld [vmem:[#allocation2 + $0x130] sm:$0xff]
  %v6860 = vld [vmem:[#allocation2 + $0x138] sm:$0xff]
  %v6861 = vld [vmem:[#allocation2 + $0x140] sm:$0xff]
  %v6862 = vld [vmem:[#allocation2 + $0x148] sm:$0xff]
  %v6863 = vld [vmem:[#allocation2 + $0x150] sm:$0xff]
  %v6864 = vld [vmem:[#allocation2 + $0x158] sm:$0xff]
  %v6865 = vld [vmem:[#allocation2 + $0x160] sm:$0xff]
  %v6866 = vld [vmem:[#allocation2 + $0x168] sm:$0xff]
  %v6867 = vld [vmem:[#allocation2 + $0x170] sm:$0xff]
  %v6868 = vld [vmem:[#allocation2 + $0x178] sm:$0xff]
  %v6869 = vld [vmem:[#allocation2 + $0x180] sm:$0xff]
  %v6870 = vld [vmem:[#allocation2 + $0x188] sm:$0xff]
  %v6871 = vld [vmem:[#allocation2 + $0x190] sm:$0xff]
  %v6872 = vld [vmem:[#allocation2 + $0x198] sm:$0xff]
  %v6873 = vld [vmem:[#allocation2 + $0x1a0] sm:$0xff]
  %v6874 = vld [vmem:[#allocation2 + $0x1a8] sm:$0xff]
  %v6875 = vld [vmem:[#allocation2 + $0x1b0] sm:$0xff]
  %v6876 = vld [vmem:[#allocation2 + $0x1b8] sm:$0xff]
  %v6877 = vld [vmem:[#allocation2 + $0x1c0] sm:$0xff]
  %v6878 = vld [vmem:[#allocation2 + $0x1c8] sm:$0xff]
  %v6879 = vld [vmem:[#allocation2 + $0x1d0] sm:$0xff]
  %v6880 = vld [vmem:[#allocation2 + $0x1d8] sm:$0xff]
  %v6881 = vld [vmem:[#allocation2 + $0x1e0] sm:$0xff]
  %v6882 = vld [vmem:[#allocation2 + $0x1e8] sm:$0xff]
  %v6883 = vld [vmem:[#allocation2 + $0x1f0] sm:$0xff]
  %v6884 = vld [vmem:[#allocation2 + $0x1f8] sm:$0xff]
  %v6885 = vld [vmem:[#allocation2 + $0x200] sm:$0xff]
  %v6886 = vld [vmem:[#allocation2 + $0x208] sm:$0xff]
  %v6887 = vld [vmem:[#allocation2 + $0x210] sm:$0xff]
  %v6888 = vld [vmem:[#allocation2 + $0x218] sm:$0xff]
  %v6889 = vld [vmem:[#allocation2 + $0x220] sm:$0xff]
  %v6890 = vld [vmem:[#allocation2 + $0x228] sm:$0xff]
  %v6891 = vld [vmem:[#allocation2 + $0x230] sm:$0xff]
  %v6892 = vld [vmem:[#allocation2 + $0x238] sm:$0xff]
  %v6893 = vld [vmem:[#allocation2 + $0x240] sm:$0xff]
  %v6894 = vld [vmem:[#allocation2 + $0x248] sm:$0xff]
  %v6895 = vld [vmem:[#allocation2 + $0x250] sm:$0xff]
  %v6896 = vld [vmem:[#allocation2 + $0x258] sm:$0xff]
  %v6897 = vld [vmem:[#allocation2 + $0x260] sm:$0xff]
  %v6898 = vld [vmem:[#allocation2 + $0x268] sm:$0xff]
  %v6899 = vld [vmem:[#allocation2 + $0x270] sm:$0xff]
  %v6900 = vld [vmem:[#allocation2 + $0x278] sm:$0xff]
  %v6901 = vld [vmem:[#allocation2 + $0x280] sm:$0xff]
  %v6902 = vld [vmem:[#allocation2 + $0x288] sm:$0xff]
  %v6903 = vld [vmem:[#allocation2 + $0x290] sm:$0xff]
  %v6904 = vld [vmem:[#allocation2 + $0x298] sm:$0xff]
  %v6905 = vld [vmem:[#allocation2 + $0x2a0] sm:$0xff]
  %v6906 = vld [vmem:[#allocation2 + $0x2a8] sm:$0xff]
  %v6907 = vld [vmem:[#allocation2 + $0x2b0] sm:$0xff]
  %v6908 = vld [vmem:[#allocation2 + $0x2b8] sm:$0xff]
  %v6909 = vld [vmem:[#allocation2 + $0x2c0] sm:$0xff]
  %v6910 = vld [vmem:[#allocation2 + $0x2c8] sm:$0xff]
  %v6911 = vld [vmem:[#allocation2 + $0x2d0] sm:$0xff]
  %v6912 = vld [vmem:[#allocation2 + $0x2d8] sm:$0xff]
  %v6913 = vld [vmem:[#allocation2 + $0x2e0] sm:$0xff]
  %v6914 = vld [vmem:[#allocation2 + $0x2e8] sm:$0xff]
  %v6915 = vld [vmem:[#allocation2 + $0x2f0] sm:$0xff]
  %v6916 = vld [vmem:[#allocation2 + $0x2f8] sm:$0xff]
  %v6917 = vadd.f32 %v6821, %v6439
  %v6918 = vadd.f32 %v6822, %v6442
  %v6919 = vadd.f32 %v6823, %v6447
  %v6920 = vadd.f32 %v6824, %v6450
  %v6921 = vadd.f32 %v6825, %v6455
  %v6922 = vadd.f32 %v6826, %v6458
  %v6923 = vadd.f32 %v6827, %v6463
  %v6924 = vadd.f32 %v6828, %v6466
  %v6925 = vadd.f32 %v6829, %v6471
  %v6926 = vadd.f32 %v6830, %v6474
  %v6927 = vadd.f32 %v6831, %v6479
  %v6928 = vadd.f32 %v6832, %v6482
  %v6929 = vadd.f32 %v6833, %v6487
  %v6930 = vadd.f32 %v6834, %v6490
  %v6931 = vadd.f32 %v6835, %v6495
  %v6932 = vadd.f32 %v6836, %v6498
  %v6933 = vadd.f32 %v6837, %v6503
  %v6934 = vadd.f32 %v6838, %v6506
  %v6935 = vadd.f32 %v6839, %v6511
  %v6936 = vadd.f32 %v6840, %v6514
  %v6937 = vadd.f32 %v6841, %v6519
  %v6938 = vadd.f32 %v6842, %v6522
  %v6939 = vadd.f32 %v6843, %v6527
  %v6940 = vadd.f32 %v6844, %v6530
  %v6941 = vadd.f32 %v6845, %v6535
  %v6942 = vadd.f32 %v6846, %v6538
  %v6943 = vadd.f32 %v6847, %v6543
  %v6944 = vadd.f32 %v6848, %v6546
  %v6945 = vadd.f32 %v6849, %v6551
  %v6946 = vadd.f32 %v6850, %v6554
  %v6947 = vadd.f32 %v6851, %v6559
  %v6948 = vadd.f32 %v6852, %v6562
  %v6949 = vadd.f32 %v6853, %v6567
  %v6950 = vadd.f32 %v6854, %v6570
  %v6951 = vadd.f32 %v6855, %v6575
  %v6952 = vadd.f32 %v6856, %v6578
  %v6953 = vadd.f32 %v6857, %v6583
  %v6954 = vadd.f32 %v6858, %v6586
  %v6955 = vadd.f32 %v6859, %v6591
  %v6956 = vadd.f32 %v6860, %v6594
  %v6957 = vadd.f32 %v6861, %v6599
  %v6958 = vadd.f32 %v6862, %v6602
  %v6959 = vadd.f32 %v6863, %v6607
  %v6960 = vadd.f32 %v6864, %v6610
  %v6961 = vadd.f32 %v6865, %v6615
  %v6962 = vadd.f32 %v6866, %v6618
  %v6963 = vadd.f32 %v6867, %v6623
  %v6964 = vadd.f32 %v6868, %v6626
  %v6965 = vadd.f32 %v6869, %v6631
  %v6966 = vadd.f32 %v6870, %v6634
  %v6967 = vadd.f32 %v6871, %v6639
  %v6968 = vadd.f32 %v6872, %v6642
  %v6969 = vadd.f32 %v6873, %v6647
  %v6970 = vadd.f32 %v6874, %v6650
  %v6971 = vadd.f32 %v6875, %v6655
  %v6972 = vadd.f32 %v6876, %v6658
  %v6973 = vadd.f32 %v6877, %v6663
  %v6974 = vadd.f32 %v6878, %v6666
  %v6975 = vadd.f32 %v6879, %v6671
  %v6976 = vadd.f32 %v6880, %v6674
  %v6977 = vadd.f32 %v6881, %v6679
  %v6978 = vadd.f32 %v6882, %v6682
  %v6979 = vadd.f32 %v6883, %v6687
  %v6980 = vadd.f32 %v6884, %v6690
  %v6981 = vadd.f32 %v6885, %v6695
  %v6982 = vadd.f32 %v6886, %v6698
  %v6983 = vadd.f32 %v6887, %v6703
  %v6984 = vadd.f32 %v6888, %v6706
  %v6985 = vadd.f32 %v6889, %v6711
  %v6986 = vadd.f32 %v6890, %v6714
  %v6987 = vadd.f32 %v6891, %v6719
  %v6988 = vadd.f32 %v6892, %v6722
  %v6989 = vadd.f32 %v6893, %v6727
  %v6990 = vadd.f32 %v6894, %v6730
  %v6991 = vadd.f32 %v6895, %v6735
  %v6992 = vadd.f32 %v6896, %v6738
  %v6993 = vadd.f32 %v6897, %v6743
  %v6994 = vadd.f32 %v6898, %v6746
  %v6995 = vadd.f32 %v6899, %v6751
  %v6996 = vadd.f32 %v6900, %v6754
  %v6997 = vadd.f32 %v6901, %v6759
  %v6998 = vadd.f32 %v6902, %v6762
  %v6999 = vadd.f32 %v6903, %v6767
  %v7000 = vadd.f32 %v6904, %v6770
  %v7001 = vadd.f32 %v6905, %v6775
  %v7002 = vadd.f32 %v6906, %v6778
  %v7003 = vadd.f32 %v6907, %v6783
  %v7004 = vadd.f32 %v6908, %v6786
  %v7005 = vadd.f32 %v6909, %v6791
  %v7006 = vadd.f32 %v6910, %v6794
  %v7007 = vadd.f32 %v6911, %v6799
  %v7008 = vadd.f32 %v6912, %v6802
  %v7009 = vadd.f32 %v6913, %v6807
  %v7010 = vadd.f32 %v6914, %v6810
  %v7011 = vadd.f32 %v6915, %v6815
  %v7012 = vadd.f32 %v6916, %v6818
  %7013 = vst [vmem:[#allocation2] sm:$0xff] %v6917
  %7014 = vst [vmem:[#allocation2 + $0x8] sm:$0xff] %v6918
  %7015 = vst [vmem:[#allocation2 + $0x10] sm:$0xff] %v6919
  %7016 = vst [vmem:[#allocation2 + $0x18] sm:$0xff] %v6920
  %7017 = vst [vmem:[#allocation2 + $0x20] sm:$0xff] %v6921
  %7018 = vst [vmem:[#allocation2 + $0x28] sm:$0xff] %v6922
  %7019 = vst [vmem:[#allocation2 + $0x30] sm:$0xff] %v6923
  %7020 = vst [vmem:[#allocation2 + $0x38] sm:$0xff] %v6924
  %7021 = vst [vmem:[#allocation2 + $0x40] sm:$0xff] %v6925
  %7022 = vst [vmem:[#allocation2 + $0x48] sm:$0xff] %v6926
  %7023 = vst [vmem:[#allocation2 + $0x50] sm:$0xff] %v6927
  %7024 = vst [vmem:[#allocation2 + $0x58] sm:$0xff] %v6928
  %7025 = vst [vmem:[#allocation2 + $0x60] sm:$0xff] %v6929
  %7026 = vst [vmem:[#allocation2 + $0x68] sm:$0xff] %v6930
  %7027 = vst [vmem:[#allocation2 + $0x70] sm:$0xff] %v6931
  %7028 = vst [vmem:[#allocation2 + $0x78] sm:$0xff] %v6932
  %7029 = vst [vmem:[#allocation2 + $0x80] sm:$0xff] %v6933
  %7030 = vst [vmem:[#allocation2 + $0x88] sm:$0xff] %v6934
  %7031 = vst [vmem:[#allocation2 + $0x90] sm:$0xff] %v6935
  %7032 = vst [vmem:[#allocation2 + $0x98] sm:$0xff] %v6936
  %7033 = vst [vmem:[#allocation2 + $0xa0] sm:$0xff] %v6937
  %7034 = vst [vmem:[#allocation2 + $0xa8] sm:$0xff] %v6938
  %7035 = vst [vmem:[#allocation2 + $0xb0] sm:$0xff] %v6939
  %7036 = vst [vmem:[#allocation2 + $0xb8] sm:$0xff] %v6940
  %7037 = vst [vmem:[#allocation2 + $0xc0] sm:$0xff] %v6941
  %7038 = vst [vmem:[#allocation2 + $0xc8] sm:$0xff] %v6942
  %7039 = vst [vmem:[#allocation2 + $0xd0] sm:$0xff] %v6943
  %7040 = vst [vmem:[#allocation2 + $0xd8] sm:$0xff] %v6944
  %7041 = vst [vmem:[#allocation2 + $0xe0] sm:$0xff] %v6945
  %7042 = vst [vmem:[#allocation2 + $0xe8] sm:$0xff] %v6946
  %7043 = vst [vmem:[#allocation2 + $0xf0] sm:$0xff] %v6947
  %7044 = vst [vmem:[#allocation2 + $0xf8] sm:$0xff] %v6948
  %7045 = vst [vmem:[#allocation2 + $0x100] sm:$0xff] %v6949
  %7046 = vst [vmem:[#allocation2 + $0x108] sm:$0xff] %v6950
  %7047 = vst [vmem:[#allocation2 + $0x110] sm:$0xff] %v6951
  %7048 = vst [vmem:[#allocation2 + $0x118] sm:$0xff] %v6952
  %7049 = vst [vmem:[#allocation2 + $0x120] sm:$0xff] %v6953
  %7050 = vst [vmem:[#allocation2 + $0x128] sm:$0xff] %v6954
  %7051 = vst [vmem:[#allocation2 + $0x130] sm:$0xff] %v6955
  %7052 = vst [vmem:[#allocation2 + $0x138] sm:$0xff] %v6956
  %7053 = vst [vmem:[#allocation2 + $0x140] sm:$0xff] %v6957
  %7054 = vst [vmem:[#allocation2 + $0x148] sm:$0xff] %v6958
  %7055 = vst [vmem:[#allocation2 + $0x150] sm:$0xff] %v6959
  %7056 = vst [vmem:[#allocation2 + $0x158] sm:$0xff] %v6960
  %7057 = vst [vmem:[#allocation2 + $0x160] sm:$0xff] %v6961
  %7058 = vst [vmem:[#allocation2 + $0x168] sm:$0xff] %v6962
  %7059 = vst [vmem:[#allocation2 + $0x170] sm:$0xff] %v6963
  %7060 = vst [vmem:[#allocation2 + $0x178] sm:$0xff] %v6964
  %7061 = vst [vmem:[#allocation2 + $0x180] sm:$0xff] %v6965
  %7062 = vst [vmem:[#allocation2 + $0x188] sm:$0xff] %v6966
  %7063 = vst [vmem:[#allocation2 + $0x190] sm:$0xff] %v6967
  %7064 = vst [vmem:[#allocation2 + $0x198] sm:$0xff] %v6968
  %7065 = vst [vmem:[#allocation2 + $0x1a0] sm:$0xff] %v6969
  %7066 = vst [vmem:[#allocation2 + $0x1a8] sm:$0xff] %v6970
  %7067 = vst [vmem:[#allocation2 + $0x1b0] sm:$0xff] %v6971
  %7068 = vst [vmem:[#allocation2 + $0x1b8] sm:$0xff] %v6972
  %7069 = vst [vmem:[#allocation2 + $0x1c0] sm:$0xff] %v6973
  %7070 = vst [vmem:[#allocation2 + $0x1c8] sm:$0xff] %v6974
  %7071 = vst [vmem:[#allocation2 + $0x1d0] sm:$0xff] %v6975
  %7072 = vst [vmem:[#allocation2 + $0x1d8] sm:$0xff] %v6976
  %7073 = vst [vmem:[#allocation2 + $0x1e0] sm:$0xff] %v6977
  %7074 = vst [vmem:[#allocation2 + $0x1e8] sm:$0xff] %v6978
  %7075 = vst [vmem:[#allocation2 + $0x1f0] sm:$0xff] %v6979
  %7076 = vst [vmem:[#allocation2 + $0x1f8] sm:$0xff] %v6980
  %7077 = vst [vmem:[#allocation2 + $0x200] sm:$0xff] %v6981
  %7078 = vst [vmem:[#allocation2 + $0x208] sm:$0xff] %v6982
  %7079 = vst [vmem:[#allocation2 + $0x210] sm:$0xff] %v6983
  %7080 = vst [vmem:[#allocation2 + $0x218] sm:$0xff] %v6984
  %7081 = vst [vmem:[#allocation2 + $0x220] sm:$0xff] %v6985
  %7082 = vst [vmem:[#allocation2 + $0x228] sm:$0xff] %v6986
  %7083 = vst [vmem:[#allocation2 + $0x230] sm:$0xff] %v6987
  %7084 = vst [vmem:[#allocation2 + $0x238] sm:$0xff] %v6988
  %7085 = vst [vmem:[#allocation2 + $0x240] sm:$0xff] %v6989
  %7086 = vst [vmem:[#allocation2 + $0x248] sm:$0xff] %v6990
  %7087 = vst [vmem:[#allocation2 + $0x250] sm:$0xff] %v6991
  %7088 = vst [vmem:[#allocation2 + $0x258] sm:$0xff] %v6992
  %7089 = vst [vmem:[#allocation2 + $0x260] sm:$0xff] %v6993
  %7090 = vst [vmem:[#allocation2 + $0x268] sm:$0xff] %v6994
  %7091 = vst [vmem:[#allocation2 + $0x270] sm:$0xff] %v6995
  %7092 = vst [vmem:[#allocation2 + $0x278] sm:$0xff] %v6996
  %7093 = vst [vmem:[#allocation2 + $0x280] sm:$0xff] %v6997
  %7094 = vst [vmem:[#allocation2 + $0x288] sm:$0xff] %v6998
  %7095 = vst [vmem:[#allocation2 + $0x290] sm:$0xff] %v6999
  %7096 = vst [vmem:[#allocation2 + $0x298] sm:$0xff] %v7000
  %7097 = vst [vmem:[#allocation2 + $0x2a0] sm:$0xff] %v7001
  %7098 = vst [vmem:[#allocation2 + $0x2a8] sm:$0xff] %v7002
  %7099 = vst [vmem:[#allocation2 + $0x2b0] sm:$0xff] %v7003
  %7100 = vst [vmem:[#allocation2 + $0x2b8] sm:$0xff] %v7004
  %7101 = vst [vmem:[#allocation2 + $0x2c0] sm:$0xff] %v7005
  %7102 = vst [vmem:[#allocation2 + $0x2c8] sm:$0xff] %v7006
  %7103 = vst [vmem:[#allocation2 + $0x2d0] sm:$0xff] %v7007
  %7104 = vst [vmem:[#allocation2 + $0x2d8] sm:$0xff] %v7008
  %7105 = vst [vmem:[#allocation2 + $0x2e0] sm:$0xff] %v7009
  %7106 = vst [vmem:[#allocation2 + $0x2e8] sm:$0xff] %v7010
  %7107 = vst [vmem:[#allocation2 + $0x2f0] sm:$0xff] %v7011
  %7108 = vst [vmem:[#allocation2 + $0x2f8] sm:$0xff] %v7012
  %v7109 = vld [vmem:[%s0 + $0x25] sm:$0xff]
  %v7110 = vld [vmem:[%s0 + $0x2d] sm:$0xff]
  %v7111 = vld [vmem:[%s0 + $0x35] sm:$0xff]
  %v7112 = vld [vmem:[%s0 + $0x3d] sm:$0xff]
  %v7113 = vld [vmem:[%s0 + $0x45] sm:$0xff]
  %v7114 = vld [vmem:[%s0 + $0x4d] sm:$0xff]
  %v7115 = vld [vmem:[%s0 + $0x55] sm:$0xff]
  %v7116 = vld [vmem:[%s0 + $0x5d] sm:$0xff]
  %v7117 = vld [vmem:[%s0 + $0x65] sm:$0xff]
  %v7118 = vld [vmem:[%s0 + $0x6d] sm:$0xff]
  %v7119 = vld [vmem:[%s0 + $0x75] sm:$0xff]
  %v7120 = vld [vmem:[%s0 + $0x7d] sm:$0xff]
  %v7121 = vld [vmem:[%s0 + $0x85] sm:$0xff]
  %v7122 = vld [vmem:[%s0 + $0x8d] sm:$0xff]
  %v7123 = vld [vmem:[%s0 + $0x95] sm:$0xff]
  %v7124 = vld [vmem:[%s0 + $0x9d] sm:$0xff]
  %v7125 = vld [vmem:[%s0 + $0xa5] sm:$0xff]
  %v7126 = vld [vmem:[%s0 + $0xad] sm:$0xff]
  %v7127 = vld [vmem:[%s0 + $0xb5] sm:$0xff]
  %v7128 = vld [vmem:[%s0 + $0xbd] sm:$0xff]
  %v7129 = vld [vmem:[%s0 + $0xc5] sm:$0xff]
  %v7130 = vld [vmem:[%s0 + $0xcd] sm:$0xff]
  %v7131 = vld [vmem:[%s0 + $0xd5] sm:$0xff]
  %v7132 = vld [vmem:[%s0 + $0xdd] sm:$0xff]
  %v7133 = vld [vmem:[%s0 + $0xe5] sm:$0xff]
  %v7134 = vld [vmem:[%s0 + $0xed] sm:$0xff]
  %v7135 = vld [vmem:[%s0 + $0xf5] sm:$0xff]
  %v7136 = vld [vmem:[%s0 + $0xfd] sm:$0xff]
  %v7137 = vld [vmem:[%s0 + $0x105] sm:$0xff]
  %v7138 = vld [vmem:[%s0 + $0x10d] sm:$0xff]
  %v7139 = vld [vmem:[%s0 + $0x115] sm:$0xff]
  %v7140 = vld [vmem:[%s0 + $0x11d] sm:$0xff]
  %v7141 = vld [vmem:[%s0 + $0x125] sm:$0xff]
  %v7142 = vld [vmem:[%s0 + $0x12d] sm:$0xff]
  %v7143 = vld [vmem:[%s0 + $0x135] sm:$0xff]
  %v7144 = vld [vmem:[%s0 + $0x13d] sm:$0xff]
  %v7145 = vld [vmem:[%s0 + $0x145] sm:$0xff]
  %v7146 = vld [vmem:[%s0 + $0x14d] sm:$0xff]
  %v7147 = vld [vmem:[%s0 + $0x155] sm:$0xff]
  %v7148 = vld [vmem:[%s0 + $0x15d] sm:$0xff]
  %v7149 = vld [vmem:[%s0 + $0x165] sm:$0xff]
  %v7150 = vld [vmem:[%s0 + $0x16d] sm:$0xff]
  %v7151 = vld [vmem:[%s0 + $0x175] sm:$0xff]
  %v7152 = vld [vmem:[%s0 + $0x17d] sm:$0xff]
  %v7153 = vld [vmem:[%s0 + $0x185] sm:$0xff]
  %v7154 = vld [vmem:[%s0 + $0x18d] sm:$0xff]
  %v7155 = vld [vmem:[%s0 + $0x195] sm:$0xff]
  %v7156 = vld [vmem:[%s0 + $0x19d] sm:$0xff]
  %v7157 = vld [vmem:[%s0 + $0x1a5] sm:$0xff]
  %v7158 = vld [vmem:[%s0 + $0x1ad] sm:$0xff]
  %v7159 = vld [vmem:[%s0 + $0x1b5] sm:$0xff]
  %v7160 = vld [vmem:[%s0 + $0x1bd] sm:$0xff]
  %v7161 = vld [vmem:[%s0 + $0x1c5] sm:$0xff]
  %v7162 = vld [vmem:[%s0 + $0x1cd] sm:$0xff]
  %v7163 = vld [vmem:[%s0 + $0x1d5] sm:$0xff]
  %v7164 = vld [vmem:[%s0 + $0x1dd] sm:$0xff]
  %v7165 = vld [vmem:[%s0 + $0x1e5] sm:$0xff]
  %v7166 = vld [vmem:[%s0 + $0x1ed] sm:$0xff]
  %v7167 = vld [vmem:[%s0 + $0x1f5] sm:$0xff]
  %v7168 = vld [vmem:[%s0 + $0x1fd] sm:$0xff]
  %v7169 = vld [vmem:[%s0 + $0x205] sm:$0xff]
  %v7170 = vld [vmem:[%s0 + $0x20d] sm:$0xff]
  %v7171 = vld [vmem:[%s0 + $0x215] sm:$0xff]
  %v7172 = vld [vmem:[%s0 + $0x21d] sm:$0xff]
  %v7173 = vld [vmem:[%s0 + $0x225] sm:$0xff]
  %v7174 = vld [vmem:[%s0 + $0x22d] sm:$0xff]
  %v7175 = vld [vmem:[%s0 + $0x235] sm:$0xff]
  %v7176 = vld [vmem:[%s0 + $0x23d] sm:$0xff]
  %v7177 = vld [vmem:[%s0 + $0x245] sm:$0xff]
  %v7178 = vld [vmem:[%s0 + $0x24d] sm:$0xff]
  %v7179 = vld [vmem:[%s0 + $0x255] sm:$0xff]
  %v7180 = vld [vmem:[%s0 + $0x25d] sm:$0xff]
  %v7181 = vld [vmem:[%s0 + $0x265] sm:$0xff]
  %v7182 = vld [vmem:[%s0 + $0x26d] sm:$0xff]
  %v7183 = vld [vmem:[%s0 + $0x275] sm:$0xff]
  %v7184 = vld [vmem:[%s0 + $0x27d] sm:$0xff]
  %v7185 = vld [vmem:[%s0 + $0x285] sm:$0xff]
  %v7186 = vld [vmem:[%s0 + $0x28d] sm:$0xff]
  %v7187 = vld [vmem:[%s0 + $0x295] sm:$0xff]
  %v7188 = vld [vmem:[%s0 + $0x29d] sm:$0xff]
  %v7189 = vld [vmem:[%s0 + $0x2a5] sm:$0xff]
  %v7190 = vld [vmem:[%s0 + $0x2ad] sm:$0xff]
  %v7191 = vld [vmem:[%s0 + $0x2b5] sm:$0xff]
  %v7192 = vld [vmem:[%s0 + $0x2bd] sm:$0xff]
  %v7193 = vld [vmem:[%s0 + $0x2c5] sm:$0xff]
  %v7194 = vld [vmem:[%s0 + $0x2cd] sm:$0xff]
  %v7195 = vld [vmem:[%s0 + $0x2d5] sm:$0xff]
  %v7196 = vld [vmem:[%s0 + $0x2dd] sm:$0xff]
  %v7197 = vld [vmem:[%s0 + $0x2e5] sm:$0xff]
  %v7198 = vld [vmem:[%s0 + $0x2ed] sm:$0xff]
  %v7199 = vld [vmem:[%s0 + $0x2f5] sm:$0xff]
  %v7200 = vld [vmem:[%s0 + $0x2fd] sm:$0xff]
  %v7201 = vld [vmem:[%s0 + $0x305] sm:$0xff]
  %v7202 = vld [vmem:[%s0 + $0x30d] sm:$0xff]
  %v7203 = vld [vmem:[%s0 + $0x315] sm:$0xff]
  %v7204 = vld [vmem:[%s0 + $0x31d] sm:$0xff]
  %v7205 = vpack.c.bf16 %v7110, %v7109
  %v7206 = vpack.c.bf16 %v7112, %v7111
  %v7207 = vpack.c.bf16 %v7114, %v7113
  %v7208 = vpack.c.bf16 %v7116, %v7115
  %v7209 = vpack.c.bf16 %v7118, %v7117
  %v7210 = vpack.c.bf16 %v7120, %v7119
  %v7211 = vpack.c.bf16 %v7122, %v7121
  %v7212 = vpack.c.bf16 %v7124, %v7123
  %v7213 = vpack.c.bf16 %v7126, %v7125
  %v7214 = vpack.c.bf16 %v7128, %v7127
  %v7215 = vpack.c.bf16 %v7130, %v7129
  %v7216 = vpack.c.bf16 %v7132, %v7131
  %v7217 = vpack.c.bf16 %v7134, %v7133
  %v7218 = vpack.c.bf16 %v7136, %v7135
  %v7219 = vpack.c.bf16 %v7138, %v7137
  %v7220 = vpack.c.bf16 %v7140, %v7139
  %v7221 = vpack.c.bf16 %v7142, %v7141
  %v7222 = vpack.c.bf16 %v7144, %v7143
  %v7223 = vpack.c.bf16 %v7146, %v7145
  %v7224 = vpack.c.bf16 %v7148, %v7147
  %v7225 = vpack.c.bf16 %v7150, %v7149
  %v7226 = vpack.c.bf16 %v7152, %v7151
  %v7227 = vpack.c.bf16 %v7154, %v7153
  %v7228 = vpack.c.bf16 %v7156, %v7155
  %v7229 = vpack.c.bf16 %v7158, %v7157
  %v7230 = vpack.c.bf16 %v7160, %v7159
  %v7231 = vpack.c.bf16 %v7162, %v7161
  %v7232 = vpack.c.bf16 %v7164, %v7163
  %v7233 = vpack.c.bf16 %v7166, %v7165
  %v7234 = vpack.c.bf16 %v7168, %v7167
  %v7235 = vpack.c.bf16 %v7170, %v7169
  %v7236 = vpack.c.bf16 %v7172, %v7171
  %v7237 = vpack.c.bf16 %v7174, %v7173
  %v7238 = vpack.c.bf16 %v7176, %v7175
  %v7239 = vpack.c.bf16 %v7178, %v7177
  %v7240 = vpack.c.bf16 %v7180, %v7179
  %v7241 = vpack.c.bf16 %v7182, %v7181
  %v7242 = vpack.c.bf16 %v7184, %v7183
  %v7243 = vpack.c.bf16 %v7186, %v7185
  %v7244 = vpack.c.bf16 %v7188, %v7187
  %v7245 = vpack.c.bf16 %v7190, %v7189
  %v7246 = vpack.c.bf16 %v7192, %v7191
  %v7247 = vpack.c.bf16 %v7194, %v7193
  %v7248 = vpack.c.bf16 %v7196, %v7195
  %v7249 = vpack.c.bf16 %v7198, %v7197
  %v7250 = vpack.c.bf16 %v7200, %v7199
  %v7251 = vpack.c.bf16 %v7202, %v7201
  %v7252 = vpack.c.bf16 %v7204, %v7203
  %s7253 = scalar_lea.vmem %s1, 28
  %v7254 = vld [vmem:[%s7253] sm:$0xf]
  %v7256 = vsel %vm163, %v7205, 0
  %v7259 = vsel %vm163, %v7206, 0
  %v7262 = vsel %vm163, %v7207, 0
  %v7265 = vsel %vm163, %v7208, 0
  %v7268 = vsel %vm163, %v7209, 0
  %v7271 = vsel %vm163, %v7210, 0
  %v7274 = vsel %vm163, %v7211, 0
  %v7277 = vsel %vm163, %v7212, 0
  %v7280 = vsel %vm163, %v7213, 0
  %v7283 = vsel %vm163, %v7214, 0
  %v7286 = vsel %vm163, %v7215, 0
  %v7289 = vsel %vm163, %v7216, 0
  %v7292 = vsel %vm163, %v7217, 0
  %v7295 = vsel %vm163, %v7218, 0
  %v7298 = vsel %vm163, %v7219, 0
  %v7301 = vsel %vm163, %v7220, 0
  %v7304 = vsel %vm163, %v7221, 0
  %v7307 = vsel %vm163, %v7222, 0
  %v7310 = vsel %vm163, %v7223, 0
  %v7313 = vsel %vm163, %v7224, 0
  %v7316 = vsel %vm163, %v7225, 0
  %v7319 = vsel %vm163, %v7226, 0
  %v7322 = vsel %vm163, %v7227, 0
  %v7325 = vsel %vm163, %v7228, 0
  %v7328 = vsel %vm163, %v7229, 0
  %v7331 = vsel %vm163, %v7230, 0
  %v7334 = vsel %vm163, %v7231, 0
  %v7337 = vsel %vm163, %v7232, 0
  %v7340 = vsel %vm163, %v7233, 0
  %v7343 = vsel %vm163, %v7234, 0
  %v7346 = vsel %vm163, %v7235, 0
  %v7349 = vsel %vm163, %v7236, 0
  %v7352 = vsel %vm163, %v7237, 0
  %v7355 = vsel %vm163, %v7238, 0
  %v7358 = vsel %vm163, %v7239, 0
  %v7361 = vsel %vm163, %v7240, 0
  %v7364 = vsel %vm163, %v7241, 0
  %v7367 = vsel %vm163, %v7242, 0
  %v7370 = vsel %vm163, %v7243, 0
  %v7373 = vsel %vm163, %v7244, 0
  %v7376 = vsel %vm163, %v7245, 0
  %v7379 = vsel %vm163, %v7246, 0
  %v7382 = vsel %vm163, %v7247, 0
  %v7385 = vsel %vm163, %v7248, 0
  %v7388 = vsel %vm163, %v7249, 0
  %v7391 = vsel %vm163, %v7250, 0
  %v7394 = vsel %vm163, %v7251, 0
  %v7397 = vsel %vm163, %v7252, 0
  %v7400 = vsel %vm308, %v7254, 0
  %7402 = vmatprep.subr.bf16.mxu0 0
  %7403 = vmatpush1.bf16.msra.mxu0 %v7400
  %7404 = vmatprep.subr.bf16.mxu0 0
  %7405 = vmatpush1.bf16.msra.mxu0 0
  %7406 = vmatprep.subr.bf16.mxu0 0
  %7407 = vmatpush1.bf16.msra.mxu0 0
  %7408 = vmatprep.subr.bf16.mxu0 0
  %7409 = vmatpush1.bf16.msra.mxu0 0
  %7410 = vmatprep.subr.bf16.mxu0 0
  %7411 = vmatpush1.bf16.msra.mxu0 0
  %7412 = vmatprep.subr.bf16.mxu0 0
  %7413 = vmatpush1.bf16.msra.mxu0 0
  %7414 = vmatprep.subr.bf16.mxu0 0
  %7415 = vmatpush1.bf16.msra.mxu0 0
  %7416 = vmatprep.subr.bf16.mxu0 0
  %7417 = vmatpush1.bf16.msra.mxu0 0
  %7418 = vmatprep.subr.bf16.mxu0 0
  %7419 = vmatpush1.bf16.msra.mxu0 0
  %7420 = vmatprep.subr.bf16.mxu0 0
  %7421 = vmatpush1.bf16.msra.mxu0 0
  %7422 = vmatprep.subr.bf16.mxu0 0
  %7423 = vmatpush1.bf16.msra.mxu0 0
  %7424 = vmatprep.subr.bf16.mxu0 0
  %7425 = vmatpush1.bf16.msra.mxu0 0
  %7426 = vmatprep.subr.bf16.mxu0 0
  %7427 = vmatpush1.bf16.msra.mxu0 0
  %7428 = vmatprep.subr.bf16.mxu0 0
  %7429 = vmatpush1.bf16.msra.mxu0 0
  %7430 = vmatprep.subr.bf16.mxu0 0
  %7431 = vmatpush1.bf16.msra.mxu0 0
  %7432 = vmatprep.subr.bf16.mxu0 0
  %7433 = vmatpush1.bf16.msra.mxu0 0
  %7434 = vmatprep.mubr.bf16.mxu0 0
  %7435 = vmatmul.mubr.bf16.gmra.mrb[0].mxu0 %v7256
  %v7436 = vpop.f32.mrb[0].mxu0
  %v7437 = vadd.f32 0.0, %v7436
  %v7438 = vpop.f32.mrb[0].mxu0
  %v7439 = vpop.f32.mrb[0].mxu0
  %v7440 = vadd.f32 0.0, %v7439
  %v7441 = vpop.f32.mrb[0].mxu0
  %7442 = vmatprep.mubr.bf16.mxu0 0
  %7443 = vmatmul.mubr.bf16.gmra.mrb[0].mxu0 %v7259
  %v7444 = vpop.f32.mrb[0].mxu0
  %v7445 = vadd.f32 0.0, %v7444
  %v7446 = vpop.f32.mrb[0].mxu0
  %v7447 = vpop.f32.mrb[0].mxu0
  %v7448 = vadd.f32 0.0, %v7447
  %v7449 = vpop.f32.mrb[0].mxu0
  %7450 = vmatprep.mubr.bf16.mxu0 0
  %7451 = vmatmul.mubr.bf16.gmra.mrb[0].mxu0 %v7262
  %v7452 = vpop.f32.mrb[0].mxu0
  %v7453 = vadd.f32 0.0, %v7452
  %v7454 = vpop.f32.mrb[0].mxu0
  %v7455 = vpop.f32.mrb[0].mxu0
  %v7456 = vadd.f32 0.0, %v7455
  %v7457 = vpop.f32.mrb[0].mxu0
  %7458 = vmatprep.mubr.bf16.mxu0 0
  %7459 = vmatmul.mubr.bf16.gmra.mrb[0].mxu0 %v7265
  %v7460 = vpop.f32.mrb[0].mxu0
  %v7461 = vadd.f32 0.0, %v7460
  %v7462 = vpop.f32.mrb[0].mxu0
  %v7463 = vpop.f32.mrb[0].mxu0
  %v7464 = vadd.f32 0.0, %v7463
  %v7465 = vpop.f32.mrb[0].mxu0
  %7466 = vmatprep.mubr.bf16.mxu0 0
  %7467 = vmatmul.mubr.bf16.gmra.mrb[0].mxu0 %v7268
  %v7468 = vpop.f32.mrb[0].mxu0
  %v7469 = vadd.f32 0.0, %v7468
  %v7470 = vpop.f32.mrb[0].mxu0
  %v7471 = vpop.f32.mrb[0].mxu0
  %v7472 = vadd.f32 0.0, %v7471
  %v7473 = vpop.f32.mrb[0].mxu0
  %7474 = vmatprep.mubr.bf16.mxu0 0
  %7475 = vmatmul.mubr.bf16.gmra.mrb[0].mxu0 %v7271
  %v7476 = vpop.f32.mrb[0].mxu0
  %v7477 = vadd.f32 0.0, %v7476
  %v7478 = vpop.f32.mrb[0].mxu0
  %v7479 = vpop.f32.mrb[0].mxu0
  %v7480 = vadd.f32 0.0, %v7479
  %v7481 = vpop.f32.mrb[0].mxu0
  %7482 = vmatprep.mubr.bf16.mxu0 0
  %7483 = vmatmul.mubr.bf16.gmra.mrb[0].mxu0 %v7274
  %v7484 = vpop.f32.mrb[0].mxu0
  %v7485 = vadd.f32 0.0, %v7484
  %v7486 = vpop.f32.mrb[0].mxu0
  %v7487 = vpop.f32.mrb[0].mxu0
  %v7488 = vadd.f32 0.0, %v7487
  %v7489 = vpop.f32.mrb[0].mxu0
  %7490 = vmatprep.mubr.bf16.mxu0 0
  %7491 = vmatmul.mubr.bf16.gmra.mrb[0].mxu0 %v7277
  %v7492 = vpop.f32.mrb[0].mxu0
  %v7493 = vadd.f32 0.0, %v7492
  %v7494 = vpop.f32.mrb[0].mxu0
  %v7495 = vpop.f32.mrb[0].mxu0
  %v7496 = vadd.f32 0.0, %v7495
  %v7497 = vpop.f32.mrb[0].mxu0
  %7498 = vmatprep.mubr.bf16.mxu0 0
  %7499 = vmatmul.mubr.bf16.gmra.mrb[0].mxu0 %v7280
  %v7500 = vpop.f32.mrb[0].mxu0
  %v7501 = vadd.f32 0.0, %v7500
  %v7502 = vpop.f32.mrb[0].mxu0
  %v7503 = vpop.f32.mrb[0].mxu0
  %v7504 = vadd.f32 0.0, %v7503
  %v7505 = vpop.f32.mrb[0].mxu0
  %7506 = vmatprep.mubr.bf16.mxu0 0
  %7507 = vmatmul.mubr.bf16.gmra.mrb[0].mxu0 %v7283
  %v7508 = vpop.f32.mrb[0].mxu0
  %v7509 = vadd.f32 0.0, %v7508
  %v7510 = vpop.f32.mrb[0].mxu0
  %v7511 = vpop.f32.mrb[0].mxu0
  %v7512 = vadd.f32 0.0, %v7511
  %v7513 = vpop.f32.mrb[0].mxu0
  %7514 = vmatprep.mubr.bf16.mxu0 0
  %7515 = vmatmul.mubr.bf16.gmra.mrb[0].mxu0 %v7286
  %v7516 = vpop.f32.mrb[0].mxu0
  %v7517 = vadd.f32 0.0, %v7516
  %v7518 = vpop.f32.mrb[0].mxu0
  %v7519 = vpop.f32.mrb[0].mxu0
  %v7520 = vadd.f32 0.0, %v7519
  %v7521 = vpop.f32.mrb[0].mxu0
  %7522 = vmatprep.mubr.bf16.mxu0 0
  %7523 = vmatmul.mubr.bf16.gmra.mrb[0].mxu0 %v7289
  %v7524 = vpop.f32.mrb[0].mxu0
  %v7525 = vadd.f32 0.0, %v7524
  %v7526 = vpop.f32.mrb[0].mxu0
  %v7527 = vpop.f32.mrb[0].mxu0
  %v7528 = vadd.f32 0.0, %v7527
  %v7529 = vpop.f32.mrb[0].mxu0
  %7530 = vmatprep.mubr.bf16.mxu0 0
  %7531 = vmatmul.mubr.bf16.gmra.mrb[0].mxu0 %v7292
  %v7532 = vpop.f32.mrb[0].mxu0
  %v7533 = vadd.f32 0.0, %v7532
  %v7534 = vpop.f32.mrb[0].mxu0
  %v7535 = vpop.f32.mrb[0].mxu0
  %v7536 = vadd.f32 0.0, %v7535
  %v7537 = vpop.f32.mrb[0].mxu0
  %7538 = vmatprep.mubr.bf16.mxu0 0
  %7539 = vmatmul.mubr.bf16.gmra.mrb[0].mxu0 %v7295
  %v7540 = vpop.f32.mrb[0].mxu0
  %v7541 = vadd.f32 0.0, %v7540
  %v7542 = vpop.f32.mrb[0].mxu0
  %v7543 = vpop.f32.mrb[0].mxu0
  %v7544 = vadd.f32 0.0, %v7543
  %v7545 = vpop.f32.mrb[0].mxu0
  %7546 = vmatprep.mubr.bf16.mxu0 0
  %7547 = vmatmul.mubr.bf16.gmra.mrb[0].mxu0 %v7298
  %v7548 = vpop.f32.mrb[0].mxu0
  %v7549 = vadd.f32 0.0, %v7548
  %v7550 = vpop.f32.mrb[0].mxu0
  %v7551 = vpop.f32.mrb[0].mxu0
  %v7552 = vadd.f32 0.0, %v7551
  %v7553 = vpop.f32.mrb[0].mxu0
  %7554 = vmatprep.mubr.bf16.mxu0 0
  %7555 = vmatmul.mubr.bf16.gmra.mrb[0].mxu0 %v7301
  %v7556 = vpop.f32.mrb[0].mxu0
  %v7557 = vadd.f32 0.0, %v7556
  %v7558 = vpop.f32.mrb[0].mxu0
  %v7559 = vpop.f32.mrb[0].mxu0
  %v7560 = vadd.f32 0.0, %v7559
  %v7561 = vpop.f32.mrb[0].mxu0
  %7562 = vmatprep.mubr.bf16.mxu0 0
  %7563 = vmatmul.mubr.bf16.gmra.mrb[0].mxu0 %v7304
  %v7564 = vpop.f32.mrb[0].mxu0
  %v7565 = vadd.f32 0.0, %v7564
  %v7566 = vpop.f32.mrb[0].mxu0
  %v7567 = vpop.f32.mrb[0].mxu0
  %v7568 = vadd.f32 0.0, %v7567
  %v7569 = vpop.f32.mrb[0].mxu0
  %7570 = vmatprep.mubr.bf16.mxu0 0
  %7571 = vmatmul.mubr.bf16.gmra.mrb[0].mxu0 %v7307
  %v7572 = vpop.f32.mrb[0].mxu0
  %v7573 = vadd.f32 0.0, %v7572
  %v7574 = vpop.f32.mrb[0].mxu0
  %v7575 = vpop.f32.mrb[0].mxu0
  %v7576 = vadd.f32 0.0, %v7575
  %v7577 = vpop.f32.mrb[0].mxu0
  %7578 = vmatprep.mubr.bf16.mxu0 0
  %7579 = vmatmul.mubr.bf16.gmra.mrb[0].mxu0 %v7310
  %v7580 = vpop.f32.mrb[0].mxu0
  %v7581 = vadd.f32 0.0, %v7580
  %v7582 = vpop.f32.mrb[0].mxu0
  %v7583 = vpop.f32.mrb[0].mxu0
  %v7584 = vadd.f32 0.0, %v7583
  %v7585 = vpop.f32.mrb[0].mxu0
  %7586 = vmatprep.mubr.bf16.mxu0 0
  %7587 = vmatmul.mubr.bf16.gmra.mrb[0].mxu0 %v7313
  %v7588 = vpop.f32.mrb[0].mxu0
  %v7589 = vadd.f32 0.0, %v7588
  %v7590 = vpop.f32.mrb[0].mxu0
  %v7591 = vpop.f32.mrb[0].mxu0
  %v7592 = vadd.f32 0.0, %v7591
  %v7593 = vpop.f32.mrb[0].mxu0
  %7594 = vmatprep.mubr.bf16.mxu0 0
  %7595 = vmatmul.mubr.bf16.gmra.mrb[0].mxu0 %v7316
  %v7596 = vpop.f32.mrb[0].mxu0
  %v7597 = vadd.f32 0.0, %v7596
  %v7598 = vpop.f32.mrb[0].mxu0
  %v7599 = vpop.f32.mrb[0].mxu0
  %v7600 = vadd.f32 0.0, %v7599
  %v7601 = vpop.f32.mrb[0].mxu0
  %7602 = vmatprep.mubr.bf16.mxu0 0
  %7603 = vmatmul.mubr.bf16.gmra.mrb[0].mxu0 %v7319
  %v7604 = vpop.f32.mrb[0].mxu0
  %v7605 = vadd.f32 0.0, %v7604
  %v7606 = vpop.f32.mrb[0].mxu0
  %v7607 = vpop.f32.mrb[0].mxu0
  %v7608 = vadd.f32 0.0, %v7607
  %v7609 = vpop.f32.mrb[0].mxu0
  %7610 = vmatprep.mubr.bf16.mxu0 0
  %7611 = vmatmul.mubr.bf16.gmra.mrb[0].mxu0 %v7322
  %v7612 = vpop.f32.mrb[0].mxu0
  %v7613 = vadd.f32 0.0, %v7612
  %v7614 = vpop.f32.mrb[0].mxu0
  %v7615 = vpop.f32.mrb[0].mxu0
  %v7616 = vadd.f32 0.0, %v7615
  %v7617 = vpop.f32.mrb[0].mxu0
  %7618 = vmatprep.mubr.bf16.mxu0 0
  %7619 = vmatmul.mubr.bf16.gmra.mrb[0].mxu0 %v7325
  %v7620 = vpop.f32.mrb[0].mxu0
  %v7621 = vadd.f32 0.0, %v7620
  %v7622 = vpop.f32.mrb[0].mxu0
  %v7623 = vpop.f32.mrb[0].mxu0
  %v7624 = vadd.f32 0.0, %v7623
  %v7625 = vpop.f32.mrb[0].mxu0
  %7626 = vmatprep.mubr.bf16.mxu0 0
  %7627 = vmatmul.mubr.bf16.gmra.mrb[0].mxu0 %v7328
  %v7628 = vpop.f32.mrb[0].mxu0
  %v7629 = vadd.f32 0.0, %v7628
  %v7630 = vpop.f32.mrb[0].mxu0
  %v7631 = vpop.f32.mrb[0].mxu0
  %v7632 = vadd.f32 0.0, %v7631
  %v7633 = vpop.f32.mrb[0].mxu0
  %7634 = vmatprep.mubr.bf16.mxu0 0
  %7635 = vmatmul.mubr.bf16.gmra.mrb[0].mxu0 %v7331
  %v7636 = vpop.f32.mrb[0].mxu0
  %v7637 = vadd.f32 0.0, %v7636
  %v7638 = vpop.f32.mrb[0].mxu0
  %v7639 = vpop.f32.mrb[0].mxu0
  %v7640 = vadd.f32 0.0, %v7639
  %v7641 = vpop.f32.mrb[0].mxu0
  %7642 = vmatprep.mubr.bf16.mxu0 0
  %7643 = vmatmul.mubr.bf16.gmra.mrb[0].mxu0 %v7334
  %v7644 = vpop.f32.mrb[0].mxu0
  %v7645 = vadd.f32 0.0, %v7644
  %v7646 = vpop.f32.mrb[0].mxu0
  %v7647 = vpop.f32.mrb[0].mxu0
  %v7648 = vadd.f32 0.0, %v7647
  %v7649 = vpop.f32.mrb[0].mxu0
  %7650 = vmatprep.mubr.bf16.mxu0 0
  %7651 = vmatmul.mubr.bf16.gmra.mrb[0].mxu0 %v7337
  %v7652 = vpop.f32.mrb[0].mxu0
  %v7653 = vadd.f32 0.0, %v7652
  %v7654 = vpop.f32.mrb[0].mxu0
  %v7655 = vpop.f32.mrb[0].mxu0
  %v7656 = vadd.f32 0.0, %v7655
  %v7657 = vpop.f32.mrb[0].mxu0
  %7658 = vmatprep.mubr.bf16.mxu0 0
  %7659 = vmatmul.mubr.bf16.gmra.mrb[0].mxu0 %v7340
  %v7660 = vpop.f32.mrb[0].mxu0
  %v7661 = vadd.f32 0.0, %v7660
  %v7662 = vpop.f32.mrb[0].mxu0
  %v7663 = vpop.f32.mrb[0].mxu0
  %v7664 = vadd.f32 0.0, %v7663
  %v7665 = vpop.f32.mrb[0].mxu0
  %7666 = vmatprep.mubr.bf16.mxu0 0
  %7667 = vmatmul.mubr.bf16.gmra.mrb[0].mxu0 %v7343
  %v7668 = vpop.f32.mrb[0].mxu0
  %v7669 = vadd.f32 0.0, %v7668
  %v7670 = vpop.f32.mrb[0].mxu0
  %v7671 = vpop.f32.mrb[0].mxu0
  %v7672 = vadd.f32 0.0, %v7671
  %v7673 = vpop.f32.mrb[0].mxu0
  %7674 = vmatprep.mubr.bf16.mxu0 0
  %7675 = vmatmul.mubr.bf16.gmra.mrb[0].mxu0 %v7346
  %v7676 = vpop.f32.mrb[0].mxu0
  %v7677 = vadd.f32 0.0, %v7676
  %v7678 = vpop.f32.mrb[0].mxu0
  %v7679 = vpop.f32.mrb[0].mxu0
  %v7680 = vadd.f32 0.0, %v7679
  %v7681 = vpop.f32.mrb[0].mxu0
  %7682 = vmatprep.mubr.bf16.mxu0 0
  %7683 = vmatmul.mubr.bf16.gmra.mrb[0].mxu0 %v7349
  %v7684 = vpop.f32.mrb[0].mxu0
  %v7685 = vadd.f32 0.0, %v7684
  %v7686 = vpop.f32.mrb[0].mxu0
  %v7687 = vpop.f32.mrb[0].mxu0
  %v7688 = vadd.f32 0.0, %v7687
  %v7689 = vpop.f32.mrb[0].mxu0
  %7690 = vmatprep.mubr.bf16.mxu0 0
  %7691 = vmatmul.mubr.bf16.gmra.mrb[0].mxu0 %v7352
  %v7692 = vpop.f32.mrb[0].mxu0
  %v7693 = vadd.f32 0.0, %v7692
  %v7694 = vpop.f32.mrb[0].mxu0
  %v7695 = vpop.f32.mrb[0].mxu0
  %v7696 = vadd.f32 0.0, %v7695
  %v7697 = vpop.f32.mrb[0].mxu0
  %7698 = vmatprep.mubr.bf16.mxu0 0
  %7699 = vmatmul.mubr.bf16.gmra.mrb[0].mxu0 %v7355
  %v7700 = vpop.f32.mrb[0].mxu0
  %v7701 = vadd.f32 0.0, %v7700
  %v7702 = vpop.f32.mrb[0].mxu0
  %v7703 = vpop.f32.mrb[0].mxu0
  %v7704 = vadd.f32 0.0, %v7703
  %v7705 = vpop.f32.mrb[0].mxu0
  %7706 = vmatprep.mubr.bf16.mxu0 0
  %7707 = vmatmul.mubr.bf16.gmra.mrb[0].mxu0 %v7358
  %v7708 = vpop.f32.mrb[0].mxu0
  %v7709 = vadd.f32 0.0, %v7708
  %v7710 = vpop.f32.mrb[0].mxu0
  %v7711 = vpop.f32.mrb[0].mxu0
  %v7712 = vadd.f32 0.0, %v7711
  %v7713 = vpop.f32.mrb[0].mxu0
  %7714 = vmatprep.mubr.bf16.mxu0 0
  %7715 = vmatmul.mubr.bf16.gmra.mrb[0].mxu0 %v7361
  %v7716 = vpop.f32.mrb[0].mxu0
  %v7717 = vadd.f32 0.0, %v7716
  %v7718 = vpop.f32.mrb[0].mxu0
  %v7719 = vpop.f32.mrb[0].mxu0
  %v7720 = vadd.f32 0.0, %v7719
  %v7721 = vpop.f32.mrb[0].mxu0
  %7722 = vmatprep.mubr.bf16.mxu0 0
  %7723 = vmatmul.mubr.bf16.gmra.mrb[0].mxu0 %v7364
  %v7724 = vpop.f32.mrb[0].mxu0
  %v7725 = vadd.f32 0.0, %v7724
  %v7726 = vpop.f32.mrb[0].mxu0
  %v7727 = vpop.f32.mrb[0].mxu0
  %v7728 = vadd.f32 0.0, %v7727
  %v7729 = vpop.f32.mrb[0].mxu0
  %7730 = vmatprep.mubr.bf16.mxu0 0
  %7731 = vmatmul.mubr.bf16.gmra.mrb[0].mxu0 %v7367
  %v7732 = vpop.f32.mrb[0].mxu0
  %v7733 = vadd.f32 0.0, %v7732
  %v7734 = vpop.f32.mrb[0].mxu0
  %v7735 = vpop.f32.mrb[0].mxu0
  %v7736 = vadd.f32 0.0, %v7735
  %v7737 = vpop.f32.mrb[0].mxu0
  %7738 = vmatprep.mubr.bf16.mxu0 0
  %7739 = vmatmul.mubr.bf16.gmra.mrb[0].mxu0 %v7370
  %v7740 = vpop.f32.mrb[0].mxu0
  %v7741 = vadd.f32 0.0, %v7740
  %v7742 = vpop.f32.mrb[0].mxu0
  %v7743 = vpop.f32.mrb[0].mxu0
  %v7744 = vadd.f32 0.0, %v7743
  %v7745 = vpop.f32.mrb[0].mxu0
  %7746 = vmatprep.mubr.bf16.mxu0 0
  %7747 = vmatmul.mubr.bf16.gmra.mrb[0].mxu0 %v7373
  %v7748 = vpop.f32.mrb[0].mxu0
  %v7749 = vadd.f32 0.0, %v7748
  %v7750 = vpop.f32.mrb[0].mxu0
  %v7751 = vpop.f32.mrb[0].mxu0
  %v7752 = vadd.f32 0.0, %v7751
  %v7753 = vpop.f32.mrb[0].mxu0
  %7754 = vmatprep.mubr.bf16.mxu0 0
  %7755 = vmatmul.mubr.bf16.gmra.mrb[0].mxu0 %v7376
  %v7756 = vpop.f32.mrb[0].mxu0
  %v7757 = vadd.f32 0.0, %v7756
  %v7758 = vpop.f32.mrb[0].mxu0
  %v7759 = vpop.f32.mrb[0].mxu0
  %v7760 = vadd.f32 0.0, %v7759
  %v7761 = vpop.f32.mrb[0].mxu0
  %7762 = vmatprep.mubr.bf16.mxu0 0
  %7763 = vmatmul.mubr.bf16.gmra.mrb[0].mxu0 %v7379
  %v7764 = vpop.f32.mrb[0].mxu0
  %v7765 = vadd.f32 0.0, %v7764
  %v7766 = vpop.f32.mrb[0].mxu0
  %v7767 = vpop.f32.mrb[0].mxu0
  %v7768 = vadd.f32 0.0, %v7767
  %v7769 = vpop.f32.mrb[0].mxu0
  %7770 = vmatprep.mubr.bf16.mxu0 0
  %7771 = vmatmul.mubr.bf16.gmra.mrb[0].mxu0 %v7382
  %v7772 = vpop.f32.mrb[0].mxu0
  %v7773 = vadd.f32 0.0, %v7772
  %v7774 = vpop.f32.mrb[0].mxu0
  %v7775 = vpop.f32.mrb[0].mxu0
  %v7776 = vadd.f32 0.0, %v7775
  %v7777 = vpop.f32.mrb[0].mxu0
  %7778 = vmatprep.mubr.bf16.mxu0 0
  %7779 = vmatmul.mubr.bf16.gmra.mrb[0].mxu0 %v7385
  %v7780 = vpop.f32.mrb[0].mxu0
  %v7781 = vadd.f32 0.0, %v7780
  %v7782 = vpop.f32.mrb[0].mxu0
  %v7783 = vpop.f32.mrb[0].mxu0
  %v7784 = vadd.f32 0.0, %v7783
  %v7785 = vpop.f32.mrb[0].mxu0
  %7786 = vmatprep.mubr.bf16.mxu0 0
  %7787 = vmatmul.mubr.bf16.gmra.mrb[0].mxu0 %v7388
  %v7788 = vpop.f32.mrb[0].mxu0
  %v7789 = vadd.f32 0.0, %v7788
  %v7790 = vpop.f32.mrb[0].mxu0
  %v7791 = vpop.f32.mrb[0].mxu0
  %v7792 = vadd.f32 0.0, %v7791
  %v7793 = vpop.f32.mrb[0].mxu0
  %7794 = vmatprep.mubr.bf16.mxu0 0
  %7795 = vmatmul.mubr.bf16.gmra.mrb[0].mxu0 %v7391
  %v7796 = vpop.f32.mrb[0].mxu0
  %v7797 = vadd.f32 0.0, %v7796
  %v7798 = vpop.f32.mrb[0].mxu0
  %v7799 = vpop.f32.mrb[0].mxu0
  %v7800 = vadd.f32 0.0, %v7799
  %v7801 = vpop.f32.mrb[0].mxu0
  %7802 = vmatprep.mubr.bf16.mxu0 0
  %7803 = vmatmul.mubr.bf16.gmra.mrb[0].mxu0 %v7394
  %v7804 = vpop.f32.mrb[0].mxu0
  %v7805 = vadd.f32 0.0, %v7804
  %v7806 = vpop.f32.mrb[0].mxu0
  %v7807 = vpop.f32.mrb[0].mxu0
  %v7808 = vadd.f32 0.0, %v7807
  %v7809 = vpop.f32.mrb[0].mxu0
  %7810 = vmatprep.mubr.bf16.mxu0 0
  %7811 = vmatmul.mubr.bf16.gmra.mrb[0].mxu0 %v7397
  %v7812 = vpop.f32.mrb[0].mxu0
  %v7813 = vadd.f32 0.0, %v7812
  %v7814 = vpop.f32.mrb[0].mxu0
  %v7815 = vpop.f32.mrb[0].mxu0
  %v7816 = vadd.f32 0.0, %v7815
  %v7817 = vpop.f32.mrb[0].mxu0
  %7818 = vdwg.mxu0
  %v7819 = vld [vmem:[#allocation2] sm:$0xff]
  %v7820 = vld [vmem:[#allocation2 + $0x8] sm:$0xff]
  %v7821 = vld [vmem:[#allocation2 + $0x10] sm:$0xff]
  %v7822 = vld [vmem:[#allocation2 + $0x18] sm:$0xff]
  %v7823 = vld [vmem:[#allocation2 + $0x20] sm:$0xff]
  %v7824 = vld [vmem:[#allocation2 + $0x28] sm:$0xff]
  %v7825 = vld [vmem:[#allocation2 + $0x30] sm:$0xff]
  %v7826 = vld [vmem:[#allocation2 + $0x38] sm:$0xff]
  %v7827 = vld [vmem:[#allocation2 + $0x40] sm:$0xff]
  %v7828 = vld [vmem:[#allocation2 + $0x48] sm:$0xff]
  %v7829 = vld [vmem:[#allocation2 + $0x50] sm:$0xff]
  %v7830 = vld [vmem:[#allocation2 + $0x58] sm:$0xff]
  %v7831 = vld [vmem:[#allocation2 + $0x60] sm:$0xff]
  %v7832 = vld [vmem:[#allocation2 + $0x68] sm:$0xff]
  %v7833 = vld [vmem:[#allocation2 + $0x70] sm:$0xff]
  %v7834 = vld [vmem:[#allocation2 + $0x78] sm:$0xff]
  %v7835 = vld [vmem:[#allocation2 + $0x80] sm:$0xff]
  %v7836 = vld [vmem:[#allocation2 + $0x88] sm:$0xff]
  %v7837 = vld [vmem:[#allocation2 + $0x90] sm:$0xff]
  %v7838 = vld [vmem:[#allocation2 + $0x98] sm:$0xff]
  %v7839 = vld [vmem:[#allocation2 + $0xa0] sm:$0xff]
  %v7840 = vld [vmem:[#allocation2 + $0xa8] sm:$0xff]
  %v7841 = vld [vmem:[#allocation2 + $0xb0] sm:$0xff]
  %v7842 = vld [vmem:[#allocation2 + $0xb8] sm:$0xff]
  %v7843 = vld [vmem:[#allocation2 + $0xc0] sm:$0xff]
  %v7844 = vld [vmem:[#allocation2 + $0xc8] sm:$0xff]
  %v7845 = vld [vmem:[#allocation2 + $0xd0] sm:$0xff]
  %v7846 = vld [vmem:[#allocation2 + $0xd8] sm:$0xff]
  %v7847 = vld [vmem:[#allocation2 + $0xe0] sm:$0xff]
  %v7848 = vld [vmem:[#allocation2 + $0xe8] sm:$0xff]
  %v7849 = vld [vmem:[#allocation2 + $0xf0] sm:$0xff]
  %v7850 = vld [vmem:[#allocation2 + $0xf8] sm:$0xff]
  %v7851 = vld [vmem:[#allocation2 + $0x100] sm:$0xff]
  %v7852 = vld [vmem:[#allocation2 + $0x108] sm:$0xff]
  %v7853 = vld [vmem:[#allocation2 + $0x110] sm:$0xff]
  %v7854 = vld [vmem:[#allocation2 + $0x118] sm:$0xff]
  %v7855 = vld [vmem:[#allocation2 + $0x120] sm:$0xff]
  %v7856 = vld [vmem:[#allocation2 + $0x128] sm:$0xff]
  %v7857 = vld [vmem:[#allocation2 + $0x130] sm:$0xff]
  %v7858 = vld [vmem:[#allocation2 + $0x138] sm:$0xff]
  %v7859 = vld [vmem:[#allocation2 + $0x140] sm:$0xff]
  %v7860 = vld [vmem:[#allocation2 + $0x148] sm:$0xff]
  %v7861 = vld [vmem:[#allocation2 + $0x150] sm:$0xff]
  %v7862 = vld [vmem:[#allocation2 + $0x158] sm:$0xff]
  %v7863 = vld [vmem:[#allocation2 + $0x160] sm:$0xff]
  %v7864 = vld [vmem:[#allocation2 + $0x168] sm:$0xff]
  %v7865 = vld [vmem:[#allocation2 + $0x170] sm:$0xff]
  %v7866 = vld [vmem:[#allocation2 + $0x178] sm:$0xff]
  %v7867 = vld [vmem:[#allocation2 + $0x180] sm:$0xff]
  %v7868 = vld [vmem:[#allocation2 + $0x188] sm:$0xff]
  %v7869 = vld [vmem:[#allocation2 + $0x190] sm:$0xff]
  %v7870 = vld [vmem:[#allocation2 + $0x198] sm:$0xff]
  %v7871 = vld [vmem:[#allocation2 + $0x1a0] sm:$0xff]
  %v7872 = vld [vmem:[#allocation2 + $0x1a8] sm:$0xff]
  %v7873 = vld [vmem:[#allocation2 + $0x1b0] sm:$0xff]
  %v7874 = vld [vmem:[#allocation2 + $0x1b8] sm:$0xff]
  %v7875 = vld [vmem:[#allocation2 + $0x1c0] sm:$0xff]
  %v7876 = vld [vmem:[#allocation2 + $0x1c8] sm:$0xff]
  %v7877 = vld [vmem:[#allocation2 + $0x1d0] sm:$0xff]
  %v7878 = vld [vmem:[#allocation2 + $0x1d8] sm:$0xff]
  %v7879 = vld [vmem:[#allocation2 + $0x1e0] sm:$0xff]
  %v7880 = vld [vmem:[#allocation2 + $0x1e8] sm:$0xff]
  %v7881 = vld [vmem:[#allocation2 + $0x1f0] sm:$0xff]
  %v7882 = vld [vmem:[#allocation2 + $0x1f8] sm:$0xff]
  %v7883 = vld [vmem:[#allocation2 + $0x200] sm:$0xff]
  %v7884 = vld [vmem:[#allocation2 + $0x208] sm:$0xff]
  %v7885 = vld [vmem:[#allocation2 + $0x210] sm:$0xff]
  %v7886 = vld [vmem:[#allocation2 + $0x218] sm:$0xff]
  %v7887 = vld [vmem:[#allocation2 + $0x220] sm:$0xff]
  %v7888 = vld [vmem:[#allocation2 + $0x228] sm:$0xff]
  %v7889 = vld [vmem:[#allocation2 + $0x230] sm:$0xff]
  %v7890 = vld [vmem:[#allocation2 + $0x238] sm:$0xff]
  %v7891 = vld [vmem:[#allocation2 + $0x240] sm:$0xff]
  %v7892 = vld [vmem:[#allocation2 + $0x248] sm:$0xff]
  %v7893 = vld [vmem:[#allocation2 + $0x250] sm:$0xff]
  %v7894 = vld [vmem:[#allocation2 + $0x258] sm:$0xff]
  %v7895 = vld [vmem:[#allocation2 + $0x260] sm:$0xff]
  %v7896 = vld [vmem:[#allocation2 + $0x268] sm:$0xff]
  %v7897 = vld [vmem:[#allocation2 + $0x270] sm:$0xff]
  %v7898 = vld [vmem:[#allocation2 + $0x278] sm:$0xff]
  %v7899 = vld [vmem:[#allocation2 + $0x280] sm:$0xff]
  %v7900 = vld [vmem:[#allocation2 + $0x288] sm:$0xff]
  %v7901 = vld [vmem:[#allocation2 + $0x290] sm:$0xff]
  %v7902 = vld [vmem:[#allocation2 + $0x298] sm:$0xff]
  %v7903 = vld [vmem:[#allocation2 + $0x2a0] sm:$0xff]
  %v7904 = vld [vmem:[#allocation2 + $0x2a8] sm:$0xff]
  %v7905 = vld [vmem:[#allocation2 + $0x2b0] sm:$0xff]
  %v7906 = vld [vmem:[#allocation2 + $0x2b8] sm:$0xff]
  %v7907 = vld [vmem:[#allocation2 + $0x2c0] sm:$0xff]
  %v7908 = vld [vmem:[#allocation2 + $0x2c8] sm:$0xff]
  %v7909 = vld [vmem:[#allocation2 + $0x2d0] sm:$0xff]
  %v7910 = vld [vmem:[#allocation2 + $0x2d8] sm:$0xff]
  %v7911 = vld [vmem:[#allocation2 + $0x2e0] sm:$0xff]
  %v7912 = vld [vmem:[#allocation2 + $0x2e8] sm:$0xff]
  %v7913 = vld [vmem:[#allocation2 + $0x2f0] sm:$0xff]
  %v7914 = vld [vmem:[#allocation2 + $0x2f8] sm:$0xff]
  %v7915 = vadd.f32 %v7819, %v7437
  %v7916 = vadd.f32 %v7820, %v7440
  %v7917 = vadd.f32 %v7821, %v7445
  %v7918 = vadd.f32 %v7822, %v7448
  %v7919 = vadd.f32 %v7823, %v7453
  %v7920 = vadd.f32 %v7824, %v7456
  %v7921 = vadd.f32 %v7825, %v7461
  %v7922 = vadd.f32 %v7826, %v7464
  %v7923 = vadd.f32 %v7827, %v7469
  %v7924 = vadd.f32 %v7828, %v7472
  %v7925 = vadd.f32 %v7829, %v7477
  %v7926 = vadd.f32 %v7830, %v7480
  %v7927 = vadd.f32 %v7831, %v7485
  %v7928 = vadd.f32 %v7832, %v7488
  %v7929 = vadd.f32 %v7833, %v7493
  %v7930 = vadd.f32 %v7834, %v7496
  %v7931 = vadd.f32 %v7835, %v7501
  %v7932 = vadd.f32 %v7836, %v7504
  %v7933 = vadd.f32 %v7837, %v7509
  %v7934 = vadd.f32 %v7838, %v7512
  %v7935 = vadd.f32 %v7839, %v7517
  %v7936 = vadd.f32 %v7840, %v7520
  %v7937 = vadd.f32 %v7841, %v7525
  %v7938 = vadd.f32 %v7842, %v7528
  %v7939 = vadd.f32 %v7843, %v7533
  %v7940 = vadd.f32 %v7844, %v7536
  %v7941 = vadd.f32 %v7845, %v7541
  %v7942 = vadd.f32 %v7846, %v7544
  %v7943 = vadd.f32 %v7847, %v7549
  %v7944 = vadd.f32 %v7848, %v7552
  %v7945 = vadd.f32 %v7849, %v7557
  %v7946 = vadd.f32 %v7850, %v7560
  %v7947 = vadd.f32 %v7851, %v7565
  %v7948 = vadd.f32 %v7852, %v7568
  %v7949 = vadd.f32 %v7853, %v7573
  %v7950 = vadd.f32 %v7854, %v7576
  %v7951 = vadd.f32 %v7855, %v7581
  %v7952 = vadd.f32 %v7856, %v7584
  %v7953 = vadd.f32 %v7857, %v7589
  %v7954 = vadd.f32 %v7858, %v7592
  %v7955 = vadd.f32 %v7859, %v7597
  %v7956 = vadd.f32 %v7860, %v7600
  %v7957 = vadd.f32 %v7861, %v7605
  %v7958 = vadd.f32 %v7862, %v7608
  %v7959 = vadd.f32 %v7863, %v7613
  %v7960 = vadd.f32 %v7864, %v7616
  %v7961 = vadd.f32 %v7865, %v7621
  %v7962 = vadd.f32 %v7866, %v7624
  %v7963 = vadd.f32 %v7867, %v7629
  %v7964 = vadd.f32 %v7868, %v7632
  %v7965 = vadd.f32 %v7869, %v7637
  %v7966 = vadd.f32 %v7870, %v7640
  %v7967 = vadd.f32 %v7871, %v7645
  %v7968 = vadd.f32 %v7872, %v7648
  %v7969 = vadd.f32 %v7873, %v7653
  %v7970 = vadd.f32 %v7874, %v7656
  %v7971 = vadd.f32 %v7875, %v7661
  %v7972 = vadd.f32 %v7876, %v7664
  %v7973 = vadd.f32 %v7877, %v7669
  %v7974 = vadd.f32 %v7878, %v7672
  %v7975 = vadd.f32 %v7879, %v7677
  %v7976 = vadd.f32 %v7880, %v7680
  %v7977 = vadd.f32 %v7881, %v7685
  %v7978 = vadd.f32 %v7882, %v7688
  %v7979 = vadd.f32 %v7883, %v7693
  %v7980 = vadd.f32 %v7884, %v7696
  %v7981 = vadd.f32 %v7885, %v7701
  %v7982 = vadd.f32 %v7886, %v7704
  %v7983 = vadd.f32 %v7887, %v7709
  %v7984 = vadd.f32 %v7888, %v7712
  %v7985 = vadd.f32 %v7889, %v7717
  %v7986 = vadd.f32 %v7890, %v7720
  %v7987 = vadd.f32 %v7891, %v7725
  %v7988 = vadd.f32 %v7892, %v7728
  %v7989 = vadd.f32 %v7893, %v7733
  %v7990 = vadd.f32 %v7894, %v7736
  %v7991 = vadd.f32 %v7895, %v7741
  %v7992 = vadd.f32 %v7896, %v7744
  %v7993 = vadd.f32 %v7897, %v7749
  %v7994 = vadd.f32 %v7898, %v7752
  %v7995 = vadd.f32 %v7899, %v7757
  %v7996 = vadd.f32 %v7900, %v7760
  %v7997 = vadd.f32 %v7901, %v7765
  %v7998 = vadd.f32 %v7902, %v7768
  %v7999 = vadd.f32 %v7903, %v7773
  %v8000 = vadd.f32 %v7904, %v7776
  %v8001 = vadd.f32 %v7905, %v7781
  %v8002 = vadd.f32 %v7906, %v7784
  %v8003 = vadd.f32 %v7907, %v7789
  %v8004 = vadd.f32 %v7908, %v7792
  %v8005 = vadd.f32 %v7909, %v7797
  %v8006 = vadd.f32 %v7910, %v7800
  %v8007 = vadd.f32 %v7911, %v7805
  %v8008 = vadd.f32 %v7912, %v7808
  %v8009 = vadd.f32 %v7913, %v7813
  %v8010 = vadd.f32 %v7914, %v7816
  %8011 = vst [vmem:[#allocation2] sm:$0xff] %v7915
  %8012 = vst [vmem:[#allocation2 + $0x8] sm:$0xff] %v7916
  %8013 = vst [vmem:[#allocation2 + $0x10] sm:$0xff] %v7917
  %8014 = vst [vmem:[#allocation2 + $0x18] sm:$0xff] %v7918
  %8015 = vst [vmem:[#allocation2 + $0x20] sm:$0xff] %v7919
  %8016 = vst [vmem:[#allocation2 + $0x28] sm:$0xff] %v7920
  %8017 = vst [vmem:[#allocation2 + $0x30] sm:$0xff] %v7921
  %8018 = vst [vmem:[#allocation2 + $0x38] sm:$0xff] %v7922
  %8019 = vst [vmem:[#allocation2 + $0x40] sm:$0xff] %v7923
  %8020 = vst [vmem:[#allocation2 + $0x48] sm:$0xff] %v7924
  %8021 = vst [vmem:[#allocation2 + $0x50] sm:$0xff] %v7925
  %8022 = vst [vmem:[#allocation2 + $0x58] sm:$0xff] %v7926
  %8023 = vst [vmem:[#allocation2 + $0x60] sm:$0xff] %v7927
  %8024 = vst [vmem:[#allocation2 + $0x68] sm:$0xff] %v7928
  %8025 = vst [vmem:[#allocation2 + $0x70] sm:$0xff] %v7929
  %8026 = vst [vmem:[#allocation2 + $0x78] sm:$0xff] %v7930
  %8027 = vst [vmem:[#allocation2 + $0x80] sm:$0xff] %v7931
  %8028 = vst [vmem:[#allocation2 + $0x88] sm:$0xff] %v7932
  %8029 = vst [vmem:[#allocation2 + $0x90] sm:$0xff] %v7933
  %8030 = vst [vmem:[#allocation2 + $0x98] sm:$0xff] %v7934
  %8031 = vst [vmem:[#allocation2 + $0xa0] sm:$0xff] %v7935
  %8032 = vst [vmem:[#allocation2 + $0xa8] sm:$0xff] %v7936
  %8033 = vst [vmem:[#allocation2 + $0xb0] sm:$0xff] %v7937
  %8034 = vst [vmem:[#allocation2 + $0xb8] sm:$0xff] %v7938
  %8035 = vst [vmem:[#allocation2 + $0xc0] sm:$0xff] %v7939
  %8036 = vst [vmem:[#allocation2 + $0xc8] sm:$0xff] %v7940
  %8037 = vst [vmem:[#allocation2 + $0xd0] sm:$0xff] %v7941
  %8038 = vst [vmem:[#allocation2 + $0xd8] sm:$0xff] %v7942
  %8039 = vst [vmem:[#allocation2 + $0xe0] sm:$0xff] %v7943
  %8040 = vst [vmem:[#allocation2 + $0xe8] sm:$0xff] %v7944
  %8041 = vst [vmem:[#allocation2 + $0xf0] sm:$0xff] %v7945
  %8042 = vst [vmem:[#allocation2 + $0xf8] sm:$0xff] %v7946
  %8043 = vst [vmem:[#allocation2 + $0x100] sm:$0xff] %v7947
  %8044 = vst [vmem:[#allocation2 + $0x108] sm:$0xff] %v7948
  %8045 = vst [vmem:[#allocation2 + $0x110] sm:$0xff] %v7949
  %8046 = vst [vmem:[#allocation2 + $0x118] sm:$0xff] %v7950
  %8047 = vst [vmem:[#allocation2 + $0x120] sm:$0xff] %v7951
  %8048 = vst [vmem:[#allocation2 + $0x128] sm:$0xff] %v7952
  %8049 = vst [vmem:[#allocation2 + $0x130] sm:$0xff] %v7953
  %8050 = vst [vmem:[#allocation2 + $0x138] sm:$0xff] %v7954
  %8051 = vst [vmem:[#allocation2 + $0x140] sm:$0xff] %v7955
  %8052 = vst [vmem:[#allocation2 + $0x148] sm:$0xff] %v7956
  %8053 = vst [vmem:[#allocation2 + $0x150] sm:$0xff] %v7957
  %8054 = vst [vmem:[#allocation2 + $0x158] sm:$0xff] %v7958
  %8055 = vst [vmem:[#allocation2 + $0x160] sm:$0xff] %v7959
  %8056 = vst [vmem:[#allocation2 + $0x168] sm:$0xff] %v7960
  %8057 = vst [vmem:[#allocation2 + $0x170] sm:$0xff] %v7961
  %8058 = vst [vmem:[#allocation2 + $0x178] sm:$0xff] %v7962
  %8059 = vst [vmem:[#allocation2 + $0x180] sm:$0xff] %v7963
  %8060 = vst [vmem:[#allocation2 + $0x188] sm:$0xff] %v7964
  %8061 = vst [vmem:[#allocation2 + $0x190] sm:$0xff] %v7965
  %8062 = vst [vmem:[#allocation2 + $0x198] sm:$0xff] %v7966
  %8063 = vst [vmem:[#allocation2 + $0x1a0] sm:$0xff] %v7967
  %8064 = vst [vmem:[#allocation2 + $0x1a8] sm:$0xff] %v7968
  %8065 = vst [vmem:[#allocation2 + $0x1b0] sm:$0xff] %v7969
  %8066 = vst [vmem:[#allocation2 + $0x1b8] sm:$0xff] %v7970
  %8067 = vst [vmem:[#allocation2 + $0x1c0] sm:$0xff] %v7971
  %8068 = vst [vmem:[#allocation2 + $0x1c8] sm:$0xff] %v7972
  %8069 = vst [vmem:[#allocation2 + $0x1d0] sm:$0xff] %v7973
  %8070 = vst [vmem:[#allocation2 + $0x1d8] sm:$0xff] %v7974
  %8071 = vst [vmem:[#allocation2 + $0x1e0] sm:$0xff] %v7975
  %8072 = vst [vmem:[#allocation2 + $0x1e8] sm:$0xff] %v7976
  %8073 = vst [vmem:[#allocation2 + $0x1f0] sm:$0xff] %v7977
  %8074 = vst [vmem:[#allocation2 + $0x1f8] sm:$0xff] %v7978
  %8075 = vst [vmem:[#allocation2 + $0x200] sm:$0xff] %v7979
  %8076 = vst [vmem:[#allocation2 + $0x208] sm:$0xff] %v7980
  %8077 = vst [vmem:[#allocation2 + $0x210] sm:$0xff] %v7981
  %8078 = vst [vmem:[#allocation2 + $0x218] sm:$0xff] %v7982
  %8079 = vst [vmem:[#allocation2 + $0x220] sm:$0xff] %v7983
  %8080 = vst [vmem:[#allocation2 + $0x228] sm:$0xff] %v7984
  %8081 = vst [vmem:[#allocation2 + $0x230] sm:$0xff] %v7985
  %8082 = vst [vmem:[#allocation2 + $0x238] sm:$0xff] %v7986
  %8083 = vst [vmem:[#allocation2 + $0x240] sm:$0xff] %v7987
  %8084 = vst [vmem:[#allocation2 + $0x248] sm:$0xff] %v7988
  %8085 = vst [vmem:[#allocation2 + $0x250] sm:$0xff] %v7989
  %8086 = vst [vmem:[#allocation2 + $0x258] sm:$0xff] %v7990
  %8087 = vst [vmem:[#allocation2 + $0x260] sm:$0xff] %v7991
  %8088 = vst [vmem:[#allocation2 + $0x268] sm:$0xff] %v7992
  %8089 = vst [vmem:[#allocation2 + $0x270] sm:$0xff] %v7993
  %8090 = vst [vmem:[#allocation2 + $0x278] sm:$0xff] %v7994
  %8091 = vst [vmem:[#allocation2 + $0x280] sm:$0xff] %v7995
  %8092 = vst [vmem:[#allocation2 + $0x288] sm:$0xff] %v7996
  %8093 = vst [vmem:[#allocation2 + $0x290] sm:$0xff] %v7997
  %8094 = vst [vmem:[#allocation2 + $0x298] sm:$0xff] %v7998
  %8095 = vst [vmem:[#allocation2 + $0x2a0] sm:$0xff] %v7999
  %8096 = vst [vmem:[#allocation2 + $0x2a8] sm:$0xff] %v8000
  %8097 = vst [vmem:[#allocation2 + $0x2b0] sm:$0xff] %v8001
  %8098 = vst [vmem:[#allocation2 + $0x2b8] sm:$0xff] %v8002
  %8099 = vst [vmem:[#allocation2 + $0x2c0] sm:$0xff] %v8003
  %8100 = vst [vmem:[#allocation2 + $0x2c8] sm:$0xff] %v8004
  %8101 = vst [vmem:[#allocation2 + $0x2d0] sm:$0xff] %v8005
  %8102 = vst [vmem:[#allocation2 + $0x2d8] sm:$0xff] %v8006
  %8103 = vst [vmem:[#allocation2 + $0x2e0] sm:$0xff] %v8007
  %8104 = vst [vmem:[#allocation2 + $0x2e8] sm:$0xff] %v8008
  %8105 = vst [vmem:[#allocation2 + $0x2f0] sm:$0xff] %v8009
  %8106 = vst [vmem:[#allocation2 + $0x2f8] sm:$0xff] %v8010
  %v8107 = vld [vmem:[%s0 + $0x26] sm:$0xff]
  %v8108 = vld [vmem:[%s0 + $0x2e] sm:$0xff]
  %v8109 = vld [vmem:[%s0 + $0x36] sm:$0xff]
  %v8110 = vld [vmem:[%s0 + $0x3e] sm:$0xff]
  %v8111 = vld [vmem:[%s0 + $0x46] sm:$0xff]
  %v8112 = vld [vmem:[%s0 + $0x4e] sm:$0xff]
  %v8113 = vld [vmem:[%s0 + $0x56] sm:$0xff]
  %v8114 = vld [vmem:[%s0 + $0x5e] sm:$0xff]
  %v8115 = vld [vmem:[%s0 + $0x66] sm:$0xff]
  %v8116 = vld [vmem:[%s0 + $0x6e] sm:$0xff]
  %v8117 = vld [vmem:[%s0 + $0x76] sm:$0xff]
  %v8118 = vld [vmem:[%s0 + $0x7e] sm:$0xff]
  %v8119 = vld [vmem:[%s0 + $0x86] sm:$0xff]
  %v8120 = vld [vmem:[%s0 + $0x8e] sm:$0xff]
  %v8121 = vld [vmem:[%s0 + $0x96] sm:$0xff]
  %v8122 = vld [vmem:[%s0 + $0x9e] sm:$0xff]
  %v8123 = vld [vmem:[%s0 + $0xa6] sm:$0xff]
  %v8124 = vld [vmem:[%s0 + $0xae] sm:$0xff]
  %v8125 = vld [vmem:[%s0 + $0xb6] sm:$0xff]
  %v8126 = vld [vmem:[%s0 + $0xbe] sm:$0xff]
  %v8127 = vld [vmem:[%s0 + $0xc6] sm:$0xff]
  %v8128 = vld [vmem:[%s0 + $0xce] sm:$0xff]
  %v8129 = vld [vmem:[%s0 + $0xd6] sm:$0xff]
  %v8130 = vld [vmem:[%s0 + $0xde] sm:$0xff]
  %v8131 = vld [vmem:[%s0 + $0xe6] sm:$0xff]
  %v8132 = vld [vmem:[%s0 + $0xee] sm:$0xff]
  %v8133 = vld [vmem:[%s0 + $0xf6] sm:$0xff]
  %v8134 = vld [vmem:[%s0 + $0xfe] sm:$0xff]
  %v8135 = vld [vmem:[%s0 + $0x106] sm:$0xff]
  %v8136 = vld [vmem:[%s0 + $0x10e] sm:$0xff]
  %v8137 = vld [vmem:[%s0 + $0x116] sm:$0xff]
  %v8138 = vld [vmem:[%s0 + $0x11e] sm:$0xff]
  %v8139 = vld [vmem:[%s0 + $0x126] sm:$0xff]
  %v8140 = vld [vmem:[%s0 + $0x12e] sm:$0xff]
  %v8141 = vld [vmem:[%s0 + $0x136] sm:$0xff]
  %v8142 = vld [vmem:[%s0 + $0x13e] sm:$0xff]
  %v8143 = vld [vmem:[%s0 + $0x146] sm:$0xff]
  %v8144 = vld [vmem:[%s0 + $0x14e] sm:$0xff]
  %v8145 = vld [vmem:[%s0 + $0x156] sm:$0xff]
  %v8146 = vld [vmem:[%s0 + $0x15e] sm:$0xff]
  %v8147 = vld [vmem:[%s0 + $0x166] sm:$0xff]
  %v8148 = vld [vmem:[%s0 + $0x16e] sm:$0xff]
  %v8149 = vld [vmem:[%s0 + $0x176] sm:$0xff]
  %v8150 = vld [vmem:[%s0 + $0x17e] sm:$0xff]
  %v8151 = vld [vmem:[%s0 + $0x186] sm:$0xff]
  %v8152 = vld [vmem:[%s0 + $0x18e] sm:$0xff]
  %v8153 = vld [vmem:[%s0 + $0x196] sm:$0xff]
  %v8154 = vld [vmem:[%s0 + $0x19e] sm:$0xff]
  %v8155 = vld [vmem:[%s0 + $0x1a6] sm:$0xff]
  %v8156 = vld [vmem:[%s0 + $0x1ae] sm:$0xff]
  %v8157 = vld [vmem:[%s0 + $0x1b6] sm:$0xff]
  %v8158 = vld [vmem:[%s0 + $0x1be] sm:$0xff]
  %v8159 = vld [vmem:[%s0 + $0x1c6] sm:$0xff]
  %v8160 = vld [vmem:[%s0 + $0x1ce] sm:$0xff]
  %v8161 = vld [vmem:[%s0 + $0x1d6] sm:$0xff]
  %v8162 = vld [vmem:[%s0 + $0x1de] sm:$0xff]
  %v8163 = vld [vmem:[%s0 + $0x1e6] sm:$0xff]
  %v8164 = vld [vmem:[%s0 + $0x1ee] sm:$0xff]
  %v8165 = vld [vmem:[%s0 + $0x1f6] sm:$0xff]
  %v8166 = vld [vmem:[%s0 + $0x1fe] sm:$0xff]
  %v8167 = vld [vmem:[%s0 + $0x206] sm:$0xff]
  %v8168 = vld [vmem:[%s0 + $0x20e] sm:$0xff]
  %v8169 = vld [vmem:[%s0 + $0x216] sm:$0xff]
  %v8170 = vld [vmem:[%s0 + $0x21e] sm:$0xff]
  %v8171 = vld [vmem:[%s0 + $0x226] sm:$0xff]
  %v8172 = vld [vmem:[%s0 + $0x22e] sm:$0xff]
  %v8173 = vld [vmem:[%s0 + $0x236] sm:$0xff]
  %v8174 = vld [vmem:[%s0 + $0x23e] sm:$0xff]
  %v8175 = vld [vmem:[%s0 + $0x246] sm:$0xff]
  %v8176 = vld [vmem:[%s0 + $0x24e] sm:$0xff]
  %v8177 = vld [vmem:[%s0 + $0x256] sm:$0xff]
  %v8178 = vld [vmem:[%s0 + $0x25e] sm:$0xff]
  %v8179 = vld [vmem:[%s0 + $0x266] sm:$0xff]
  %v8180 = vld [vmem:[%s0 + $0x26e] sm:$0xff]
  %v8181 = vld [vmem:[%s0 + $0x276] sm:$0xff]
  %v8182 = vld [vmem:[%s0 + $0x27e] sm:$0xff]
  %v8183 = vld [vmem:[%s0 + $0x286] sm:$0xff]
  %v8184 = vld [vmem:[%s0 + $0x28e] sm:$0xff]
  %v8185 = vld [vmem:[%s0 + $0x296] sm:$0xff]
  %v8186 = vld [vmem:[%s0 + $0x29e] sm:$0xff]
  %v8187 = vld [vmem:[%s0 + $0x2a6] sm:$0xff]
  %v8188 = vld [vmem:[%s0 + $0x2ae] sm:$0xff]
  %v8189 = vld [vmem:[%s0 + $0x2b6] sm:$0xff]
  %v8190 = vld [vmem:[%s0 + $0x2be] sm:$0xff]
  %v8191 = vld [vmem:[%s0 + $0x2c6] sm:$0xff]
  %v8192 = vld [vmem:[%s0 + $0x2ce] sm:$0xff]
  %v8193 = vld [vmem:[%s0 + $0x2d6] sm:$0xff]
  %v8194 = vld [vmem:[%s0 + $0x2de] sm:$0xff]
  %v8195 = vld [vmem:[%s0 + $0x2e6] sm:$0xff]
  %v8196 = vld [vmem:[%s0 + $0x2ee] sm:$0xff]
  %v8197 = vld [vmem:[%s0 + $0x2f6] sm:$0xff]
  %v8198 = vld [vmem:[%s0 + $0x2fe] sm:$0xff]
  %v8199 = vld [vmem:[%s0 + $0x306] sm:$0xff]
  %v8200 = vld [vmem:[%s0 + $0x30e] sm:$0xff]
  %v8201 = vld [vmem:[%s0 + $0x316] sm:$0xff]
  %v8202 = vld [vmem:[%s0 + $0x31e] sm:$0xff]
  %v8203 = vpack.c.bf16 %v8108, %v8107
  %v8204 = vpack.c.bf16 %v8110, %v8109
  %v8205 = vpack.c.bf16 %v8112, %v8111
  %v8206 = vpack.c.bf16 %v8114, %v8113
  %v8207 = vpack.c.bf16 %v8116, %v8115
  %v8208 = vpack.c.bf16 %v8118, %v8117
  %v8209 = vpack.c.bf16 %v8120, %v8119
  %v8210 = vpack.c.bf16 %v8122, %v8121
  %v8211 = vpack.c.bf16 %v8124, %v8123
  %v8212 = vpack.c.bf16 %v8126, %v8125
  %v8213 = vpack.c.bf16 %v8128, %v8127
  %v8214 = vpack.c.bf16 %v8130, %v8129
  %v8215 = vpack.c.bf16 %v8132, %v8131
  %v8216 = vpack.c.bf16 %v8134, %v8133
  %v8217 = vpack.c.bf16 %v8136, %v8135
  %v8218 = vpack.c.bf16 %v8138, %v8137
  %v8219 = vpack.c.bf16 %v8140, %v8139
  %v8220 = vpack.c.bf16 %v8142, %v8141
  %v8221 = vpack.c.bf16 %v8144, %v8143
  %v8222 = vpack.c.bf16 %v8146, %v8145
  %v8223 = vpack.c.bf16 %v8148, %v8147
  %v8224 = vpack.c.bf16 %v8150, %v8149
  %v8225 = vpack.c.bf16 %v8152, %v8151
  %v8226 = vpack.c.bf16 %v8154, %v8153
  %v8227 = vpack.c.bf16 %v8156, %v8155
  %v8228 = vpack.c.bf16 %v8158, %v8157
  %v8229 = vpack.c.bf16 %v8160, %v8159
  %v8230 = vpack.c.bf16 %v8162, %v8161
  %v8231 = vpack.c.bf16 %v8164, %v8163
  %v8232 = vpack.c.bf16 %v8166, %v8165
  %v8233 = vpack.c.bf16 %v8168, %v8167
  %v8234 = vpack.c.bf16 %v8170, %v8169
  %v8235 = vpack.c.bf16 %v8172, %v8171
  %v8236 = vpack.c.bf16 %v8174, %v8173
  %v8237 = vpack.c.bf16 %v8176, %v8175
  %v8238 = vpack.c.bf16 %v8178, %v8177
  %v8239 = vpack.c.bf16 %v8180, %v8179
  %v8240 = vpack.c.bf16 %v8182, %v8181
  %v8241 = vpack.c.bf16 %v8184, %v8183
  %v8242 = vpack.c.bf16 %v8186, %v8185
  %v8243 = vpack.c.bf16 %v8188, %v8187
  %v8244 = vpack.c.bf16 %v8190, %v8189
  %v8245 = vpack.c.bf16 %v8192, %v8191
  %v8246 = vpack.c.bf16 %v8194, %v8193
  %v8247 = vpack.c.bf16 %v8196, %v8195
  %v8248 = vpack.c.bf16 %v8198, %v8197
  %v8249 = vpack.c.bf16 %v8200, %v8199
  %v8250 = vpack.c.bf16 %v8202, %v8201
  %s8251 = scalar_lea.vmem %s1, 32
  %v8252 = vld [vmem:[%s8251] sm:$0xf]
  %v8254 = vsel %vm163, %v8203, 0
  %v8257 = vsel %vm163, %v8204, 0
  %v8260 = vsel %vm163, %v8205, 0
  %v8263 = vsel %vm163, %v8206, 0
  %v8266 = vsel %vm163, %v8207, 0
  %v8269 = vsel %vm163, %v8208, 0
  %v8272 = vsel %vm163, %v8209, 0
  %v8275 = vsel %vm163, %v8210, 0
  %v8278 = vsel %vm163, %v8211, 0
  %v8281 = vsel %vm163, %v8212, 0
  %v8284 = vsel %vm163, %v8213, 0
  %v8287 = vsel %vm163, %v8214, 0
  %v8290 = vsel %vm163, %v8215, 0
  %v8293 = vsel %vm163, %v8216, 0
  %v8296 = vsel %vm163, %v8217, 0
  %v8299 = vsel %vm163, %v8218, 0
  %v8302 = vsel %vm163, %v8219, 0
  %v8305 = vsel %vm163, %v8220, 0
  %v8308 = vsel %vm163, %v8221, 0
  %v8311 = vsel %vm163, %v8222, 0
  %v8314 = vsel %vm163, %v8223, 0
  %v8317 = vsel %vm163, %v8224, 0
  %v8320 = vsel %vm163, %v8225, 0
  %v8323 = vsel %vm163, %v8226, 0
  %v8326 = vsel %vm163, %v8227, 0
  %v8329 = vsel %vm163, %v8228, 0
  %v8332 = vsel %vm163, %v8229, 0
  %v8335 = vsel %vm163, %v8230, 0
  %v8338 = vsel %vm163, %v8231, 0
  %v8341 = vsel %vm163, %v8232, 0
  %v8344 = vsel %vm163, %v8233, 0
  %v8347 = vsel %vm163, %v8234, 0
  %v8350 = vsel %vm163, %v8235, 0
  %v8353 = vsel %vm163, %v8236, 0
  %v8356 = vsel %vm163, %v8237, 0
  %v8359 = vsel %vm163, %v8238, 0
  %v8362 = vsel %vm163, %v8239, 0
  %v8365 = vsel %vm163, %v8240, 0
  %v8368 = vsel %vm163, %v8241, 0
  %v8371 = vsel %vm163, %v8242, 0
  %v8374 = vsel %vm163, %v8243, 0
  %v8377 = vsel %vm163, %v8244, 0
  %v8380 = vsel %vm163, %v8245, 0
  %v8383 = vsel %vm163, %v8246, 0
  %v8386 = vsel %vm163, %v8247, 0
  %v8389 = vsel %vm163, %v8248, 0
  %v8392 = vsel %vm163, %v8249, 0
  %v8395 = vsel %vm163, %v8250, 0
  %v8398 = vsel %vm308, %v8252, 0
  %8400 = vmatprep.subr.bf16.mxu0 0
  %8401 = vmatpush1.bf16.msra.mxu0 %v8398
  %8402 = vmatprep.subr.bf16.mxu0 0
  %8403 = vmatpush1.bf16.msra.mxu0 0
  %8404 = vmatprep.subr.bf16.mxu0 0
  %8405 = vmatpush1.bf16.msra.mxu0 0
  %8406 = vmatprep.subr.bf16.mxu0 0
  %8407 = vmatpush1.bf16.msra.mxu0 0
  %8408 = vmatprep.subr.bf16.mxu0 0
  %8409 = vmatpush1.bf16.msra.mxu0 0
  %8410 = vmatprep.subr.bf16.mxu0 0
  %8411 = vmatpush1.bf16.msra.mxu0 0
  %8412 = vmatprep.subr.bf16.mxu0 0
  %8413 = vmatpush1.bf16.msra.mxu0 0
  %8414 = vmatprep.subr.bf16.mxu0 0
  %8415 = vmatpush1.bf16.msra.mxu0 0
  %8416 = vmatprep.subr.bf16.mxu0 0
  %8417 = vmatpush1.bf16.msra.mxu0 0
  %8418 = vmatprep.subr.bf16.mxu0 0
  %8419 = vmatpush1.bf16.msra.mxu0 0
  %8420 = vmatprep.subr.bf16.mxu0 0
  %8421 = vmatpush1.bf16.msra.mxu0 0
  %8422 = vmatprep.subr.bf16.mxu0 0
  %8423 = vmatpush1.bf16.msra.mxu0 0
  %8424 = vmatprep.subr.bf16.mxu0 0
  %8425 = vmatpush1.bf16.msra.mxu0 0
  %8426 = vmatprep.subr.bf16.mxu0 0
  %8427 = vmatpush1.bf16.msra.mxu0 0
  %8428 = vmatprep.subr.bf16.mxu0 0
  %8429 = vmatpush1.bf16.msra.mxu0 0
  %8430 = vmatprep.subr.bf16.mxu0 0
  %8431 = vmatpush1.bf16.msra.mxu0 0
  %8432 = vmatprep.mubr.bf16.mxu0 0
  %8433 = vmatmul.mubr.bf16.gmra.mrb[0].mxu0 %v8254
  %v8434 = vpop.f32.mrb[0].mxu0
  %v8435 = vadd.f32 0.0, %v8434
  %v8436 = vpop.f32.mrb[0].mxu0
  %v8437 = vpop.f32.mrb[0].mxu0
  %v8438 = vadd.f32 0.0, %v8437
  %v8439 = vpop.f32.mrb[0].mxu0
  %8440 = vmatprep.mubr.bf16.mxu0 0
  %8441 = vmatmul.mubr.bf16.gmra.mrb[0].mxu0 %v8257
  %v8442 = vpop.f32.mrb[0].mxu0
  %v8443 = vadd.f32 0.0, %v8442
  %v8444 = vpop.f32.mrb[0].mxu0
  %v8445 = vpop.f32.mrb[0].mxu0
  %v8446 = vadd.f32 0.0, %v8445
  %v8447 = vpop.f32.mrb[0].mxu0
  %8448 = vmatprep.mubr.bf16.mxu0 0
  %8449 = vmatmul.mubr.bf16.gmra.mrb[0].mxu0 %v8260
  %v8450 = vpop.f32.mrb[0].mxu0
  %v8451 = vadd.f32 0.0, %v8450
  %v8452 = vpop.f32.mrb[0].mxu0
  %v8453 = vpop.f32.mrb[0].mxu0
  %v8454 = vadd.f32 0.0, %v8453
  %v8455 = vpop.f32.mrb[0].mxu0
  %8456 = vmatprep.mubr.bf16.mxu0 0
  %8457 = vmatmul.mubr.bf16.gmra.mrb[0].mxu0 %v8263
  %v8458 = vpop.f32.mrb[0].mxu0
  %v8459 = vadd.f32 0.0, %v8458
  %v8460 = vpop.f32.mrb[0].mxu0
  %v8461 = vpop.f32.mrb[0].mxu0
  %v8462 = vadd.f32 0.0, %v8461
  %v8463 = vpop.f32.mrb[0].mxu0
  %8464 = vmatprep.mubr.bf16.mxu0 0
  %8465 = vmatmul.mubr.bf16.gmra.mrb[0].mxu0 %v8266
  %v8466 = vpop.f32.mrb[0].mxu0
  %v8467 = vadd.f32 0.0, %v8466
  %v8468 = vpop.f32.mrb[0].mxu0
  %v8469 = vpop.f32.mrb[0].mxu0
  %v8470 = vadd.f32 0.0, %v8469
  %v8471 = vpop.f32.mrb[0].mxu0
  %8472 = vmatprep.mubr.bf16.mxu0 0
  %8473 = vmatmul.mubr.bf16.gmra.mrb[0].mxu0 %v8269
  %v8474 = vpop.f32.mrb[0].mxu0
  %v8475 = vadd.f32 0.0, %v8474
  %v8476 = vpop.f32.mrb[0].mxu0
  %v8477 = vpop.f32.mrb[0].mxu0
  %v8478 = vadd.f32 0.0, %v8477
  %v8479 = vpop.f32.mrb[0].mxu0
  %8480 = vmatprep.mubr.bf16.mxu0 0
  %8481 = vmatmul.mubr.bf16.gmra.mrb[0].mxu0 %v8272
  %v8482 = vpop.f32.mrb[0].mxu0
  %v8483 = vadd.f32 0.0, %v8482
  %v8484 = vpop.f32.mrb[0].mxu0
  %v8485 = vpop.f32.mrb[0].mxu0
  %v8486 = vadd.f32 0.0, %v8485
  %v8487 = vpop.f32.mrb[0].mxu0
  %8488 = vmatprep.mubr.bf16.mxu0 0
  %8489 = vmatmul.mubr.bf16.gmra.mrb[0].mxu0 %v8275
  %v8490 = vpop.f32.mrb[0].mxu0
  %v8491 = vadd.f32 0.0, %v8490
  %v8492 = vpop.f32.mrb[0].mxu0
  %v8493 = vpop.f32.mrb[0].mxu0
  %v8494 = vadd.f32 0.0, %v8493
  %v8495 = vpop.f32.mrb[0].mxu0
  %8496 = vmatprep.mubr.bf16.mxu0 0
  %8497 = vmatmul.mubr.bf16.gmra.mrb[0].mxu0 %v8278
  %v8498 = vpop.f32.mrb[0].mxu0
  %v8499 = vadd.f32 0.0, %v8498
  %v8500 = vpop.f32.mrb[0].mxu0
  %v8501 = vpop.f32.mrb[0].mxu0
  %v8502 = vadd.f32 0.0, %v8501
  %v8503 = vpop.f32.mrb[0].mxu0
  %8504 = vmatprep.mubr.bf16.mxu0 0
  %8505 = vmatmul.mubr.bf16.gmra.mrb[0].mxu0 %v8281
  %v8506 = vpop.f32.mrb[0].mxu0
  %v8507 = vadd.f32 0.0, %v8506
  %v8508 = vpop.f32.mrb[0].mxu0
  %v8509 = vpop.f32.mrb[0].mxu0
  %v8510 = vadd.f32 0.0, %v8509
  %v8511 = vpop.f32.mrb[0].mxu0
  %8512 = vmatprep.mubr.bf16.mxu0 0
  %8513 = vmatmul.mubr.bf16.gmra.mrb[0].mxu0 %v8284
  %v8514 = vpop.f32.mrb[0].mxu0
  %v8515 = vadd.f32 0.0, %v8514
  %v8516 = vpop.f32.mrb[0].mxu0
  %v8517 = vpop.f32.mrb[0].mxu0
  %v8518 = vadd.f32 0.0, %v8517
  %v8519 = vpop.f32.mrb[0].mxu0
  %8520 = vmatprep.mubr.bf16.mxu0 0
  %8521 = vmatmul.mubr.bf16.gmra.mrb[0].mxu0 %v8287
  %v8522 = vpop.f32.mrb[0].mxu0
  %v8523 = vadd.f32 0.0, %v8522
  %v8524 = vpop.f32.mrb[0].mxu0
  %v8525 = vpop.f32.mrb[0].mxu0
  %v8526 = vadd.f32 0.0, %v8525
  %v8527 = vpop.f32.mrb[0].mxu0
  %8528 = vmatprep.mubr.bf16.mxu0 0
  %8529 = vmatmul.mubr.bf16.gmra.mrb[0].mxu0 %v8290
  %v8530 = vpop.f32.mrb[0].mxu0
  %v8531 = vadd.f32 0.0, %v8530
  %v8532 = vpop.f32.mrb[0].mxu0
  %v8533 = vpop.f32.mrb[0].mxu0
  %v8534 = vadd.f32 0.0, %v8533
  %v8535 = vpop.f32.mrb[0].mxu0
  %8536 = vmatprep.mubr.bf16.mxu0 0
  %8537 = vmatmul.mubr.bf16.gmra.mrb[0].mxu0 %v8293
  %v8538 = vpop.f32.mrb[0].mxu0
  %v8539 = vadd.f32 0.0, %v8538
  %v8540 = vpop.f32.mrb[0].mxu0
  %v8541 = vpop.f32.mrb[0].mxu0
  %v8542 = vadd.f32 0.0, %v8541
  %v8543 = vpop.f32.mrb[0].mxu0
  %8544 = vmatprep.mubr.bf16.mxu0 0
  %8545 = vmatmul.mubr.bf16.gmra.mrb[0].mxu0 %v8296
  %v8546 = vpop.f32.mrb[0].mxu0
  %v8547 = vadd.f32 0.0, %v8546
  %v8548 = vpop.f32.mrb[0].mxu0
  %v8549 = vpop.f32.mrb[0].mxu0
  %v8550 = vadd.f32 0.0, %v8549
  %v8551 = vpop.f32.mrb[0].mxu0
  %8552 = vmatprep.mubr.bf16.mxu0 0
  %8553 = vmatmul.mubr.bf16.gmra.mrb[0].mxu0 %v8299
  %v8554 = vpop.f32.mrb[0].mxu0
  %v8555 = vadd.f32 0.0, %v8554
  %v8556 = vpop.f32.mrb[0].mxu0
  %v8557 = vpop.f32.mrb[0].mxu0
  %v8558 = vadd.f32 0.0, %v8557
  %v8559 = vpop.f32.mrb[0].mxu0
  %8560 = vmatprep.mubr.bf16.mxu0 0
  %8561 = vmatmul.mubr.bf16.gmra.mrb[0].mxu0 %v8302
  %v8562 = vpop.f32.mrb[0].mxu0
  %v8563 = vadd.f32 0.0, %v8562
  %v8564 = vpop.f32.mrb[0].mxu0
  %v8565 = vpop.f32.mrb[0].mxu0
  %v8566 = vadd.f32 0.0, %v8565
  %v8567 = vpop.f32.mrb[0].mxu0
  %8568 = vmatprep.mubr.bf16.mxu0 0
  %8569 = vmatmul.mubr.bf16.gmra.mrb[0].mxu0 %v8305
  %v8570 = vpop.f32.mrb[0].mxu0
  %v8571 = vadd.f32 0.0, %v8570
  %v8572 = vpop.f32.mrb[0].mxu0
  %v8573 = vpop.f32.mrb[0].mxu0
  %v8574 = vadd.f32 0.0, %v8573
  %v8575 = vpop.f32.mrb[0].mxu0
  %8576 = vmatprep.mubr.bf16.mxu0 0
  %8577 = vmatmul.mubr.bf16.gmra.mrb[0].mxu0 %v8308
  %v8578 = vpop.f32.mrb[0].mxu0
  %v8579 = vadd.f32 0.0, %v8578
  %v8580 = vpop.f32.mrb[0].mxu0
  %v8581 = vpop.f32.mrb[0].mxu0
  %v8582 = vadd.f32 0.0, %v8581
  %v8583 = vpop.f32.mrb[0].mxu0
  %8584 = vmatprep.mubr.bf16.mxu0 0
  %8585 = vmatmul.mubr.bf16.gmra.mrb[0].mxu0 %v8311
  %v8586 = vpop.f32.mrb[0].mxu0
  %v8587 = vadd.f32 0.0, %v8586
  %v8588 = vpop.f32.mrb[0].mxu0
  %v8589 = vpop.f32.mrb[0].mxu0
  %v8590 = vadd.f32 0.0, %v8589
  %v8591 = vpop.f32.mrb[0].mxu0
  %8592 = vmatprep.mubr.bf16.mxu0 0
  %8593 = vmatmul.mubr.bf16.gmra.mrb[0].mxu0 %v8314
  %v8594 = vpop.f32.mrb[0].mxu0
  %v8595 = vadd.f32 0.0, %v8594
  %v8596 = vpop.f32.mrb[0].mxu0
  %v8597 = vpop.f32.mrb[0].mxu0
  %v8598 = vadd.f32 0.0, %v8597
  %v8599 = vpop.f32.mrb[0].mxu0
  %8600 = vmatprep.mubr.bf16.mxu0 0
  %8601 = vmatmul.mubr.bf16.gmra.mrb[0].mxu0 %v8317
  %v8602 = vpop.f32.mrb[0].mxu0
  %v8603 = vadd.f32 0.0, %v8602
  %v8604 = vpop.f32.mrb[0].mxu0
  %v8605 = vpop.f32.mrb[0].mxu0
  %v8606 = vadd.f32 0.0, %v8605
  %v8607 = vpop.f32.mrb[0].mxu0
  %8608 = vmatprep.mubr.bf16.mxu0 0
  %8609 = vmatmul.mubr.bf16.gmra.mrb[0].mxu0 %v8320
  %v8610 = vpop.f32.mrb[0].mxu0
  %v8611 = vadd.f32 0.0, %v8610
  %v8612 = vpop.f32.mrb[0].mxu0
  %v8613 = vpop.f32.mrb[0].mxu0
  %v8614 = vadd.f32 0.0, %v8613
  %v8615 = vpop.f32.mrb[0].mxu0
  %8616 = vmatprep.mubr.bf16.mxu0 0
  %8617 = vmatmul.mubr.bf16.gmra.mrb[0].mxu0 %v8323
  %v8618 = vpop.f32.mrb[0].mxu0
  %v8619 = vadd.f32 0.0, %v8618
  %v8620 = vpop.f32.mrb[0].mxu0
  %v8621 = vpop.f32.mrb[0].mxu0
  %v8622 = vadd.f32 0.0, %v8621
  %v8623 = vpop.f32.mrb[0].mxu0
  %8624 = vmatprep.mubr.bf16.mxu0 0
  %8625 = vmatmul.mubr.bf16.gmra.mrb[0].mxu0 %v8326
  %v8626 = vpop.f32.mrb[0].mxu0
  %v8627 = vadd.f32 0.0, %v8626
  %v8628 = vpop.f32.mrb[0].mxu0
  %v8629 = vpop.f32.mrb[0].mxu0
  %v8630 = vadd.f32 0.0, %v8629
  %v8631 = vpop.f32.mrb[0].mxu0
  %8632 = vmatprep.mubr.bf16.mxu0 0
  %8633 = vmatmul.mubr.bf16.gmra.mrb[0].mxu0 %v8329
  %v8634 = vpop.f32.mrb[0].mxu0
  %v8635 = vadd.f32 0.0, %v8634
  %v8636 = vpop.f32.mrb[0].mxu0
  %v8637 = vpop.f32.mrb[0].mxu0
  %v8638 = vadd.f32 0.0, %v8637
  %v8639 = vpop.f32.mrb[0].mxu0
  %8640 = vmatprep.mubr.bf16.mxu0 0
  %8641 = vmatmul.mubr.bf16.gmra.mrb[0].mxu0 %v8332
  %v8642 = vpop.f32.mrb[0].mxu0
  %v8643 = vadd.f32 0.0, %v8642
  %v8644 = vpop.f32.mrb[0].mxu0
  %v8645 = vpop.f32.mrb[0].mxu0
  %v8646 = vadd.f32 0.0, %v8645
  %v8647 = vpop.f32.mrb[0].mxu0
  %8648 = vmatprep.mubr.bf16.mxu0 0
  %8649 = vmatmul.mubr.bf16.gmra.mrb[0].mxu0 %v8335
  %v8650 = vpop.f32.mrb[0].mxu0
  %v8651 = vadd.f32 0.0, %v8650
  %v8652 = vpop.f32.mrb[0].mxu0
  %v8653 = vpop.f32.mrb[0].mxu0
  %v8654 = vadd.f32 0.0, %v8653
  %v8655 = vpop.f32.mrb[0].mxu0
  %8656 = vmatprep.mubr.bf16.mxu0 0
  %8657 = vmatmul.mubr.bf16.gmra.mrb[0].mxu0 %v8338
  %v8658 = vpop.f32.mrb[0].mxu0
  %v8659 = vadd.f32 0.0, %v8658
  %v8660 = vpop.f32.mrb[0].mxu0
  %v8661 = vpop.f32.mrb[0].mxu0
  %v8662 = vadd.f32 0.0, %v8661
  %v8663 = vpop.f32.mrb[0].mxu0
  %8664 = vmatprep.mubr.bf16.mxu0 0
  %8665 = vmatmul.mubr.bf16.gmra.mrb[0].mxu0 %v8341
  %v8666 = vpop.f32.mrb[0].mxu0
  %v8667 = vadd.f32 0.0, %v8666
  %v8668 = vpop.f32.mrb[0].mxu0
  %v8669 = vpop.f32.mrb[0].mxu0
  %v8670 = vadd.f32 0.0, %v8669
  %v8671 = vpop.f32.mrb[0].mxu0
  %8672 = vmatprep.mubr.bf16.mxu0 0
  %8673 = vmatmul.mubr.bf16.gmra.mrb[0].mxu0 %v8344
  %v8674 = vpop.f32.mrb[0].mxu0
  %v8675 = vadd.f32 0.0, %v8674
  %v8676 = vpop.f32.mrb[0].mxu0
  %v8677 = vpop.f32.mrb[0].mxu0
  %v8678 = vadd.f32 0.0, %v8677
  %v8679 = vpop.f32.mrb[0].mxu0
  %8680 = vmatprep.mubr.bf16.mxu0 0
  %8681 = vmatmul.mubr.bf16.gmra.mrb[0].mxu0 %v8347
  %v8682 = vpop.f32.mrb[0].mxu0
  %v8683 = vadd.f32 0.0, %v8682
  %v8684 = vpop.f32.mrb[0].mxu0
  %v8685 = vpop.f32.mrb[0].mxu0
  %v8686 = vadd.f32 0.0, %v8685
  %v8687 = vpop.f32.mrb[0].mxu0
  %8688 = vmatprep.mubr.bf16.mxu0 0
  %8689 = vmatmul.mubr.bf16.gmra.mrb[0].mxu0 %v8350
  %v8690 = vpop.f32.mrb[0].mxu0
  %v8691 = vadd.f32 0.0, %v8690
  %v8692 = vpop.f32.mrb[0].mxu0
  %v8693 = vpop.f32.mrb[0].mxu0
  %v8694 = vadd.f32 0.0, %v8693
  %v8695 = vpop.f32.mrb[0].mxu0
  %8696 = vmatprep.mubr.bf16.mxu0 0
  %8697 = vmatmul.mubr.bf16.gmra.mrb[0].mxu0 %v8353
  %v8698 = vpop.f32.mrb[0].mxu0
  %v8699 = vadd.f32 0.0, %v8698
  %v8700 = vpop.f32.mrb[0].mxu0
  %v8701 = vpop.f32.mrb[0].mxu0
  %v8702 = vadd.f32 0.0, %v8701
  %v8703 = vpop.f32.mrb[0].mxu0
  %8704 = vmatprep.mubr.bf16.mxu0 0
  %8705 = vmatmul.mubr.bf16.gmra.mrb[0].mxu0 %v8356
  %v8706 = vpop.f32.mrb[0].mxu0
  %v8707 = vadd.f32 0.0, %v8706
  %v8708 = vpop.f32.mrb[0].mxu0
  %v8709 = vpop.f32.mrb[0].mxu0
  %v8710 = vadd.f32 0.0, %v8709
  %v8711 = vpop.f32.mrb[0].mxu0
  %8712 = vmatprep.mubr.bf16.mxu0 0
  %8713 = vmatmul.mubr.bf16.gmra.mrb[0].mxu0 %v8359
  %v8714 = vpop.f32.mrb[0].mxu0
  %v8715 = vadd.f32 0.0, %v8714
  %v8716 = vpop.f32.mrb[0].mxu0
  %v8717 = vpop.f32.mrb[0].mxu0
  %v8718 = vadd.f32 0.0, %v8717
  %v8719 = vpop.f32.mrb[0].mxu0
  %8720 = vmatprep.mubr.bf16.mxu0 0
  %8721 = vmatmul.mubr.bf16.gmra.mrb[0].mxu0 %v8362
  %v8722 = vpop.f32.mrb[0].mxu0
  %v8723 = vadd.f32 0.0, %v8722
  %v8724 = vpop.f32.mrb[0].mxu0
  %v8725 = vpop.f32.mrb[0].mxu0
  %v8726 = vadd.f32 0.0, %v8725
  %v8727 = vpop.f32.mrb[0].mxu0
  %8728 = vmatprep.mubr.bf16.mxu0 0
  %8729 = vmatmul.mubr.bf16.gmra.mrb[0].mxu0 %v8365
  %v8730 = vpop.f32.mrb[0].mxu0
  %v8731 = vadd.f32 0.0, %v8730
  %v8732 = vpop.f32.mrb[0].mxu0
  %v8733 = vpop.f32.mrb[0].mxu0
  %v8734 = vadd.f32 0.0, %v8733
  %v8735 = vpop.f32.mrb[0].mxu0
  %8736 = vmatprep.mubr.bf16.mxu0 0
  %8737 = vmatmul.mubr.bf16.gmra.mrb[0].mxu0 %v8368
  %v8738 = vpop.f32.mrb[0].mxu0
  %v8739 = vadd.f32 0.0, %v8738
  %v8740 = vpop.f32.mrb[0].mxu0
  %v8741 = vpop.f32.mrb[0].mxu0
  %v8742 = vadd.f32 0.0, %v8741
  %v8743 = vpop.f32.mrb[0].mxu0
  %8744 = vmatprep.mubr.bf16.mxu0 0
  %8745 = vmatmul.mubr.bf16.gmra.mrb[0].mxu0 %v8371
  %v8746 = vpop.f32.mrb[0].mxu0
  %v8747 = vadd.f32 0.0, %v8746
  %v8748 = vpop.f32.mrb[0].mxu0
  %v8749 = vpop.f32.mrb[0].mxu0
  %v8750 = vadd.f32 0.0, %v8749
  %v8751 = vpop.f32.mrb[0].mxu0
  %8752 = vmatprep.mubr.bf16.mxu0 0
  %8753 = vmatmul.mubr.bf16.gmra.mrb[0].mxu0 %v8374
  %v8754 = vpop.f32.mrb[0].mxu0
  %v8755 = vadd.f32 0.0, %v8754
  %v8756 = vpop.f32.mrb[0].mxu0
  %v8757 = vpop.f32.mrb[0].mxu0
  %v8758 = vadd.f32 0.0, %v8757
  %v8759 = vpop.f32.mrb[0].mxu0
  %8760 = vmatprep.mubr.bf16.mxu0 0
  %8761 = vmatmul.mubr.bf16.gmra.mrb[0].mxu0 %v8377
  %v8762 = vpop.f32.mrb[0].mxu0
  %v8763 = vadd.f32 0.0, %v8762
  %v8764 = vpop.f32.mrb[0].mxu0
  %v8765 = vpop.f32.mrb[0].mxu0
  %v8766 = vadd.f32 0.0, %v8765
  %v8767 = vpop.f32.mrb[0].mxu0
  %8768 = vmatprep.mubr.bf16.mxu0 0
  %8769 = vmatmul.mubr.bf16.gmra.mrb[0].mxu0 %v8380
  %v8770 = vpop.f32.mrb[0].mxu0
  %v8771 = vadd.f32 0.0, %v8770
  %v8772 = vpop.f32.mrb[0].mxu0
  %v8773 = vpop.f32.mrb[0].mxu0
  %v8774 = vadd.f32 0.0, %v8773
  %v8775 = vpop.f32.mrb[0].mxu0
  %8776 = vmatprep.mubr.bf16.mxu0 0
  %8777 = vmatmul.mubr.bf16.gmra.mrb[0].mxu0 %v8383
  %v8778 = vpop.f32.mrb[0].mxu0
  %v8779 = vadd.f32 0.0, %v8778
  %v8780 = vpop.f32.mrb[0].mxu0
  %v8781 = vpop.f32.mrb[0].mxu0
  %v8782 = vadd.f32 0.0, %v8781
  %v8783 = vpop.f32.mrb[0].mxu0
  %8784 = vmatprep.mubr.bf16.mxu0 0
  %8785 = vmatmul.mubr.bf16.gmra.mrb[0].mxu0 %v8386
  %v8786 = vpop.f32.mrb[0].mxu0
  %v8787 = vadd.f32 0.0, %v8786
  %v8788 = vpop.f32.mrb[0].mxu0
  %v8789 = vpop.f32.mrb[0].mxu0
  %v8790 = vadd.f32 0.0, %v8789
  %v8791 = vpop.f32.mrb[0].mxu0
  %8792 = vmatprep.mubr.bf16.mxu0 0
  %8793 = vmatmul.mubr.bf16.gmra.mrb[0].mxu0 %v8389
  %v8794 = vpop.f32.mrb[0].mxu0
  %v8795 = vadd.f32 0.0, %v8794
  %v8796 = vpop.f32.mrb[0].mxu0
  %v8797 = vpop.f32.mrb[0].mxu0
  %v8798 = vadd.f32 0.0, %v8797
  %v8799 = vpop.f32.mrb[0].mxu0
  %8800 = vmatprep.mubr.bf16.mxu0 0
  %8801 = vmatmul.mubr.bf16.gmra.mrb[0].mxu0 %v8392
  %v8802 = vpop.f32.mrb[0].mxu0
  %v8803 = vadd.f32 0.0, %v8802
  %v8804 = vpop.f32.mrb[0].mxu0
  %v8805 = vpop.f32.mrb[0].mxu0
  %v8806 = vadd.f32 0.0, %v8805
  %v8807 = vpop.f32.mrb[0].mxu0
  %8808 = vmatprep.mubr.bf16.mxu0 0
  %8809 = vmatmul.mubr.bf16.gmra.mrb[0].mxu0 %v8395
  %v8810 = vpop.f32.mrb[0].mxu0
  %v8811 = vadd.f32 0.0, %v8810
  %v8812 = vpop.f32.mrb[0].mxu0
  %v8813 = vpop.f32.mrb[0].mxu0
  %v8814 = vadd.f32 0.0, %v8813
  %v8815 = vpop.f32.mrb[0].mxu0
  %8816 = vdwg.mxu0
  %v8817 = vld [vmem:[#allocation2] sm:$0xff]
  %v8818 = vld [vmem:[#allocation2 + $0x8] sm:$0xff]
  %v8819 = vld [vmem:[#allocation2 + $0x10] sm:$0xff]
  %v8820 = vld [vmem:[#allocation2 + $0x18] sm:$0xff]
  %v8821 = vld [vmem:[#allocation2 + $0x20] sm:$0xff]
  %v8822 = vld [vmem:[#allocation2 + $0x28] sm:$0xff]
  %v8823 = vld [vmem:[#allocation2 + $0x30] sm:$0xff]
  %v8824 = vld [vmem:[#allocation2 + $0x38] sm:$0xff]
  %v8825 = vld [vmem:[#allocation2 + $0x40] sm:$0xff]
  %v8826 = vld [vmem:[#allocation2 + $0x48] sm:$0xff]
  %v8827 = vld [vmem:[#allocation2 + $0x50] sm:$0xff]
  %v8828 = vld [vmem:[#allocation2 + $0x58] sm:$0xff]
  %v8829 = vld [vmem:[#allocation2 + $0x60] sm:$0xff]
  %v8830 = vld [vmem:[#allocation2 + $0x68] sm:$0xff]
  %v8831 = vld [vmem:[#allocation2 + $0x70] sm:$0xff]
  %v8832 = vld [vmem:[#allocation2 + $0x78] sm:$0xff]
  %v8833 = vld [vmem:[#allocation2 + $0x80] sm:$0xff]
  %v8834 = vld [vmem:[#allocation2 + $0x88] sm:$0xff]
  %v8835 = vld [vmem:[#allocation2 + $0x90] sm:$0xff]
  %v8836 = vld [vmem:[#allocation2 + $0x98] sm:$0xff]
  %v8837 = vld [vmem:[#allocation2 + $0xa0] sm:$0xff]
  %v8838 = vld [vmem:[#allocation2 + $0xa8] sm:$0xff]
  %v8839 = vld [vmem:[#allocation2 + $0xb0] sm:$0xff]
  %v8840 = vld [vmem:[#allocation2 + $0xb8] sm:$0xff]
  %v8841 = vld [vmem:[#allocation2 + $0xc0] sm:$0xff]
  %v8842 = vld [vmem:[#allocation2 + $0xc8] sm:$0xff]
  %v8843 = vld [vmem:[#allocation2 + $0xd0] sm:$0xff]
  %v8844 = vld [vmem:[#allocation2 + $0xd8] sm:$0xff]
  %v8845 = vld [vmem:[#allocation2 + $0xe0] sm:$0xff]
  %v8846 = vld [vmem:[#allocation2 + $0xe8] sm:$0xff]
  %v8847 = vld [vmem:[#allocation2 + $0xf0] sm:$0xff]
  %v8848 = vld [vmem:[#allocation2 + $0xf8] sm:$0xff]
  %v8849 = vld [vmem:[#allocation2 + $0x100] sm:$0xff]
  %v8850 = vld [vmem:[#allocation2 + $0x108] sm:$0xff]
  %v8851 = vld [vmem:[#allocation2 + $0x110] sm:$0xff]
  %v8852 = vld [vmem:[#allocation2 + $0x118] sm:$0xff]
  %v8853 = vld [vmem:[#allocation2 + $0x120] sm:$0xff]
  %v8854 = vld [vmem:[#allocation2 + $0x128] sm:$0xff]
  %v8855 = vld [vmem:[#allocation2 + $0x130] sm:$0xff]
  %v8856 = vld [vmem:[#allocation2 + $0x138] sm:$0xff]
  %v8857 = vld [vmem:[#allocation2 + $0x140] sm:$0xff]
  %v8858 = vld [vmem:[#allocation2 + $0x148] sm:$0xff]
  %v8859 = vld [vmem:[#allocation2 + $0x150] sm:$0xff]
  %v8860 = vld [vmem:[#allocation2 + $0x158] sm:$0xff]
  %v8861 = vld [vmem:[#allocation2 + $0x160] sm:$0xff]
  %v8862 = vld [vmem:[#allocation2 + $0x168] sm:$0xff]
  %v8863 = vld [vmem:[#allocation2 + $0x170] sm:$0xff]
  %v8864 = vld [vmem:[#allocation2 + $0x178] sm:$0xff]
  %v8865 = vld [vmem:[#allocation2 + $0x180] sm:$0xff]
  %v8866 = vld [vmem:[#allocation2 + $0x188] sm:$0xff]
  %v8867 = vld [vmem:[#allocation2 + $0x190] sm:$0xff]
  %v8868 = vld [vmem:[#allocation2 + $0x198] sm:$0xff]
  %v8869 = vld [vmem:[#allocation2 + $0x1a0] sm:$0xff]
  %v8870 = vld [vmem:[#allocation2 + $0x1a8] sm:$0xff]
  %v8871 = vld [vmem:[#allocation2 + $0x1b0] sm:$0xff]
  %v8872 = vld [vmem:[#allocation2 + $0x1b8] sm:$0xff]
  %v8873 = vld [vmem:[#allocation2 + $0x1c0] sm:$0xff]
  %v8874 = vld [vmem:[#allocation2 + $0x1c8] sm:$0xff]
  %v8875 = vld [vmem:[#allocation2 + $0x1d0] sm:$0xff]
  %v8876 = vld [vmem:[#allocation2 + $0x1d8] sm:$0xff]
  %v8877 = vld [vmem:[#allocation2 + $0x1e0] sm:$0xff]
  %v8878 = vld [vmem:[#allocation2 + $0x1e8] sm:$0xff]
  %v8879 = vld [vmem:[#allocation2 + $0x1f0] sm:$0xff]
  %v8880 = vld [vmem:[#allocation2 + $0x1f8] sm:$0xff]
  %v8881 = vld [vmem:[#allocation2 + $0x200] sm:$0xff]
  %v8882 = vld [vmem:[#allocation2 + $0x208] sm:$0xff]
  %v8883 = vld [vmem:[#allocation2 + $0x210] sm:$0xff]
  %v8884 = vld [vmem:[#allocation2 + $0x218] sm:$0xff]
  %v8885 = vld [vmem:[#allocation2 + $0x220] sm:$0xff]
  %v8886 = vld [vmem:[#allocation2 + $0x228] sm:$0xff]
  %v8887 = vld [vmem:[#allocation2 + $0x230] sm:$0xff]
  %v8888 = vld [vmem:[#allocation2 + $0x238] sm:$0xff]
  %v8889 = vld [vmem:[#allocation2 + $0x240] sm:$0xff]
  %v8890 = vld [vmem:[#allocation2 + $0x248] sm:$0xff]
  %v8891 = vld [vmem:[#allocation2 + $0x250] sm:$0xff]
  %v8892 = vld [vmem:[#allocation2 + $0x258] sm:$0xff]
  %v8893 = vld [vmem:[#allocation2 + $0x260] sm:$0xff]
  %v8894 = vld [vmem:[#allocation2 + $0x268] sm:$0xff]
  %v8895 = vld [vmem:[#allocation2 + $0x270] sm:$0xff]
  %v8896 = vld [vmem:[#allocation2 + $0x278] sm:$0xff]
  %v8897 = vld [vmem:[#allocation2 + $0x280] sm:$0xff]
  %v8898 = vld [vmem:[#allocation2 + $0x288] sm:$0xff]
  %v8899 = vld [vmem:[#allocation2 + $0x290] sm:$0xff]
  %v8900 = vld [vmem:[#allocation2 + $0x298] sm:$0xff]
  %v8901 = vld [vmem:[#allocation2 + $0x2a0] sm:$0xff]
  %v8902 = vld [vmem:[#allocation2 + $0x2a8] sm:$0xff]
  %v8903 = vld [vmem:[#allocation2 + $0x2b0] sm:$0xff]
  %v8904 = vld [vmem:[#allocation2 + $0x2b8] sm:$0xff]
  %v8905 = vld [vmem:[#allocation2 + $0x2c0] sm:$0xff]
  %v8906 = vld [vmem:[#allocation2 + $0x2c8] sm:$0xff]
  %v8907 = vld [vmem:[#allocation2 + $0x2d0] sm:$0xff]
  %v8908 = vld [vmem:[#allocation2 + $0x2d8] sm:$0xff]
  %v8909 = vld [vmem:[#allocation2 + $0x2e0] sm:$0xff]
  %v8910 = vld [vmem:[#allocation2 + $0x2e8] sm:$0xff]
  %v8911 = vld [vmem:[#allocation2 + $0x2f0] sm:$0xff]
  %v8912 = vld [vmem:[#allocation2 + $0x2f8] sm:$0xff]
  %v8913 = vadd.f32 %v8817, %v8435
  %v8914 = vadd.f32 %v8818, %v8438
  %v8915 = vadd.f32 %v8819, %v8443
  %v8916 = vadd.f32 %v8820, %v8446
  %v8917 = vadd.f32 %v8821, %v8451
  %v8918 = vadd.f32 %v8822, %v8454
  %v8919 = vadd.f32 %v8823, %v8459
  %v8920 = vadd.f32 %v8824, %v8462
  %v8921 = vadd.f32 %v8825, %v8467
  %v8922 = vadd.f32 %v8826, %v8470
  %v8923 = vadd.f32 %v8827, %v8475
  %v8924 = vadd.f32 %v8828, %v8478
  %v8925 = vadd.f32 %v8829, %v8483
  %v8926 = vadd.f32 %v8830, %v8486
  %v8927 = vadd.f32 %v8831, %v8491
  %v8928 = vadd.f32 %v8832, %v8494
  %v8929 = vadd.f32 %v8833, %v8499
  %v8930 = vadd.f32 %v8834, %v8502
  %v8931 = vadd.f32 %v8835, %v8507
  %v8932 = vadd.f32 %v8836, %v8510
  %v8933 = vadd.f32 %v8837, %v8515
  %v8934 = vadd.f32 %v8838, %v8518
  %v8935 = vadd.f32 %v8839, %v8523
  %v8936 = vadd.f32 %v8840, %v8526
  %v8937 = vadd.f32 %v8841, %v8531
  %v8938 = vadd.f32 %v8842, %v8534
  %v8939 = vadd.f32 %v8843, %v8539
  %v8940 = vadd.f32 %v8844, %v8542
  %v8941 = vadd.f32 %v8845, %v8547
  %v8942 = vadd.f32 %v8846, %v8550
  %v8943 = vadd.f32 %v8847, %v8555
  %v8944 = vadd.f32 %v8848, %v8558
  %v8945 = vadd.f32 %v8849, %v8563
  %v8946 = vadd.f32 %v8850, %v8566
  %v8947 = vadd.f32 %v8851, %v8571
  %v8948 = vadd.f32 %v8852, %v8574
  %v8949 = vadd.f32 %v8853, %v8579
  %v8950 = vadd.f32 %v8854, %v8582
  %v8951 = vadd.f32 %v8855, %v8587
  %v8952 = vadd.f32 %v8856, %v8590
  %v8953 = vadd.f32 %v8857, %v8595
  %v8954 = vadd.f32 %v8858, %v8598
  %v8955 = vadd.f32 %v8859, %v8603
  %v8956 = vadd.f32 %v8860, %v8606
  %v8957 = vadd.f32 %v8861, %v8611
  %v8958 = vadd.f32 %v8862, %v8614
  %v8959 = vadd.f32 %v8863, %v8619
  %v8960 = vadd.f32 %v8864, %v8622
  %v8961 = vadd.f32 %v8865, %v8627
  %v8962 = vadd.f32 %v8866, %v8630
  %v8963 = vadd.f32 %v8867, %v8635
  %v8964 = vadd.f32 %v8868, %v8638
  %v8965 = vadd.f32 %v8869, %v8643
  %v8966 = vadd.f32 %v8870, %v8646
  %v8967 = vadd.f32 %v8871, %v8651
  %v8968 = vadd.f32 %v8872, %v8654
  %v8969 = vadd.f32 %v8873, %v8659
  %v8970 = vadd.f32 %v8874, %v8662
  %v8971 = vadd.f32 %v8875, %v8667
  %v8972 = vadd.f32 %v8876, %v8670
  %v8973 = vadd.f32 %v8877, %v8675
  %v8974 = vadd.f32 %v8878, %v8678
  %v8975 = vadd.f32 %v8879, %v8683
  %v8976 = vadd.f32 %v8880, %v8686
  %v8977 = vadd.f32 %v8881, %v8691
  %v8978 = vadd.f32 %v8882, %v8694
  %v8979 = vadd.f32 %v8883, %v8699
  %v8980 = vadd.f32 %v8884, %v8702
  %v8981 = vadd.f32 %v8885, %v8707
  %v8982 = vadd.f32 %v8886, %v8710
  %v8983 = vadd.f32 %v8887, %v8715
  %v8984 = vadd.f32 %v8888, %v8718
  %v8985 = vadd.f32 %v8889, %v8723
  %v8986 = vadd.f32 %v8890, %v8726
  %v8987 = vadd.f32 %v8891, %v8731
  %v8988 = vadd.f32 %v8892, %v8734
  %v8989 = vadd.f32 %v8893, %v8739
  %v8990 = vadd.f32 %v8894, %v8742
  %v8991 = vadd.f32 %v8895, %v8747
  %v8992 = vadd.f32 %v8896, %v8750
  %v8993 = vadd.f32 %v8897, %v8755
  %v8994 = vadd.f32 %v8898, %v8758
  %v8995 = vadd.f32 %v8899, %v8763
  %v8996 = vadd.f32 %v8900, %v8766
  %v8997 = vadd.f32 %v8901, %v8771
  %v8998 = vadd.f32 %v8902, %v8774
  %v8999 = vadd.f32 %v8903, %v8779
  %v9000 = vadd.f32 %v8904, %v8782
  %v9001 = vadd.f32 %v8905, %v8787
  %v9002 = vadd.f32 %v8906, %v8790
  %v9003 = vadd.f32 %v8907, %v8795
  %v9004 = vadd.f32 %v8908, %v8798
  %v9005 = vadd.f32 %v8909, %v8803
  %v9006 = vadd.f32 %v8910, %v8806
  %v9007 = vadd.f32 %v8911, %v8811
  %v9008 = vadd.f32 %v8912, %v8814
  %9009 = vst [vmem:[#allocation2] sm:$0xff] %v8913
  %9010 = vst [vmem:[#allocation2 + $0x8] sm:$0xff] %v8914
  %9011 = vst [vmem:[#allocation2 + $0x10] sm:$0xff] %v8915
  %9012 = vst [vmem:[#allocation2 + $0x18] sm:$0xff] %v8916
  %9013 = vst [vmem:[#allocation2 + $0x20] sm:$0xff] %v8917
  %9014 = vst [vmem:[#allocation2 + $0x28] sm:$0xff] %v8918
  %9015 = vst [vmem:[#allocation2 + $0x30] sm:$0xff] %v8919
  %9016 = vst [vmem:[#allocation2 + $0x38] sm:$0xff] %v8920
  %9017 = vst [vmem:[#allocation2 + $0x40] sm:$0xff] %v8921
  %9018 = vst [vmem:[#allocation2 + $0x48] sm:$0xff] %v8922
  %9019 = vst [vmem:[#allocation2 + $0x50] sm:$0xff] %v8923
  %9020 = vst [vmem:[#allocation2 + $0x58] sm:$0xff] %v8924
  %9021 = vst [vmem:[#allocation2 + $0x60] sm:$0xff] %v8925
  %9022 = vst [vmem:[#allocation2 + $0x68] sm:$0xff] %v8926
  %9023 = vst [vmem:[#allocation2 + $0x70] sm:$0xff] %v8927
  %9024 = vst [vmem:[#allocation2 + $0x78] sm:$0xff] %v8928
  %9025 = vst [vmem:[#allocation2 + $0x80] sm:$0xff] %v8929
  %9026 = vst [vmem:[#allocation2 + $0x88] sm:$0xff] %v8930
  %9027 = vst [vmem:[#allocation2 + $0x90] sm:$0xff] %v8931
  %9028 = vst [vmem:[#allocation2 + $0x98] sm:$0xff] %v8932
  %9029 = vst [vmem:[#allocation2 + $0xa0] sm:$0xff] %v8933
  %9030 = vst [vmem:[#allocation2 + $0xa8] sm:$0xff] %v8934
  %9031 = vst [vmem:[#allocation2 + $0xb0] sm:$0xff] %v8935
  %9032 = vst [vmem:[#allocation2 + $0xb8] sm:$0xff] %v8936
  %9033 = vst [vmem:[#allocation2 + $0xc0] sm:$0xff] %v8937
  %9034 = vst [vmem:[#allocation2 + $0xc8] sm:$0xff] %v8938
  %9035 = vst [vmem:[#allocation2 + $0xd0] sm:$0xff] %v8939
  %9036 = vst [vmem:[#allocation2 + $0xd8] sm:$0xff] %v8940
  %9037 = vst [vmem:[#allocation2 + $0xe0] sm:$0xff] %v8941
  %9038 = vst [vmem:[#allocation2 + $0xe8] sm:$0xff] %v8942
  %9039 = vst [vmem:[#allocation2 + $0xf0] sm:$0xff] %v8943
  %9040 = vst [vmem:[#allocation2 + $0xf8] sm:$0xff] %v8944
  %9041 = vst [vmem:[#allocation2 + $0x100] sm:$0xff] %v8945
  %9042 = vst [vmem:[#allocation2 + $0x108] sm:$0xff] %v8946
  %9043 = vst [vmem:[#allocation2 + $0x110] sm:$0xff] %v8947
  %9044 = vst [vmem:[#allocation2 + $0x118] sm:$0xff] %v8948
  %9045 = vst [vmem:[#allocation2 + $0x120] sm:$0xff] %v8949
  %9046 = vst [vmem:[#allocation2 + $0x128] sm:$0xff] %v8950
  %9047 = vst [vmem:[#allocation2 + $0x130] sm:$0xff] %v8951
  %9048 = vst [vmem:[#allocation2 + $0x138] sm:$0xff] %v8952
  %9049 = vst [vmem:[#allocation2 + $0x140] sm:$0xff] %v8953
  %9050 = vst [vmem:[#allocation2 + $0x148] sm:$0xff] %v8954
  %9051 = vst [vmem:[#allocation2 + $0x150] sm:$0xff] %v8955
  %9052 = vst [vmem:[#allocation2 + $0x158] sm:$0xff] %v8956
  %9053 = vst [vmem:[#allocation2 + $0x160] sm:$0xff] %v8957
  %9054 = vst [vmem:[#allocation2 + $0x168] sm:$0xff] %v8958
  %9055 = vst [vmem:[#allocation2 + $0x170] sm:$0xff] %v8959
  %9056 = vst [vmem:[#allocation2 + $0x178] sm:$0xff] %v8960
  %9057 = vst [vmem:[#allocation2 + $0x180] sm:$0xff] %v8961
  %9058 = vst [vmem:[#allocation2 + $0x188] sm:$0xff] %v8962
  %9059 = vst [vmem:[#allocation2 + $0x190] sm:$0xff] %v8963
  %9060 = vst [vmem:[#allocation2 + $0x198] sm:$0xff] %v8964
  %9061 = vst [vmem:[#allocation2 + $0x1a0] sm:$0xff] %v8965
  %9062 = vst [vmem:[#allocation2 + $0x1a8] sm:$0xff] %v8966
  %9063 = vst [vmem:[#allocation2 + $0x1b0] sm:$0xff] %v8967
  %9064 = vst [vmem:[#allocation2 + $0x1b8] sm:$0xff] %v8968
  %9065 = vst [vmem:[#allocation2 + $0x1c0] sm:$0xff] %v8969
  %9066 = vst [vmem:[#allocation2 + $0x1c8] sm:$0xff] %v8970
  %9067 = vst [vmem:[#allocation2 + $0x1d0] sm:$0xff] %v8971
  %9068 = vst [vmem:[#allocation2 + $0x1d8] sm:$0xff] %v8972
  %9069 = vst [vmem:[#allocation2 + $0x1e0] sm:$0xff] %v8973
  %9070 = vst [vmem:[#allocation2 + $0x1e8] sm:$0xff] %v8974
  %9071 = vst [vmem:[#allocation2 + $0x1f0] sm:$0xff] %v8975
  %9072 = vst [vmem:[#allocation2 + $0x1f8] sm:$0xff] %v8976
  %9073 = vst [vmem:[#allocation2 + $0x200] sm:$0xff] %v8977
  %9074 = vst [vmem:[#allocation2 + $0x208] sm:$0xff] %v8978
  %9075 = vst [vmem:[#allocation2 + $0x210] sm:$0xff] %v8979
  %9076 = vst [vmem:[#allocation2 + $0x218] sm:$0xff] %v8980
  %9077 = vst [vmem:[#allocation2 + $0x220] sm:$0xff] %v8981
  %9078 = vst [vmem:[#allocation2 + $0x228] sm:$0xff] %v8982
  %9079 = vst [vmem:[#allocation2 + $0x230] sm:$0xff] %v8983
  %9080 = vst [vmem:[#allocation2 + $0x238] sm:$0xff] %v8984
  %9081 = vst [vmem:[#allocation2 + $0x240] sm:$0xff] %v8985
  %9082 = vst [vmem:[#allocation2 + $0x248] sm:$0xff] %v8986
  %9083 = vst [vmem:[#allocation2 + $0x250] sm:$0xff] %v8987
  %9084 = vst [vmem:[#allocation2 + $0x258] sm:$0xff] %v8988
  %9085 = vst [vmem:[#allocation2 + $0x260] sm:$0xff] %v8989
  %9086 = vst [vmem:[#allocation2 + $0x268] sm:$0xff] %v8990
  %9087 = vst [vmem:[#allocation2 + $0x270] sm:$0xff] %v8991
  %9088 = vst [vmem:[#allocation2 + $0x278] sm:$0xff] %v8992
  %9089 = vst [vmem:[#allocation2 + $0x280] sm:$0xff] %v8993
  %9090 = vst [vmem:[#allocation2 + $0x288] sm:$0xff] %v8994
  %9091 = vst [vmem:[#allocation2 + $0x290] sm:$0xff] %v8995
  %9092 = vst [vmem:[#allocation2 + $0x298] sm:$0xff] %v8996
  %9093 = vst [vmem:[#allocation2 + $0x2a0] sm:$0xff] %v8997
  %9094 = vst [vmem:[#allocation2 + $0x2a8] sm:$0xff] %v8998
  %9095 = vst [vmem:[#allocation2 + $0x2b0] sm:$0xff] %v8999
  %9096 = vst [vmem:[#allocation2 + $0x2b8] sm:$0xff] %v9000
  %9097 = vst [vmem:[#allocation2 + $0x2c0] sm:$0xff] %v9001
  %9098 = vst [vmem:[#allocation2 + $0x2c8] sm:$0xff] %v9002
  %9099 = vst [vmem:[#allocation2 + $0x2d0] sm:$0xff] %v9003
  %9100 = vst [vmem:[#allocation2 + $0x2d8] sm:$0xff] %v9004
  %9101 = vst [vmem:[#allocation2 + $0x2e0] sm:$0xff] %v9005
  %9102 = vst [vmem:[#allocation2 + $0x2e8] sm:$0xff] %v9006
  %9103 = vst [vmem:[#allocation2 + $0x2f0] sm:$0xff] %v9007
  %9104 = vst [vmem:[#allocation2 + $0x2f8] sm:$0xff] %v9008
  // Predicated region
  $region22: #{conv2d_batchnorm.2} parent=0 // pred_check
    %p9105 = pneg %p729
  $region23: #{conv2d_batchnorm.2} parent=0 // pred_check_branch
    %9107 = sbr.rel (%p9105) target = $region25
  $region24: #{conv2d_batchnorm.2} parent=0 // pred_region
    %v9108 = vld [vmem:[#allocation2] sm:$0xff]
    %v9109 = vld [vmem:[#allocation2 + $0x8] sm:$0xff]
    %v9110 = vld [vmem:[#allocation2 + $0x10] sm:$0xff]
    %v9111 = vld [vmem:[#allocation2 + $0x18] sm:$0xff]
    %v9112 = vld [vmem:[#allocation2 + $0x20] sm:$0xff]
    %v9113 = vld [vmem:[#allocation2 + $0x28] sm:$0xff]
    %v9114 = vld [vmem:[#allocation2 + $0x30] sm:$0xff]
    %v9115 = vld [vmem:[#allocation2 + $0x38] sm:$0xff]
    %v9116 = vld [vmem:[#allocation2 + $0x40] sm:$0xff]
    %v9117 = vld [vmem:[#allocation2 + $0x48] sm:$0xff]
    %v9118 = vld [vmem:[#allocation2 + $0x50] sm:$0xff]
    %v9119 = vld [vmem:[#allocation2 + $0x58] sm:$0xff]
    %v9120 = vld [vmem:[#allocation2 + $0x60] sm:$0xff]
    %v9121 = vld [vmem:[#allocation2 + $0x68] sm:$0xff]
    %v9122 = vld [vmem:[#allocation2 + $0x70] sm:$0xff]
    %v9123 = vld [vmem:[#allocation2 + $0x78] sm:$0xff]
    %v9124 = vld [vmem:[#allocation2 + $0x80] sm:$0xff]
    %v9125 = vld [vmem:[#allocation2 + $0x88] sm:$0xff]
    %v9126 = vld [vmem:[#allocation2 + $0x90] sm:$0xff]
    %v9127 = vld [vmem:[#allocation2 + $0x98] sm:$0xff]
    %v9128 = vld [vmem:[#allocation2 + $0xa0] sm:$0xff]
    %v9129 = vld [vmem:[#allocation2 + $0xa8] sm:$0xff]
    %v9130 = vld [vmem:[#allocation2 + $0xb0] sm:$0xff]
    %v9131 = vld [vmem:[#allocation2 + $0xb8] sm:$0xff]
    %v9132 = vld [vmem:[#allocation2 + $0xc0] sm:$0xff]
    %v9133 = vld [vmem:[#allocation2 + $0xc8] sm:$0xff]
    %v9134 = vld [vmem:[#allocation2 + $0xd0] sm:$0xff]
    %v9135 = vld [vmem:[#allocation2 + $0xd8] sm:$0xff]
    %v9136 = vld [vmem:[#allocation2 + $0xe0] sm:$0xff]
    %v9137 = vld [vmem:[#allocation2 + $0xe8] sm:$0xff]
    %v9138 = vld [vmem:[#allocation2 + $0xf0] sm:$0xff]
    %v9139 = vld [vmem:[#allocation2 + $0xf8] sm:$0xff]
    %v9140 = vld [vmem:[#allocation2 + $0x100] sm:$0xff]
    %v9141 = vld [vmem:[#allocation2 + $0x108] sm:$0xff]
    %v9142 = vld [vmem:[#allocation2 + $0x110] sm:$0xff]
    %v9143 = vld [vmem:[#allocation2 + $0x118] sm:$0xff]
    %v9144 = vld [vmem:[#allocation2 + $0x120] sm:$0xff]
    %v9145 = vld [vmem:[#allocation2 + $0x128] sm:$0xff]
    %v9146 = vld [vmem:[#allocation2 + $0x130] sm:$0xff]
    %v9147 = vld [vmem:[#allocation2 + $0x138] sm:$0xff]
    %v9148 = vld [vmem:[#allocation2 + $0x140] sm:$0xff]
    %v9149 = vld [vmem:[#allocation2 + $0x148] sm:$0xff]
    %v9150 = vld [vmem:[#allocation2 + $0x150] sm:$0xff]
    %v9151 = vld [vmem:[#allocation2 + $0x158] sm:$0xff]
    %v9152 = vld [vmem:[#allocation2 + $0x160] sm:$0xff]
    %v9153 = vld [vmem:[#allocation2 + $0x168] sm:$0xff]
    %v9154 = vld [vmem:[#allocation2 + $0x170] sm:$0xff]
    %v9155 = vld [vmem:[#allocation2 + $0x178] sm:$0xff]
    %v9156 = vld [vmem:[#allocation2 + $0x180] sm:$0xff]
    %v9157 = vld [vmem:[#allocation2 + $0x188] sm:$0xff]
    %v9158 = vld [vmem:[#allocation2 + $0x190] sm:$0xff]
    %v9159 = vld [vmem:[#allocation2 + $0x198] sm:$0xff]
    %v9160 = vld [vmem:[#allocation2 + $0x1a0] sm:$0xff]
    %v9161 = vld [vmem:[#allocation2 + $0x1a8] sm:$0xff]
    %v9162 = vld [vmem:[#allocation2 + $0x1b0] sm:$0xff]
    %v9163 = vld [vmem:[#allocation2 + $0x1b8] sm:$0xff]
    %v9164 = vld [vmem:[#allocation2 + $0x1c0] sm:$0xff]
    %v9165 = vld [vmem:[#allocation2 + $0x1c8] sm:$0xff]
    %v9166 = vld [vmem:[#allocation2 + $0x1d0] sm:$0xff]
    %v9167 = vld [vmem:[#allocation2 + $0x1d8] sm:$0xff]
    %v9168 = vld [vmem:[#allocation2 + $0x1e0] sm:$0xff]
    %v9169 = vld [vmem:[#allocation2 + $0x1e8] sm:$0xff]
    %v9170 = vld [vmem:[#allocation2 + $0x1f0] sm:$0xff]
    %v9171 = vld [vmem:[#allocation2 + $0x1f8] sm:$0xff]
    %v9172 = vld [vmem:[#allocation2 + $0x200] sm:$0xff]
    %v9173 = vld [vmem:[#allocation2 + $0x208] sm:$0xff]
    %v9174 = vld [vmem:[#allocation2 + $0x210] sm:$0xff]
    %v9175 = vld [vmem:[#allocation2 + $0x218] sm:$0xff]
    %v9176 = vld [vmem:[#allocation2 + $0x220] sm:$0xff]
    %v9177 = vld [vmem:[#allocation2 + $0x228] sm:$0xff]
    %v9178 = vld [vmem:[#allocation2 + $0x230] sm:$0xff]
    %v9179 = vld [vmem:[#allocation2 + $0x238] sm:$0xff]
    %v9180 = vld [vmem:[#allocation2 + $0x240] sm:$0xff]
    %v9181 = vld [vmem:[#allocation2 + $0x248] sm:$0xff]
    %v9182 = vld [vmem:[#allocation2 + $0x250] sm:$0xff]
    %v9183 = vld [vmem:[#allocation2 + $0x258] sm:$0xff]
    %v9184 = vld [vmem:[#allocation2 + $0x260] sm:$0xff]
    %v9185 = vld [vmem:[#allocation2 + $0x268] sm:$0xff]
    %v9186 = vld [vmem:[#allocation2 + $0x270] sm:$0xff]
    %v9187 = vld [vmem:[#allocation2 + $0x278] sm:$0xff]
    %v9188 = vld [vmem:[#allocation2 + $0x280] sm:$0xff]
    %v9189 = vld [vmem:[#allocation2 + $0x288] sm:$0xff]
    %v9190 = vld [vmem:[#allocation2 + $0x290] sm:$0xff]
    %v9191 = vld [vmem:[#allocation2 + $0x298] sm:$0xff]
    %v9192 = vld [vmem:[#allocation2 + $0x2a0] sm:$0xff]
    %v9193 = vld [vmem:[#allocation2 + $0x2a8] sm:$0xff]
    %v9194 = vld [vmem:[#allocation2 + $0x2b0] sm:$0xff]
    %v9195 = vld [vmem:[#allocation2 + $0x2b8] sm:$0xff]
    %v9196 = vld [vmem:[#allocation2 + $0x2c0] sm:$0xff]
    %v9197 = vld [vmem:[#allocation2 + $0x2c8] sm:$0xff]
    %v9198 = vld [vmem:[#allocation2 + $0x2d0] sm:$0xff]
    %v9199 = vld [vmem:[#allocation2 + $0x2d8] sm:$0xff]
    %v9200 = vld [vmem:[#allocation2 + $0x2e0] sm:$0xff]
    %v9201 = vld [vmem:[#allocation2 + $0x2e8] sm:$0xff]
    %v9202 = vld [vmem:[#allocation2 + $0x2f0] sm:$0xff]
    %v9203 = vld [vmem:[#allocation2 + $0x2f8] sm:$0xff]
    %9204 = vst [vmem:[%s3] sm:$0xff] %v9108
    %9205 = vst [vmem:[%s3 + $0x8] sm:$0xff] %v9109
    %9206 = vst [vmem:[%s3 + $0x10] sm:$0xff] %v9110
    %9207 = vst [vmem:[%s3 + $0x18] sm:$0xff] %v9111
    %9208 = vst [vmem:[%s3 + $0x20] sm:$0xff] %v9112
    %9209 = vst [vmem:[%s3 + $0x28] sm:$0xff] %v9113
    %9210 = vst [vmem:[%s3 + $0x30] sm:$0xff] %v9114
    %9211 = vst [vmem:[%s3 + $0x38] sm:$0xff] %v9115
    %9212 = vst [vmem:[%s3 + $0x40] sm:$0xff] %v9116
    %9213 = vst [vmem:[%s3 + $0x48] sm:$0xff] %v9117
    %9214 = vst [vmem:[%s3 + $0x50] sm:$0xff] %v9118
    %9215 = vst [vmem:[%s3 + $0x58] sm:$0xff] %v9119
    %9216 = vst [vmem:[%s3 + $0x60] sm:$0xff] %v9120
    %9217 = vst [vmem:[%s3 + $0x68] sm:$0xff] %v9121
    %9218 = vst [vmem:[%s3 + $0x70] sm:$0xff] %v9122
    %9219 = vst [vmem:[%s3 + $0x78] sm:$0xff] %v9123
    %9220 = vst [vmem:[%s3 + $0x80] sm:$0xff] %v9124
    %9221 = vst [vmem:[%s3 + $0x88] sm:$0xff] %v9125
    %9222 = vst [vmem:[%s3 + $0x90] sm:$0xff] %v9126
    %9223 = vst [vmem:[%s3 + $0x98] sm:$0xff] %v9127
    %9224 = vst [vmem:[%s3 + $0xa0] sm:$0xff] %v9128
    %9225 = vst [vmem:[%s3 + $0xa8] sm:$0xff] %v9129
    %9226 = vst [vmem:[%s3 + $0xb0] sm:$0xff] %v9130
    %9227 = vst [vmem:[%s3 + $0xb8] sm:$0xff] %v9131
    %9228 = vst [vmem:[%s3 + $0xc0] sm:$0xff] %v9132
    %9229 = vst [vmem:[%s3 + $0xc8] sm:$0xff] %v9133
    %9230 = vst [vmem:[%s3 + $0xd0] sm:$0xff] %v9134
    %9231 = vst [vmem:[%s3 + $0xd8] sm:$0xff] %v9135
    %9232 = vst [vmem:[%s3 + $0xe0] sm:$0xff] %v9136
    %9233 = vst [vmem:[%s3 + $0xe8] sm:$0xff] %v9137
    %9234 = vst [vmem:[%s3 + $0xf0] sm:$0xff] %v9138
    %9235 = vst [vmem:[%s3 + $0xf8] sm:$0xff] %v9139
    %9236 = vst [vmem:[%s3 + $0x100] sm:$0xff] %v9140
    %9237 = vst [vmem:[%s3 + $0x108] sm:$0xff] %v9141
    %9238 = vst [vmem:[%s3 + $0x110] sm:$0xff] %v9142
    %9239 = vst [vmem:[%s3 + $0x118] sm:$0xff] %v9143
    %9240 = vst [vmem:[%s3 + $0x120] sm:$0xff] %v9144
    %9241 = vst [vmem:[%s3 + $0x128] sm:$0xff] %v9145
    %9242 = vst [vmem:[%s3 + $0x130] sm:$0xff] %v9146
    %9243 = vst [vmem:[%s3 + $0x138] sm:$0xff] %v9147
    %9244 = vst [vmem:[%s3 + $0x140] sm:$0xff] %v9148
    %9245 = vst [vmem:[%s3 + $0x148] sm:$0xff] %v9149
    %9246 = vst [vmem:[%s3 + $0x150] sm:$0xff] %v9150
    %9247 = vst [vmem:[%s3 + $0x158] sm:$0xff] %v9151
    %9248 = vst [vmem:[%s3 + $0x160] sm:$0xff] %v9152
    %9249 = vst [vmem:[%s3 + $0x168] sm:$0xff] %v9153
    %9250 = vst [vmem:[%s3 + $0x170] sm:$0xff] %v9154
    %9251 = vst [vmem:[%s3 + $0x178] sm:$0xff] %v9155
    %9252 = vst [vmem:[%s3 + $0x180] sm:$0xff] %v9156
    %9253 = vst [vmem:[%s3 + $0x188] sm:$0xff] %v9157
    %9254 = vst [vmem:[%s3 + $0x190] sm:$0xff] %v9158
    %9255 = vst [vmem:[%s3 + $0x198] sm:$0xff] %v9159
    %9256 = vst [vmem:[%s3 + $0x1a0] sm:$0xff] %v9160
    %9257 = vst [vmem:[%s3 + $0x1a8] sm:$0xff] %v9161
    %9258 = vst [vmem:[%s3 + $0x1b0] sm:$0xff] %v9162
    %9259 = vst [vmem:[%s3 + $0x1b8] sm:$0xff] %v9163
    %9260 = vst [vmem:[%s3 + $0x1c0] sm:$0xff] %v9164
    %9261 = vst [vmem:[%s3 + $0x1c8] sm:$0xff] %v9165
    %9262 = vst [vmem:[%s3 + $0x1d0] sm:$0xff] %v9166
    %9263 = vst [vmem:[%s3 + $0x1d8] sm:$0xff] %v9167
    %9264 = vst [vmem:[%s3 + $0x1e0] sm:$0xff] %v9168
    %9265 = vst [vmem:[%s3 + $0x1e8] sm:$0xff] %v9169
    %9266 = vst [vmem:[%s3 + $0x1f0] sm:$0xff] %v9170
    %9267 = vst [vmem:[%s3 + $0x1f8] sm:$0xff] %v9171
    %9268 = vst [vmem:[%s3 + $0x200] sm:$0xff] %v9172
    %9269 = vst [vmem:[%s3 + $0x208] sm:$0xff] %v9173
    %9270 = vst [vmem:[%s3 + $0x210] sm:$0xff] %v9174
    %9271 = vst [vmem:[%s3 + $0x218] sm:$0xff] %v9175
    %9272 = vst [vmem:[%s3 + $0x220] sm:$0xff] %v9176
    %9273 = vst [vmem:[%s3 + $0x228] sm:$0xff] %v9177
    %9274 = vst [vmem:[%s3 + $0x230] sm:$0xff] %v9178
    %9275 = vst [vmem:[%s3 + $0x238] sm:$0xff] %v9179
    %9276 = vst [vmem:[%s3 + $0x240] sm:$0xff] %v9180
    %9277 = vst [vmem:[%s3 + $0x248] sm:$0xff] %v9181
    %9278 = vst [vmem:[%s3 + $0x250] sm:$0xff] %v9182
    %9279 = vst [vmem:[%s3 + $0x258] sm:$0xff] %v9183
    %9280 = vst [vmem:[%s3 + $0x260] sm:$0xff] %v9184
    %9281 = vst [vmem:[%s3 + $0x268] sm:$0xff] %v9185
    %9282 = vst [vmem:[%s3 + $0x270] sm:$0xff] %v9186
    %9283 = vst [vmem:[%s3 + $0x278] sm:$0xff] %v9187
    %9284 = vst [vmem:[%s3 + $0x280] sm:$0xff] %v9188
    %9285 = vst [vmem:[%s3 + $0x288] sm:$0xff] %v9189
    %9286 = vst [vmem:[%s3 + $0x290] sm:$0xff] %v9190
    %9287 = vst [vmem:[%s3 + $0x298] sm:$0xff] %v9191
    %9288 = vst [vmem:[%s3 + $0x2a0] sm:$0xff] %v9192
    %9289 = vst [vmem:[%s3 + $0x2a8] sm:$0xff] %v9193
    %9290 = vst [vmem:[%s3 + $0x2b0] sm:$0xff] %v9194
    %9291 = vst [vmem:[%s3 + $0x2b8] sm:$0xff] %v9195
    %9292 = vst [vmem:[%s3 + $0x2c0] sm:$0xff] %v9196
    %9293 = vst [vmem:[%s3 + $0x2c8] sm:$0xff] %v9197
    %9294 = vst [vmem:[%s3 + $0x2d0] sm:$0xff] %v9198
    %9295 = vst [vmem:[%s3 + $0x2d8] sm:$0xff] %v9199
    %9296 = vst [vmem:[%s3 + $0x2e0] sm:$0xff] %v9200
    %9297 = vst [vmem:[%s3 + $0x2e8] sm:$0xff] %v9201
    %9298 = vst [vmem:[%s3 + $0x2f0] sm:$0xff] %v9202
    %9299 = vst [vmem:[%s3 + $0x2f8] sm:$0xff] %v9203
    %v9300 = vld [vmem:[%s2] sm:$0xff]
    %v9301 = vld [vmem:[%s2 + $0x8] sm:$0xff]
    %v9302 = vld [vmem:[%s2 + $0x10] sm:$0xff]
    %v9303 = vld [vmem:[%s2 + $0x18] sm:$0xff]
    %v9304 = vld [vmem:[%s2 + $0x20] sm:$0xff]
    %v9305 = vld [vmem:[%s2 + $0x28] sm:$0xff]
    %v9306 = vld [vmem:[%s2 + $0x30] sm:$0xff]
    %v9307 = vld [vmem:[%s2 + $0x38] sm:$0xff]
    %v9308 = vld [vmem:[%s2 + $0x40] sm:$0xff]
    %v9309 = vld [vmem:[%s2 + $0x48] sm:$0xff]
    %v9310 = vld [vmem:[%s2 + $0x50] sm:$0xff]
    %v9311 = vld [vmem:[%s2 + $0x58] sm:$0xff]
    %v9312 = vld [vmem:[%s2 + $0x60] sm:$0xff]
    %v9313 = vld [vmem:[%s2 + $0x68] sm:$0xff]
    %v9314 = vld [vmem:[%s2 + $0x70] sm:$0xff]
    %v9315 = vld [vmem:[%s2 + $0x78] sm:$0xff]
    %v9316 = vld [vmem:[%s2 + $0x80] sm:$0xff]
    %v9317 = vld [vmem:[%s2 + $0x88] sm:$0xff]
    %v9318 = vld [vmem:[%s2 + $0x90] sm:$0xff]
    %v9319 = vld [vmem:[%s2 + $0x98] sm:$0xff]
    %v9320 = vld [vmem:[%s2 + $0xa0] sm:$0xff]
    %v9321 = vld [vmem:[%s2 + $0xa8] sm:$0xff]
    %v9322 = vld [vmem:[%s2 + $0xb0] sm:$0xff]
    %v9323 = vld [vmem:[%s2 + $0xb8] sm:$0xff]
    %v9324 = vld [vmem:[%s2 + $0xc0] sm:$0xff]
    %v9325 = vld [vmem:[%s2 + $0xc8] sm:$0xff]
    %v9326 = vld [vmem:[%s2 + $0xd0] sm:$0xff]
    %v9327 = vld [vmem:[%s2 + $0xd8] sm:$0xff]
    %v9328 = vld [vmem:[%s2 + $0xe0] sm:$0xff]
    %v9329 = vld [vmem:[%s2 + $0xe8] sm:$0xff]
    %v9330 = vld [vmem:[%s2 + $0xf0] sm:$0xff]
    %v9331 = vld [vmem:[%s2 + $0xf8] sm:$0xff]
    %v9332 = vld [vmem:[%s2 + $0x100] sm:$0xff]
    %v9333 = vld [vmem:[%s2 + $0x108] sm:$0xff]
    %v9334 = vld [vmem:[%s2 + $0x110] sm:$0xff]
    %v9335 = vld [vmem:[%s2 + $0x118] sm:$0xff]
    %v9336 = vld [vmem:[%s2 + $0x120] sm:$0xff]
    %v9337 = vld [vmem:[%s2 + $0x128] sm:$0xff]
    %v9338 = vld [vmem:[%s2 + $0x130] sm:$0xff]
    %v9339 = vld [vmem:[%s2 + $0x138] sm:$0xff]
    %v9340 = vld [vmem:[%s2 + $0x140] sm:$0xff]
    %v9341 = vld [vmem:[%s2 + $0x148] sm:$0xff]
    %v9342 = vld [vmem:[%s2 + $0x150] sm:$0xff]
    %v9343 = vld [vmem:[%s2 + $0x158] sm:$0xff]
    %v9344 = vld [vmem:[%s2 + $0x160] sm:$0xff]
    %v9345 = vld [vmem:[%s2 + $0x168] sm:$0xff]
    %v9346 = vld [vmem:[%s2 + $0x170] sm:$0xff]
    %v9347 = vld [vmem:[%s2 + $0x178] sm:$0xff]
    %v9348 = vld [vmem:[%s2 + $0x180] sm:$0xff]
    %v9349 = vld [vmem:[%s2 + $0x188] sm:$0xff]
    %v9350 = vld [vmem:[%s2 + $0x190] sm:$0xff]
    %v9351 = vld [vmem:[%s2 + $0x198] sm:$0xff]
    %v9352 = vld [vmem:[%s2 + $0x1a0] sm:$0xff]
    %v9353 = vld [vmem:[%s2 + $0x1a8] sm:$0xff]
    %v9354 = vld [vmem:[%s2 + $0x1b0] sm:$0xff]
    %v9355 = vld [vmem:[%s2 + $0x1b8] sm:$0xff]
    %v9356 = vld [vmem:[%s2 + $0x1c0] sm:$0xff]
    %v9357 = vld [vmem:[%s2 + $0x1c8] sm:$0xff]
    %v9358 = vld [vmem:[%s2 + $0x1d0] sm:$0xff]
    %v9359 = vld [vmem:[%s2 + $0x1d8] sm:$0xff]
    %v9360 = vld [vmem:[%s2 + $0x1e0] sm:$0xff]
    %v9361 = vld [vmem:[%s2 + $0x1e8] sm:$0xff]
    %v9362 = vld [vmem:[%s2 + $0x1f0] sm:$0xff]
    %v9363 = vld [vmem:[%s2 + $0x1f8] sm:$0xff]
    %v9364 = vld [vmem:[%s2 + $0x200] sm:$0xff]
    %v9365 = vld [vmem:[%s2 + $0x208] sm:$0xff]
    %v9366 = vld [vmem:[%s2 + $0x210] sm:$0xff]
    %v9367 = vld [vmem:[%s2 + $0x218] sm:$0xff]
    %v9368 = vld [vmem:[%s2 + $0x220] sm:$0xff]
    %v9369 = vld [vmem:[%s2 + $0x228] sm:$0xff]
    %v9370 = vld [vmem:[%s2 + $0x230] sm:$0xff]
    %v9371 = vld [vmem:[%s2 + $0x238] sm:$0xff]
    %v9372 = vld [vmem:[%s2 + $0x240] sm:$0xff]
    %v9373 = vld [vmem:[%s2 + $0x248] sm:$0xff]
    %v9374 = vld [vmem:[%s2 + $0x250] sm:$0xff]
    %v9375 = vld [vmem:[%s2 + $0x258] sm:$0xff]
    %v9376 = vld [vmem:[%s2 + $0x260] sm:$0xff]
    %v9377 = vld [vmem:[%s2 + $0x268] sm:$0xff]
    %v9378 = vld [vmem:[%s2 + $0x270] sm:$0xff]
    %v9379 = vld [vmem:[%s2 + $0x278] sm:$0xff]
    %v9380 = vld [vmem:[%s2 + $0x280] sm:$0xff]
    %v9381 = vld [vmem:[%s2 + $0x288] sm:$0xff]
    %v9382 = vld [vmem:[%s2 + $0x290] sm:$0xff]
    %v9383 = vld [vmem:[%s2 + $0x298] sm:$0xff]
    %v9384 = vld [vmem:[%s2 + $0x2a0] sm:$0xff]
    %v9385 = vld [vmem:[%s2 + $0x2a8] sm:$0xff]
    %v9386 = vld [vmem:[%s2 + $0x2b0] sm:$0xff]
    %v9387 = vld [vmem:[%s2 + $0x2b8] sm:$0xff]
    %v9388 = vld [vmem:[%s2 + $0x2c0] sm:$0xff]
    %v9389 = vld [vmem:[%s2 + $0x2c8] sm:$0xff]
    %v9390 = vld [vmem:[%s2 + $0x2d0] sm:$0xff]
    %v9391 = vld [vmem:[%s2 + $0x2d8] sm:$0xff]
    %v9392 = vld [vmem:[%s2 + $0x2e0] sm:$0xff]
    %v9393 = vld [vmem:[%s2 + $0x2e8] sm:$0xff]
    %v9394 = vld [vmem:[%s2 + $0x2f0] sm:$0xff]
    %v9395 = vld [vmem:[%s2 + $0x2f8] sm:$0xff]
    %9397 = vset.pattern.permute.xlu0 0
    %9398 = vperm.xlu0 %9397, %v9300
    %v9399 = vpop.permute.xlu0 %9398
    %9402 = vset.pattern.permute.xlu0 0
    %9403 = vperm.xlu0 %9402, %v9301
    %v9404 = vpop.permute.xlu0 %9403
    %9407 = vset.pattern.permute.xlu0 0
    %9408 = vperm.xlu0 %9407, %v9302
    %v9409 = vpop.permute.xlu0 %9408
    %9412 = vset.pattern.permute.xlu0 0
    %9413 = vperm.xlu0 %9412, %v9303
    %v9414 = vpop.permute.xlu0 %9413
    %9417 = vset.pattern.permute.xlu0 0
    %9418 = vperm.xlu0 %9417, %v9304
    %v9419 = vpop.permute.xlu0 %9418
    %9422 = vset.pattern.permute.xlu0 0
    %9423 = vperm.xlu0 %9422, %v9305
    %v9424 = vpop.permute.xlu0 %9423
    %9427 = vset.pattern.permute.xlu0 0
    %9428 = vperm.xlu0 %9427, %v9306
    %v9429 = vpop.permute.xlu0 %9428
    %9432 = vset.pattern.permute.xlu0 0
    %9433 = vperm.xlu0 %9432, %v9307
    %v9434 = vpop.permute.xlu0 %9433
    %9437 = vset.pattern.permute.xlu0 0
    %9438 = vperm.xlu0 %9437, %v9308
    %v9439 = vpop.permute.xlu0 %9438
    %9442 = vset.pattern.permute.xlu0 0
    %9443 = vperm.xlu0 %9442, %v9309
    %v9444 = vpop.permute.xlu0 %9443
    %9447 = vset.pattern.permute.xlu0 0
    %9448 = vperm.xlu0 %9447, %v9310
    %v9449 = vpop.permute.xlu0 %9448
    %9452 = vset.pattern.permute.xlu0 0
    %9453 = vperm.xlu0 %9452, %v9311
    %v9454 = vpop.permute.xlu0 %9453
    %9457 = vset.pattern.permute.xlu0 0
    %9458 = vperm.xlu0 %9457, %v9312
    %v9459 = vpop.permute.xlu0 %9458
    %9462 = vset.pattern.permute.xlu0 0
    %9463 = vperm.xlu0 %9462, %v9313
    %v9464 = vpop.permute.xlu0 %9463
    %9467 = vset.pattern.permute.xlu0 0
    %9468 = vperm.xlu0 %9467, %v9314
    %v9469 = vpop.permute.xlu0 %9468
    %9472 = vset.pattern.permute.xlu0 0
    %9473 = vperm.xlu0 %9472, %v9315
    %v9474 = vpop.permute.xlu0 %9473
    %9477 = vset.pattern.permute.xlu0 0
    %9478 = vperm.xlu0 %9477, %v9316
    %v9479 = vpop.permute.xlu0 %9478
    %9482 = vset.pattern.permute.xlu0 0
    %9483 = vperm.xlu0 %9482, %v9317
    %v9484 = vpop.permute.xlu0 %9483
    %9487 = vset.pattern.permute.xlu0 0
    %9488 = vperm.xlu0 %9487, %v9318
    %v9489 = vpop.permute.xlu0 %9488
    %9492 = vset.pattern.permute.xlu0 0
    %9493 = vperm.xlu0 %9492, %v9319
    %v9494 = vpop.permute.xlu0 %9493
    %9497 = vset.pattern.permute.xlu0 0
    %9498 = vperm.xlu0 %9497, %v9320
    %v9499 = vpop.permute.xlu0 %9498
    %9502 = vset.pattern.permute.xlu0 0
    %9503 = vperm.xlu0 %9502, %v9321
    %v9504 = vpop.permute.xlu0 %9503
    %9507 = vset.pattern.permute.xlu0 0
    %9508 = vperm.xlu0 %9507, %v9322
    %v9509 = vpop.permute.xlu0 %9508
    %9512 = vset.pattern.permute.xlu0 0
    %9513 = vperm.xlu0 %9512, %v9323
    %v9514 = vpop.permute.xlu0 %9513
    %9517 = vset.pattern.permute.xlu0 0
    %9518 = vperm.xlu0 %9517, %v9324
    %v9519 = vpop.permute.xlu0 %9518
    %9522 = vset.pattern.permute.xlu0 0
    %9523 = vperm.xlu0 %9522, %v9325
    %v9524 = vpop.permute.xlu0 %9523
    %9527 = vset.pattern.permute.xlu0 0
    %9528 = vperm.xlu0 %9527, %v9326
    %v9529 = vpop.permute.xlu0 %9528
    %9532 = vset.pattern.permute.xlu0 0
    %9533 = vperm.xlu0 %9532, %v9327
    %v9534 = vpop.permute.xlu0 %9533
    %9537 = vset.pattern.permute.xlu0 0
    %9538 = vperm.xlu0 %9537, %v9328
    %v9539 = vpop.permute.xlu0 %9538
    %9542 = vset.pattern.permute.xlu0 0
    %9543 = vperm.xlu0 %9542, %v9329
    %v9544 = vpop.permute.xlu0 %9543
    %9547 = vset.pattern.permute.xlu0 0
    %9548 = vperm.xlu0 %9547, %v9330
    %v9549 = vpop.permute.xlu0 %9548
    %9552 = vset.pattern.permute.xlu0 0
    %9553 = vperm.xlu0 %9552, %v9331
    %v9554 = vpop.permute.xlu0 %9553
    %9557 = vset.pattern.permute.xlu0 0
    %9558 = vperm.xlu0 %9557, %v9332
    %v9559 = vpop.permute.xlu0 %9558
    %9562 = vset.pattern.permute.xlu0 0
    %9563 = vperm.xlu0 %9562, %v9333
    %v9564 = vpop.permute.xlu0 %9563
    %9567 = vset.pattern.permute.xlu0 0
    %9568 = vperm.xlu0 %9567, %v9334
    %v9569 = vpop.permute.xlu0 %9568
    %9572 = vset.pattern.permute.xlu0 0
    %9573 = vperm.xlu0 %9572, %v9335
    %v9574 = vpop.permute.xlu0 %9573
    %9577 = vset.pattern.permute.xlu0 0
    %9578 = vperm.xlu0 %9577, %v9336
    %v9579 = vpop.permute.xlu0 %9578
    %9582 = vset.pattern.permute.xlu0 0
    %9583 = vperm.xlu0 %9582, %v9337
    %v9584 = vpop.permute.xlu0 %9583
    %9587 = vset.pattern.permute.xlu0 0
    %9588 = vperm.xlu0 %9587, %v9338
    %v9589 = vpop.permute.xlu0 %9588
    %9592 = vset.pattern.permute.xlu0 0
    %9593 = vperm.xlu0 %9592, %v9339
    %v9594 = vpop.permute.xlu0 %9593
    %9597 = vset.pattern.permute.xlu0 0
    %9598 = vperm.xlu0 %9597, %v9340
    %v9599 = vpop.permute.xlu0 %9598
    %9602 = vset.pattern.permute.xlu0 0
    %9603 = vperm.xlu0 %9602, %v9341
    %v9604 = vpop.permute.xlu0 %9603
    %9607 = vset.pattern.permute.xlu0 0
    %9608 = vperm.xlu0 %9607, %v9342
    %v9609 = vpop.permute.xlu0 %9608
    %9612 = vset.pattern.permute.xlu0 0
    %9613 = vperm.xlu0 %9612, %v9343
    %v9614 = vpop.permute.xlu0 %9613
    %9617 = vset.pattern.permute.xlu0 0
    %9618 = vperm.xlu0 %9617, %v9344
    %v9619 = vpop.permute.xlu0 %9618
    %9622 = vset.pattern.permute.xlu0 0
    %9623 = vperm.xlu0 %9622, %v9345
    %v9624 = vpop.permute.xlu0 %9623
    %9627 = vset.pattern.permute.xlu0 0
    %9628 = vperm.xlu0 %9627, %v9346
    %v9629 = vpop.permute.xlu0 %9628
    %9632 = vset.pattern.permute.xlu0 0
    %9633 = vperm.xlu0 %9632, %v9347
    %v9634 = vpop.permute.xlu0 %9633
    %9637 = vset.pattern.permute.xlu0 0
    %9638 = vperm.xlu0 %9637, %v9348
    %v9639 = vpop.permute.xlu0 %9638
    %9642 = vset.pattern.permute.xlu0 0
    %9643 = vperm.xlu0 %9642, %v9349
    %v9644 = vpop.permute.xlu0 %9643
    %9647 = vset.pattern.permute.xlu0 0
    %9648 = vperm.xlu0 %9647, %v9350
    %v9649 = vpop.permute.xlu0 %9648
    %9652 = vset.pattern.permute.xlu0 0
    %9653 = vperm.xlu0 %9652, %v9351
    %v9654 = vpop.permute.xlu0 %9653
    %9657 = vset.pattern.permute.xlu0 0
    %9658 = vperm.xlu0 %9657, %v9352
    %v9659 = vpop.permute.xlu0 %9658
    %9662 = vset.pattern.permute.xlu0 0
    %9663 = vperm.xlu0 %9662, %v9353
    %v9664 = vpop.permute.xlu0 %9663
    %9667 = vset.pattern.permute.xlu0 0
    %9668 = vperm.xlu0 %9667, %v9354
    %v9669 = vpop.permute.xlu0 %9668
    %9672 = vset.pattern.permute.xlu0 0
    %9673 = vperm.xlu0 %9672, %v9355
    %v9674 = vpop.permute.xlu0 %9673
    %9677 = vset.pattern.permute.xlu0 0
    %9678 = vperm.xlu0 %9677, %v9356
    %v9679 = vpop.permute.xlu0 %9678
    %9682 = vset.pattern.permute.xlu0 0
    %9683 = vperm.xlu0 %9682, %v9357
    %v9684 = vpop.permute.xlu0 %9683
    %9687 = vset.pattern.permute.xlu0 0
    %9688 = vperm.xlu0 %9687, %v9358
    %v9689 = vpop.permute.xlu0 %9688
    %9692 = vset.pattern.permute.xlu0 0
    %9693 = vperm.xlu0 %9692, %v9359
    %v9694 = vpop.permute.xlu0 %9693
    %9697 = vset.pattern.permute.xlu0 0
    %9698 = vperm.xlu0 %9697, %v9360
    %v9699 = vpop.permute.xlu0 %9698
    %9702 = vset.pattern.permute.xlu0 0
    %9703 = vperm.xlu0 %9702, %v9361
    %v9704 = vpop.permute.xlu0 %9703
    %9707 = vset.pattern.permute.xlu0 0
    %9708 = vperm.xlu0 %9707, %v9362
    %v9709 = vpop.permute.xlu0 %9708
    %9712 = vset.pattern.permute.xlu0 0
    %9713 = vperm.xlu0 %9712, %v9363
    %v9714 = vpop.permute.xlu0 %9713
    %9717 = vset.pattern.permute.xlu0 0
    %9718 = vperm.xlu0 %9717, %v9364
    %v9719 = vpop.permute.xlu0 %9718
    %9722 = vset.pattern.permute.xlu0 0
    %9723 = vperm.xlu0 %9722, %v9365
    %v9724 = vpop.permute.xlu0 %9723
    %9727 = vset.pattern.permute.xlu0 0
    %9728 = vperm.xlu0 %9727, %v9366
    %v9729 = vpop.permute.xlu0 %9728
    %9732 = vset.pattern.permute.xlu0 0
    %9733 = vperm.xlu0 %9732, %v9367
    %v9734 = vpop.permute.xlu0 %9733
    %9737 = vset.pattern.permute.xlu0 0
    %9738 = vperm.xlu0 %9737, %v9368
    %v9739 = vpop.permute.xlu0 %9738
    %9742 = vset.pattern.permute.xlu0 0
    %9743 = vperm.xlu0 %9742, %v9369
    %v9744 = vpop.permute.xlu0 %9743
    %9747 = vset.pattern.permute.xlu0 0
    %9748 = vperm.xlu0 %9747, %v9370
    %v9749 = vpop.permute.xlu0 %9748
    %9752 = vset.pattern.permute.xlu0 0
    %9753 = vperm.xlu0 %9752, %v9371
    %v9754 = vpop.permute.xlu0 %9753
    %9757 = vset.pattern.permute.xlu0 0
    %9758 = vperm.xlu0 %9757, %v9372
    %v9759 = vpop.permute.xlu0 %9758
    %9762 = vset.pattern.permute.xlu0 0
    %9763 = vperm.xlu0 %9762, %v9373
    %v9764 = vpop.permute.xlu0 %9763
    %9767 = vset.pattern.permute.xlu0 0
    %9768 = vperm.xlu0 %9767, %v9374
    %v9769 = vpop.permute.xlu0 %9768
    %9772 = vset.pattern.permute.xlu0 0
    %9773 = vperm.xlu0 %9772, %v9375
    %v9774 = vpop.permute.xlu0 %9773
    %9777 = vset.pattern.permute.xlu0 0
    %9778 = vperm.xlu0 %9777, %v9376
    %v9779 = vpop.permute.xlu0 %9778
    %9782 = vset.pattern.permute.xlu0 0
    %9783 = vperm.xlu0 %9782, %v9377
    %v9784 = vpop.permute.xlu0 %9783
    %9787 = vset.pattern.permute.xlu0 0
    %9788 = vperm.xlu0 %9787, %v9378
    %v9789 = vpop.permute.xlu0 %9788
    %9792 = vset.pattern.permute.xlu0 0
    %9793 = vperm.xlu0 %9792, %v9379
    %v9794 = vpop.permute.xlu0 %9793
    %9797 = vset.pattern.permute.xlu0 0
    %9798 = vperm.xlu0 %9797, %v9380
    %v9799 = vpop.permute.xlu0 %9798
    %9802 = vset.pattern.permute.xlu0 0
    %9803 = vperm.xlu0 %9802, %v9381
    %v9804 = vpop.permute.xlu0 %9803
    %9807 = vset.pattern.permute.xlu0 0
    %9808 = vperm.xlu0 %9807, %v9382
    %v9809 = vpop.permute.xlu0 %9808
    %9812 = vset.pattern.permute.xlu0 0
    %9813 = vperm.xlu0 %9812, %v9383
    %v9814 = vpop.permute.xlu0 %9813
    %9817 = vset.pattern.permute.xlu0 0
    %9818 = vperm.xlu0 %9817, %v9384
    %v9819 = vpop.permute.xlu0 %9818
    %9822 = vset.pattern.permute.xlu0 0
    %9823 = vperm.xlu0 %9822, %v9385
    %v9824 = vpop.permute.xlu0 %9823
    %9827 = vset.pattern.permute.xlu0 0
    %9828 = vperm.xlu0 %9827, %v9386
    %v9829 = vpop.permute.xlu0 %9828
    %9832 = vset.pattern.permute.xlu0 0
    %9833 = vperm.xlu0 %9832, %v9387
    %v9834 = vpop.permute.xlu0 %9833
    %9837 = vset.pattern.permute.xlu0 0
    %9838 = vperm.xlu0 %9837, %v9388
    %v9839 = vpop.permute.xlu0 %9838
    %9842 = vset.pattern.permute.xlu0 0
    %9843 = vperm.xlu0 %9842, %v9389
    %v9844 = vpop.permute.xlu0 %9843
    %9847 = vset.pattern.permute.xlu0 0
    %9848 = vperm.xlu0 %9847, %v9390
    %v9849 = vpop.permute.xlu0 %9848
    %9852 = vset.pattern.permute.xlu0 0
    %9853 = vperm.xlu0 %9852, %v9391
    %v9854 = vpop.permute.xlu0 %9853
    %9857 = vset.pattern.permute.xlu0 0
    %9858 = vperm.xlu0 %9857, %v9392
    %v9859 = vpop.permute.xlu0 %9858
    %9862 = vset.pattern.permute.xlu0 0
    %9863 = vperm.xlu0 %9862, %v9393
    %v9864 = vpop.permute.xlu0 %9863
    %9867 = vset.pattern.permute.xlu0 0
    %9868 = vperm.xlu0 %9867, %v9394
    %v9869 = vpop.permute.xlu0 %9868
    %9872 = vset.pattern.permute.xlu0 0
    %9873 = vperm.xlu0 %9872, %v9395
    %v9874 = vpop.permute.xlu0 %9873
    %v9876 = vmul.f32 %v9108, %v9399
    %v9877 = vmul.f32 %v9109, %v9404
    %v9878 = vmul.f32 %v9110, %v9409
    %v9879 = vmul.f32 %v9111, %v9414
    %v9880 = vmul.f32 %v9112, %v9419
    %v9881 = vmul.f32 %v9113, %v9424
    %v9882 = vmul.f32 %v9114, %v9429
    %v9883 = vmul.f32 %v9115, %v9434
    %v9884 = vmul.f32 %v9116, %v9439
    %v9885 = vmul.f32 %v9117, %v9444
    %v9886 = vmul.f32 %v9118, %v9449
    %v9887 = vmul.f32 %v9119, %v9454
    %v9888 = vmul.f32 %v9120, %v9459
    %v9889 = vmul.f32 %v9121, %v9464
    %v9890 = vmul.f32 %v9122, %v9469
    %v9891 = vmul.f32 %v9123, %v9474
    %v9892 = vmul.f32 %v9124, %v9479
    %v9893 = vmul.f32 %v9125, %v9484
    %v9894 = vmul.f32 %v9126, %v9489
    %v9895 = vmul.f32 %v9127, %v9494
    %v9896 = vmul.f32 %v9128, %v9499
    %v9897 = vmul.f32 %v9129, %v9504
    %v9898 = vmul.f32 %v9130, %v9509
    %v9899 = vmul.f32 %v9131, %v9514
    %v9900 = vmul.f32 %v9132, %v9519
    %v9901 = vmul.f32 %v9133, %v9524
    %v9902 = vmul.f32 %v9134, %v9529
    %v9903 = vmul.f32 %v9135, %v9534
    %v9904 = vmul.f32 %v9136, %v9539
    %v9905 = vmul.f32 %v9137, %v9544
    %v9906 = vmul.f32 %v9138, %v9549
    %v9907 = vmul.f32 %v9139, %v9554
    %v9908 = vmul.f32 %v9140, %v9559
    %v9909 = vmul.f32 %v9141, %v9564
    %v9910 = vmul.f32 %v9142, %v9569
    %v9911 = vmul.f32 %v9143, %v9574
    %v9912 = vmul.f32 %v9144, %v9579
    %v9913 = vmul.f32 %v9145, %v9584
    %v9914 = vmul.f32 %v9146, %v9589
    %v9915 = vmul.f32 %v9147, %v9594
    %v9916 = vmul.f32 %v9148, %v9599
    %v9917 = vmul.f32 %v9149, %v9604
    %v9918 = vmul.f32 %v9150, %v9609
    %v9919 = vmul.f32 %v9151, %v9614
    %v9920 = vmul.f32 %v9152, %v9619
    %v9921 = vmul.f32 %v9153, %v9624
    %v9922 = vmul.f32 %v9154, %v9629
    %v9923 = vmul.f32 %v9155, %v9634
    %v9924 = vmul.f32 %v9156, %v9639
    %v9925 = vmul.f32 %v9157, %v9644
    %v9926 = vmul.f32 %v9158, %v9649
    %v9927 = vmul.f32 %v9159, %v9654
    %v9928 = vmul.f32 %v9160, %v9659
    %v9929 = vmul.f32 %v9161, %v9664
    %v9930 = vmul.f32 %v9162, %v9669
    %v9931 = vmul.f32 %v9163, %v9674
    %v9932 = vmul.f32 %v9164, %v9679
    %v9933 = vmul.f32 %v9165, %v9684
    %v9934 = vmul.f32 %v9166, %v9689
    %v9935 = vmul.f32 %v9167, %v9694
    %v9936 = vmul.f32 %v9168, %v9699
    %v9937 = vmul.f32 %v9169, %v9704
    %v9938 = vmul.f32 %v9170, %v9709
    %v9939 = vmul.f32 %v9171, %v9714
    %v9940 = vmul.f32 %v9172, %v9719
    %v9941 = vmul.f32 %v9173, %v9724
    %v9942 = vmul.f32 %v9174, %v9729
    %v9943 = vmul.f32 %v9175, %v9734
    %v9944 = vmul.f32 %v9176, %v9739
    %v9945 = vmul.f32 %v9177, %v9744
    %v9946 = vmul.f32 %v9178, %v9749
    %v9947 = vmul.f32 %v9179, %v9754
    %v9948 = vmul.f32 %v9180, %v9759
    %v9949 = vmul.f32 %v9181, %v9764
    %v9950 = vmul.f32 %v9182, %v9769
    %v9951 = vmul.f32 %v9183, %v9774
    %v9952 = vmul.f32 %v9184, %v9779
    %v9953 = vmul.f32 %v9185, %v9784
    %v9954 = vmul.f32 %v9186, %v9789
    %v9955 = vmul.f32 %v9187, %v9794
    %v9956 = vmul.f32 %v9188, %v9799
    %v9957 = vmul.f32 %v9189, %v9804
    %v9958 = vmul.f32 %v9190, %v9809
    %v9959 = vmul.f32 %v9191, %v9814
    %v9960 = vmul.f32 %v9192, %v9819
    %v9961 = vmul.f32 %v9193, %v9824
    %v9962 = vmul.f32 %v9194, %v9829
    %v9963 = vmul.f32 %v9195, %v9834
    %v9964 = vmul.f32 %v9196, %v9839
    %v9965 = vmul.f32 %v9197, %v9844
    %v9966 = vmul.f32 %v9198, %v9849
    %v9967 = vmul.f32 %v9199, %v9854
    %v9968 = vmul.f32 %v9200, %v9859
    %v9969 = vmul.f32 %v9201, %v9864
    %v9970 = vmul.f32 %v9202, %v9869
    %v9971 = vmul.f32 %v9203, %v9874
    %v9972 = vadd.f32 %v9876, %v9877
    %v9973 = vadd.f32 %v9972, %v9878
    %v9974 = vadd.f32 %v9973, %v9879
    %v9975 = vadd.f32 %v9974, %v9880
    %v9976 = vadd.f32 %v9975, %v9881
    %v9977 = vadd.f32 %v9976, %v9882
    %v9978 = vadd.f32 %v9977, %v9883
    %v9979 = vadd.f32 %v9978, %v9884
    %v9980 = vadd.f32 %v9979, %v9885
    %v9981 = vadd.f32 %v9980, %v9886
    %v9982 = vadd.f32 %v9981, %v9887
    %v9983 = vadd.f32 %v9982, %v9888
    %v9984 = vadd.f32 %v9983, %v9889
    %v9985 = vadd.f32 %v9984, %v9890
    %v9986 = vadd.f32 %v9985, %v9891
    %v9987 = vadd.f32 %v9986, %v9892
    %v9988 = vadd.f32 %v9987, %v9893
    %v9989 = vadd.f32 %v9988, %v9894
    %v9990 = vadd.f32 %v9989, %v9895
    %v9991 = vadd.f32 %v9990, %v9896
    %v9992 = vadd.f32 %v9991, %v9897
    %v9993 = vadd.f32 %v9992, %v9898
    %v9994 = vadd.f32 %v9993, %v9899
    %v9995 = vadd.f32 %v9994, %v9900
    %v9996 = vadd.f32 %v9995, %v9901
    %v9997 = vadd.f32 %v9996, %v9902
    %v9998 = vadd.f32 %v9997, %v9903
    %v9999 = vadd.f32 %v9998, %v9904
    %v10000 = vadd.f32 %v9999, %v9905
    %v10001 = vadd.f32 %v10000, %v9906
    %v10002 = vadd.f32 %v10001, %v9907
    %v10003 = vadd.f32 %v10002, %v9908
    %v10004 = vadd.f32 %v10003, %v9909
    %v10005 = vadd.f32 %v10004, %v9910
    %v10006 = vadd.f32 %v10005, %v9911
    %v10007 = vadd.f32 %v10006, %v9912
    %v10008 = vadd.f32 %v10007, %v9913
    %v10009 = vadd.f32 %v10008, %v9914
    %v10010 = vadd.f32 %v10009, %v9915
    %v10011 = vadd.f32 %v10010, %v9916
    %v10012 = vadd.f32 %v10011, %v9917
    %v10013 = vadd.f32 %v10012, %v9918
    %v10014 = vadd.f32 %v10013, %v9919
    %v10015 = vadd.f32 %v10014, %v9920
    %v10016 = vadd.f32 %v10015, %v9921
    %v10017 = vadd.f32 %v10016, %v9922
    %v10018 = vadd.f32 %v10017, %v9923
    %v10019 = vadd.f32 %v10018, %v9924
    %v10020 = vadd.f32 %v10019, %v9925
    %v10021 = vadd.f32 %v10020, %v9926
    %v10022 = vadd.f32 %v10021, %v9927
    %v10023 = vadd.f32 %v10022, %v9928
    %v10024 = vadd.f32 %v10023, %v9929
    %v10025 = vadd.f32 %v10024, %v9930
    %v10026 = vadd.f32 %v10025, %v9931
    %v10027 = vadd.f32 %v10026, %v9932
    %v10028 = vadd.f32 %v10027, %v9933
    %v10029 = vadd.f32 %v10028, %v9934
    %v10030 = vadd.f32 %v10029, %v9935
    %v10031 = vadd.f32 %v10030, %v9936
    %v10032 = vadd.f32 %v10031, %v9937
    %v10033 = vadd.f32 %v10032, %v9938
    %v10034 = vadd.f32 %v10033, %v9939
    %v10035 = vadd.f32 %v10034, %v9940
    %v10036 = vadd.f32 %v10035, %v9941
    %v10037 = vadd.f32 %v10036, %v9942
    %v10038 = vadd.f32 %v10037, %v9943
    %v10039 = vadd.f32 %v10038, %v9944
    %v10040 = vadd.f32 %v10039, %v9945
    %v10041 = vadd.f32 %v10040, %v9946
    %v10042 = vadd.f32 %v10041, %v9947
    %v10043 = vadd.f32 %v10042, %v9948
    %v10044 = vadd.f32 %v10043, %v9949
    %v10045 = vadd.f32 %v10044, %v9950
    %v10046 = vadd.f32 %v10045, %v9951
    %v10047 = vadd.f32 %v10046, %v9952
    %v10048 = vadd.f32 %v10047, %v9953
    %v10049 = vadd.f32 %v10048, %v9954
    %v10050 = vadd.f32 %v10049, %v9955
    %v10051 = vadd.f32 %v10050, %v9956
    %v10052 = vadd.f32 %v10051, %v9957
    %v10053 = vadd.f32 %v10052, %v9958
    %v10054 = vadd.f32 %v10053, %v9959
    %v10055 = vadd.f32 %v10054, %v9960
    %v10056 = vadd.f32 %v10055, %v9961
    %v10057 = vadd.f32 %v10056, %v9962
    %v10058 = vadd.f32 %v10057, %v9963
    %v10059 = vadd.f32 %v10058, %v9964
    %v10060 = vadd.f32 %v10059, %v9965
    %v10061 = vadd.f32 %v10060, %v9966
    %v10062 = vadd.f32 %v10061, %v9967
    %v10063 = vadd.f32 %v10062, %v9968
    %v10064 = vadd.f32 %v10063, %v9969
    %v10065 = vadd.f32 %v10064, %v9970
    %v10066 = vadd.f32 %v10065, %v9971
    %v10067 = vrot.slane %v10066, 4
    %v10068 = vadd.f32 %v10066, %v10067
    %v10069 = vrot.slane %v10068, 2
    %v10070 = vadd.f32 %v10068, %v10069
    %v10071 = vrot.slane %v10070, 1
    %v10072 = vadd.f32 %v10070, %v10071
    %10073 = vst [vmem:[%s4] sm:$0x1] %v10072
    %v10074 = vmul.f32 %v9876, %v9108
    %v10075 = vmul.f32 %v9877, %v9109
    %v10076 = vmul.f32 %v9878, %v9110
    %v10077 = vmul.f32 %v9879, %v9111
    %v10078 = vmul.f32 %v9880, %v9112
    %v10079 = vmul.f32 %v9881, %v9113
    %v10080 = vmul.f32 %v9882, %v9114
    %v10081 = vmul.f32 %v9883, %v9115
    %v10082 = vmul.f32 %v9884, %v9116
    %v10083 = vmul.f32 %v9885, %v9117
    %v10084 = vmul.f32 %v9886, %v9118
    %v10085 = vmul.f32 %v9887, %v9119
    %v10086 = vmul.f32 %v9888, %v9120
    %v10087 = vmul.f32 %v9889, %v9121
    %v10088 = vmul.f32 %v9890, %v9122
    %v10089 = vmul.f32 %v9891, %v9123
    %v10090 = vmul.f32 %v9892, %v9124
    %v10091 = vmul.f32 %v9893, %v9125
    %v10092 = vmul.f32 %v9894, %v9126
    %v10093 = vmul.f32 %v9895, %v9127
    %v10094 = vmul.f32 %v9896, %v9128
    %v10095 = vmul.f32 %v9897, %v9129
    %v10096 = vmul.f32 %v9898, %v9130
    %v10097 = vmul.f32 %v9899, %v9131
    %v10098 = vmul.f32 %v9900, %v9132
    %v10099 = vmul.f32 %v9901, %v9133
    %v10100 = vmul.f32 %v9902, %v9134
    %v10101 = vmul.f32 %v9903, %v9135
    %v10102 = vmul.f32 %v9904, %v9136
    %v10103 = vmul.f32 %v9905, %v9137
    %v10104 = vmul.f32 %v9906, %v9138
    %v10105 = vmul.f32 %v9907, %v9139
    %v10106 = vmul.f32 %v9908, %v9140
    %v10107 = vmul.f32 %v9909, %v9141
    %v10108 = vmul.f32 %v9910, %v9142
    %v10109 = vmul.f32 %v9911, %v9143
    %v10110 = vmul.f32 %v9912, %v9144
    %v10111 = vmul.f32 %v9913, %v9145
    %v10112 = vmul.f32 %v9914, %v9146
    %v10113 = vmul.f32 %v9915, %v9147
    %v10114 = vmul.f32 %v9916, %v9148
    %v10115 = vmul.f32 %v9917, %v9149
    %v10116 = vmul.f32 %v9918, %v9150
    %v10117 = vmul.f32 %v9919, %v9151
    %v10118 = vmul.f32 %v9920, %v9152
    %v10119 = vmul.f32 %v9921, %v9153
    %v10120 = vmul.f32 %v9922, %v9154
    %v10121 = vmul.f32 %v9923, %v9155
    %v10122 = vmul.f32 %v9924, %v9156
    %v10123 = vmul.f32 %v9925, %v9157
    %v10124 = vmul.f32 %v9926, %v9158
    %v10125 = vmul.f32 %v9927, %v9159
    %v10126 = vmul.f32 %v9928, %v9160
    %v10127 = vmul.f32 %v9929, %v9161
    %v10128 = vmul.f32 %v9930, %v9162
    %v10129 = vmul.f32 %v9931, %v9163
    %v10130 = vmul.f32 %v9932, %v9164
    %v10131 = vmul.f32 %v9933, %v9165
    %v10132 = vmul.f32 %v9934, %v9166
    %v10133 = vmul.f32 %v9935, %v9167
    %v10134 = vmul.f32 %v9936, %v9168
    %v10135 = vmul.f32 %v9937, %v9169
    %v10136 = vmul.f32 %v9938, %v9170
    %v10137 = vmul.f32 %v9939, %v9171
    %v10138 = vmul.f32 %v9940, %v9172
    %v10139 = vmul.f32 %v9941, %v9173
    %v10140 = vmul.f32 %v9942, %v9174
    %v10141 = vmul.f32 %v9943, %v9175
    %v10142 = vmul.f32 %v9944, %v9176
    %v10143 = vmul.f32 %v9945, %v9177
    %v10144 = vmul.f32 %v9946, %v9178
    %v10145 = vmul.f32 %v9947, %v9179
    %v10146 = vmul.f32 %v9948, %v9180
    %v10147 = vmul.f32 %v9949, %v9181
    %v10148 = vmul.f32 %v9950, %v9182
    %v10149 = vmul.f32 %v9951, %v9183
    %v10150 = vmul.f32 %v9952, %v9184
    %v10151 = vmul.f32 %v9953, %v9185
    %v10152 = vmul.f32 %v9954, %v9186
    %v10153 = vmul.f32 %v9955, %v9187
    %v10154 = vmul.f32 %v9956, %v9188
    %v10155 = vmul.f32 %v9957, %v9189
    %v10156 = vmul.f32 %v9958, %v9190
    %v10157 = vmul.f32 %v9959, %v9191
    %v10158 = vmul.f32 %v9960, %v9192
    %v10159 = vmul.f32 %v9961, %v9193
    %v10160 = vmul.f32 %v9962, %v9194
    %v10161 = vmul.f32 %v9963, %v9195
    %v10162 = vmul.f32 %v9964, %v9196
    %v10163 = vmul.f32 %v9965, %v9197
    %v10164 = vmul.f32 %v9966, %v9198
    %v10165 = vmul.f32 %v9967, %v9199
    %v10166 = vmul.f32 %v9968, %v9200
    %v10167 = vmul.f32 %v9969, %v9201
    %v10168 = vmul.f32 %v9970, %v9202
    %v10169 = vmul.f32 %v9971, %v9203
    %v10170 = vadd.f32 %v10074, %v10075
    %v10171 = vadd.f32 %v10170, %v10076
    %v10172 = vadd.f32 %v10171, %v10077
    %v10173 = vadd.f32 %v10172, %v10078
    %v10174 = vadd.f32 %v10173, %v10079
    %v10175 = vadd.f32 %v10174, %v10080
    %v10176 = vadd.f32 %v10175, %v10081
    %v10177 = vadd.f32 %v10176, %v10082
    %v10178 = vadd.f32 %v10177, %v10083
    %v10179 = vadd.f32 %v10178, %v10084
    %v10180 = vadd.f32 %v10179, %v10085
    %v10181 = vadd.f32 %v10180, %v10086
    %v10182 = vadd.f32 %v10181, %v10087
    %v10183 = vadd.f32 %v10182, %v10088
    %v10184 = vadd.f32 %v10183, %v10089
    %v10185 = vadd.f32 %v10184, %v10090
    %v10186 = vadd.f32 %v10185, %v10091
    %v10187 = vadd.f32 %v10186, %v10092
    %v10188 = vadd.f32 %v10187, %v10093
    %v10189 = vadd.f32 %v10188, %v10094
    %v10190 = vadd.f32 %v10189, %v10095
    %v10191 = vadd.f32 %v10190, %v10096
    %v10192 = vadd.f32 %v10191, %v10097
    %v10193 = vadd.f32 %v10192, %v10098
    %v10194 = vadd.f32 %v10193, %v10099
    %v10195 = vadd.f32 %v10194, %v10100
    %v10196 = vadd.f32 %v10195, %v10101
    %v10197 = vadd.f32 %v10196, %v10102
    %v10198 = vadd.f32 %v10197, %v10103
    %v10199 = vadd.f32 %v10198, %v10104
    %v10200 = vadd.f32 %v10199, %v10105
    %v10201 = vadd.f32 %v10200, %v10106
    %v10202 = vadd.f32 %v10201, %v10107
    %v10203 = vadd.f32 %v10202, %v10108
    %v10204 = vadd.f32 %v10203, %v10109
    %v10205 = vadd.f32 %v10204, %v10110
    %v10206 = vadd.f32 %v10205, %v10111
    %v10207 = vadd.f32 %v10206, %v10112
    %v10208 = vadd.f32 %v10207, %v10113
    %v10209 = vadd.f32 %v10208, %v10114
    %v10210 = vadd.f32 %v10209, %v10115
    %v10211 = vadd.f32 %v10210, %v10116
    %v10212 = vadd.f32 %v10211, %v10117
    %v10213 = vadd.f32 %v10212, %v10118
    %v10214 = vadd.f32 %v10213, %v10119
    %v10215 = vadd.f32 %v10214, %v10120
    %v10216 = vadd.f32 %v10215, %v10121
    %v10217 = vadd.f32 %v10216, %v10122
    %v10218 = vadd.f32 %v10217, %v10123
    %v10219 = vadd.f32 %v10218, %v10124
    %v10220 = vadd.f32 %v10219, %v10125
    %v10221 = vadd.f32 %v10220, %v10126
    %v10222 = vadd.f32 %v10221, %v10127
    %v10223 = vadd.f32 %v10222, %v10128
    %v10224 = vadd.f32 %v10223, %v10129
    %v10225 = vadd.f32 %v10224, %v10130
    %v10226 = vadd.f32 %v10225, %v10131
    %v10227 = vadd.f32 %v10226, %v10132
    %v10228 = vadd.f32 %v10227, %v10133
    %v10229 = vadd.f32 %v10228, %v10134
    %v10230 = vadd.f32 %v10229, %v10135
    %v10231 = vadd.f32 %v10230, %v10136
    %v10232 = vadd.f32 %v10231, %v10137
    %v10233 = vadd.f32 %v10232, %v10138
    %v10234 = vadd.f32 %v10233, %v10139
    %v10235 = vadd.f32 %v10234, %v10140
    %v10236 = vadd.f32 %v10235, %v10141
    %v10237 = vadd.f32 %v10236, %v10142
    %v10238 = vadd.f32 %v10237, %v10143
    %v10239 = vadd.f32 %v10238, %v10144
    %v10240 = vadd.f32 %v10239, %v10145
    %v10241 = vadd.f32 %v10240, %v10146
    %v10242 = vadd.f32 %v10241, %v10147
    %v10243 = vadd.f32 %v10242, %v10148
    %v10244 = vadd.f32 %v10243, %v10149
    %v10245 = vadd.f32 %v10244, %v10150
    %v10246 = vadd.f32 %v10245, %v10151
    %v10247 = vadd.f32 %v10246, %v10152
    %v10248 = vadd.f32 %v10247, %v10153
    %v10249 = vadd.f32 %v10248, %v10154
    %v10250 = vadd.f32 %v10249, %v10155
    %v10251 = vadd.f32 %v10250, %v10156
    %v10252 = vadd.f32 %v10251, %v10157
    %v10253 = vadd.f32 %v10252, %v10158
    %v10254 = vadd.f32 %v10253, %v10159
    %v10255 = vadd.f32 %v10254, %v10160
    %v10256 = vadd.f32 %v10255, %v10161
    %v10257 = vadd.f32 %v10256, %v10162
    %v10258 = vadd.f32 %v10257, %v10163
    %v10259 = vadd.f32 %v10258, %v10164
    %v10260 = vadd.f32 %v10259, %v10165
    %v10261 = vadd.f32 %v10260, %v10166
    %v10262 = vadd.f32 %v10261, %v10167
    %v10263 = vadd.f32 %v10262, %v10168
    %v10264 = vadd.f32 %v10263, %v10169
    %v10265 = vrot.slane %v10264, 4
    %v10266 = vadd.f32 %v10264, %v10265
    %v10267 = vrot.slane %v10266, 2
    %v10268 = vadd.f32 %v10266, %v10267
    %v10269 = vrot.slane %v10268, 1
    %v10270 = vadd.f32 %v10268, %v10269
    %10271 = vst [vmem:[%s5] sm:$0x1] %v10270
  $region25: #{conv2d_batchnorm.2} parent=0 // pred_fallthru
    _
  // Predicated region
  $region26: #{conv2d_batchnorm.2} parent=0 // pred_check
    _
  $region27: #{conv2d_batchnorm.2} parent=0 // pred_check_branch
    %10273 = sbr.rel (0) target = $region29
  $region28: #{conv2d_batchnorm.2} parent=0 // pred_region
    _
  $region29: #{conv2d_batchnorm.2} parent=0 // pred_fallthru
    _
  // Predicated region
  $region30: #{conv2d_batchnorm.2} parent=0 // pred_check
    _
  $region31: #{conv2d_batchnorm.2} parent=0 // pred_check_branch
    %10275 = sbr.rel (0) target = $region33
  $region32: #{conv2d_batchnorm.2} parent=0 // pred_region
    _
  $region33: #{conv2d_batchnorm.2} parent=0 // pred_fallthru
    _
  // Predicated region
  $region34: #{conv2d_batchnorm.2} parent=0 // pred_check
    _
  $region35: #{conv2d_batchnorm.2} parent=0 // pred_check_branch
    %10277 = sbr.rel (0) target = $region37
  $region36: #{conv2d_batchnorm.2} parent=0 // pred_region
    _
  $region37: #{conv2d_batchnorm.2} parent=0 // pred_fallthru
    _
  // Predicated region
  $region38: #{conv2d_batchnorm.2} parent=0 // pred_check
    _
  $region39: #{conv2d_batchnorm.2} parent=0 // pred_check_branch
    %10279 = sbr.rel (0) target = $region41
  $region40: #{conv2d_batchnorm.2} parent=0 // pred_region
    _
  $region41: #{conv2d_batchnorm.2} parent=0 // pred_fallthru
    _
  // Predicated region
  $region42: #{conv2d_batchnorm.2} parent=0 // pred_check
    _
  $region43: #{conv2d_batchnorm.2} parent=0 // pred_check_branch
    %10281 = sbr.rel (0) target = $region45
  $region44: #{conv2d_batchnorm.2} parent=0 // pred_region
    _
  $region45: #{conv2d_batchnorm.2} parent=0 // pred_fallthru
    _
  // Predicated region
  $region46: #{conv2d_batchnorm.2} parent=0 // pred_check
    _
  $region47: #{conv2d_batchnorm.2} parent=0 // pred_check_branch
    %10283 = sbr.rel (0) target = $region49
  $region48: #{conv2d_batchnorm.2} parent=0 // pred_region
    _
  $region49: #{conv2d_batchnorm.2} parent=0 // pred_fallthru
    _

</llo_original>
